<compile_context>
chip_gen: v6e
topology: v6e:2x2x1
jax: 0.10.0
libtpu: 0.0.40
codegen_flags: <defaults>
</compile_context>

<pallas_src>
import numpy as np

import jax
import jax.numpy as jnp
from jax.experimental import pallas as pl
from jax.experimental.pallas import tpu as pltpu


LANE_PAD = 256      # non-LN stage widths -> full 256-wide MXU passes on v6e/v7x
SUBLANE_PAD = 16    # bf16 LHS rows -> full sublane-packed vregs


def _round_up(x, m):
    return ((x + m - 1) // m) * m


# ----------------------- init-time operator folding ------------------------ #

def _conv_flat_operator(w_oihw, stride, pad, in_hw):
    """Flat linear operator of PyTorch Conv2d (no bias), C-major flattening.

    Returns (M, out_chw) with out = x_flat @ M, x_flat indexed (ci, y, x)."""
    cout, cin, kh, kw = w_oihw.shape
    H, W = in_hw
    n_in = cin * H * W
    basis = jnp.eye(n_in, dtype=jnp.float32).reshape(n_in, cin, H, W)
    y = jax.lax.conv_general_dilated(
        basis, w_oihw.astype(jnp.float32),
        window_strides=(stride, stride),
        padding=[(pad, pad), (pad, pad)],
        dimension_numbers=("NCHW", "OIHW", "NCHW"))
    out_chw = tuple(int(d) for d in y.shape[1:])
    return y.reshape(n_in, -1), out_chw


def _conv_transpose_flat_operator(w_iohw, stride, pad, in_hw):
    """Flat operator of PyTorch ConvTranspose2d (no bias), w: (Cin, Cout, k, k).

    ConvTranspose2d is the adjoint of Conv2d with the same weight tensor, so its
    flat operator is the transpose of that conv's operator."""
    cin, cout, kh, kw = w_iohw.shape
    Hin, Win = in_hw
    Hout = (Hin - 1) * stride - 2 * pad + kh
    Wout = (Win - 1) * stride - 2 * pad + kw
    m_conv, out_chw = _conv_flat_operator(w_iohw, stride, pad, (Hout, Wout))
    assert out_chw == (cin, Hin, Win), (out_chw, (cin, Hin, Win))
    return m_conv.T, (cout, Hout, Wout)


def _block_diag(a, b):
    za = jnp.zeros((a.shape[0], b.shape[1]), a.dtype)
    zb = jnp.zeros((b.shape[0], a.shape[1]), b.dtype)
    return jnp.concatenate(
        [jnp.concatenate([a, za], axis=1), jnp.concatenate([zb, b], axis=1)], axis=0)


def compile_qmap(params, observation_space, conv_params, hidden_params, deconv_params):
    """Fold the whole qmap forward into a chain of matmul(+bias)(+LN)(+ReLU) stages."""
    del hidden_params  # structure already carried by params["fc"]
    sx, sy, sz = observation_space
    H, W, C = sx, sy, sz
    stages = []

    # ---- conv encoder (ReLU fused) ----
    for (wt, bias), (_, k, s, p) in zip(params["conv"], conv_params):
        op, (co, Ho, Wo) = _conv_flat_operator(wt, s, p, (H, W))
        stages.append(dict(w=op, b=jnp.repeat(bias, Ho * Wo), ln=None, relu=True))
        H, W, C = Ho, Wo, co

    # fold the x/255 input scaling into the first stage's weights (bias untouched)
    stages[0]["w"] = stages[0]["w"] * (1.0 / 255.0)

    # ---- FC bottleneck (LayerNorm + ReLU fused into each matmul epilogue) ----
    assert params["fc"][0][0].shape[0] == C * H * W
    assert params["fc"][-1][0].shape[1] == C * H * W
    for (wf, bf, g, be) in params["fc"]:
        stages.append(dict(w=wf, b=bf, ln=(g, be), relu=True))

    # ---- twin transposed-conv decoder heads (fused) ----
    n_dec = len(deconv_params)
    a_hw = (H, W)
    s_hw = (H, W)
    for i in range(n_dec - 1):
        _, k, s, p = deconv_params[i]
        wa, ba = params["deconv_action"][i]
        ws, bs = params["deconv_state"][i]
        op_a, (_, ah, aw) = _conv_transpose_flat_operator(wa, s, p, a_hw)
        op_s, (_, sh, sw) = _conv_transpose_flat_operator(ws, s, p, s_hw)
        bias = jnp.concatenate([jnp.repeat(ba, ah * aw), jnp.repeat(bs, sh * sw)])
        if i == 0:
            w_stage = jnp.concatenate([op_a, op_s], axis=1)  # heads share the same input
        else:
            w_stage = _block_diag(op_a, op_s)
        stages.append(dict(w=w_stage, b=bias, ln=None, relu=True))
        a_hw, s_hw = (ah, aw), (sh, sw)

    # ---- last stage: ZeroPad2d((0,1,0,1)) + last deconv of both heads
    #      + dueling combine (state + action - mean_c(action)), one operator ----
    _, k, s, p = deconv_params[-1]
    wa, ba = params["deconv_action"][-1]
    ws, bs = params["deconv_state"][-1]
    ca_in, cs_in = wa.shape[0], ws.shape[0]
    (ah, aw), (sh, sw) = a_hw, s_hw

    op_a, (ca_out, Ho, Wo) = _conv_transpose_flat_operator(wa, s, p, (ah + 1, aw + 1))
    op_s, (cs_out, Ho2, Wo2) = _conv_transpose_flat_operator(ws, s, p, (sh + 1, sw + 1))
    assert cs_out == 1 and (Ho2, Wo2) == (Ho, Wo)

    def _unpadded_rows(c, h, w):
        hp, wp = h + 1, w + 1
        return np.array([ci * hp * wp + y * wp + x
                         for ci in range(c) for y in range(h) for x in range(w)])

    # drop rows that correspond to the (zero) padded positions
    op_a = op_a[_unpadded_rows(ca_in, ah, aw)]
    op_s = op_s[_unpadded_rows(cs_in, sh, sw)]

    S = Ho * Wo
    op_a = op_a.reshape(-1, ca_out, S)
    op_a = (op_a - jnp.mean(op_a, axis=1, keepdims=True)).reshape(-1, ca_out * S)
    op_s = jnp.tile(op_s, (1, ca_out))             # state broadcast over action channels
    if n_dec == 1:
        w_stage = op_a + op_s                      # both heads read the encoder output
    else:
        w_stage = jnp.concatenate([op_a, op_s], axis=0)
    b_a = jnp.repeat(ba, S).reshape(ca_out, S)
    b_a = b_a - jnp.mean(b_a, axis=0, keepdims=True)
    bias = (b_a + jnp.repeat(bs, S).reshape(1, S)).reshape(ca_out * S)
    stages.append(dict(w=w_stage, b=bias, ln=None, relu=False))

    # ---- lane-padding pass: pad non-LN stage widths to LANE_PAD, never LN ----
    in_width = int(stages[0]["w"].shape[0])
    in_width_padded = _round_up(in_width, 128)
    n_out_valid = int(stages[-1]["w"].shape[1])

    padded = []
    prev_np = in_width_padded
    for st in stages:
        w, b = st["w"], st["b"]
        K, N = int(w.shape[0]), int(w.shape[1])
        if prev_np > K:     # absorb the previous stage's zero-padded lanes (they are exactly 0)
            w = jnp.concatenate([w, jnp.zeros((prev_np - K, N), w.dtype)], axis=0)
        if st["ln"] is None:
            Np = _round_up(N, LANE_PAD)
            if Np > N:      # zero weight columns + zero bias; ReLU(0)=0 keeps them inert
                w = jnp.concatenate([w, jnp.zeros((w.shape[0], Np - N), w.dtype)], axis=1)
                b = jnp.concatenate([b, jnp.zeros((Np - N,), b.dtype)])
        else:
            Np = N          # never pad LayerNorm widths: mean/var must see the true N
        padded.append(dict(w=w, b=b, ln=st["ln"], relu=st["relu"]))
        prev_np = Np

    # ---- flatten to kernel inputs: middle stages auto-VMEM, biggest (final)
    #      operator kept in HBM and DMA'd manually inside the kernel ----------
    mid_flags, mid_flat = [], []
    for st in padded[:-1]:
        mid_flags.append((st["ln"] is not None, st["relu"]))
        mid_flat.append(st["w"].astype(jnp.bfloat16))
        mid_flat.append(st["b"].reshape(1, -1).astype(jnp.float32))
        if st["ln"] is not None:
            g, be = st["ln"]
            mid_flat.append(g.reshape(1, -1).astype(jnp.float32))
            mid_flat.append(be.reshape(1, -1).astype(jnp.float32))
    last = padded[-1]
    assert last["ln"] is None and not last["relu"]
    w_last = last["w"].astype(jnp.bfloat16)
    b_last = last["b"].reshape(1, -1).astype(jnp.float32)

    flops_per_row = sum(2 * int(st["w"].shape[0]) * int(st["w"].shape[1]) for st in padded)
    n_ln = sum(1 for st in padded if st["ln"] is not None)

    return dict(mid_flags=tuple(mid_flags), mid_flat=mid_flat,
                w_last=w_last, b_last=b_last,
                out_chw=(int(ca_out), int(Ho), int(Wo)), n_out_valid=n_out_valid,
                in_width=in_width, in_width_padded=in_width_padded,
                flops_per_row=flops_per_row, n_ln=n_ln)


# ------------------------------ fused kernel -------------------------------- #

def _make_kernel(mid_flags, n_mid):
    def kernel(*refs):
        x_ref = refs[0]
        mid = refs[1:1 + n_mid]
        w_last_hbm = refs[1 + n_mid]
        b_last_ref = refs[2 + n_mid]
        out_ref = refs[3 + n_mid]
        w_last_vmem = refs[4 + n_mid]
        sem = refs[5 + n_mid]

        # Start fetching the largest folded operator (final pad+deconv+dueling
        # combine) now; its HBM->VMEM DMA overlaps all earlier stages.
        tail_cp = pltpu.make_async_copy(w_last_hbm, w_last_vmem, sem)
        tail_cp.start()

        it = iter(mid)
        h = x_ref[...]                       # bf16; 1/255 is folded into stage 0
        for has_ln, has_relu in mid_flags:
            w_ref = next(it)
            b_ref = next(it)
            h = jnp.dot(h.astype(jnp.bfloat16), w_ref[...],
                        preferred_element_type=jnp.float32) + b_ref[...]
            if has_ln:
                g_ref = next(it)
                be_ref = next(it)
                mu = jnp.mean(h, axis=-1, keepdims=True)
                var = jnp.mean(jnp.square(h - mu), axis=-1, keepdims=True)
                h = (h - mu) * jax.lax.rsqrt(var + 1e-5)
                h = h * g_ref[...] + be_ref[...]
            if has_relu:
                h = jnp.maximum(h, 0.0)

        tail_cp.wait()
        out_ref[...] = (jnp.dot(h.astype(jnp.bfloat16), w_last_vmem[...],
                                preferred_element_type=jnp.float32)
                        + b_last_ref[...]).astype(out_ref.dtype)
    return kernel


def make_forward(compiled):
    mid_flat = compiled["mid_flat"]
    n_mid = len(mid_flat)
    kernel = _make_kernel(compiled["mid_flags"], n_mid)
    w_last, b_last = compiled["w_last"], compiled["b_last"]
    c_out, Ho, Wo = compiled["out_chw"]
    n_out_valid = compiled["n_out_valid"]
    k_in = compiled["in_width"]
    k_in_p = compiled["in_width_padded"]
    n_out_p = int(w_last.shape[1])
    flops_per_row = compiled["flops_per_row"]
    n_ln = compiled["n_ln"]

    vmem_spec = pl.BlockSpec(memory_space=pltpu.MemorySpace.VMEM)
    hbm_spec = pl.BlockSpec(memory_space=pl.ANY)

    weight_bytes = sum(int(a.size) * a.dtype.itemsize for a in mid_flat)
    weight_bytes += int(w_last.size) * w_last.dtype.itemsize
    weight_bytes += int(b_last.size) * b_last.dtype.itemsize

    @jax.jit
    def forward(x_nchw):
        B = x_nchw.shape[0]
        x2d = x_nchw.reshape(B, -1).astype(jnp.bfloat16)
        assert x2d.shape[1] == k_in
        # pad batch to full bf16 sublane packs and lanes to the padded K
        Bp = _round_up(B, SUBLANE_PAD)
        xp = jnp.pad(x2d, ((0, Bp - B), (0, k_in_p - k_in)))

        cost = pl.CostEstimate(
            flops=Bp * flops_per_row,
            transcendentals=Bp * n_ln,
            bytes_accessed=weight_bytes + Bp * k_in_p * 2 + Bp * n_out_p * 4)

        out2d = pl.pallas_call(
            kernel,
            out_shape=jax.ShapeDtypeStruct((Bp, n_out_p), jnp.float32),
            in_specs=[vmem_spec] * (1 + n_mid) + [hbm_spec, vmem_spec],
            out_specs=vmem_spec,
            scratch_shapes=[pltpu.VMEM(tuple(w_last.shape), jnp.bfloat16),
                            pltpu.SemaphoreType.DMA(())],
            compiler_params=pltpu.CompilerParams(
                vmem_limit_bytes=32 * 1024 * 1024),
            cost_estimate=cost,
        )(xp, *mid_flat, w_last, b_last)

        return out2d[:B, :n_out_valid].reshape(B, c_out, Ho, Wo)

    return forward


# ------------------------------ model params -------------------------------- #

def init_params(seed, observation_space, conv_params, hidden_params, deconv_params):
    key = jax.random.PRNGKey(seed)
    keys = iter(jax.random.split(key, 64))

    def nrm(shape, fan_in):
        return jax.random.normal(next(keys), shape, jnp.float32) / jnp.sqrt(float(fan_in))

    sx, sy, sz = observation_space
    params = {}

    conv = []
    in_c = sz
    for (out_c, k, s, p) in conv_params:
        w = nrm((out_c, in_c, k, k), in_c * k * k)           # PyTorch OIHW
        b = 0.01 * jax.random.normal(next(keys), (out_c,), jnp.float32)
        conv.append((w, b))
        sx = (sx - k + 2 * p) // s + 1
        sy = (sy - k + 2 * p) // s + 1
        in_c = out_c
    params["conv"] = conv
    flat = sx * sy * conv_params[-1][0]

    fc = []
    in_f = flat
    for h in list(hidden_params) + [flat]:
        w = nrm((in_f, h), in_f)
        b = 0.01 * jax.random.normal(next(keys), (h,), jnp.float32)
        gamma = jnp.ones((h,), jnp.float32)
        beta = jnp.zeros((h,), jnp.float32)
        fc.append((w, b, gamma, beta))
        in_f = h
    params["fc"] = fc

    deconv_action, deconv_state = [], []
    in_c = conv_params[-1][0]
    n = len(deconv_params)
    for i, (out_c, k, s, p) in enumerate(deconv_params):
        wa = nrm((in_c, out_c, k, k), in_c * k * k)          # ConvTranspose2d (I,O,k,k)
        ba = 0.01 * jax.random.normal(next(keys), (out_c,), jnp.float32)
        deconv_action.append((wa, ba))
        out_s = 1 if i == n - 1 else out_c
        ws = nrm((in_c, out_s, k, k), in_c * k * k)
        bs = 0.01 * jax.random.normal(next(keys), (out_s,), jnp.float32)
        deconv_state.append((ws, bs))
        in_c = out_c
    params["deconv_action"] = deconv_action
    params["deconv_state"] = deconv_state
    return params


# --------------------- plain-JAX reference (for checking) ------------------- #

def reference_forward(params, conv_params, deconv_params, x_nchw):
    x = x_nchw.astype(jnp.float32) / 255.0
    for (w, b), (_, k, s, p) in zip(params["conv"], conv_params):
        x = jax.lax.conv_general_dilated(
            x, w, (s, s), [(p, p), (p, p)],
            dimension_numbers=("NCHW", "OIHW", "NCHW"))
        x = jnp.maximum(x + b[None, :, None, None], 0.0)
    enc_shape = x.shape
    h = x.reshape(x.shape[0], -1)
    for (wf, bf, g, be) in params["fc"]:
        h = h @ wf + bf
        mu = h.mean(-1, keepdims=True)
        var = ((h - mu) ** 2).mean(-1, keepdims=True)
        h = (h - mu) / jnp.sqrt(var + 1e-5) * g + be
        h = jnp.maximum(h, 0.0)
    x = h.reshape(enc_shape)

    def deconv(z, w, b, s, p):
        cin, cout, kh, kw = w.shape
        w_conv = jnp.flip(w, (2, 3)).transpose(1, 0, 2, 3)   # (Cout, Cin, kh, kw)
        y = jax.lax.conv_general_dilated(
            z, w_conv, window_strides=(1, 1),
            padding=[(kh - 1 - p, kh - 1 - p), (kw - 1 - p, kw - 1 - p)],
            lhs_dilation=(s, s),
            dimension_numbers=("NCHW", "OIHW", "NCHW"))
        return y + b[None, :, None, None]

    m1 = m2 = x
    for i in range(len(deconv_params) - 1):
        _, k, s, p = deconv_params[i]
        wa, ba = params["deconv_action"][i]
        ws, bs = params["deconv_state"][i]
        m1 = jnp.maximum(deconv(m1, wa, ba, s, p), 0.0)
        m2 = jnp.maximum(deconv(m2, ws, bs, s, p), 0.0)
    m1 = jnp.pad(m1, ((0, 0), (0, 0), (0, 1), (0, 1)))
    m2 = jnp.pad(m2, ((0, 0), (0, 0), (0, 1), (0, 1)))
    _, k, s, p = deconv_params[-1]
    wa, ba = params["deconv_action"][-1]
    ws, bs = params["deconv_state"][-1]
    action = deconv(m1, wa, ba, s, p)
    state = deconv(m2, ws, bs, s, p)
    return state + action - action.mean(axis=1, keepdims=True)


# ---------------------------------- main ------------------------------------ #

if __name__ == "__main__":
    observation_space = (16, 16, 4)                 # (size_x, size_y, size_z)
    conv_params = [(8, 3, 2, 1), (16, 3, 2, 1)]     # (out_c, k, stride, pad)
    hidden_params = [32]
    deconv_params = [(8, 3, 2, 1), (4, 3, 2, 1)]    # last action head 4 ch, state head 1 ch

    params = init_params(0, observation_space, conv_params, hidden_params, deconv_params)
    compiled = compile_qmap(params, observation_space, conv_params, hidden_params,
                            deconv_params)
    forward = make_forward(compiled)

    key = jax.random.PRNGKey(0)
    x = jax.random.uniform(key, (2, 4, 16, 16), jnp.float32, 0.0, 255.0)  # NCHW

    out = forward(x)
    out = jax.block_until_ready(out)

    assert out.shape == (2, 4, 15, 15), out.shape
    assert bool(jnp.all(jnp.isfinite(out)))

    # cross-check the fused bf16 Pallas pipeline against an f32 op-by-op reference
    ref = reference_forward(params, conv_params, deconv_params, x)
    err = float(jnp.max(jnp.abs(out - ref)))
    scale = float(jnp.max(jnp.abs(ref)))
    assert err <= 5e-2 * max(1.0, scale), (err, scale)

    print("KERNEL_OK")
</pallas_src>

<mosaic_0001>
module attributes {stable_mosaic.version = 11 : i64} {
  func.func @kernel(%arg0: memref<16x1024xbf16, #tpu.memory_space<vmem>>, %arg1: memref<1024x512xbf16, #tpu.memory_space<vmem>>, %arg2: memref<1x512xf32, #tpu.memory_space<vmem>>, %arg3: memref<512x256xbf16, #tpu.memory_space<vmem>>, %arg4: memref<1x256xf32, #tpu.memory_space<vmem>>, %arg5: memref<256x32xbf16, #tpu.memory_space<vmem>>, %arg6: memref<1x32xf32, #tpu.memory_space<vmem>>, %arg7: memref<1x32xf32, #tpu.memory_space<vmem>>, %arg8: memref<1x32xf32, #tpu.memory_space<vmem>>, %arg9: memref<32x256xbf16, #tpu.memory_space<vmem>>, %arg10: memref<1x256xf32, #tpu.memory_space<vmem>>, %arg11: memref<1x256xf32, #tpu.memory_space<vmem>>, %arg12: memref<1x256xf32, #tpu.memory_space<vmem>>, %arg13: memref<256x1024xbf16, #tpu.memory_space<vmem>>, %arg14: memref<1x1024xf32, #tpu.memory_space<vmem>>, %arg15: memref<1024x1024xbf16, #tpu.memory_space<any>>, %arg16: memref<1x1024xf32, #tpu.memory_space<vmem>>, %arg17: memref<16x1024xf32, #tpu.memory_space<vmem>>, %arg18: memref<1024x1024xbf16, #tpu.memory_space<vmem>>, %arg19: memref<!tpu.dma_semaphore, #tpu.memory_space<semaphore_mem>>) attributes {dimension_semantics = [], scalar_prefetch = 0 : i64, scratch_operands = 2 : i64, tpu.core_type = #tpu.core_type<tc>} {
    tpu.enqueue_dma source(%arg15 : memref<1024x1024xbf16, #tpu.memory_space<any>>) target(%arg18 : memref<1024x1024xbf16, #tpu.memory_space<vmem>>) target_semaphore(%arg19 : memref<!tpu.dma_semaphore, #tpu.memory_space<semaphore_mem>>)
    %c0 = arith.constant 0 : index
    %c0_0 = arith.constant 0 : index
    %0 = vector.load %arg0[%c0, %c0_0] : memref<16x1024xbf16, #tpu.memory_space<vmem>>, vector<16x1024xbf16>
    %c0_1 = arith.constant 0 : index
    %c0_2 = arith.constant 0 : index
    %1 = vector.load %arg1[%c0_1, %c0_2] : memref<1024x512xbf16, #tpu.memory_space<vmem>>, vector<1024x512xbf16>
    %cst = arith.constant dense<0.000000e+00> : vector<16x512xf32>
    %2 = tpu.matmul %0, %1, %cst {dimension_numbers = #tpu.dot_dimension_numbers<[1], [0], [0], [1], [0, 0, 1, 1], [], []>} : vector<16x1024xbf16>, vector<1024x512xbf16>, vector<16x512xf32> -> vector<16x512xf32>
    %c0_3 = arith.constant 0 : index
    %c0_4 = arith.constant 0 : index
    %3 = vector.load %arg2[%c0_3, %c0_4] : memref<1x512xf32, #tpu.memory_space<vmem>>, vector<1x512xf32>
    %4 = vector.broadcast %3 : vector<1x512xf32> to vector<16x512xf32>
    %5 = arith.addf %2, %4 : vector<16x512xf32>
    %cst_5 = arith.constant 0.000000e+00 : f32
    %6 = vector.broadcast %cst_5 : f32 to vector<16x512xf32>
    %7 = arith.maximumf %5, %6 : vector<16x512xf32>
    %8 = arith.truncf %7 : vector<16x512xf32> to vector<16x512xbf16>
    %c0_6 = arith.constant 0 : index
    %c0_7 = arith.constant 0 : index
    %9 = vector.load %arg3[%c0_6, %c0_7] : memref<512x256xbf16, #tpu.memory_space<vmem>>, vector<512x256xbf16>
    %cst_8 = arith.constant dense<0.000000e+00> : vector<16x256xf32>
    %10 = tpu.matmul %8, %9, %cst_8 {dimension_numbers = #tpu.dot_dimension_numbers<[1], [0], [0], [1], [0, 0, 1, 1], [], []>} : vector<16x512xbf16>, vector<512x256xbf16>, vector<16x256xf32> -> vector<16x256xf32>
    %c0_9 = arith.constant 0 : index
    %c0_10 = arith.constant 0 : index
    %11 = vector.load %arg4[%c0_9, %c0_10] : memref<1x256xf32, #tpu.memory_space<vmem>>, vector<1x256xf32>
    %12 = vector.broadcast %11 : vector<1x256xf32> to vector<16x256xf32>
    %13 = arith.addf %10, %12 : vector<16x256xf32>
    %cst_11 = arith.constant 0.000000e+00 : f32
    %14 = vector.broadcast %cst_11 : f32 to vector<16x256xf32>
    %15 = arith.maximumf %13, %14 : vector<16x256xf32>
    %16 = arith.truncf %15 : vector<16x256xf32> to vector<16x256xbf16>
    %c0_12 = arith.constant 0 : index
    %c0_13 = arith.constant 0 : index
    %17 = vector.load %arg5[%c0_12, %c0_13] : memref<256x32xbf16, #tpu.memory_space<vmem>>, vector<256x32xbf16>
    %cst_14 = arith.constant dense<0.000000e+00> : vector<16x32xf32>
    %18 = tpu.matmul %16, %17, %cst_14 {dimension_numbers = #tpu.dot_dimension_numbers<[1], [0], [0], [1], [0, 0, 1, 1], [], []>} : vector<16x256xbf16>, vector<256x32xbf16>, vector<16x32xf32> -> vector<16x32xf32>
    %c0_15 = arith.constant 0 : index
    %c0_16 = arith.constant 0 : index
    %19 = vector.load %arg6[%c0_15, %c0_16] : memref<1x32xf32, #tpu.memory_space<vmem>>, vector<1x32xf32>
    %20 = vector.broadcast %19 : vector<1x32xf32> to vector<16x32xf32>
    %21 = arith.addf %18, %20 : vector<16x32xf32>
    %cst_17 = arith.constant dense<0.000000e+00> : vector<16xf32>
    %22 = vector.multi_reduction <add>, %21, %cst_17 [1] : vector<16x32xf32> to vector<16xf32>
    %23 = vector.shape_cast %22 : vector<16xf32> to vector<16x1xf32>
    %cst_18 = arith.constant 3.200000e+01 : f32
    %24 = vector.broadcast %cst_18 : f32 to vector<16x1xf32>
    %25 = arith.divf %23, %24 : vector<16x1xf32>
    %26 = vector.broadcast %25 : vector<16x1xf32> to vector<16x32xf32>
    %27 = arith.subf %21, %26 : vector<16x32xf32>
    %28 = arith.mulf %27, %27 : vector<16x32xf32>
    %cst_19 = arith.constant dense<0.000000e+00> : vector<16xf32>
    %29 = vector.multi_reduction <add>, %28, %cst_19 [1] : vector<16x32xf32> to vector<16xf32>
    %30 = vector.shape_cast %29 : vector<16xf32> to vector<16x1xf32>
    %cst_20 = arith.constant 3.200000e+01 : f32
    %31 = vector.broadcast %cst_20 : f32 to vector<16x1xf32>
    %32 = arith.divf %30, %31 : vector<16x1xf32>
    %33 = vector.broadcast %25 : vector<16x1xf32> to vector<16x32xf32>
    %34 = arith.subf %21, %33 : vector<16x32xf32>
    %cst_21 = arith.constant 9.99999974E-6 : f32
    %35 = vector.broadcast %cst_21 : f32 to vector<16x1xf32>
    %36 = arith.addf %32, %35 : vector<16x1xf32>
    %37 = math.rsqrt %36 : vector<16x1xf32>
    %38 = vector.broadcast %37 : vector<16x1xf32> to vector<16x32xf32>
    %39 = arith.mulf %34, %38 : vector<16x32xf32>
    %c0_22 = arith.constant 0 : index
    %c0_23 = arith.constant 0 : index
    %40 = vector.load %arg7[%c0_22, %c0_23] : memref<1x32xf32, #tpu.memory_space<vmem>>, vector<1x32xf32>
    %41 = vector.broadcast %40 : vector<1x32xf32> to vector<16x32xf32>
    %42 = arith.mulf %39, %41 : vector<16x32xf32>
    %c0_24 = arith.constant 0 : index
    %c0_25 = arith.constant 0 : index
    %43 = vector.load %arg8[%c0_24, %c0_25] : memref<1x32xf32, #tpu.memory_space<vmem>>, vector<1x32xf32>
    %44 = vector.broadcast %43 : vector<1x32xf32> to vector<16x32xf32>
    %45 = arith.addf %42, %44 : vector<16x32xf32>
    %cst_26 = arith.constant 0.000000e+00 : f32
    %46 = vector.broadcast %cst_26 : f32 to vector<16x32xf32>
    %47 = arith.maximumf %45, %46 : vector<16x32xf32>
    %48 = arith.truncf %47 : vector<16x32xf32> to vector<16x32xbf16>
    %c0_27 = arith.constant 0 : index
    %c0_28 = arith.constant 0 : index
    %49 = vector.load %arg9[%c0_27, %c0_28] : memref<32x256xbf16, #tpu.memory_space<vmem>>, vector<32x256xbf16>
    %cst_29 = arith.constant dense<0.000000e+00> : vector<16x256xf32>
    %50 = tpu.matmul %48, %49, %cst_29 {dimension_numbers = #tpu.dot_dimension_numbers<[1], [0], [0], [1], [0, 0, 1, 1], [], []>} : vector<16x32xbf16>, vector<32x256xbf16>, vector<16x256xf32> -> vector<16x256xf32>
    %c0_30 = arith.constant 0 : index
    %c0_31 = arith.constant 0 : index
    %51 = vector.load %arg10[%c0_30, %c0_31] : memref<1x256xf32, #tpu.memory_space<vmem>>, vector<1x256xf32>
    %52 = vector.broadcast %51 : vector<1x256xf32> to vector<16x256xf32>
    %53 = arith.addf %50, %52 : vector<16x256xf32>
    %cst_32 = arith.constant dense<0.000000e+00> : vector<16xf32>
    %54 = vector.multi_reduction <add>, %53, %cst_32 [1] : vector<16x256xf32> to vector<16xf32>
    %55 = vector.shape_cast %54 : vector<16xf32> to vector<16x1xf32>
    %cst_33 = arith.constant 2.560000e+02 : f32
    %56 = vector.broadcast %cst_33 : f32 to vector<16x1xf32>
    %57 = arith.divf %55, %56 : vector<16x1xf32>
    %58 = vector.broadcast %57 : vector<16x1xf32> to vector<16x256xf32>
    %59 = arith.subf %53, %58 : vector<16x256xf32>
    %60 = arith.mulf %59, %59 : vector<16x256xf32>
    %cst_34 = arith.constant dense<0.000000e+00> : vector<16xf32>
    %61 = vector.multi_reduction <add>, %60, %cst_34 [1] : vector<16x256xf32> to vector<16xf32>
    %62 = vector.shape_cast %61 : vector<16xf32> to vector<16x1xf32>
    %cst_35 = arith.constant 2.560000e+02 : f32
    %63 = vector.broadcast %cst_35 : f32 to vector<16x1xf32>
    %64 = arith.divf %62, %63 : vector<16x1xf32>
    %65 = vector.broadcast %57 : vector<16x1xf32> to vector<16x256xf32>
    %66 = arith.subf %53, %65 : vector<16x256xf32>
    %cst_36 = arith.constant 9.99999974E-6 : f32
    %67 = vector.broadcast %cst_36 : f32 to vector<16x1xf32>
    %68 = arith.addf %64, %67 : vector<16x1xf32>
    %69 = math.rsqrt %68 : vector<16x1xf32>
    %70 = vector.broadcast %69 : vector<16x1xf32> to vector<16x256xf32>
    %71 = arith.mulf %66, %70 : vector<16x256xf32>
    %c0_37 = arith.constant 0 : index
    %c0_38 = arith.constant 0 : index
    %72 = vector.load %arg11[%c0_37, %c0_38] : memref<1x256xf32, #tpu.memory_space<vmem>>, vector<1x256xf32>
    %73 = vector.broadcast %72 : vector<1x256xf32> to vector<16x256xf32>
    %74 = arith.mulf %71, %73 : vector<16x256xf32>
    %c0_39 = arith.constant 0 : index
    %c0_40 = arith.constant 0 : index
    %75 = vector.load %arg12[%c0_39, %c0_40] : memref<1x256xf32, #tpu.memory_space<vmem>>, vector<1x256xf32>
    %76 = vector.broadcast %75 : vector<1x256xf32> to vector<16x256xf32>
    %77 = arith.addf %74, %76 : vector<16x256xf32>
    %cst_41 = arith.constant 0.000000e+00 : f32
    %78 = vector.broadcast %cst_41 : f32 to vector<16x256xf32>
    %79 = arith.maximumf %77, %78 : vector<16x256xf32>
    %80 = arith.truncf %79 : vector<16x256xf32> to vector<16x256xbf16>
    %c0_42 = arith.constant 0 : index
    %c0_43 = arith.constant 0 : index
    %81 = vector.load %arg13[%c0_42, %c0_43] : memref<256x1024xbf16, #tpu.memory_space<vmem>>, vector<256x1024xbf16>
    %cst_44 = arith.constant dense<0.000000e+00> : vector<16x1024xf32>
    %82 = tpu.matmul %80, %81, %cst_44 {dimension_numbers = #tpu.dot_dimension_numbers<[1], [0], [0], [1], [0, 0, 1, 1], [], []>} : vector<16x256xbf16>, vector<256x1024xbf16>, vector<16x1024xf32> -> vector<16x1024xf32>
    %c0_45 = arith.constant 0 : index
    %c0_46 = arith.constant 0 : index
    %83 = vector.load %arg14[%c0_45, %c0_46] : memref<1x1024xf32, #tpu.memory_space<vmem>>, vector<1x1024xf32>
    %84 = vector.broadcast %83 : vector<1x1024xf32> to vector<16x1024xf32>
    %85 = arith.addf %82, %84 : vector<16x1024xf32>
    %cst_47 = arith.constant 0.000000e+00 : f32
    %86 = vector.broadcast %cst_47 : f32 to vector<16x1024xf32>
    %87 = arith.maximumf %85, %86 : vector<16x1024xf32>
    tpu.wait_dma2 semaphore(%arg19 : memref<!tpu.dma_semaphore, #tpu.memory_space<semaphore_mem>>) src(%arg15 : memref<1024x1024xbf16, #tpu.memory_space<any>>) dst(%arg18 : memref<1024x1024xbf16, #tpu.memory_space<vmem>>)
    %88 = arith.truncf %87 : vector<16x1024xf32> to vector<16x1024xbf16>
    %c0_48 = arith.constant 0 : index
    %c0_49 = arith.constant 0 : index
    %89 = vector.load %arg18[%c0_48, %c0_49] : memref<1024x1024xbf16, #tpu.memory_space<vmem>>, vector<1024x1024xbf16>
    %cst_50 = arith.constant dense<0.000000e+00> : vector<16x1024xf32>
    %90 = tpu.matmul %88, %89, %cst_50 {dimension_numbers = #tpu.dot_dimension_numbers<[1], [0], [0], [1], [0, 0, 1, 1], [], []>} : vector<16x1024xbf16>, vector<1024x1024xbf16>, vector<16x1024xf32> -> vector<16x1024xf32>
    %c0_51 = arith.constant 0 : index
    %c0_52 = arith.constant 0 : index
    %91 = vector.load %arg16[%c0_51, %c0_52] : memref<1x1024xf32, #tpu.memory_space<vmem>>, vector<1x1024xf32>
    %92 = vector.broadcast %91 : vector<1x1024xf32> to vector<16x1024xf32>
    %93 = arith.addf %90, %92 : vector<16x1024xf32>
    %c0_53 = arith.constant 0 : index
    %c0_54 = arith.constant 0 : index
    %94 = vector.load %arg17[%c0_53, %c0_54] : memref<16x1024xf32, #tpu.memory_space<vmem>>, vector<16x1024xf32>
    tpu.vector_store %arg17[%c0_53, %c0_54], %93 {strides = array<i32>} : memref<16x1024xf32, #tpu.memory_space<vmem>>, vector<16x1024xf32>,
    return
  }
}

</mosaic_0001>

<llo_original>
// kernel: forward.1
$region0: #{forward.1}
  #allocation0 [shape = 'u32[]', space=smem, size = 0x4, offset = 0x4, fixed_abs, tag = 'smem constant byte address 0x4 - core index']
  #allocation1 [shape = 'u32[144,128]{1,0:T(1,128)}', space=vmem, size = 0x12000, scoped, tag = 'internal scratch']
  #allocation2 [shape = 'bf16[1024,1024]{1,0:T(8,128)(2,1)}', space=vmem, size = 0x200000, scoped, tag = 'scratch operand']
  #allocation3 [shape = 's32[1]{0}', space=sflag, size = 0x4, scoped, tag = 'scratch operand']
  #allocation21 [shape = 's32[]', space=sflag, size = 0x4, offset = 0, fixed_abs, tag = 'sflag constant byte address 0x0 - dummy sync flag']
  #allocation22 [shape = 's32[]', space=sflag, size = 0x4, offset = 0, fixed_abs, tag = 'sflag constant byte address 0x0 - dummy sync flag']
  #allocation23 [shape = 'u32[]', space=smem, size = 0x4, offset = 0x44, fixed_abs, tag = 'smem constant byte address 0x44 - assertion arg 0']
  #allocation24 [shape = 'u32[]', space=smem, size = 0x4, offset = 0x48, fixed_abs, tag = 'smem constant byte address 0x48 - assertion arg 1']
  %s0 = inlined_call_operand.vmem [shape: bf16[16,1024], index: 0, kind: input, shape index: {}]
  %s1 = inlined_call_operand.hbm [shape: bf16[1024,512], index: 1, kind: input, shape index: {}]
  %s2 = inlined_call_operand.hbm [shape: f32[1,512], index: 2, kind: input, shape index: {}]
  %s3 = inlined_call_operand.hbm [shape: bf16[512,256], index: 3, kind: input, shape index: {}]
  %s4 = inlined_call_operand.hbm [shape: f32[1,256], index: 4, kind: input, shape index: {}]
  %s5 = inlined_call_operand.hbm [shape: bf16[256,32], index: 5, kind: input, shape index: {}]
  %s6 = inlined_call_operand.hbm [shape: f32[1,32], index: 6, kind: input, shape index: {}]
  %s7 = inlined_call_operand.vmem [shape: f32[1,32], index: 7, kind: input, shape index: {}]
  %s8 = inlined_call_operand.vmem [shape: f32[1,32], index: 8, kind: input, shape index: {}]
  %s9 = inlined_call_operand.hbm [shape: bf16[32,256], index: 9, kind: input, shape index: {}]
  %s10 = inlined_call_operand.hbm [shape: f32[1,256], index: 10, kind: input, shape index: {}]
  %s11 = inlined_call_operand.vmem [shape: f32[1,256], index: 11, kind: input, shape index: {}]
  %s12 = inlined_call_operand.vmem [shape: f32[1,256], index: 12, kind: input, shape index: {}]
  %s13 = inlined_call_operand.hbm [shape: bf16[256,1024], index: 13, kind: input, shape index: {}]
  %s14 = inlined_call_operand.hbm [shape: f32[1,1024], index: 14, kind: input, shape index: {}]
  %s15 = inlined_call_operand.hbm [shape: bf16[1024,1024], index: 15, kind: input, shape index: {}]
  %s16 = inlined_call_operand.hbm [shape: f32[1,1024], index: 16, kind: input, shape index: {}]
  %s17 = inlined_call_operand.vmem [shape: f32[16,1024], index: 17, kind: output, shape index: {}]
  %s18 = sld [smem:[#allocation0]]
  $region122: #{forward.1} parent=0
    _
  %s20 = ssub.s32 1, %s18
  %s21 = scalar_select 0, %s20, %s18
  $region1: #{forward.1} parent=0
    #allocation4 [shape = 'u8[1048576]{0}', space=vmem, size = 0x100000, scoped, tag = 'input window, operand 1, single buffered']
    #allocation5 [shape = 's32[1]{0}', space=sflag, size = 0x4, scoped, tag = 'scoped memory for forward.1']
    #allocation6 [shape = 'u8[2048]{0}', space=vmem, size = 0x800, scoped, tag = 'input window, operand 2, single buffered']
    #allocation7 [shape = 's32[1]{0}', space=sflag, size = 0x4, scoped, tag = 'scoped memory for forward.1']
    #allocation8 [shape = 'u8[262144]{0}', space=vmem, size = 0x40000, scoped, tag = 'input window, operand 3, single buffered']
    #allocation9 [shape = 'u8[1024]{0}', space=vmem, size = 0x400, scoped, tag = 'input window, operand 4, single buffered']
    #allocation10 [shape = 's32[1]{0}', space=sflag, size = 0x4, scoped, tag = 'scoped memory for forward.1']
    #allocation11 [shape = 'u8[65536]{0}', space=vmem, size = 0x10000, scoped, tag = 'input window, operand 5, single buffered']
    #allocation12 [shape = 'u8[512]{0}', space=vmem, size = 0x400, scoped, tag = 'input window, operand 6, single buffered']
    #allocation13 [shape = 's32[1]{0}', space=sflag, size = 0x4, scoped, tag = 'scoped memory for forward.1']
    #allocation14 [shape = 'u8[16384]{0}', space=vmem, size = 0x4000, scoped, tag = 'input window, operand 9, single buffered']
    #allocation15 [shape = 'u8[1024]{0}', space=vmem, size = 0x400, scoped, tag = 'input window, operand 10, single buffered']
    #allocation16 [shape = 's32[1]{0}', space=sflag, size = 0x4, scoped, tag = 'scoped memory for forward.1']
    #allocation17 [shape = 'u8[524288]{0}', space=vmem, size = 0x80000, scoped, tag = 'input window, operand 13, single buffered']
    #allocation18 [shape = 'u8[4096]{0}', space=vmem, size = 0x1000, scoped, tag = 'input window, operand 14, single buffered']
    #allocation19 [shape = 's32[1]{0}', space=sflag, size = 0x4, scoped, tag = 'scoped memory for forward.1']
    #allocation20 [shape = 'u8[4096]{0}', space=vmem, size = 0x1000, scoped, tag = 'input window, operand 16, single buffered']
    %22 = vsyncpa [#allocation5], 0
    %23 = vsyncpa [#allocation7], 0
    %24 = vsyncpa [#allocation10], 0
    %25 = vsyncpa [#allocation13], 0
    %26 = vsyncpa [#allocation16], 0
    %27 = vsyncpa [#allocation19], 0
    // Predicated region
    $region2: #{forward.1} parent=1 // pred_check
      _
    $region3: #{forward.1} parent=1 // pred_check_branch
      %29 = sbr.rel (0) target = $region5
    $region4: #{forward.1} parent=1 // pred_region
      _
    $region5: #{forward.1} parent=1 // pred_fallthru
      _
    // Predicated region
    $region6: #{forward.1} parent=1 // pred_check
      _
    $region7: #{forward.1} parent=1 // pred_check_branch
      %31 = sbr.rel (0) target = $region9
    $region8: #{forward.1} parent=1 // pred_region
      %s33 = ssub.s32 32768, 32768
      %34 = vsyncadd [#allocation5], %s33
      %s35 = sshll.u32 [#allocation4], 4
      %s36 = int_to_ptr.vmem [resolvable:$true] %s35
      %41 = dma.hbm_to_vmem [thread:$0]  %s1, 32768, %s36, [#allocation5], 256, 256, 16
    $region9: #{forward.1} parent=1 // pred_fallthru
      _
    // Predicated region
    $region10: #{forward.1} parent=1 // pred_check
      _
    $region11: #{forward.1} parent=1 // pred_check_branch
      %43 = sbr.rel (0) target = $region13
    $region12: #{forward.1} parent=1 // pred_region
      %s45 = ssub.s32 64, 64
      %46 = vsyncadd [#allocation7], %s45
      %s48 = sshll.u32 [#allocation6], 4
      %s49 = int_to_ptr.vmem [resolvable:$true] %s48
      %51 = dma.hbm_to_vmem [thread:$0]  %s2, 64, %s49, [#allocation7]
    $region13: #{forward.1} parent=1 // pred_fallthru
      _
    // Predicated region
    $region14: #{forward.1} parent=1 // pred_check
      _
    $region15: #{forward.1} parent=1 // pred_check_branch
      %53 = sbr.rel (0) target = $region17
    $region16: #{forward.1} parent=1 // pred_region
      %s55 = ssub.s32 8192, 8192
      %56 = vsyncadd [#allocation7], %s55
      %s57 = sshll.u32 [#allocation8], 4
      %s58 = int_to_ptr.vmem [resolvable:$true] %s57
      %63 = dma.hbm_to_vmem [thread:$0]  %s3, 8192, %s58, [#allocation7], 128, 128, 8
    $region17: #{forward.1} parent=1 // pred_fallthru
      _
    // Predicated region
    $region18: #{forward.1} parent=1 // pred_check
      _
    $region19: #{forward.1} parent=1 // pred_check_branch
      %65 = sbr.rel (0) target = $region21
    $region20: #{forward.1} parent=1 // pred_region
      %s67 = ssub.s32 32, 32
      %68 = vsyncadd [#allocation10], %s67
      %s70 = sshll.u32 [#allocation9], 4
      %s71 = int_to_ptr.vmem [resolvable:$true] %s70
      %73 = dma.hbm_to_vmem [thread:$0]  %s4, 32, %s71, [#allocation10]
    $region21: #{forward.1} parent=1 // pred_fallthru
      _
    // Predicated region
    $region22: #{forward.1} parent=1 // pred_check
      _
    $region23: #{forward.1} parent=1 // pred_check_branch
      %75 = sbr.rel (0) target = $region25
    $region24: #{forward.1} parent=1 // pred_region
      %s77 = ssub.s32 2048, 2048
      %78 = vsyncadd [#allocation10], %s77
      %s79 = sshll.u32 [#allocation11], 4
      %s80 = int_to_ptr.vmem [resolvable:$true] %s79
      %85 = dma.hbm_to_vmem [thread:$0]  %s5, 2048, %s80, [#allocation10], 64, 64, 4
    $region25: #{forward.1} parent=1 // pred_fallthru
      _
    // Predicated region
    $region26: #{forward.1} parent=1 // pred_check
      _
    $region27: #{forward.1} parent=1 // pred_check_branch
      %87 = sbr.rel (0) target = $region29
    $region28: #{forward.1} parent=1 // pred_region
      %s89 = ssub.s32 16, 16
      %90 = vsyncadd [#allocation13], %s89
      %s92 = sshll.u32 [#allocation12], 4
      %s93 = int_to_ptr.vmem [resolvable:$true] %s92
      %95 = dma.hbm_to_vmem [thread:$0]  %s6, 16, %s93, [#allocation13]
    $region29: #{forward.1} parent=1 // pred_fallthru
      _
    // Predicated region
    $region30: #{forward.1} parent=1 // pred_check
      _
    $region31: #{forward.1} parent=1 // pred_check_branch
      %97 = sbr.rel (0) target = $region33
    $region32: #{forward.1} parent=1 // pred_region
      _
    $region33: #{forward.1} parent=1 // pred_fallthru
      _
    // Predicated region
    $region34: #{forward.1} parent=1 // pred_check
      _
    $region35: #{forward.1} parent=1 // pred_check_branch
      %99 = sbr.rel (0) target = $region37
    $region36: #{forward.1} parent=1 // pred_region
      _
    $region37: #{forward.1} parent=1 // pred_fallthru
      _
    // Predicated region
    $region38: #{forward.1} parent=1 // pred_check
      _
    $region39: #{forward.1} parent=1 // pred_check_branch
      %101 = sbr.rel (0) target = $region41
    $region40: #{forward.1} parent=1 // pred_region
      %s103 = ssub.s32 512, 512
      %104 = vsyncadd [#allocation13], %s103
      %s105 = sshll.u32 [#allocation14], 4
      %s106 = int_to_ptr.vmem [resolvable:$true] %s105
      %111 = dma.hbm_to_vmem [thread:$0]  %s9, 512, %s106, [#allocation13], 128, 128, 8
    $region41: #{forward.1} parent=1 // pred_fallthru
      _
    // Predicated region
    $region42: #{forward.1} parent=1 // pred_check
      _
    $region43: #{forward.1} parent=1 // pred_check_branch
      %113 = sbr.rel (0) target = $region45
    $region44: #{forward.1} parent=1 // pred_region
      %s115 = ssub.s32 32, 32
      %116 = vsyncadd [#allocation16], %s115
      %s118 = sshll.u32 [#allocation15], 4
      %s119 = int_to_ptr.vmem [resolvable:$true] %s118
      %121 = dma.hbm_to_vmem [thread:$0]  %s10, 32, %s119, [#allocation16]
    $region45: #{forward.1} parent=1 // pred_fallthru
      _
    // Predicated region
    $region46: #{forward.1} parent=1 // pred_check
      _
    $region47: #{forward.1} parent=1 // pred_check_branch
      %123 = sbr.rel (0) target = $region49
    $region48: #{forward.1} parent=1 // pred_region
      _
    $region49: #{forward.1} parent=1 // pred_fallthru
      _
    // Predicated region
    $region50: #{forward.1} parent=1 // pred_check
      _
    $region51: #{forward.1} parent=1 // pred_check_branch
      %125 = sbr.rel (0) target = $region53
    $region52: #{forward.1} parent=1 // pred_region
      _
    $region53: #{forward.1} parent=1 // pred_fallthru
      _
    // Predicated region
    $region54: #{forward.1} parent=1 // pred_check
      _
    $region55: #{forward.1} parent=1 // pred_check_branch
      %127 = sbr.rel (0) target = $region57
    $region56: #{forward.1} parent=1 // pred_region
      %s129 = ssub.s32 16384, 16384
      %130 = vsyncadd [#allocation16], %s129
      %s131 = sshll.u32 [#allocation17], 4
      %s132 = int_to_ptr.vmem [resolvable:$true] %s131
      %137 = dma.hbm_to_vmem [thread:$0]  %s13, 16384, %s132, [#allocation16], 512, 512, 32
    $region57: #{forward.1} parent=1 // pred_fallthru
      _
    // Predicated region
    $region58: #{forward.1} parent=1 // pred_check
      _
    $region59: #{forward.1} parent=1 // pred_check_branch
      %139 = sbr.rel (0) target = $region61
    $region60: #{forward.1} parent=1 // pred_region
      %s141 = ssub.s32 128, 128
      %142 = vsyncadd [#allocation19], %s141
      %s144 = sshll.u32 [#allocation18], 4
      %s145 = int_to_ptr.vmem [resolvable:$true] %s144
      %147 = dma.hbm_to_vmem [thread:$0]  %s14, 128, %s145, [#allocation19]
    $region61: #{forward.1} parent=1 // pred_fallthru
      _
    // Predicated region
    $region62: #{forward.1} parent=1 // pred_check
      _
    $region63: #{forward.1} parent=1 // pred_check_branch
      %149 = sbr.rel (0) target = $region65
    $region64: #{forward.1} parent=1 // pred_region
      %s151 = ssub.s32 128, 128
      %152 = vsyncadd [#allocation19], %s151
      %s154 = sshll.u32 [#allocation20], 4
      %s155 = int_to_ptr.vmem [resolvable:$true] %s154
      %157 = dma.hbm_to_vmem [thread:$0]  %s16, 128, %s155, [#allocation19]
    $region65: #{forward.1} parent=1 // pred_fallthru
      _
    // Predicated region
    $region66: #{forward.1} parent=1 // pred_check
      _
    $region67: #{forward.1} parent=1 // pred_check_branch
      %159 = sbr.rel (0) target = $region69
    $region68: #{forward.1} parent=1 // pred_region
      %160 = dma.done [#allocation5], 32768
    $region69: #{forward.1} parent=1 // pred_fallthru
      _
    // Predicated region
    $region70: #{forward.1} parent=1 // pred_check
      _
    $region71: #{forward.1} parent=1 // pred_check_branch
      %162 = sbr.rel (0) target = $region73
    $region72: #{forward.1} parent=1 // pred_region
      %163 = dma.done [#allocation7], 64
    $region73: #{forward.1} parent=1 // pred_fallthru
      _
    // Predicated region
    $region74: #{forward.1} parent=1 // pred_check
      _
    $region75: #{forward.1} parent=1 // pred_check_branch
      %165 = sbr.rel (0) target = $region77
    $region76: #{forward.1} parent=1 // pred_region
      %166 = dma.done [#allocation7], 8192
    $region77: #{forward.1} parent=1 // pred_fallthru
      _
    // Predicated region
    $region78: #{forward.1} parent=1 // pred_check
      _
    $region79: #{forward.1} parent=1 // pred_check_branch
      %168 = sbr.rel (0) target = $region81
    $region80: #{forward.1} parent=1 // pred_region
      %169 = dma.done [#allocation10], 32
    $region81: #{forward.1} parent=1 // pred_fallthru
      _
    // Predicated region
    $region82: #{forward.1} parent=1 // pred_check
      _
    $region83: #{forward.1} parent=1 // pred_check_branch
      %171 = sbr.rel (0) target = $region85
    $region84: #{forward.1} parent=1 // pred_region
      %172 = dma.done [#allocation10], 2048
    $region85: #{forward.1} parent=1 // pred_fallthru
      _
    // Predicated region
    $region86: #{forward.1} parent=1 // pred_check
      _
    $region87: #{forward.1} parent=1 // pred_check_branch
      %174 = sbr.rel (0) target = $region89
    $region88: #{forward.1} parent=1 // pred_region
      %175 = dma.done [#allocation13], 16
    $region89: #{forward.1} parent=1 // pred_fallthru
      _
    // Predicated region
    $region90: #{forward.1} parent=1 // pred_check
      _
    $region91: #{forward.1} parent=1 // pred_check_branch
      %177 = sbr.rel (0) target = $region93
    $region92: #{forward.1} parent=1 // pred_region
      %178 = dma.done [#allocation13], 512
    $region93: #{forward.1} parent=1 // pred_fallthru
      _
    // Predicated region
    $region94: #{forward.1} parent=1 // pred_check
      _
    $region95: #{forward.1} parent=1 // pred_check_branch
      %180 = sbr.rel (0) target = $region97
    $region96: #{forward.1} parent=1 // pred_region
      %181 = dma.done [#allocation16], 32
    $region97: #{forward.1} parent=1 // pred_fallthru
      _
    // Predicated region
    $region98: #{forward.1} parent=1 // pred_check
      _
    $region99: #{forward.1} parent=1 // pred_check_branch
      %183 = sbr.rel (0) target = $region101
    $region100: #{forward.1} parent=1 // pred_region
      %184 = dma.done [#allocation16], 16384
    $region101: #{forward.1} parent=1 // pred_fallthru
      _
    // Predicated region
    $region102: #{forward.1} parent=1 // pred_check
      _
    $region103: #{forward.1} parent=1 // pred_check_branch
      %186 = sbr.rel (0) target = $region105
    $region104: #{forward.1} parent=1 // pred_region
      %187 = dma.done [#allocation19], 128
    $region105: #{forward.1} parent=1 // pred_fallthru
      _
    // Predicated region
    $region106: #{forward.1} parent=1 // pred_check
      _
    $region107: #{forward.1} parent=1 // pred_check_branch
      %189 = sbr.rel (0) target = $region109
    $region108: #{forward.1} parent=1 // pred_region
      %190 = dma.done [#allocation19], 128
    $region109: #{forward.1} parent=1 // pred_fallthru
      _
    // Predicated region
    $region110: #{forward.1} parent=1 // pred_check
      _
    $region111: #{forward.1} parent=1 // pred_check_branch
      %193 = sbr.rel target = $region113
    $region112: #{forward.1} parent=1 // pred_region
      %194 = sst [smem:[#allocation23]] [#allocation22]
      %195 = sst [smem:[#allocation24]] [#allocation21]
    $region113: #{forward.1} parent=1 // pred_fallthru
      _
    %197 = shalt.err (0)
    %s199 = sshll.u32 [#allocation2], 4
    %s200 = int_to_ptr.vmem [resolvable:$true] %s199
    %202 = dma.hbm_to_vmem [thread:$0]  %s15, 65536, %s200, [#allocation3]
    %v203 = vld [vmem:[%s0] sm:$0xff]
    %v204 = vld [vmem:[%s0 + $0x8] sm:$0xff]
    %v205 = vld [vmem:[%s0 + $0x10] sm:$0xff]
    %v206 = vld [vmem:[%s0 + $0x18] sm:$0xff]
    %v207 = vld [vmem:[%s0 + $0x20] sm:$0xff]
    %v208 = vld [vmem:[%s0 + $0x28] sm:$0xff]
    %v209 = vld [vmem:[%s0 + $0x30] sm:$0xff]
    %v210 = vld [vmem:[%s0 + $0x38] sm:$0xff]
    %v211 = vld [vmem:[#allocation4] sm:$0xff]
    %v212 = vld [vmem:[#allocation4 + $0x8] sm:$0xff]
    %v213 = vld [vmem:[#allocation4 + $0x10] sm:$0xff]
    %v214 = vld [vmem:[#allocation4 + $0x18] sm:$0xff]
    %v215 = vld [vmem:[#allocation4 + $0x20] sm:$0xff]
    %v216 = vld [vmem:[#allocation4 + $0x28] sm:$0xff]
    %v217 = vld [vmem:[#allocation4 + $0x30] sm:$0xff]
    %v218 = vld [vmem:[#allocation4 + $0x38] sm:$0xff]
    %v219 = vld [vmem:[#allocation4 + $0x40] sm:$0xff]
    %v220 = vld [vmem:[#allocation4 + $0x48] sm:$0xff]
    %v221 = vld [vmem:[#allocation4 + $0x50] sm:$0xff]
    %v222 = vld [vmem:[#allocation4 + $0x58] sm:$0xff]
    %v223 = vld [vmem:[#allocation4 + $0x60] sm:$0xff]
    %v224 = vld [vmem:[#allocation4 + $0x68] sm:$0xff]
    %v225 = vld [vmem:[#allocation4 + $0x70] sm:$0xff]
    %v226 = vld [vmem:[#allocation4 + $0x78] sm:$0xff]
    %v227 = vld [vmem:[#allocation4 + $0x80] sm:$0xff]
    %v228 = vld [vmem:[#allocation4 + $0x88] sm:$0xff]
    %v229 = vld [vmem:[#allocation4 + $0x90] sm:$0xff]
    %v230 = vld [vmem:[#allocation4 + $0x98] sm:$0xff]
    %v231 = vld [vmem:[#allocation4 + $0xa0] sm:$0xff]
    %v232 = vld [vmem:[#allocation4 + $0xa8] sm:$0xff]
    %v233 = vld [vmem:[#allocation4 + $0xb0] sm:$0xff]
    %v234 = vld [vmem:[#allocation4 + $0xb8] sm:$0xff]
    %v235 = vld [vmem:[#allocation4 + $0xc0] sm:$0xff]
    %v236 = vld [vmem:[#allocation4 + $0xc8] sm:$0xff]
    %v237 = vld [vmem:[#allocation4 + $0xd0] sm:$0xff]
    %v238 = vld [vmem:[#allocation4 + $0xd8] sm:$0xff]
    %v239 = vld [vmem:[#allocation4 + $0xe0] sm:$0xff]
    %v240 = vld [vmem:[#allocation4 + $0xe8] sm:$0xff]
    %v241 = vld [vmem:[#allocation4 + $0xf0] sm:$0xff]
    %v242 = vld [vmem:[#allocation4 + $0xf8] sm:$0xff]
    %v243 = vld [vmem:[#allocation4 + $0x100] sm:$0xff]
    %v244 = vld [vmem:[#allocation4 + $0x108] sm:$0xff]
    %v245 = vld [vmem:[#allocation4 + $0x110] sm:$0xff]
    %v246 = vld [vmem:[#allocation4 + $0x118] sm:$0xff]
    %v247 = vld [vmem:[#allocation4 + $0x120] sm:$0xff]
    %v248 = vld [vmem:[#allocation4 + $0x128] sm:$0xff]
    %v249 = vld [vmem:[#allocation4 + $0x130] sm:$0xff]
    %v250 = vld [vmem:[#allocation4 + $0x138] sm:$0xff]
    %v251 = vld [vmem:[#allocation4 + $0x140] sm:$0xff]
    %v252 = vld [vmem:[#allocation4 + $0x148] sm:$0xff]
    %v253 = vld [vmem:[#allocation4 + $0x150] sm:$0xff]
    %v254 = vld [vmem:[#allocation4 + $0x158] sm:$0xff]
    %v255 = vld [vmem:[#allocation4 + $0x160] sm:$0xff]
    %v256 = vld [vmem:[#allocation4 + $0x168] sm:$0xff]
    %v257 = vld [vmem:[#allocation4 + $0x170] sm:$0xff]
    %v258 = vld [vmem:[#allocation4 + $0x178] sm:$0xff]
    %v259 = vld [vmem:[#allocation4 + $0x180] sm:$0xff]
    %v260 = vld [vmem:[#allocation4 + $0x188] sm:$0xff]
    %v261 = vld [vmem:[#allocation4 + $0x190] sm:$0xff]
    %v262 = vld [vmem:[#allocation4 + $0x198] sm:$0xff]
    %v263 = vld [vmem:[#allocation4 + $0x1a0] sm:$0xff]
    %v264 = vld [vmem:[#allocation4 + $0x1a8] sm:$0xff]
    %v265 = vld [vmem:[#allocation4 + $0x1b0] sm:$0xff]
    %v266 = vld [vmem:[#allocation4 + $0x1b8] sm:$0xff]
    %v267 = vld [vmem:[#allocation4 + $0x1c0] sm:$0xff]
    %v268 = vld [vmem:[#allocation4 + $0x1c8] sm:$0xff]
    %v269 = vld [vmem:[#allocation4 + $0x1d0] sm:$0xff]
    %v270 = vld [vmem:[#allocation4 + $0x1d8] sm:$0xff]
    %v271 = vld [vmem:[#allocation4 + $0x1e0] sm:$0xff]
    %v272 = vld [vmem:[#allocation4 + $0x1e8] sm:$0xff]
    %v273 = vld [vmem:[#allocation4 + $0x1f0] sm:$0xff]
    %v274 = vld [vmem:[#allocation4 + $0x1f8] sm:$0xff]
    %v275 = vld [vmem:[#allocation4 + $0x200] sm:$0xff]
    %v276 = vld [vmem:[#allocation4 + $0x208] sm:$0xff]
    %v277 = vld [vmem:[#allocation4 + $0x210] sm:$0xff]
    %v278 = vld [vmem:[#allocation4 + $0x218] sm:$0xff]
    %v279 = vld [vmem:[#allocation4 + $0x220] sm:$0xff]
    %v280 = vld [vmem:[#allocation4 + $0x228] sm:$0xff]
    %v281 = vld [vmem:[#allocation4 + $0x230] sm:$0xff]
    %v282 = vld [vmem:[#allocation4 + $0x238] sm:$0xff]
    %v283 = vld [vmem:[#allocation4 + $0x240] sm:$0xff]
    %v284 = vld [vmem:[#allocation4 + $0x248] sm:$0xff]
    %v285 = vld [vmem:[#allocation4 + $0x250] sm:$0xff]
    %v286 = vld [vmem:[#allocation4 + $0x258] sm:$0xff]
    %v287 = vld [vmem:[#allocation4 + $0x260] sm:$0xff]
    %v288 = vld [vmem:[#allocation4 + $0x268] sm:$0xff]
    %v289 = vld [vmem:[#allocation4 + $0x270] sm:$0xff]
    %v290 = vld [vmem:[#allocation4 + $0x278] sm:$0xff]
    %v291 = vld [vmem:[#allocation4 + $0x280] sm:$0xff]
    %v292 = vld [vmem:[#allocation4 + $0x288] sm:$0xff]
    %v293 = vld [vmem:[#allocation4 + $0x290] sm:$0xff]
    %v294 = vld [vmem:[#allocation4 + $0x298] sm:$0xff]
    %v295 = vld [vmem:[#allocation4 + $0x2a0] sm:$0xff]
    %v296 = vld [vmem:[#allocation4 + $0x2a8] sm:$0xff]
    %v297 = vld [vmem:[#allocation4 + $0x2b0] sm:$0xff]
    %v298 = vld [vmem:[#allocation4 + $0x2b8] sm:$0xff]
    %v299 = vld [vmem:[#allocation4 + $0x2c0] sm:$0xff]
    %v300 = vld [vmem:[#allocation4 + $0x2c8] sm:$0xff]
    %v301 = vld [vmem:[#allocation4 + $0x2d0] sm:$0xff]
    %v302 = vld [vmem:[#allocation4 + $0x2d8] sm:$0xff]
    %v303 = vld [vmem:[#allocation4 + $0x2e0] sm:$0xff]
    %v304 = vld [vmem:[#allocation4 + $0x2e8] sm:$0xff]
    %v305 = vld [vmem:[#allocation4 + $0x2f0] sm:$0xff]
    %v306 = vld [vmem:[#allocation4 + $0x2f8] sm:$0xff]
    %v307 = vld [vmem:[#allocation4 + $0x300] sm:$0xff]
    %v308 = vld [vmem:[#allocation4 + $0x308] sm:$0xff]
    %v309 = vld [vmem:[#allocation4 + $0x310] sm:$0xff]
    %v310 = vld [vmem:[#allocation4 + $0x318] sm:$0xff]
    %v311 = vld [vmem:[#allocation4 + $0x320] sm:$0xff]
    %v312 = vld [vmem:[#allocation4 + $0x328] sm:$0xff]
    %v313 = vld [vmem:[#allocation4 + $0x330] sm:$0xff]
    %v314 = vld [vmem:[#allocation4 + $0x338] sm:$0xff]
    %v315 = vld [vmem:[#allocation4 + $0x340] sm:$0xff]
    %v316 = vld [vmem:[#allocation4 + $0x348] sm:$0xff]
    %v317 = vld [vmem:[#allocation4 + $0x350] sm:$0xff]
    %v318 = vld [vmem:[#allocation4 + $0x358] sm:$0xff]
    %v319 = vld [vmem:[#allocation4 + $0x360] sm:$0xff]
    %v320 = vld [vmem:[#allocation4 + $0x368] sm:$0xff]
    %v321 = vld [vmem:[#allocation4 + $0x370] sm:$0xff]
    %v322 = vld [vmem:[#allocation4 + $0x378] sm:$0xff]
    %v323 = vld [vmem:[#allocation4 + $0x380] sm:$0xff]
    %v324 = vld [vmem:[#allocation4 + $0x388] sm:$0xff]
    %v325 = vld [vmem:[#allocation4 + $0x390] sm:$0xff]
    %v326 = vld [vmem:[#allocation4 + $0x398] sm:$0xff]
    %v327 = vld [vmem:[#allocation4 + $0x3a0] sm:$0xff]
    %v328 = vld [vmem:[#allocation4 + $0x3a8] sm:$0xff]
    %v329 = vld [vmem:[#allocation4 + $0x3b0] sm:$0xff]
    %v330 = vld [vmem:[#allocation4 + $0x3b8] sm:$0xff]
    %v331 = vld [vmem:[#allocation4 + $0x3c0] sm:$0xff]
    %v332 = vld [vmem:[#allocation4 + $0x3c8] sm:$0xff]
    %v333 = vld [vmem:[#allocation4 + $0x3d0] sm:$0xff]
    %v334 = vld [vmem:[#allocation4 + $0x3d8] sm:$0xff]
    %v335 = vld [vmem:[#allocation4 + $0x3e0] sm:$0xff]
    %v336 = vld [vmem:[#allocation4 + $0x3e8] sm:$0xff]
    %v337 = vld [vmem:[#allocation4 + $0x3f0] sm:$0xff]
    %v338 = vld [vmem:[#allocation4 + $0x3f8] sm:$0xff]
    %v339 = vld [vmem:[#allocation4 + $0x400] sm:$0xff]
    %v340 = vld [vmem:[#allocation4 + $0x408] sm:$0xff]
    %v341 = vld [vmem:[#allocation4 + $0x410] sm:$0xff]
    %v342 = vld [vmem:[#allocation4 + $0x418] sm:$0xff]
    %v343 = vld [vmem:[#allocation4 + $0x420] sm:$0xff]
    %v344 = vld [vmem:[#allocation4 + $0x428] sm:$0xff]
    %v345 = vld [vmem:[#allocation4 + $0x430] sm:$0xff]
    %v346 = vld [vmem:[#allocation4 + $0x438] sm:$0xff]
    %v347 = vld [vmem:[#allocation4 + $0x440] sm:$0xff]
    %v348 = vld [vmem:[#allocation4 + $0x448] sm:$0xff]
    %v349 = vld [vmem:[#allocation4 + $0x450] sm:$0xff]
    %v350 = vld [vmem:[#allocation4 + $0x458] sm:$0xff]
    %v351 = vld [vmem:[#allocation4 + $0x460] sm:$0xff]
    %v352 = vld [vmem:[#allocation4 + $0x468] sm:$0xff]
    %v353 = vld [vmem:[#allocation4 + $0x470] sm:$0xff]
    %v354 = vld [vmem:[#allocation4 + $0x478] sm:$0xff]
    %v355 = vld [vmem:[#allocation4 + $0x480] sm:$0xff]
    %v356 = vld [vmem:[#allocation4 + $0x488] sm:$0xff]
    %v357 = vld [vmem:[#allocation4 + $0x490] sm:$0xff]
    %v358 = vld [vmem:[#allocation4 + $0x498] sm:$0xff]
    %v359 = vld [vmem:[#allocation4 + $0x4a0] sm:$0xff]
    %v360 = vld [vmem:[#allocation4 + $0x4a8] sm:$0xff]
    %v361 = vld [vmem:[#allocation4 + $0x4b0] sm:$0xff]
    %v362 = vld [vmem:[#allocation4 + $0x4b8] sm:$0xff]
    %v363 = vld [vmem:[#allocation4 + $0x4c0] sm:$0xff]
    %v364 = vld [vmem:[#allocation4 + $0x4c8] sm:$0xff]
    %v365 = vld [vmem:[#allocation4 + $0x4d0] sm:$0xff]
    %v366 = vld [vmem:[#allocation4 + $0x4d8] sm:$0xff]
    %v367 = vld [vmem:[#allocation4 + $0x4e0] sm:$0xff]
    %v368 = vld [vmem:[#allocation4 + $0x4e8] sm:$0xff]
    %v369 = vld [vmem:[#allocation4 + $0x4f0] sm:$0xff]
    %v370 = vld [vmem:[#allocation4 + $0x4f8] sm:$0xff]
    %v371 = vld [vmem:[#allocation4 + $0x500] sm:$0xff]
    %v372 = vld [vmem:[#allocation4 + $0x508] sm:$0xff]
    %v373 = vld [vmem:[#allocation4 + $0x510] sm:$0xff]
    %v374 = vld [vmem:[#allocation4 + $0x518] sm:$0xff]
    %v375 = vld [vmem:[#allocation4 + $0x520] sm:$0xff]
    %v376 = vld [vmem:[#allocation4 + $0x528] sm:$0xff]
    %v377 = vld [vmem:[#allocation4 + $0x530] sm:$0xff]
    %v378 = vld [vmem:[#allocation4 + $0x538] sm:$0xff]
    %v379 = vld [vmem:[#allocation4 + $0x540] sm:$0xff]
    %v380 = vld [vmem:[#allocation4 + $0x548] sm:$0xff]
    %v381 = vld [vmem:[#allocation4 + $0x550] sm:$0xff]
    %v382 = vld [vmem:[#allocation4 + $0x558] sm:$0xff]
    %v383 = vld [vmem:[#allocation4 + $0x560] sm:$0xff]
    %v384 = vld [vmem:[#allocation4 + $0x568] sm:$0xff]
    %v385 = vld [vmem:[#allocation4 + $0x570] sm:$0xff]
    %v386 = vld [vmem:[#allocation4 + $0x578] sm:$0xff]
    %v387 = vld [vmem:[#allocation4 + $0x580] sm:$0xff]
    %v388 = vld [vmem:[#allocation4 + $0x588] sm:$0xff]
    %v389 = vld [vmem:[#allocation4 + $0x590] sm:$0xff]
    %v390 = vld [vmem:[#allocation4 + $0x598] sm:$0xff]
    %v391 = vld [vmem:[#allocation4 + $0x5a0] sm:$0xff]
    %v392 = vld [vmem:[#allocation4 + $0x5a8] sm:$0xff]
    %v393 = vld [vmem:[#allocation4 + $0x5b0] sm:$0xff]
    %v394 = vld [vmem:[#allocation4 + $0x5b8] sm:$0xff]
    %v395 = vld [vmem:[#allocation4 + $0x5c0] sm:$0xff]
    %v396 = vld [vmem:[#allocation4 + $0x5c8] sm:$0xff]
    %v397 = vld [vmem:[#allocation4 + $0x5d0] sm:$0xff]
    %v398 = vld [vmem:[#allocation4 + $0x5d8] sm:$0xff]
    %v399 = vld [vmem:[#allocation4 + $0x5e0] sm:$0xff]
    %v400 = vld [vmem:[#allocation4 + $0x5e8] sm:$0xff]
    %v401 = vld [vmem:[#allocation4 + $0x5f0] sm:$0xff]
    %v402 = vld [vmem:[#allocation4 + $0x5f8] sm:$0xff]
    %v403 = vld [vmem:[#allocation4 + $0x600] sm:$0xff]
    %v404 = vld [vmem:[#allocation4 + $0x608] sm:$0xff]
    %v405 = vld [vmem:[#allocation4 + $0x610] sm:$0xff]
    %v406 = vld [vmem:[#allocation4 + $0x618] sm:$0xff]
    %v407 = vld [vmem:[#allocation4 + $0x620] sm:$0xff]
    %v408 = vld [vmem:[#allocation4 + $0x628] sm:$0xff]
    %v409 = vld [vmem:[#allocation4 + $0x630] sm:$0xff]
    %v410 = vld [vmem:[#allocation4 + $0x638] sm:$0xff]
    %v411 = vld [vmem:[#allocation4 + $0x640] sm:$0xff]
    %v412 = vld [vmem:[#allocation4 + $0x648] sm:$0xff]
    %v413 = vld [vmem:[#allocation4 + $0x650] sm:$0xff]
    %v414 = vld [vmem:[#allocation4 + $0x658] sm:$0xff]
    %v415 = vld [vmem:[#allocation4 + $0x660] sm:$0xff]
    %v416 = vld [vmem:[#allocation4 + $0x668] sm:$0xff]
    %v417 = vld [vmem:[#allocation4 + $0x670] sm:$0xff]
    %v418 = vld [vmem:[#allocation4 + $0x678] sm:$0xff]
    %v419 = vld [vmem:[#allocation4 + $0x680] sm:$0xff]
    %v420 = vld [vmem:[#allocation4 + $0x688] sm:$0xff]
    %v421 = vld [vmem:[#allocation4 + $0x690] sm:$0xff]
    %v422 = vld [vmem:[#allocation4 + $0x698] sm:$0xff]
    %v423 = vld [vmem:[#allocation4 + $0x6a0] sm:$0xff]
    %v424 = vld [vmem:[#allocation4 + $0x6a8] sm:$0xff]
    %v425 = vld [vmem:[#allocation4 + $0x6b0] sm:$0xff]
    %v426 = vld [vmem:[#allocation4 + $0x6b8] sm:$0xff]
    %v427 = vld [vmem:[#allocation4 + $0x6c0] sm:$0xff]
    %v428 = vld [vmem:[#allocation4 + $0x6c8] sm:$0xff]
    %v429 = vld [vmem:[#allocation4 + $0x6d0] sm:$0xff]
    %v430 = vld [vmem:[#allocation4 + $0x6d8] sm:$0xff]
    %v431 = vld [vmem:[#allocation4 + $0x6e0] sm:$0xff]
    %v432 = vld [vmem:[#allocation4 + $0x6e8] sm:$0xff]
    %v433 = vld [vmem:[#allocation4 + $0x6f0] sm:$0xff]
    %v434 = vld [vmem:[#allocation4 + $0x6f8] sm:$0xff]
    %v435 = vld [vmem:[#allocation4 + $0x700] sm:$0xff]
    %v436 = vld [vmem:[#allocation4 + $0x708] sm:$0xff]
    %v437 = vld [vmem:[#allocation4 + $0x710] sm:$0xff]
    %v438 = vld [vmem:[#allocation4 + $0x718] sm:$0xff]
    %v439 = vld [vmem:[#allocation4 + $0x720] sm:$0xff]
    %v440 = vld [vmem:[#allocation4 + $0x728] sm:$0xff]
    %v441 = vld [vmem:[#allocation4 + $0x730] sm:$0xff]
    %v442 = vld [vmem:[#allocation4 + $0x738] sm:$0xff]
    %v443 = vld [vmem:[#allocation4 + $0x740] sm:$0xff]
    %v444 = vld [vmem:[#allocation4 + $0x748] sm:$0xff]
    %v445 = vld [vmem:[#allocation4 + $0x750] sm:$0xff]
    %v446 = vld [vmem:[#allocation4 + $0x758] sm:$0xff]
    %v447 = vld [vmem:[#allocation4 + $0x760] sm:$0xff]
    %v448 = vld [vmem:[#allocation4 + $0x768] sm:$0xff]
    %v449 = vld [vmem:[#allocation4 + $0x770] sm:$0xff]
    %v450 = vld [vmem:[#allocation4 + $0x778] sm:$0xff]
    %v451 = vld [vmem:[#allocation4 + $0x780] sm:$0xff]
    %v452 = vld [vmem:[#allocation4 + $0x788] sm:$0xff]
    %v453 = vld [vmem:[#allocation4 + $0x790] sm:$0xff]
    %v454 = vld [vmem:[#allocation4 + $0x798] sm:$0xff]
    %v455 = vld [vmem:[#allocation4 + $0x7a0] sm:$0xff]
    %v456 = vld [vmem:[#allocation4 + $0x7a8] sm:$0xff]
    %v457 = vld [vmem:[#allocation4 + $0x7b0] sm:$0xff]
    %v458 = vld [vmem:[#allocation4 + $0x7b8] sm:$0xff]
    %v459 = vld [vmem:[#allocation4 + $0x7c0] sm:$0xff]
    %v460 = vld [vmem:[#allocation4 + $0x7c8] sm:$0xff]
    %v461 = vld [vmem:[#allocation4 + $0x7d0] sm:$0xff]
    %v462 = vld [vmem:[#allocation4 + $0x7d8] sm:$0xff]
    %v463 = vld [vmem:[#allocation4 + $0x7e0] sm:$0xff]
    %v464 = vld [vmem:[#allocation4 + $0x7e8] sm:$0xff]
    %v465 = vld [vmem:[#allocation4 + $0x7f0] sm:$0xff]
    %v466 = vld [vmem:[#allocation4 + $0x7f8] sm:$0xff]
    %v467 = vld [vmem:[#allocation6] sm:$0xf]
    %v469 = vlaneseq
    %v470 = vshrl.u32 %v469, 7
    %v471 = vsub.s32 0, %v470
    %v472 = vrot.slane %v467, %v471
    %v473 = vlaneseq
    %v474 = vshrl.u32 %v473, 7
    %v475 = vsub.s32 1, %v474
    %v476 = vrot.slane %v467, %v475
    %v477 = vlaneseq
    %v478 = vshrl.u32 %v477, 7
    %v479 = vsub.s32 2, %v478
    %v480 = vrot.slane %v467, %v479
    %v481 = vlaneseq
    %v482 = vshrl.u32 %v481, 7
    %v483 = vsub.s32 3, %v482
    %v484 = vrot.slane %v467, %v483
    %v497 = vunpack.c.l.b16 %v203
    %v498 = vunpack.c.h.b16 %v203
    %v499 = vunpack.c.l.b16 %v204
    %v500 = vunpack.c.h.b16 %v204
    %v501 = vunpack.c.l.b16 %v205
    %v502 = vunpack.c.h.b16 %v205
    %v503 = vunpack.c.l.b16 %v206
    %v504 = vunpack.c.h.b16 %v206
    %v505 = vunpack.c.l.b16 %v207
    %v506 = vunpack.c.h.b16 %v207
    %v507 = vunpack.c.l.b16 %v208
    %v508 = vunpack.c.h.b16 %v208
    %v509 = vunpack.c.l.b16 %v209
    %v510 = vunpack.c.h.b16 %v209
    %v511 = vunpack.c.l.b16 %v210
    %v512 = vunpack.c.h.b16 %v210
    %v513 = vpack.c.b16 %v505, %v497
    %v514 = vpack.c.b16 %v506, %v498
    %v515 = vpack.c.b16 %v507, %v499
    %v516 = vpack.c.b16 %v508, %v500
    %v517 = vpack.c.b16 %v509, %v501
    %v518 = vpack.c.b16 %v510, %v502
    %v519 = vpack.c.b16 %v511, %v503
    %v520 = vpack.c.b16 %v512, %v504
    %v785 = vunpack.c.l.b16 %v211
    %v786 = vunpack.c.h.b16 %v211
    %v787 = vunpack.c.l.b16 %v212
    %v788 = vunpack.c.h.b16 %v212
    %v789 = vunpack.c.l.b16 %v213
    %v790 = vunpack.c.h.b16 %v213
    %v791 = vunpack.c.l.b16 %v214
    %v792 = vunpack.c.h.b16 %v214
    %v793 = vunpack.c.l.b16 %v215
    %v794 = vunpack.c.h.b16 %v215
    %v795 = vunpack.c.l.b16 %v216
    %v796 = vunpack.c.h.b16 %v216
    %v797 = vunpack.c.l.b16 %v217
    %v798 = vunpack.c.h.b16 %v217
    %v799 = vunpack.c.l.b16 %v218
    %v800 = vunpack.c.h.b16 %v218
    %v801 = vunpack.c.l.b16 %v219
    %v802 = vunpack.c.h.b16 %v219
    %v803 = vunpack.c.l.b16 %v220
    %v804 = vunpack.c.h.b16 %v220
    %v805 = vunpack.c.l.b16 %v221
    %v806 = vunpack.c.h.b16 %v221
    %v807 = vunpack.c.l.b16 %v222
    %v808 = vunpack.c.h.b16 %v222
    %v809 = vunpack.c.l.b16 %v223
    %v810 = vunpack.c.h.b16 %v223
    %v811 = vunpack.c.l.b16 %v224
    %v812 = vunpack.c.h.b16 %v224
    %v813 = vunpack.c.l.b16 %v225
    %v814 = vunpack.c.h.b16 %v225
    %v815 = vunpack.c.l.b16 %v226
    %v816 = vunpack.c.h.b16 %v226
    %v817 = vunpack.c.l.b16 %v227
    %v818 = vunpack.c.h.b16 %v227
    %v819 = vunpack.c.l.b16 %v228
    %v820 = vunpack.c.h.b16 %v228
    %v821 = vunpack.c.l.b16 %v229
    %v822 = vunpack.c.h.b16 %v229
    %v823 = vunpack.c.l.b16 %v230
    %v824 = vunpack.c.h.b16 %v230
    %v825 = vunpack.c.l.b16 %v231
    %v826 = vunpack.c.h.b16 %v231
    %v827 = vunpack.c.l.b16 %v232
    %v828 = vunpack.c.h.b16 %v232
    %v829 = vunpack.c.l.b16 %v233
    %v830 = vunpack.c.h.b16 %v233
    %v831 = vunpack.c.l.b16 %v234
    %v832 = vunpack.c.h.b16 %v234
    %v833 = vunpack.c.l.b16 %v235
    %v834 = vunpack.c.h.b16 %v235
    %v835 = vunpack.c.l.b16 %v236
    %v836 = vunpack.c.h.b16 %v236
    %v837 = vunpack.c.l.b16 %v237
    %v838 = vunpack.c.h.b16 %v237
    %v839 = vunpack.c.l.b16 %v238
    %v840 = vunpack.c.h.b16 %v238
    %v841 = vunpack.c.l.b16 %v239
    %v842 = vunpack.c.h.b16 %v239
    %v843 = vunpack.c.l.b16 %v240
    %v844 = vunpack.c.h.b16 %v240
    %v845 = vunpack.c.l.b16 %v241
    %v846 = vunpack.c.h.b16 %v241
    %v847 = vunpack.c.l.b16 %v242
    %v848 = vunpack.c.h.b16 %v242
    %v849 = vunpack.c.l.b16 %v243
    %v850 = vunpack.c.h.b16 %v243
    %v851 = vunpack.c.l.b16 %v244
    %v852 = vunpack.c.h.b16 %v244
    %v853 = vunpack.c.l.b16 %v245
    %v854 = vunpack.c.h.b16 %v245
    %v855 = vunpack.c.l.b16 %v246
    %v856 = vunpack.c.h.b16 %v246
    %v857 = vunpack.c.l.b16 %v247
    %v858 = vunpack.c.h.b16 %v247
    %v859 = vunpack.c.l.b16 %v248
    %v860 = vunpack.c.h.b16 %v248
    %v861 = vunpack.c.l.b16 %v249
    %v862 = vunpack.c.h.b16 %v249
    %v863 = vunpack.c.l.b16 %v250
    %v864 = vunpack.c.h.b16 %v250
    %v865 = vunpack.c.l.b16 %v251
    %v866 = vunpack.c.h.b16 %v251
    %v867 = vunpack.c.l.b16 %v252
    %v868 = vunpack.c.h.b16 %v252
    %v869 = vunpack.c.l.b16 %v253
    %v870 = vunpack.c.h.b16 %v253
    %v871 = vunpack.c.l.b16 %v254
    %v872 = vunpack.c.h.b16 %v254
    %v873 = vunpack.c.l.b16 %v255
    %v874 = vunpack.c.h.b16 %v255
    %v875 = vunpack.c.l.b16 %v256
    %v876 = vunpack.c.h.b16 %v256
    %v877 = vunpack.c.l.b16 %v257
    %v878 = vunpack.c.h.b16 %v257
    %v879 = vunpack.c.l.b16 %v258
    %v880 = vunpack.c.h.b16 %v258
    %v881 = vunpack.c.l.b16 %v259
    %v882 = vunpack.c.h.b16 %v259
    %v883 = vunpack.c.l.b16 %v260
    %v884 = vunpack.c.h.b16 %v260
    %v885 = vunpack.c.l.b16 %v261
    %v886 = vunpack.c.h.b16 %v261
    %v887 = vunpack.c.l.b16 %v262
    %v888 = vunpack.c.h.b16 %v262
    %v889 = vunpack.c.l.b16 %v263
    %v890 = vunpack.c.h.b16 %v263
    %v891 = vunpack.c.l.b16 %v264
    %v892 = vunpack.c.h.b16 %v264
    %v893 = vunpack.c.l.b16 %v265
    %v894 = vunpack.c.h.b16 %v265
    %v895 = vunpack.c.l.b16 %v266
    %v896 = vunpack.c.h.b16 %v266
    %v897 = vunpack.c.l.b16 %v267
    %v898 = vunpack.c.h.b16 %v267
    %v899 = vunpack.c.l.b16 %v268
    %v900 = vunpack.c.h.b16 %v268
    %v901 = vunpack.c.l.b16 %v269
    %v902 = vunpack.c.h.b16 %v269
    %v903 = vunpack.c.l.b16 %v270
    %v904 = vunpack.c.h.b16 %v270
    %v905 = vunpack.c.l.b16 %v271
    %v906 = vunpack.c.h.b16 %v271
    %v907 = vunpack.c.l.b16 %v272
    %v908 = vunpack.c.h.b16 %v272
    %v909 = vunpack.c.l.b16 %v273
    %v910 = vunpack.c.h.b16 %v273
    %v911 = vunpack.c.l.b16 %v274
    %v912 = vunpack.c.h.b16 %v274
    %v913 = vunpack.c.l.b16 %v275
    %v914 = vunpack.c.h.b16 %v275
    %v915 = vunpack.c.l.b16 %v276
    %v916 = vunpack.c.h.b16 %v276
    %v917 = vunpack.c.l.b16 %v277
    %v918 = vunpack.c.h.b16 %v277
    %v919 = vunpack.c.l.b16 %v278
    %v920 = vunpack.c.h.b16 %v278
    %v921 = vunpack.c.l.b16 %v279
    %v922 = vunpack.c.h.b16 %v279
    %v923 = vunpack.c.l.b16 %v280
    %v924 = vunpack.c.h.b16 %v280
    %v925 = vunpack.c.l.b16 %v281
    %v926 = vunpack.c.h.b16 %v281
    %v927 = vunpack.c.l.b16 %v282
    %v928 = vunpack.c.h.b16 %v282
    %v929 = vunpack.c.l.b16 %v283
    %v930 = vunpack.c.h.b16 %v283
    %v931 = vunpack.c.l.b16 %v284
    %v932 = vunpack.c.h.b16 %v284
    %v933 = vunpack.c.l.b16 %v285
    %v934 = vunpack.c.h.b16 %v285
    %v935 = vunpack.c.l.b16 %v286
    %v936 = vunpack.c.h.b16 %v286
    %v937 = vunpack.c.l.b16 %v287
    %v938 = vunpack.c.h.b16 %v287
    %v939 = vunpack.c.l.b16 %v288
    %v940 = vunpack.c.h.b16 %v288
    %v941 = vunpack.c.l.b16 %v289
    %v942 = vunpack.c.h.b16 %v289
    %v943 = vunpack.c.l.b16 %v290
    %v944 = vunpack.c.h.b16 %v290
    %v945 = vunpack.c.l.b16 %v291
    %v946 = vunpack.c.h.b16 %v291
    %v947 = vunpack.c.l.b16 %v292
    %v948 = vunpack.c.h.b16 %v292
    %v949 = vunpack.c.l.b16 %v293
    %v950 = vunpack.c.h.b16 %v293
    %v951 = vunpack.c.l.b16 %v294
    %v952 = vunpack.c.h.b16 %v294
    %v953 = vunpack.c.l.b16 %v295
    %v954 = vunpack.c.h.b16 %v295
    %v955 = vunpack.c.l.b16 %v296
    %v956 = vunpack.c.h.b16 %v296
    %v957 = vunpack.c.l.b16 %v297
    %v958 = vunpack.c.h.b16 %v297
    %v959 = vunpack.c.l.b16 %v298
    %v960 = vunpack.c.h.b16 %v298
    %v961 = vunpack.c.l.b16 %v299
    %v962 = vunpack.c.h.b16 %v299
    %v963 = vunpack.c.l.b16 %v300
    %v964 = vunpack.c.h.b16 %v300
    %v965 = vunpack.c.l.b16 %v301
    %v966 = vunpack.c.h.b16 %v301
    %v967 = vunpack.c.l.b16 %v302
    %v968 = vunpack.c.h.b16 %v302
    %v969 = vunpack.c.l.b16 %v303
    %v970 = vunpack.c.h.b16 %v303
    %v971 = vunpack.c.l.b16 %v304
    %v972 = vunpack.c.h.b16 %v304
    %v973 = vunpack.c.l.b16 %v305
    %v974 = vunpack.c.h.b16 %v305
    %v975 = vunpack.c.l.b16 %v306
    %v976 = vunpack.c.h.b16 %v306
    %v977 = vunpack.c.l.b16 %v307
    %v978 = vunpack.c.h.b16 %v307
    %v979 = vunpack.c.l.b16 %v308
    %v980 = vunpack.c.h.b16 %v308
    %v981 = vunpack.c.l.b16 %v309
    %v982 = vunpack.c.h.b16 %v309
    %v983 = vunpack.c.l.b16 %v310
    %v984 = vunpack.c.h.b16 %v310
    %v985 = vunpack.c.l.b16 %v311
    %v986 = vunpack.c.h.b16 %v311
    %v987 = vunpack.c.l.b16 %v312
    %v988 = vunpack.c.h.b16 %v312
    %v989 = vunpack.c.l.b16 %v313
    %v990 = vunpack.c.h.b16 %v313
    %v991 = vunpack.c.l.b16 %v314
    %v992 = vunpack.c.h.b16 %v314
    %v993 = vunpack.c.l.b16 %v315
    %v994 = vunpack.c.h.b16 %v315
    %v995 = vunpack.c.l.b16 %v316
    %v996 = vunpack.c.h.b16 %v316
    %v997 = vunpack.c.l.b16 %v317
    %v998 = vunpack.c.h.b16 %v317
    %v999 = vunpack.c.l.b16 %v318
    %v1000 = vunpack.c.h.b16 %v318
    %v1001 = vunpack.c.l.b16 %v319
    %v1002 = vunpack.c.h.b16 %v319
    %v1003 = vunpack.c.l.b16 %v320
    %v1004 = vunpack.c.h.b16 %v320
    %v1005 = vunpack.c.l.b16 %v321
    %v1006 = vunpack.c.h.b16 %v321
    %v1007 = vunpack.c.l.b16 %v322
    %v1008 = vunpack.c.h.b16 %v322
    %v1009 = vunpack.c.l.b16 %v323
    %v1010 = vunpack.c.h.b16 %v323
    %v1011 = vunpack.c.l.b16 %v324
    %v1012 = vunpack.c.h.b16 %v324
    %v1013 = vunpack.c.l.b16 %v325
    %v1014 = vunpack.c.h.b16 %v325
    %v1015 = vunpack.c.l.b16 %v326
    %v1016 = vunpack.c.h.b16 %v326
    %v1017 = vunpack.c.l.b16 %v327
    %v1018 = vunpack.c.h.b16 %v327
    %v1019 = vunpack.c.l.b16 %v328
    %v1020 = vunpack.c.h.b16 %v328
    %v1021 = vunpack.c.l.b16 %v329
    %v1022 = vunpack.c.h.b16 %v329
    %v1023 = vunpack.c.l.b16 %v330
    %v1024 = vunpack.c.h.b16 %v330
    %v1025 = vunpack.c.l.b16 %v331
    %v1026 = vunpack.c.h.b16 %v331
    %v1027 = vunpack.c.l.b16 %v332
    %v1028 = vunpack.c.h.b16 %v332
    %v1029 = vunpack.c.l.b16 %v333
    %v1030 = vunpack.c.h.b16 %v333
    %v1031 = vunpack.c.l.b16 %v334
    %v1032 = vunpack.c.h.b16 %v334
    %v1033 = vunpack.c.l.b16 %v335
    %v1034 = vunpack.c.h.b16 %v335
    %v1035 = vunpack.c.l.b16 %v336
    %v1036 = vunpack.c.h.b16 %v336
    %v1037 = vunpack.c.l.b16 %v337
    %v1038 = vunpack.c.h.b16 %v337
    %v1039 = vunpack.c.l.b16 %v338
    %v1040 = vunpack.c.h.b16 %v338
    %v1041 = vunpack.c.l.b16 %v339
    %v1042 = vunpack.c.h.b16 %v339
    %v1043 = vunpack.c.l.b16 %v340
    %v1044 = vunpack.c.h.b16 %v340
    %v1045 = vunpack.c.l.b16 %v341
    %v1046 = vunpack.c.h.b16 %v341
    %v1047 = vunpack.c.l.b16 %v342
    %v1048 = vunpack.c.h.b16 %v342
    %v1049 = vunpack.c.l.b16 %v343
    %v1050 = vunpack.c.h.b16 %v343
    %v1051 = vunpack.c.l.b16 %v344
    %v1052 = vunpack.c.h.b16 %v344
    %v1053 = vunpack.c.l.b16 %v345
    %v1054 = vunpack.c.h.b16 %v345
    %v1055 = vunpack.c.l.b16 %v346
    %v1056 = vunpack.c.h.b16 %v346
    %v1057 = vunpack.c.l.b16 %v347
    %v1058 = vunpack.c.h.b16 %v347
    %v1059 = vunpack.c.l.b16 %v348
    %v1060 = vunpack.c.h.b16 %v348
    %v1061 = vunpack.c.l.b16 %v349
    %v1062 = vunpack.c.h.b16 %v349
    %v1063 = vunpack.c.l.b16 %v350
    %v1064 = vunpack.c.h.b16 %v350
    %v1065 = vunpack.c.l.b16 %v351
    %v1066 = vunpack.c.h.b16 %v351
    %v1067 = vunpack.c.l.b16 %v352
    %v1068 = vunpack.c.h.b16 %v352
    %v1069 = vunpack.c.l.b16 %v353
    %v1070 = vunpack.c.h.b16 %v353
    %v1071 = vunpack.c.l.b16 %v354
    %v1072 = vunpack.c.h.b16 %v354
    %v1073 = vunpack.c.l.b16 %v355
    %v1074 = vunpack.c.h.b16 %v355
    %v1075 = vunpack.c.l.b16 %v356
    %v1076 = vunpack.c.h.b16 %v356
    %v1077 = vunpack.c.l.b16 %v357
    %v1078 = vunpack.c.h.b16 %v357
    %v1079 = vunpack.c.l.b16 %v358
    %v1080 = vunpack.c.h.b16 %v358
    %v1081 = vunpack.c.l.b16 %v359
    %v1082 = vunpack.c.h.b16 %v359
    %v1083 = vunpack.c.l.b16 %v360
    %v1084 = vunpack.c.h.b16 %v360
    %v1085 = vunpack.c.l.b16 %v361
    %v1086 = vunpack.c.h.b16 %v361
    %v1087 = vunpack.c.l.b16 %v362
    %v1088 = vunpack.c.h.b16 %v362
    %v1089 = vunpack.c.l.b16 %v363
    %v1090 = vunpack.c.h.b16 %v363
    %v1091 = vunpack.c.l.b16 %v364
    %v1092 = vunpack.c.h.b16 %v364
    %v1093 = vunpack.c.l.b16 %v365
    %v1094 = vunpack.c.h.b16 %v365
    %v1095 = vunpack.c.l.b16 %v366
    %v1096 = vunpack.c.h.b16 %v366
    %v1097 = vunpack.c.l.b16 %v367
    %v1098 = vunpack.c.h.b16 %v367
    %v1099 = vunpack.c.l.b16 %v368
    %v1100 = vunpack.c.h.b16 %v368
    %v1101 = vunpack.c.l.b16 %v369
    %v1102 = vunpack.c.h.b16 %v369
    %v1103 = vunpack.c.l.b16 %v370
    %v1104 = vunpack.c.h.b16 %v370
    %v1105 = vunpack.c.l.b16 %v371
    %v1106 = vunpack.c.h.b16 %v371
    %v1107 = vunpack.c.l.b16 %v372
    %v1108 = vunpack.c.h.b16 %v372
    %v1109 = vunpack.c.l.b16 %v373
    %v1110 = vunpack.c.h.b16 %v373
    %v1111 = vunpack.c.l.b16 %v374
    %v1112 = vunpack.c.h.b16 %v374
    %v1113 = vunpack.c.l.b16 %v375
    %v1114 = vunpack.c.h.b16 %v375
    %v1115 = vunpack.c.l.b16 %v376
    %v1116 = vunpack.c.h.b16 %v376
    %v1117 = vunpack.c.l.b16 %v377
    %v1118 = vunpack.c.h.b16 %v377
    %v1119 = vunpack.c.l.b16 %v378
    %v1120 = vunpack.c.h.b16 %v378
    %v1121 = vunpack.c.l.b16 %v379
    %v1122 = vunpack.c.h.b16 %v379
    %v1123 = vunpack.c.l.b16 %v380
    %v1124 = vunpack.c.h.b16 %v380
    %v1125 = vunpack.c.l.b16 %v381
    %v1126 = vunpack.c.h.b16 %v381
    %v1127 = vunpack.c.l.b16 %v382
    %v1128 = vunpack.c.h.b16 %v382
    %v1129 = vunpack.c.l.b16 %v383
    %v1130 = vunpack.c.h.b16 %v383
    %v1131 = vunpack.c.l.b16 %v384
    %v1132 = vunpack.c.h.b16 %v384
    %v1133 = vunpack.c.l.b16 %v385
    %v1134 = vunpack.c.h.b16 %v385
    %v1135 = vunpack.c.l.b16 %v386
    %v1136 = vunpack.c.h.b16 %v386
    %v1137 = vunpack.c.l.b16 %v387
    %v1138 = vunpack.c.h.b16 %v387
    %v1139 = vunpack.c.l.b16 %v388
    %v1140 = vunpack.c.h.b16 %v388
    %v1141 = vunpack.c.l.b16 %v389
    %v1142 = vunpack.c.h.b16 %v389
    %v1143 = vunpack.c.l.b16 %v390
    %v1144 = vunpack.c.h.b16 %v390
    %v1145 = vunpack.c.l.b16 %v391
    %v1146 = vunpack.c.h.b16 %v391
    %v1147 = vunpack.c.l.b16 %v392
    %v1148 = vunpack.c.h.b16 %v392
    %v1149 = vunpack.c.l.b16 %v393
    %v1150 = vunpack.c.h.b16 %v393
    %v1151 = vunpack.c.l.b16 %v394
    %v1152 = vunpack.c.h.b16 %v394
    %v1153 = vunpack.c.l.b16 %v395
    %v1154 = vunpack.c.h.b16 %v395
    %v1155 = vunpack.c.l.b16 %v396
    %v1156 = vunpack.c.h.b16 %v396
    %v1157 = vunpack.c.l.b16 %v397
    %v1158 = vunpack.c.h.b16 %v397
    %v1159 = vunpack.c.l.b16 %v398
    %v1160 = vunpack.c.h.b16 %v398
    %v1161 = vunpack.c.l.b16 %v399
    %v1162 = vunpack.c.h.b16 %v399
    %v1163 = vunpack.c.l.b16 %v400
    %v1164 = vunpack.c.h.b16 %v400
    %v1165 = vunpack.c.l.b16 %v401
    %v1166 = vunpack.c.h.b16 %v401
    %v1167 = vunpack.c.l.b16 %v402
    %v1168 = vunpack.c.h.b16 %v402
    %v1169 = vunpack.c.l.b16 %v403
    %v1170 = vunpack.c.h.b16 %v403
    %v1171 = vunpack.c.l.b16 %v404
    %v1172 = vunpack.c.h.b16 %v404
    %v1173 = vunpack.c.l.b16 %v405
    %v1174 = vunpack.c.h.b16 %v405
    %v1175 = vunpack.c.l.b16 %v406
    %v1176 = vunpack.c.h.b16 %v406
    %v1177 = vunpack.c.l.b16 %v407
    %v1178 = vunpack.c.h.b16 %v407
    %v1179 = vunpack.c.l.b16 %v408
    %v1180 = vunpack.c.h.b16 %v408
    %v1181 = vunpack.c.l.b16 %v409
    %v1182 = vunpack.c.h.b16 %v409
    %v1183 = vunpack.c.l.b16 %v410
    %v1184 = vunpack.c.h.b16 %v410
    %v1185 = vunpack.c.l.b16 %v411
    %v1186 = vunpack.c.h.b16 %v411
    %v1187 = vunpack.c.l.b16 %v412
    %v1188 = vunpack.c.h.b16 %v412
    %v1189 = vunpack.c.l.b16 %v413
    %v1190 = vunpack.c.h.b16 %v413
    %v1191 = vunpack.c.l.b16 %v414
    %v1192 = vunpack.c.h.b16 %v414
    %v1193 = vunpack.c.l.b16 %v415
    %v1194 = vunpack.c.h.b16 %v415
    %v1195 = vunpack.c.l.b16 %v416
    %v1196 = vunpack.c.h.b16 %v416
    %v1197 = vunpack.c.l.b16 %v417
    %v1198 = vunpack.c.h.b16 %v417
    %v1199 = vunpack.c.l.b16 %v418
    %v1200 = vunpack.c.h.b16 %v418
    %v1201 = vunpack.c.l.b16 %v419
    %v1202 = vunpack.c.h.b16 %v419
    %v1203 = vunpack.c.l.b16 %v420
    %v1204 = vunpack.c.h.b16 %v420
    %v1205 = vunpack.c.l.b16 %v421
    %v1206 = vunpack.c.h.b16 %v421
    %v1207 = vunpack.c.l.b16 %v422
    %v1208 = vunpack.c.h.b16 %v422
    %v1209 = vunpack.c.l.b16 %v423
    %v1210 = vunpack.c.h.b16 %v423
    %v1211 = vunpack.c.l.b16 %v424
    %v1212 = vunpack.c.h.b16 %v424
    %v1213 = vunpack.c.l.b16 %v425
    %v1214 = vunpack.c.h.b16 %v425
    %v1215 = vunpack.c.l.b16 %v426
    %v1216 = vunpack.c.h.b16 %v426
    %v1217 = vunpack.c.l.b16 %v427
    %v1218 = vunpack.c.h.b16 %v427
    %v1219 = vunpack.c.l.b16 %v428
    %v1220 = vunpack.c.h.b16 %v428
    %v1221 = vunpack.c.l.b16 %v429
    %v1222 = vunpack.c.h.b16 %v429
    %v1223 = vunpack.c.l.b16 %v430
    %v1224 = vunpack.c.h.b16 %v430
    %v1225 = vunpack.c.l.b16 %v431
    %v1226 = vunpack.c.h.b16 %v431
    %v1227 = vunpack.c.l.b16 %v432
    %v1228 = vunpack.c.h.b16 %v432
    %v1229 = vunpack.c.l.b16 %v433
    %v1230 = vunpack.c.h.b16 %v433
    %v1231 = vunpack.c.l.b16 %v434
    %v1232 = vunpack.c.h.b16 %v434
    %v1233 = vunpack.c.l.b16 %v435
    %v1234 = vunpack.c.h.b16 %v435
    %v1235 = vunpack.c.l.b16 %v436
    %v1236 = vunpack.c.h.b16 %v436
    %v1237 = vunpack.c.l.b16 %v437
    %v1238 = vunpack.c.h.b16 %v437
    %v1239 = vunpack.c.l.b16 %v438
    %v1240 = vunpack.c.h.b16 %v438
    %v1241 = vunpack.c.l.b16 %v439
    %v1242 = vunpack.c.h.b16 %v439
    %v1243 = vunpack.c.l.b16 %v440
    %v1244 = vunpack.c.h.b16 %v440
    %v1245 = vunpack.c.l.b16 %v441
    %v1246 = vunpack.c.h.b16 %v441
    %v1247 = vunpack.c.l.b16 %v442
    %v1248 = vunpack.c.h.b16 %v442
    %v1249 = vunpack.c.l.b16 %v443
    %v1250 = vunpack.c.h.b16 %v443
    %v1251 = vunpack.c.l.b16 %v444
    %v1252 = vunpack.c.h.b16 %v444
    %v1253 = vunpack.c.l.b16 %v445
    %v1254 = vunpack.c.h.b16 %v445
    %v1255 = vunpack.c.l.b16 %v446
    %v1256 = vunpack.c.h.b16 %v446
    %v1257 = vunpack.c.l.b16 %v447
    %v1258 = vunpack.c.h.b16 %v447
    %v1259 = vunpack.c.l.b16 %v448
    %v1260 = vunpack.c.h.b16 %v448
    %v1261 = vunpack.c.l.b16 %v449
    %v1262 = vunpack.c.h.b16 %v449
    %v1263 = vunpack.c.l.b16 %v450
    %v1264 = vunpack.c.h.b16 %v450
    %v1265 = vunpack.c.l.b16 %v451
    %v1266 = vunpack.c.h.b16 %v451
    %v1267 = vunpack.c.l.b16 %v452
    %v1268 = vunpack.c.h.b16 %v452
    %v1269 = vunpack.c.l.b16 %v453
    %v1270 = vunpack.c.h.b16 %v453
    %v1271 = vunpack.c.l.b16 %v454
    %v1272 = vunpack.c.h.b16 %v454
    %v1273 = vunpack.c.l.b16 %v455
    %v1274 = vunpack.c.h.b16 %v455
    %v1275 = vunpack.c.l.b16 %v456
    %v1276 = vunpack.c.h.b16 %v456
    %v1277 = vunpack.c.l.b16 %v457
    %v1278 = vunpack.c.h.b16 %v457
    %v1279 = vunpack.c.l.b16 %v458
    %v1280 = vunpack.c.h.b16 %v458
    %v1281 = vunpack.c.l.b16 %v459
    %v1282 = vunpack.c.h.b16 %v459
    %v1283 = vunpack.c.l.b16 %v460
    %v1284 = vunpack.c.h.b16 %v460
    %v1285 = vunpack.c.l.b16 %v461
    %v1286 = vunpack.c.h.b16 %v461
    %v1287 = vunpack.c.l.b16 %v462
    %v1288 = vunpack.c.h.b16 %v462
    %v1289 = vunpack.c.l.b16 %v463
    %v1290 = vunpack.c.h.b16 %v463
    %v1291 = vunpack.c.l.b16 %v464
    %v1292 = vunpack.c.h.b16 %v464
    %v1293 = vunpack.c.l.b16 %v465
    %v1294 = vunpack.c.h.b16 %v465
    %v1295 = vunpack.c.l.b16 %v466
    %v1296 = vunpack.c.h.b16 %v466
    %v1297 = vpack.c.b16 %v789, %v785
    %v1298 = vpack.c.b16 %v790, %v786
    %v1299 = vpack.c.b16 %v791, %v787
    %v1300 = vpack.c.b16 %v792, %v788
    %v1301 = vpack.c.b16 %v797, %v793
    %v1302 = vpack.c.b16 %v798, %v794
    %v1303 = vpack.c.b16 %v799, %v795
    %v1304 = vpack.c.b16 %v800, %v796
    %v1305 = vpack.c.b16 %v805, %v801
    %v1306 = vpack.c.b16 %v806, %v802
    %v1307 = vpack.c.b16 %v807, %v803
    %v1308 = vpack.c.b16 %v808, %v804
    %v1309 = vpack.c.b16 %v813, %v809
    %v1310 = vpack.c.b16 %v814, %v810
    %v1311 = vpack.c.b16 %v815, %v811
    %v1312 = vpack.c.b16 %v816, %v812
    %v1313 = vpack.c.b16 %v821, %v817
    %v1314 = vpack.c.b16 %v822, %v818
    %v1315 = vpack.c.b16 %v823, %v819
    %v1316 = vpack.c.b16 %v824, %v820
    %v1317 = vpack.c.b16 %v829, %v825
    %v1318 = vpack.c.b16 %v830, %v826
    %v1319 = vpack.c.b16 %v831, %v827
    %v1320 = vpack.c.b16 %v832, %v828
    %v1321 = vpack.c.b16 %v837, %v833
    %v1322 = vpack.c.b16 %v838, %v834
    %v1323 = vpack.c.b16 %v839, %v835
    %v1324 = vpack.c.b16 %v840, %v836
    %v1325 = vpack.c.b16 %v845, %v841
    %v1326 = vpack.c.b16 %v846, %v842
    %v1327 = vpack.c.b16 %v847, %v843
    %v1328 = vpack.c.b16 %v848, %v844
    %v1329 = vpack.c.b16 %v853, %v849
    %v1330 = vpack.c.b16 %v854, %v850
    %v1331 = vpack.c.b16 %v855, %v851
    %v1332 = vpack.c.b16 %v856, %v852
    %v1333 = vpack.c.b16 %v861, %v857
    %v1334 = vpack.c.b16 %v862, %v858
    %v1335 = vpack.c.b16 %v863, %v859
    %v1336 = vpack.c.b16 %v864, %v860
    %v1337 = vpack.c.b16 %v869, %v865
    %v1338 = vpack.c.b16 %v870, %v866
    %v1339 = vpack.c.b16 %v871, %v867
    %v1340 = vpack.c.b16 %v872, %v868
    %v1341 = vpack.c.b16 %v877, %v873
    %v1342 = vpack.c.b16 %v878, %v874
    %v1343 = vpack.c.b16 %v879, %v875
    %v1344 = vpack.c.b16 %v880, %v876
    %v1345 = vpack.c.b16 %v885, %v881
    %v1346 = vpack.c.b16 %v886, %v882
    %v1347 = vpack.c.b16 %v887, %v883
    %v1348 = vpack.c.b16 %v888, %v884
    %v1349 = vpack.c.b16 %v893, %v889
    %v1350 = vpack.c.b16 %v894, %v890
    %v1351 = vpack.c.b16 %v895, %v891
    %v1352 = vpack.c.b16 %v896, %v892
    %v1353 = vpack.c.b16 %v901, %v897
    %v1354 = vpack.c.b16 %v902, %v898
    %v1355 = vpack.c.b16 %v903, %v899
    %v1356 = vpack.c.b16 %v904, %v900
    %v1357 = vpack.c.b16 %v909, %v905
    %v1358 = vpack.c.b16 %v910, %v906
    %v1359 = vpack.c.b16 %v911, %v907
    %v1360 = vpack.c.b16 %v912, %v908
    %v1361 = vpack.c.b16 %v917, %v913
    %v1362 = vpack.c.b16 %v918, %v914
    %v1363 = vpack.c.b16 %v919, %v915
    %v1364 = vpack.c.b16 %v920, %v916
    %v1365 = vpack.c.b16 %v925, %v921
    %v1366 = vpack.c.b16 %v926, %v922
    %v1367 = vpack.c.b16 %v927, %v923
    %v1368 = vpack.c.b16 %v928, %v924
    %v1369 = vpack.c.b16 %v933, %v929
    %v1370 = vpack.c.b16 %v934, %v930
    %v1371 = vpack.c.b16 %v935, %v931
    %v1372 = vpack.c.b16 %v936, %v932
    %v1373 = vpack.c.b16 %v941, %v937
    %v1374 = vpack.c.b16 %v942, %v938
    %v1375 = vpack.c.b16 %v943, %v939
    %v1376 = vpack.c.b16 %v944, %v940
    %v1377 = vpack.c.b16 %v949, %v945
    %v1378 = vpack.c.b16 %v950, %v946
    %v1379 = vpack.c.b16 %v951, %v947
    %v1380 = vpack.c.b16 %v952, %v948
    %v1381 = vpack.c.b16 %v957, %v953
    %v1382 = vpack.c.b16 %v958, %v954
    %v1383 = vpack.c.b16 %v959, %v955
    %v1384 = vpack.c.b16 %v960, %v956
    %v1385 = vpack.c.b16 %v965, %v961
    %v1386 = vpack.c.b16 %v966, %v962
    %v1387 = vpack.c.b16 %v967, %v963
    %v1388 = vpack.c.b16 %v968, %v964
    %v1389 = vpack.c.b16 %v973, %v969
    %v1390 = vpack.c.b16 %v974, %v970
    %v1391 = vpack.c.b16 %v975, %v971
    %v1392 = vpack.c.b16 %v976, %v972
    %v1393 = vpack.c.b16 %v981, %v977
    %v1394 = vpack.c.b16 %v982, %v978
    %v1395 = vpack.c.b16 %v983, %v979
    %v1396 = vpack.c.b16 %v984, %v980
    %v1397 = vpack.c.b16 %v989, %v985
    %v1398 = vpack.c.b16 %v990, %v986
    %v1399 = vpack.c.b16 %v991, %v987
    %v1400 = vpack.c.b16 %v992, %v988
    %v1401 = vpack.c.b16 %v997, %v993
    %v1402 = vpack.c.b16 %v998, %v994
    %v1403 = vpack.c.b16 %v999, %v995
    %v1404 = vpack.c.b16 %v1000, %v996
    %v1405 = vpack.c.b16 %v1005, %v1001
    %v1406 = vpack.c.b16 %v1006, %v1002
    %v1407 = vpack.c.b16 %v1007, %v1003
    %v1408 = vpack.c.b16 %v1008, %v1004
    %v1409 = vpack.c.b16 %v1013, %v1009
    %v1410 = vpack.c.b16 %v1014, %v1010
    %v1411 = vpack.c.b16 %v1015, %v1011
    %v1412 = vpack.c.b16 %v1016, %v1012
    %v1413 = vpack.c.b16 %v1021, %v1017
    %v1414 = vpack.c.b16 %v1022, %v1018
    %v1415 = vpack.c.b16 %v1023, %v1019
    %v1416 = vpack.c.b16 %v1024, %v1020
    %v1417 = vpack.c.b16 %v1029, %v1025
    %v1418 = vpack.c.b16 %v1030, %v1026
    %v1419 = vpack.c.b16 %v1031, %v1027
    %v1420 = vpack.c.b16 %v1032, %v1028
    %v1421 = vpack.c.b16 %v1037, %v1033
    %v1422 = vpack.c.b16 %v1038, %v1034
    %v1423 = vpack.c.b16 %v1039, %v1035
    %v1424 = vpack.c.b16 %v1040, %v1036
    %v1425 = vpack.c.b16 %v1045, %v1041
    %v1426 = vpack.c.b16 %v1046, %v1042
    %v1427 = vpack.c.b16 %v1047, %v1043
    %v1428 = vpack.c.b16 %v1048, %v1044
    %v1429 = vpack.c.b16 %v1053, %v1049
    %v1430 = vpack.c.b16 %v1054, %v1050
    %v1431 = vpack.c.b16 %v1055, %v1051
    %v1432 = vpack.c.b16 %v1056, %v1052
    %v1433 = vpack.c.b16 %v1061, %v1057
    %v1434 = vpack.c.b16 %v1062, %v1058
    %v1435 = vpack.c.b16 %v1063, %v1059
    %v1436 = vpack.c.b16 %v1064, %v1060
    %v1437 = vpack.c.b16 %v1069, %v1065
    %v1438 = vpack.c.b16 %v1070, %v1066
    %v1439 = vpack.c.b16 %v1071, %v1067
    %v1440 = vpack.c.b16 %v1072, %v1068
    %v1441 = vpack.c.b16 %v1077, %v1073
    %v1442 = vpack.c.b16 %v1078, %v1074
    %v1443 = vpack.c.b16 %v1079, %v1075
    %v1444 = vpack.c.b16 %v1080, %v1076
    %v1445 = vpack.c.b16 %v1085, %v1081
    %v1446 = vpack.c.b16 %v1086, %v1082
    %v1447 = vpack.c.b16 %v1087, %v1083
    %v1448 = vpack.c.b16 %v1088, %v1084
    %v1449 = vpack.c.b16 %v1093, %v1089
    %v1450 = vpack.c.b16 %v1094, %v1090
    %v1451 = vpack.c.b16 %v1095, %v1091
    %v1452 = vpack.c.b16 %v1096, %v1092
    %v1453 = vpack.c.b16 %v1101, %v1097
    %v1454 = vpack.c.b16 %v1102, %v1098
    %v1455 = vpack.c.b16 %v1103, %v1099
    %v1456 = vpack.c.b16 %v1104, %v1100
    %v1457 = vpack.c.b16 %v1109, %v1105
    %v1458 = vpack.c.b16 %v1110, %v1106
    %v1459 = vpack.c.b16 %v1111, %v1107
    %v1460 = vpack.c.b16 %v1112, %v1108
    %v1461 = vpack.c.b16 %v1117, %v1113
    %v1462 = vpack.c.b16 %v1118, %v1114
    %v1463 = vpack.c.b16 %v1119, %v1115
    %v1464 = vpack.c.b16 %v1120, %v1116
    %v1465 = vpack.c.b16 %v1125, %v1121
    %v1466 = vpack.c.b16 %v1126, %v1122
    %v1467 = vpack.c.b16 %v1127, %v1123
    %v1468 = vpack.c.b16 %v1128, %v1124
    %v1469 = vpack.c.b16 %v1133, %v1129
    %v1470 = vpack.c.b16 %v1134, %v1130
    %v1471 = vpack.c.b16 %v1135, %v1131
    %v1472 = vpack.c.b16 %v1136, %v1132
    %v1473 = vpack.c.b16 %v1141, %v1137
    %v1474 = vpack.c.b16 %v1142, %v1138
    %v1475 = vpack.c.b16 %v1143, %v1139
    %v1476 = vpack.c.b16 %v1144, %v1140
    %v1477 = vpack.c.b16 %v1149, %v1145
    %v1478 = vpack.c.b16 %v1150, %v1146
    %v1479 = vpack.c.b16 %v1151, %v1147
    %v1480 = vpack.c.b16 %v1152, %v1148
    %v1481 = vpack.c.b16 %v1157, %v1153
    %v1482 = vpack.c.b16 %v1158, %v1154
    %v1483 = vpack.c.b16 %v1159, %v1155
    %v1484 = vpack.c.b16 %v1160, %v1156
    %v1485 = vpack.c.b16 %v1165, %v1161
    %v1486 = vpack.c.b16 %v1166, %v1162
    %v1487 = vpack.c.b16 %v1167, %v1163
    %v1488 = vpack.c.b16 %v1168, %v1164
    %v1489 = vpack.c.b16 %v1173, %v1169
    %v1490 = vpack.c.b16 %v1174, %v1170
    %v1491 = vpack.c.b16 %v1175, %v1171
    %v1492 = vpack.c.b16 %v1176, %v1172
    %v1493 = vpack.c.b16 %v1181, %v1177
    %v1494 = vpack.c.b16 %v1182, %v1178
    %v1495 = vpack.c.b16 %v1183, %v1179
    %v1496 = vpack.c.b16 %v1184, %v1180
    %v1497 = vpack.c.b16 %v1189, %v1185
    %v1498 = vpack.c.b16 %v1190, %v1186
    %v1499 = vpack.c.b16 %v1191, %v1187
    %v1500 = vpack.c.b16 %v1192, %v1188
    %v1501 = vpack.c.b16 %v1197, %v1193
    %v1502 = vpack.c.b16 %v1198, %v1194
    %v1503 = vpack.c.b16 %v1199, %v1195
    %v1504 = vpack.c.b16 %v1200, %v1196
    %v1505 = vpack.c.b16 %v1205, %v1201
    %v1506 = vpack.c.b16 %v1206, %v1202
    %v1507 = vpack.c.b16 %v1207, %v1203
    %v1508 = vpack.c.b16 %v1208, %v1204
    %v1509 = vpack.c.b16 %v1213, %v1209
    %v1510 = vpack.c.b16 %v1214, %v1210
    %v1511 = vpack.c.b16 %v1215, %v1211
    %v1512 = vpack.c.b16 %v1216, %v1212
    %v1513 = vpack.c.b16 %v1221, %v1217
    %v1514 = vpack.c.b16 %v1222, %v1218
    %v1515 = vpack.c.b16 %v1223, %v1219
    %v1516 = vpack.c.b16 %v1224, %v1220
    %v1517 = vpack.c.b16 %v1229, %v1225
    %v1518 = vpack.c.b16 %v1230, %v1226
    %v1519 = vpack.c.b16 %v1231, %v1227
    %v1520 = vpack.c.b16 %v1232, %v1228
    %v1521 = vpack.c.b16 %v1237, %v1233
    %v1522 = vpack.c.b16 %v1238, %v1234
    %v1523 = vpack.c.b16 %v1239, %v1235
    %v1524 = vpack.c.b16 %v1240, %v1236
    %v1525 = vpack.c.b16 %v1245, %v1241
    %v1526 = vpack.c.b16 %v1246, %v1242
    %v1527 = vpack.c.b16 %v1247, %v1243
    %v1528 = vpack.c.b16 %v1248, %v1244
    %v1529 = vpack.c.b16 %v1253, %v1249
    %v1530 = vpack.c.b16 %v1254, %v1250
    %v1531 = vpack.c.b16 %v1255, %v1251
    %v1532 = vpack.c.b16 %v1256, %v1252
    %v1533 = vpack.c.b16 %v1261, %v1257
    %v1534 = vpack.c.b16 %v1262, %v1258
    %v1535 = vpack.c.b16 %v1263, %v1259
    %v1536 = vpack.c.b16 %v1264, %v1260
    %v1537 = vpack.c.b16 %v1269, %v1265
    %v1538 = vpack.c.b16 %v1270, %v1266
    %v1539 = vpack.c.b16 %v1271, %v1267
    %v1540 = vpack.c.b16 %v1272, %v1268
    %v1541 = vpack.c.b16 %v1277, %v1273
    %v1542 = vpack.c.b16 %v1278, %v1274
    %v1543 = vpack.c.b16 %v1279, %v1275
    %v1544 = vpack.c.b16 %v1280, %v1276
    %v1545 = vpack.c.b16 %v1285, %v1281
    %v1546 = vpack.c.b16 %v1286, %v1282
    %v1547 = vpack.c.b16 %v1287, %v1283
    %v1548 = vpack.c.b16 %v1288, %v1284
    %v1549 = vpack.c.b16 %v1293, %v1289
    %v1550 = vpack.c.b16 %v1294, %v1290
    %v1551 = vpack.c.b16 %v1295, %v1291
    %v1552 = vpack.c.b16 %v1296, %v1292
    %1809 = vmatprep.subr.bf16.mxu0 %v1326
    %1810 = vmatpush1.bf16.msra.mxu0 %v1325
    %1811 = vmatprep.subr.bf16.mxu0 %v1322
    %1812 = vmatpush1.bf16.msra.mxu0 %v1321
    %1813 = vmatprep.subr.bf16.mxu0 %v1318
    %1814 = vmatpush1.bf16.msra.mxu0 %v1317
    %1815 = vmatprep.subr.bf16.mxu0 %v1314
    %1816 = vmatpush1.bf16.msra.mxu0 %v1313
    %1817 = vmatprep.subr.bf16.mxu0 %v1310
    %1818 = vmatpush1.bf16.msra.mxu0 %v1309
    %1819 = vmatprep.subr.bf16.mxu0 %v1306
    %1820 = vmatpush1.bf16.msra.mxu0 %v1305
    %1821 = vmatprep.subr.bf16.mxu0 %v1302
    %1822 = vmatpush1.bf16.msra.mxu0 %v1301
    %1823 = vmatprep.subr.bf16.mxu0 %v1298
    %1824 = vmatpush1.bf16.msra.mxu0 %v1297
    %1825 = vmatprep.subr.bf16.mxu0 %v1358
    %1826 = vmatpush2.bf16.msra.mxu0 %v1357
    %1827 = vmatprep.subr.bf16.mxu0 %v1354
    %1828 = vmatpush2.bf16.msra.mxu0 %v1353
    %1829 = vmatprep.subr.bf16.mxu0 %v1350
    %1830 = vmatpush2.bf16.msra.mxu0 %v1349
    %1831 = vmatprep.subr.bf16.mxu0 %v1346
    %1832 = vmatpush2.bf16.msra.mxu0 %v1345
    %1833 = vmatprep.subr.bf16.mxu0 %v1342
    %1834 = vmatpush2.bf16.msra.mxu0 %v1341
    %1835 = vmatprep.subr.bf16.mxu0 %v1338
    %1836 = vmatpush2.bf16.msra.mxu0 %v1337
    %1837 = vmatprep.subr.bf16.mxu0 %v1334
    %1838 = vmatpush2.bf16.msra.mxu0 %v1333
    %1839 = vmatprep.subr.bf16.mxu0 %v1330
    %1840 = vmatpush2.bf16.msra.mxu0 %v1329
    %1841 = vmatprep.mubr.bf16.mxu0 %v514
    %1842 = vmatmul.mubr.bf16.gmra.mxu0 %v513
    %v1843 = vpop.f32.mrf.mxu0
    %v1844 = vadd.f32 %v472, %v1843
    %v1845 = vpop.f32.mrf.mxu0
    %v1846 = vadd.f32 %v476, %v1845
    %v1847 = vpop.f32.mrf.mxu0
    %v1848 = vadd.f32 %v472, %v1847
    %v1849 = vpop.f32.mrf.mxu0
    %v1850 = vadd.f32 %v476, %v1849
    %1851 = vdwg.mxu0
    %1852 = vmatprep.subr.bf16.mxu0 %v1390
    %1853 = vmatpush1.bf16.msra.mxu0 %v1389
    %1854 = vmatprep.subr.bf16.mxu0 %v1386
    %1855 = vmatpush1.bf16.msra.mxu0 %v1385
    %1856 = vmatprep.subr.bf16.mxu0 %v1382
    %1857 = vmatpush1.bf16.msra.mxu0 %v1381
    %1858 = vmatprep.subr.bf16.mxu0 %v1378
    %1859 = vmatpush1.bf16.msra.mxu0 %v1377
    %1860 = vmatprep.subr.bf16.mxu0 %v1374
    %1861 = vmatpush1.bf16.msra.mxu0 %v1373
    %1862 = vmatprep.subr.bf16.mxu0 %v1370
    %1863 = vmatpush1.bf16.msra.mxu0 %v1369
    %1864 = vmatprep.subr.bf16.mxu0 %v1366
    %1865 = vmatpush1.bf16.msra.mxu0 %v1365
    %1866 = vmatprep.subr.bf16.mxu0 %v1362
    %1867 = vmatpush1.bf16.msra.mxu0 %v1361
    %1868 = vmatprep.subr.bf16.mxu0 %v1422
    %1869 = vmatpush2.bf16.msra.mxu0 %v1421
    %1870 = vmatprep.subr.bf16.mxu0 %v1418
    %1871 = vmatpush2.bf16.msra.mxu0 %v1417
    %1872 = vmatprep.subr.bf16.mxu0 %v1414
    %1873 = vmatpush2.bf16.msra.mxu0 %v1413
    %1874 = vmatprep.subr.bf16.mxu0 %v1410
    %1875 = vmatpush2.bf16.msra.mxu0 %v1409
    %1876 = vmatprep.subr.bf16.mxu0 %v1406
    %1877 = vmatpush2.bf16.msra.mxu0 %v1405
    %1878 = vmatprep.subr.bf16.mxu0 %v1402
    %1879 = vmatpush2.bf16.msra.mxu0 %v1401
    %1880 = vmatprep.subr.bf16.mxu0 %v1398
    %1881 = vmatpush2.bf16.msra.mxu0 %v1397
    %1882 = vmatprep.subr.bf16.mxu0 %v1394
    %1883 = vmatpush2.bf16.msra.mxu0 %v1393
    %1884 = vmatprep.mubr.bf16.mxu0 %v516
    %1885 = vmatmul.mubr.bf16.gmra.mxu0 %v515
    %v1886 = vpop.f32.mrf.mxu0
    %v1887 = vadd.f32 %v1844, %v1886
    %v1888 = vpop.f32.mrf.mxu0
    %v1889 = vadd.f32 %v1846, %v1888
    %v1890 = vpop.f32.mrf.mxu0
    %v1891 = vadd.f32 %v1848, %v1890
    %v1892 = vpop.f32.mrf.mxu0
    %v1893 = vadd.f32 %v1850, %v1892
    %1894 = vdwg.mxu0
    %1895 = vmatprep.subr.bf16.mxu0 %v1454
    %1896 = vmatpush1.bf16.msra.mxu0 %v1453
    %1897 = vmatprep.subr.bf16.mxu0 %v1450
    %1898 = vmatpush1.bf16.msra.mxu0 %v1449
    %1899 = vmatprep.subr.bf16.mxu0 %v1446
    %1900 = vmatpush1.bf16.msra.mxu0 %v1445
    %1901 = vmatprep.subr.bf16.mxu0 %v1442
    %1902 = vmatpush1.bf16.msra.mxu0 %v1441
    %1903 = vmatprep.subr.bf16.mxu0 %v1438
    %1904 = vmatpush1.bf16.msra.mxu0 %v1437
    %1905 = vmatprep.subr.bf16.mxu0 %v1434
    %1906 = vmatpush1.bf16.msra.mxu0 %v1433
    %1907 = vmatprep.subr.bf16.mxu0 %v1430
    %1908 = vmatpush1.bf16.msra.mxu0 %v1429
    %1909 = vmatprep.subr.bf16.mxu0 %v1426
    %1910 = vmatpush1.bf16.msra.mxu0 %v1425
    %1911 = vmatprep.subr.bf16.mxu0 %v1486
    %1912 = vmatpush2.bf16.msra.mxu0 %v1485
    %1913 = vmatprep.subr.bf16.mxu0 %v1482
    %1914 = vmatpush2.bf16.msra.mxu0 %v1481
    %1915 = vmatprep.subr.bf16.mxu0 %v1478
    %1916 = vmatpush2.bf16.msra.mxu0 %v1477
    %1917 = vmatprep.subr.bf16.mxu0 %v1474
    %1918 = vmatpush2.bf16.msra.mxu0 %v1473
    %1919 = vmatprep.subr.bf16.mxu0 %v1470
    %1920 = vmatpush2.bf16.msra.mxu0 %v1469
    %1921 = vmatprep.subr.bf16.mxu0 %v1466
    %1922 = vmatpush2.bf16.msra.mxu0 %v1465
    %1923 = vmatprep.subr.bf16.mxu0 %v1462
    %1924 = vmatpush2.bf16.msra.mxu0 %v1461
    %1925 = vmatprep.subr.bf16.mxu0 %v1458
    %1926 = vmatpush2.bf16.msra.mxu0 %v1457
    %1927 = vmatprep.mubr.bf16.mxu0 %v518
    %1928 = vmatmul.mubr.bf16.gmra.mxu0 %v517
    %v1929 = vpop.f32.mrf.mxu0
    %v1930 = vadd.f32 %v1887, %v1929
    %v1931 = vpop.f32.mrf.mxu0
    %v1932 = vadd.f32 %v1889, %v1931
    %v1933 = vpop.f32.mrf.mxu0
    %v1934 = vadd.f32 %v1891, %v1933
    %v1935 = vpop.f32.mrf.mxu0
    %v1936 = vadd.f32 %v1893, %v1935
    %1937 = vdwg.mxu0
    %1938 = vmatprep.subr.bf16.mxu0 %v1518
    %1939 = vmatpush1.bf16.msra.mxu0 %v1517
    %1940 = vmatprep.subr.bf16.mxu0 %v1514
    %1941 = vmatpush1.bf16.msra.mxu0 %v1513
    %1942 = vmatprep.subr.bf16.mxu0 %v1510
    %1943 = vmatpush1.bf16.msra.mxu0 %v1509
    %1944 = vmatprep.subr.bf16.mxu0 %v1506
    %1945 = vmatpush1.bf16.msra.mxu0 %v1505
    %1946 = vmatprep.subr.bf16.mxu0 %v1502
    %1947 = vmatpush1.bf16.msra.mxu0 %v1501
    %1948 = vmatprep.subr.bf16.mxu0 %v1498
    %1949 = vmatpush1.bf16.msra.mxu0 %v1497
    %1950 = vmatprep.subr.bf16.mxu0 %v1494
    %1951 = vmatpush1.bf16.msra.mxu0 %v1493
    %1952 = vmatprep.subr.bf16.mxu0 %v1490
    %1953 = vmatpush1.bf16.msra.mxu0 %v1489
    %1954 = vmatprep.subr.bf16.mxu0 %v1550
    %1955 = vmatpush2.bf16.msra.mxu0 %v1549
    %1956 = vmatprep.subr.bf16.mxu0 %v1546
    %1957 = vmatpush2.bf16.msra.mxu0 %v1545
    %1958 = vmatprep.subr.bf16.mxu0 %v1542
    %1959 = vmatpush2.bf16.msra.mxu0 %v1541
    %1960 = vmatprep.subr.bf16.mxu0 %v1538
    %1961 = vmatpush2.bf16.msra.mxu0 %v1537
    %1962 = vmatprep.subr.bf16.mxu0 %v1534
    %1963 = vmatpush2.bf16.msra.mxu0 %v1533
    %1964 = vmatprep.subr.bf16.mxu0 %v1530
    %1965 = vmatpush2.bf16.msra.mxu0 %v1529
    %1966 = vmatprep.subr.bf16.mxu0 %v1526
    %1967 = vmatpush2.bf16.msra.mxu0 %v1525
    %1968 = vmatprep.subr.bf16.mxu0 %v1522
    %1969 = vmatpush2.bf16.msra.mxu0 %v1521
    %1970 = vmatprep.mubr.bf16.mxu0 %v520
    %1971 = vmatmul.mubr.bf16.gmra.mxu0 %v519
    %v1972 = vpop.f32.mrf.mxu0
    %v1973 = vadd.f32 %v1930, %v1972
    %v1974 = vpop.f32.mrf.mxu0
    %v1975 = vadd.f32 %v1932, %v1974
    %v1976 = vpop.f32.mrf.mxu0
    %v1977 = vadd.f32 %v1934, %v1976
    %v1978 = vpop.f32.mrf.mxu0
    %v1979 = vadd.f32 %v1936, %v1978
    %1980 = vdwg.mxu0
    %1981 = vmatprep.subr.bf16.mxu0 %v1328
    %1982 = vmatpush1.bf16.msra.mxu0 %v1327
    %1983 = vmatprep.subr.bf16.mxu0 %v1324
    %1984 = vmatpush1.bf16.msra.mxu0 %v1323
    %1985 = vmatprep.subr.bf16.mxu0 %v1320
    %1986 = vmatpush1.bf16.msra.mxu0 %v1319
    %1987 = vmatprep.subr.bf16.mxu0 %v1316
    %1988 = vmatpush1.bf16.msra.mxu0 %v1315
    %1989 = vmatprep.subr.bf16.mxu0 %v1312
    %1990 = vmatpush1.bf16.msra.mxu0 %v1311
    %1991 = vmatprep.subr.bf16.mxu0 %v1308
    %1992 = vmatpush1.bf16.msra.mxu0 %v1307
    %1993 = vmatprep.subr.bf16.mxu0 %v1304
    %1994 = vmatpush1.bf16.msra.mxu0 %v1303
    %1995 = vmatprep.subr.bf16.mxu0 %v1300
    %1996 = vmatpush1.bf16.msra.mxu0 %v1299
    %1997 = vmatprep.subr.bf16.mxu0 %v1360
    %1998 = vmatpush2.bf16.msra.mxu0 %v1359
    %1999 = vmatprep.subr.bf16.mxu0 %v1356
    %2000 = vmatpush2.bf16.msra.mxu0 %v1355
    %2001 = vmatprep.subr.bf16.mxu0 %v1352
    %2002 = vmatpush2.bf16.msra.mxu0 %v1351
    %2003 = vmatprep.subr.bf16.mxu0 %v1348
    %2004 = vmatpush2.bf16.msra.mxu0 %v1347
    %2005 = vmatprep.subr.bf16.mxu0 %v1344
    %2006 = vmatpush2.bf16.msra.mxu0 %v1343
    %2007 = vmatprep.subr.bf16.mxu0 %v1340
    %2008 = vmatpush2.bf16.msra.mxu0 %v1339
    %2009 = vmatprep.subr.bf16.mxu0 %v1336
    %2010 = vmatpush2.bf16.msra.mxu0 %v1335
    %2011 = vmatprep.subr.bf16.mxu0 %v1332
    %2012 = vmatpush2.bf16.msra.mxu0 %v1331
    %2013 = vmatprep.mubr.bf16.mxu0 %v514
    %2014 = vmatmul.mubr.bf16.gmra.mxu0 %v513
    %v2015 = vpop.f32.mrf.mxu0
    %v2016 = vadd.f32 %v480, %v2015
    %v2017 = vpop.f32.mrf.mxu0
    %v2018 = vadd.f32 %v484, %v2017
    %v2019 = vpop.f32.mrf.mxu0
    %v2020 = vadd.f32 %v480, %v2019
    %v2021 = vpop.f32.mrf.mxu0
    %v2022 = vadd.f32 %v484, %v2021
    %2023 = vdwg.mxu0
    %2024 = vmatprep.subr.bf16.mxu0 %v1392
    %2025 = vmatpush1.bf16.msra.mxu0 %v1391
    %2026 = vmatprep.subr.bf16.mxu0 %v1388
    %2027 = vmatpush1.bf16.msra.mxu0 %v1387
    %2028 = vmatprep.subr.bf16.mxu0 %v1384
    %2029 = vmatpush1.bf16.msra.mxu0 %v1383
    %2030 = vmatprep.subr.bf16.mxu0 %v1380
    %2031 = vmatpush1.bf16.msra.mxu0 %v1379
    %2032 = vmatprep.subr.bf16.mxu0 %v1376
    %2033 = vmatpush1.bf16.msra.mxu0 %v1375
    %2034 = vmatprep.subr.bf16.mxu0 %v1372
    %2035 = vmatpush1.bf16.msra.mxu0 %v1371
    %2036 = vmatprep.subr.bf16.mxu0 %v1368
    %2037 = vmatpush1.bf16.msra.mxu0 %v1367
    %2038 = vmatprep.subr.bf16.mxu0 %v1364
    %2039 = vmatpush1.bf16.msra.mxu0 %v1363
    %2040 = vmatprep.subr.bf16.mxu0 %v1424
    %2041 = vmatpush2.bf16.msra.mxu0 %v1423
    %2042 = vmatprep.subr.bf16.mxu0 %v1420
    %2043 = vmatpush2.bf16.msra.mxu0 %v1419
    %2044 = vmatprep.subr.bf16.mxu0 %v1416
    %2045 = vmatpush2.bf16.msra.mxu0 %v1415
    %2046 = vmatprep.subr.bf16.mxu0 %v1412
    %2047 = vmatpush2.bf16.msra.mxu0 %v1411
    %2048 = vmatprep.subr.bf16.mxu0 %v1408
    %2049 = vmatpush2.bf16.msra.mxu0 %v1407
    %2050 = vmatprep.subr.bf16.mxu0 %v1404
    %2051 = vmatpush2.bf16.msra.mxu0 %v1403
    %2052 = vmatprep.subr.bf16.mxu0 %v1400
    %2053 = vmatpush2.bf16.msra.mxu0 %v1399
    %2054 = vmatprep.subr.bf16.mxu0 %v1396
    %2055 = vmatpush2.bf16.msra.mxu0 %v1395
    %2056 = vmatprep.mubr.bf16.mxu0 %v516
    %2057 = vmatmul.mubr.bf16.gmra.mxu0 %v515
    %v2058 = vpop.f32.mrf.mxu0
    %v2059 = vadd.f32 %v2016, %v2058
    %v2060 = vpop.f32.mrf.mxu0
    %v2061 = vadd.f32 %v2018, %v2060
    %v2062 = vpop.f32.mrf.mxu0
    %v2063 = vadd.f32 %v2020, %v2062
    %v2064 = vpop.f32.mrf.mxu0
    %v2065 = vadd.f32 %v2022, %v2064
    %2066 = vdwg.mxu0
    %2067 = vmatprep.subr.bf16.mxu0 %v1456
    %2068 = vmatpush1.bf16.msra.mxu0 %v1455
    %2069 = vmatprep.subr.bf16.mxu0 %v1452
    %2070 = vmatpush1.bf16.msra.mxu0 %v1451
    %2071 = vmatprep.subr.bf16.mxu0 %v1448
    %2072 = vmatpush1.bf16.msra.mxu0 %v1447
    %2073 = vmatprep.subr.bf16.mxu0 %v1444
    %2074 = vmatpush1.bf16.msra.mxu0 %v1443
    %2075 = vmatprep.subr.bf16.mxu0 %v1440
    %2076 = vmatpush1.bf16.msra.mxu0 %v1439
    %2077 = vmatprep.subr.bf16.mxu0 %v1436
    %2078 = vmatpush1.bf16.msra.mxu0 %v1435
    %2079 = vmatprep.subr.bf16.mxu0 %v1432
    %2080 = vmatpush1.bf16.msra.mxu0 %v1431
    %2081 = vmatprep.subr.bf16.mxu0 %v1428
    %2082 = vmatpush1.bf16.msra.mxu0 %v1427
    %2083 = vmatprep.subr.bf16.mxu0 %v1488
    %2084 = vmatpush2.bf16.msra.mxu0 %v1487
    %2085 = vmatprep.subr.bf16.mxu0 %v1484
    %2086 = vmatpush2.bf16.msra.mxu0 %v1483
    %2087 = vmatprep.subr.bf16.mxu0 %v1480
    %2088 = vmatpush2.bf16.msra.mxu0 %v1479
    %2089 = vmatprep.subr.bf16.mxu0 %v1476
    %2090 = vmatpush2.bf16.msra.mxu0 %v1475
    %2091 = vmatprep.subr.bf16.mxu0 %v1472
    %2092 = vmatpush2.bf16.msra.mxu0 %v1471
    %2093 = vmatprep.subr.bf16.mxu0 %v1468
    %2094 = vmatpush2.bf16.msra.mxu0 %v1467
    %2095 = vmatprep.subr.bf16.mxu0 %v1464
    %2096 = vmatpush2.bf16.msra.mxu0 %v1463
    %2097 = vmatprep.subr.bf16.mxu0 %v1460
    %2098 = vmatpush2.bf16.msra.mxu0 %v1459
    %2099 = vmatprep.mubr.bf16.mxu0 %v518
    %2100 = vmatmul.mubr.bf16.gmra.mxu0 %v517
    %v2101 = vpop.f32.mrf.mxu0
    %v2102 = vadd.f32 %v2059, %v2101
    %v2103 = vpop.f32.mrf.mxu0
    %v2104 = vadd.f32 %v2061, %v2103
    %v2105 = vpop.f32.mrf.mxu0
    %v2106 = vadd.f32 %v2063, %v2105
    %v2107 = vpop.f32.mrf.mxu0
    %v2108 = vadd.f32 %v2065, %v2107
    %2109 = vdwg.mxu0
    %2110 = vmatprep.subr.bf16.mxu0 %v1520
    %2111 = vmatpush1.bf16.msra.mxu0 %v1519
    %2112 = vmatprep.subr.bf16.mxu0 %v1516
    %2113 = vmatpush1.bf16.msra.mxu0 %v1515
    %2114 = vmatprep.subr.bf16.mxu0 %v1512
    %2115 = vmatpush1.bf16.msra.mxu0 %v1511
    %2116 = vmatprep.subr.bf16.mxu0 %v1508
    %2117 = vmatpush1.bf16.msra.mxu0 %v1507
    %2118 = vmatprep.subr.bf16.mxu0 %v1504
    %2119 = vmatpush1.bf16.msra.mxu0 %v1503
    %2120 = vmatprep.subr.bf16.mxu0 %v1500
    %2121 = vmatpush1.bf16.msra.mxu0 %v1499
    %2122 = vmatprep.subr.bf16.mxu0 %v1496
    %2123 = vmatpush1.bf16.msra.mxu0 %v1495
    %2124 = vmatprep.subr.bf16.mxu0 %v1492
    %2125 = vmatpush1.bf16.msra.mxu0 %v1491
    %2126 = vmatprep.subr.bf16.mxu0 %v1552
    %2127 = vmatpush2.bf16.msra.mxu0 %v1551
    %2128 = vmatprep.subr.bf16.mxu0 %v1548
    %2129 = vmatpush2.bf16.msra.mxu0 %v1547
    %2130 = vmatprep.subr.bf16.mxu0 %v1544
    %2131 = vmatpush2.bf16.msra.mxu0 %v1543
    %2132 = vmatprep.subr.bf16.mxu0 %v1540
    %2133 = vmatpush2.bf16.msra.mxu0 %v1539
    %2134 = vmatprep.subr.bf16.mxu0 %v1536
    %2135 = vmatpush2.bf16.msra.mxu0 %v1535
    %2136 = vmatprep.subr.bf16.mxu0 %v1532
    %2137 = vmatpush2.bf16.msra.mxu0 %v1531
    %2138 = vmatprep.subr.bf16.mxu0 %v1528
    %2139 = vmatpush2.bf16.msra.mxu0 %v1527
    %2140 = vmatprep.subr.bf16.mxu0 %v1524
    %2141 = vmatpush2.bf16.msra.mxu0 %v1523
    %2142 = vmatprep.mubr.bf16.mxu0 %v520
    %2143 = vmatmul.mubr.bf16.gmra.mxu0 %v519
    %v2144 = vpop.f32.mrf.mxu0
    %v2145 = vadd.f32 %v2102, %v2144
    %v2146 = vpop.f32.mrf.mxu0
    %v2147 = vadd.f32 %v2104, %v2146
    %v2148 = vpop.f32.mrf.mxu0
    %v2149 = vadd.f32 %v2106, %v2148
    %v2150 = vpop.f32.mrf.mxu0
    %v2151 = vadd.f32 %v2108, %v2150
    %2152 = vdwg.mxu0
    %v2153 = vmax.f32 %v1973, 0.0
    %v2154 = vmax.f32 %v1975, 0.0
    %v2155 = vmax.f32 %v2145, 0.0
    %v2156 = vmax.f32 %v2147, 0.0
    %v2157 = vmax.f32 %v1977, 0.0
    %v2158 = vmax.f32 %v1979, 0.0
    %v2159 = vmax.f32 %v2149, 0.0
    %v2160 = vmax.f32 %v2151, 0.0
    %v2161 = vpack.c.bf16 %v2157, %v2153
    %v2162 = vpack.c.bf16 %v2158, %v2154
    %v2163 = vpack.c.bf16 %v2159, %v2155
    %v2164 = vpack.c.bf16 %v2160, %v2156
    %v2165 = vld [vmem:[#allocation8] sm:$0xff]
    %v2166 = vld [vmem:[#allocation8 + $0x8] sm:$0xff]
    %v2167 = vld [vmem:[#allocation8 + $0x10] sm:$0xff]
    %v2168 = vld [vmem:[#allocation8 + $0x18] sm:$0xff]
    %v2169 = vld [vmem:[#allocation8 + $0x20] sm:$0xff]
    %v2170 = vld [vmem:[#allocation8 + $0x28] sm:$0xff]
    %v2171 = vld [vmem:[#allocation8 + $0x30] sm:$0xff]
    %v2172 = vld [vmem:[#allocation8 + $0x38] sm:$0xff]
    %v2173 = vld [vmem:[#allocation8 + $0x40] sm:$0xff]
    %v2174 = vld [vmem:[#allocation8 + $0x48] sm:$0xff]
    %v2175 = vld [vmem:[#allocation8 + $0x50] sm:$0xff]
    %v2176 = vld [vmem:[#allocation8 + $0x58] sm:$0xff]
    %v2177 = vld [vmem:[#allocation8 + $0x60] sm:$0xff]
    %v2178 = vld [vmem:[#allocation8 + $0x68] sm:$0xff]
    %v2179 = vld [vmem:[#allocation8 + $0x70] sm:$0xff]
    %v2180 = vld [vmem:[#allocation8 + $0x78] sm:$0xff]
    %v2181 = vld [vmem:[#allocation8 + $0x80] sm:$0xff]
    %v2182 = vld [vmem:[#allocation8 + $0x88] sm:$0xff]
    %v2183 = vld [vmem:[#allocation8 + $0x90] sm:$0xff]
    %v2184 = vld [vmem:[#allocation8 + $0x98] sm:$0xff]
    %v2185 = vld [vmem:[#allocation8 + $0xa0] sm:$0xff]
    %v2186 = vld [vmem:[#allocation8 + $0xa8] sm:$0xff]
    %v2187 = vld [vmem:[#allocation8 + $0xb0] sm:$0xff]
    %v2188 = vld [vmem:[#allocation8 + $0xb8] sm:$0xff]
    %v2189 = vld [vmem:[#allocation8 + $0xc0] sm:$0xff]
    %v2190 = vld [vmem:[#allocation8 + $0xc8] sm:$0xff]
    %v2191 = vld [vmem:[#allocation8 + $0xd0] sm:$0xff]
    %v2192 = vld [vmem:[#allocation8 + $0xd8] sm:$0xff]
    %v2193 = vld [vmem:[#allocation8 + $0xe0] sm:$0xff]
    %v2194 = vld [vmem:[#allocation8 + $0xe8] sm:$0xff]
    %v2195 = vld [vmem:[#allocation8 + $0xf0] sm:$0xff]
    %v2196 = vld [vmem:[#allocation8 + $0xf8] sm:$0xff]
    %v2197 = vld [vmem:[#allocation8 + $0x100] sm:$0xff]
    %v2198 = vld [vmem:[#allocation8 + $0x108] sm:$0xff]
    %v2199 = vld [vmem:[#allocation8 + $0x110] sm:$0xff]
    %v2200 = vld [vmem:[#allocation8 + $0x118] sm:$0xff]
    %v2201 = vld [vmem:[#allocation8 + $0x120] sm:$0xff]
    %v2202 = vld [vmem:[#allocation8 + $0x128] sm:$0xff]
    %v2203 = vld [vmem:[#allocation8 + $0x130] sm:$0xff]
    %v2204 = vld [vmem:[#allocation8 + $0x138] sm:$0xff]
    %v2205 = vld [vmem:[#allocation8 + $0x140] sm:$0xff]
    %v2206 = vld [vmem:[#allocation8 + $0x148] sm:$0xff]
    %v2207 = vld [vmem:[#allocation8 + $0x150] sm:$0xff]
    %v2208 = vld [vmem:[#allocation8 + $0x158] sm:$0xff]
    %v2209 = vld [vmem:[#allocation8 + $0x160] sm:$0xff]
    %v2210 = vld [vmem:[#allocation8 + $0x168] sm:$0xff]
    %v2211 = vld [vmem:[#allocation8 + $0x170] sm:$0xff]
    %v2212 = vld [vmem:[#allocation8 + $0x178] sm:$0xff]
    %v2213 = vld [vmem:[#allocation8 + $0x180] sm:$0xff]
    %v2214 = vld [vmem:[#allocation8 + $0x188] sm:$0xff]
    %v2215 = vld [vmem:[#allocation8 + $0x190] sm:$0xff]
    %v2216 = vld [vmem:[#allocation8 + $0x198] sm:$0xff]
    %v2217 = vld [vmem:[#allocation8 + $0x1a0] sm:$0xff]
    %v2218 = vld [vmem:[#allocation8 + $0x1a8] sm:$0xff]
    %v2219 = vld [vmem:[#allocation8 + $0x1b0] sm:$0xff]
    %v2220 = vld [vmem:[#allocation8 + $0x1b8] sm:$0xff]
    %v2221 = vld [vmem:[#allocation8 + $0x1c0] sm:$0xff]
    %v2222 = vld [vmem:[#allocation8 + $0x1c8] sm:$0xff]
    %v2223 = vld [vmem:[#allocation8 + $0x1d0] sm:$0xff]
    %v2224 = vld [vmem:[#allocation8 + $0x1d8] sm:$0xff]
    %v2225 = vld [vmem:[#allocation8 + $0x1e0] sm:$0xff]
    %v2226 = vld [vmem:[#allocation8 + $0x1e8] sm:$0xff]
    %v2227 = vld [vmem:[#allocation8 + $0x1f0] sm:$0xff]
    %v2228 = vld [vmem:[#allocation8 + $0x1f8] sm:$0xff]
    %v2229 = vld [vmem:[#allocation9] sm:$0x3]
    %v2231 = vlaneseq
    %v2232 = vshrl.u32 %v2231, 7
    %v2233 = vsub.s32 0, %v2232
    %v2234 = vrot.slane %v2229, %v2233
    %v2235 = vlaneseq
    %v2236 = vshrl.u32 %v2235, 7
    %v2237 = vsub.s32 1, %v2236
    %v2238 = vrot.slane %v2229, %v2237
    %v2305 = vunpack.c.l.b16 %v2165
    %v2306 = vunpack.c.h.b16 %v2165
    %v2307 = vunpack.c.l.b16 %v2166
    %v2308 = vunpack.c.h.b16 %v2166
    %v2309 = vunpack.c.l.b16 %v2167
    %v2310 = vunpack.c.h.b16 %v2167
    %v2311 = vunpack.c.l.b16 %v2168
    %v2312 = vunpack.c.h.b16 %v2168
    %v2313 = vunpack.c.l.b16 %v2169
    %v2314 = vunpack.c.h.b16 %v2169
    %v2315 = vunpack.c.l.b16 %v2170
    %v2316 = vunpack.c.h.b16 %v2170
    %v2317 = vunpack.c.l.b16 %v2171
    %v2318 = vunpack.c.h.b16 %v2171
    %v2319 = vunpack.c.l.b16 %v2172
    %v2320 = vunpack.c.h.b16 %v2172
    %v2321 = vunpack.c.l.b16 %v2173
    %v2322 = vunpack.c.h.b16 %v2173
    %v2323 = vunpack.c.l.b16 %v2174
    %v2324 = vunpack.c.h.b16 %v2174
    %v2325 = vunpack.c.l.b16 %v2175
    %v2326 = vunpack.c.h.b16 %v2175
    %v2327 = vunpack.c.l.b16 %v2176
    %v2328 = vunpack.c.h.b16 %v2176
    %v2329 = vunpack.c.l.b16 %v2177
    %v2330 = vunpack.c.h.b16 %v2177
    %v2331 = vunpack.c.l.b16 %v2178
    %v2332 = vunpack.c.h.b16 %v2178
    %v2333 = vunpack.c.l.b16 %v2179
    %v2334 = vunpack.c.h.b16 %v2179
    %v2335 = vunpack.c.l.b16 %v2180
    %v2336 = vunpack.c.h.b16 %v2180
    %v2337 = vunpack.c.l.b16 %v2181
    %v2338 = vunpack.c.h.b16 %v2181
    %v2339 = vunpack.c.l.b16 %v2182
    %v2340 = vunpack.c.h.b16 %v2182
    %v2341 = vunpack.c.l.b16 %v2183
    %v2342 = vunpack.c.h.b16 %v2183
    %v2343 = vunpack.c.l.b16 %v2184
    %v2344 = vunpack.c.h.b16 %v2184
    %v2345 = vunpack.c.l.b16 %v2185
    %v2346 = vunpack.c.h.b16 %v2185
    %v2347 = vunpack.c.l.b16 %v2186
    %v2348 = vunpack.c.h.b16 %v2186
    %v2349 = vunpack.c.l.b16 %v2187
    %v2350 = vunpack.c.h.b16 %v2187
    %v2351 = vunpack.c.l.b16 %v2188
    %v2352 = vunpack.c.h.b16 %v2188
    %v2353 = vunpack.c.l.b16 %v2189
    %v2354 = vunpack.c.h.b16 %v2189
    %v2355 = vunpack.c.l.b16 %v2190
    %v2356 = vunpack.c.h.b16 %v2190
    %v2357 = vunpack.c.l.b16 %v2191
    %v2358 = vunpack.c.h.b16 %v2191
    %v2359 = vunpack.c.l.b16 %v2192
    %v2360 = vunpack.c.h.b16 %v2192
    %v2361 = vunpack.c.l.b16 %v2193
    %v2362 = vunpack.c.h.b16 %v2193
    %v2363 = vunpack.c.l.b16 %v2194
    %v2364 = vunpack.c.h.b16 %v2194
    %v2365 = vunpack.c.l.b16 %v2195
    %v2366 = vunpack.c.h.b16 %v2195
    %v2367 = vunpack.c.l.b16 %v2196
    %v2368 = vunpack.c.h.b16 %v2196
    %v2369 = vunpack.c.l.b16 %v2197
    %v2370 = vunpack.c.h.b16 %v2197
    %v2371 = vunpack.c.l.b16 %v2198
    %v2372 = vunpack.c.h.b16 %v2198
    %v2373 = vunpack.c.l.b16 %v2199
    %v2374 = vunpack.c.h.b16 %v2199
    %v2375 = vunpack.c.l.b16 %v2200
    %v2376 = vunpack.c.h.b16 %v2200
    %v2377 = vunpack.c.l.b16 %v2201
    %v2378 = vunpack.c.h.b16 %v2201
    %v2379 = vunpack.c.l.b16 %v2202
    %v2380 = vunpack.c.h.b16 %v2202
    %v2381 = vunpack.c.l.b16 %v2203
    %v2382 = vunpack.c.h.b16 %v2203
    %v2383 = vunpack.c.l.b16 %v2204
    %v2384 = vunpack.c.h.b16 %v2204
    %v2385 = vunpack.c.l.b16 %v2205
    %v2386 = vunpack.c.h.b16 %v2205
    %v2387 = vunpack.c.l.b16 %v2206
    %v2388 = vunpack.c.h.b16 %v2206
    %v2389 = vunpack.c.l.b16 %v2207
    %v2390 = vunpack.c.h.b16 %v2207
    %v2391 = vunpack.c.l.b16 %v2208
    %v2392 = vunpack.c.h.b16 %v2208
    %v2393 = vunpack.c.l.b16 %v2209
    %v2394 = vunpack.c.h.b16 %v2209
    %v2395 = vunpack.c.l.b16 %v2210
    %v2396 = vunpack.c.h.b16 %v2210
    %v2397 = vunpack.c.l.b16 %v2211
    %v2398 = vunpack.c.h.b16 %v2211
    %v2399 = vunpack.c.l.b16 %v2212
    %v2400 = vunpack.c.h.b16 %v2212
    %v2401 = vunpack.c.l.b16 %v2213
    %v2402 = vunpack.c.h.b16 %v2213
    %v2403 = vunpack.c.l.b16 %v2214
    %v2404 = vunpack.c.h.b16 %v2214
    %v2405 = vunpack.c.l.b16 %v2215
    %v2406 = vunpack.c.h.b16 %v2215
    %v2407 = vunpack.c.l.b16 %v2216
    %v2408 = vunpack.c.h.b16 %v2216
    %v2409 = vunpack.c.l.b16 %v2217
    %v2410 = vunpack.c.h.b16 %v2217
    %v2411 = vunpack.c.l.b16 %v2218
    %v2412 = vunpack.c.h.b16 %v2218
    %v2413 = vunpack.c.l.b16 %v2219
    %v2414 = vunpack.c.h.b16 %v2219
    %v2415 = vunpack.c.l.b16 %v2220
    %v2416 = vunpack.c.h.b16 %v2220
    %v2417 = vunpack.c.l.b16 %v2221
    %v2418 = vunpack.c.h.b16 %v2221
    %v2419 = vunpack.c.l.b16 %v2222
    %v2420 = vunpack.c.h.b16 %v2222
    %v2421 = vunpack.c.l.b16 %v2223
    %v2422 = vunpack.c.h.b16 %v2223
    %v2423 = vunpack.c.l.b16 %v2224
    %v2424 = vunpack.c.h.b16 %v2224
    %v2425 = vunpack.c.l.b16 %v2225
    %v2426 = vunpack.c.h.b16 %v2225
    %v2427 = vunpack.c.l.b16 %v2226
    %v2428 = vunpack.c.h.b16 %v2226
    %v2429 = vunpack.c.l.b16 %v2227
    %v2430 = vunpack.c.h.b16 %v2227
    %v2431 = vunpack.c.l.b16 %v2228
    %v2432 = vunpack.c.h.b16 %v2228
    %v2433 = vpack.c.b16 %v2307, %v2305
    %v2434 = vpack.c.b16 %v2308, %v2306
    %v2435 = vpack.c.b16 %v2311, %v2309
    %v2436 = vpack.c.b16 %v2312, %v2310
    %v2437 = vpack.c.b16 %v2315, %v2313
    %v2438 = vpack.c.b16 %v2316, %v2314
    %v2439 = vpack.c.b16 %v2319, %v2317
    %v2440 = vpack.c.b16 %v2320, %v2318
    %v2441 = vpack.c.b16 %v2323, %v2321
    %v2442 = vpack.c.b16 %v2324, %v2322
    %v2443 = vpack.c.b16 %v2327, %v2325
    %v2444 = vpack.c.b16 %v2328, %v2326
    %v2445 = vpack.c.b16 %v2331, %v2329
    %v2446 = vpack.c.b16 %v2332, %v2330
    %v2447 = vpack.c.b16 %v2335, %v2333
    %v2448 = vpack.c.b16 %v2336, %v2334
    %v2449 = vpack.c.b16 %v2339, %v2337
    %v2450 = vpack.c.b16 %v2340, %v2338
    %v2451 = vpack.c.b16 %v2343, %v2341
    %v2452 = vpack.c.b16 %v2344, %v2342
    %v2453 = vpack.c.b16 %v2347, %v2345
    %v2454 = vpack.c.b16 %v2348, %v2346
    %v2455 = vpack.c.b16 %v2351, %v2349
    %v2456 = vpack.c.b16 %v2352, %v2350
    %v2457 = vpack.c.b16 %v2355, %v2353
    %v2458 = vpack.c.b16 %v2356, %v2354
    %v2459 = vpack.c.b16 %v2359, %v2357
    %v2460 = vpack.c.b16 %v2360, %v2358
    %v2461 = vpack.c.b16 %v2363, %v2361
    %v2462 = vpack.c.b16 %v2364, %v2362
    %v2463 = vpack.c.b16 %v2367, %v2365
    %v2464 = vpack.c.b16 %v2368, %v2366
    %v2465 = vpack.c.b16 %v2371, %v2369
    %v2466 = vpack.c.b16 %v2372, %v2370
    %v2467 = vpack.c.b16 %v2375, %v2373
    %v2468 = vpack.c.b16 %v2376, %v2374
    %v2469 = vpack.c.b16 %v2379, %v2377
    %v2470 = vpack.c.b16 %v2380, %v2378
    %v2471 = vpack.c.b16 %v2383, %v2381
    %v2472 = vpack.c.b16 %v2384, %v2382
    %v2473 = vpack.c.b16 %v2387, %v2385
    %v2474 = vpack.c.b16 %v2388, %v2386
    %v2475 = vpack.c.b16 %v2391, %v2389
    %v2476 = vpack.c.b16 %v2392, %v2390
    %v2477 = vpack.c.b16 %v2395, %v2393
    %v2478 = vpack.c.b16 %v2396, %v2394
    %v2479 = vpack.c.b16 %v2399, %v2397
    %v2480 = vpack.c.b16 %v2400, %v2398
    %v2481 = vpack.c.b16 %v2403, %v2401
    %v2482 = vpack.c.b16 %v2404, %v2402
    %v2483 = vpack.c.b16 %v2407, %v2405
    %v2484 = vpack.c.b16 %v2408, %v2406
    %v2485 = vpack.c.b16 %v2411, %v2409
    %v2486 = vpack.c.b16 %v2412, %v2410
    %v2487 = vpack.c.b16 %v2415, %v2413
    %v2488 = vpack.c.b16 %v2416, %v2414
    %v2489 = vpack.c.b16 %v2419, %v2417
    %v2490 = vpack.c.b16 %v2420, %v2418
    %v2491 = vpack.c.b16 %v2423, %v2421
    %v2492 = vpack.c.b16 %v2424, %v2422
    %v2493 = vpack.c.b16 %v2427, %v2425
    %v2494 = vpack.c.b16 %v2428, %v2426
    %v2495 = vpack.c.b16 %v2431, %v2429
    %v2496 = vpack.c.b16 %v2432, %v2430
    %2561 = vmatprep.subr.bf16.mxu0 %v2448
    %2562 = vmatpush1.bf16.msra.mxu0 %v2447
    %2563 = vmatprep.subr.bf16.mxu0 %v2446
    %2564 = vmatpush1.bf16.msra.mxu0 %v2445
    %2565 = vmatprep.subr.bf16.mxu0 %v2444
    %2566 = vmatpush1.bf16.msra.mxu0 %v2443
    %2567 = vmatprep.subr.bf16.mxu0 %v2442
    %2568 = vmatpush1.bf16.msra.mxu0 %v2441
    %2569 = vmatprep.subr.bf16.mxu0 %v2440
    %2570 = vmatpush1.bf16.msra.mxu0 %v2439
    %2571 = vmatprep.subr.bf16.mxu0 %v2438
    %2572 = vmatpush1.bf16.msra.mxu0 %v2437
    %2573 = vmatprep.subr.bf16.mxu0 %v2436
    %2574 = vmatpush1.bf16.msra.mxu0 %v2435
    %2575 = vmatprep.subr.bf16.mxu0 %v2434
    %2576 = vmatpush1.bf16.msra.mxu0 %v2433
    %2577 = vmatprep.subr.bf16.mxu0 %v2464
    %2578 = vmatpush2.bf16.msra.mxu0 %v2463
    %2579 = vmatprep.subr.bf16.mxu0 %v2462
    %2580 = vmatpush2.bf16.msra.mxu0 %v2461
    %2581 = vmatprep.subr.bf16.mxu0 %v2460
    %2582 = vmatpush2.bf16.msra.mxu0 %v2459
    %2583 = vmatprep.subr.bf16.mxu0 %v2458
    %2584 = vmatpush2.bf16.msra.mxu0 %v2457
    %2585 = vmatprep.subr.bf16.mxu0 %v2456
    %2586 = vmatpush2.bf16.msra.mxu0 %v2455
    %2587 = vmatprep.subr.bf16.mxu0 %v2454
    %2588 = vmatpush2.bf16.msra.mxu0 %v2453
    %2589 = vmatprep.subr.bf16.mxu0 %v2452
    %2590 = vmatpush2.bf16.msra.mxu0 %v2451
    %2591 = vmatprep.subr.bf16.mxu0 %v2450
    %2592 = vmatpush2.bf16.msra.mxu0 %v2449
    %2593 = vmatprep.mubr.bf16.mxu0 %v2162
    %2594 = vmatmul.mubr.bf16.gmra.mxu0 %v2161
    %v2595 = vpop.f32.mrf.mxu0
    %v2596 = vadd.f32 %v2234, %v2595
    %v2597 = vpop.f32.mrf.mxu0
    %v2598 = vadd.f32 %v2238, %v2597
    %v2599 = vpop.f32.mrf.mxu0
    %v2600 = vadd.f32 %v2234, %v2599
    %v2601 = vpop.f32.mrf.mxu0
    %v2602 = vadd.f32 %v2238, %v2601
    %2603 = vdwg.mxu0
    %2604 = vmatprep.subr.bf16.mxu0 %v2480
    %2605 = vmatpush1.bf16.msra.mxu0 %v2479
    %2606 = vmatprep.subr.bf16.mxu0 %v2478
    %2607 = vmatpush1.bf16.msra.mxu0 %v2477
    %2608 = vmatprep.subr.bf16.mxu0 %v2476
    %2609 = vmatpush1.bf16.msra.mxu0 %v2475
    %2610 = vmatprep.subr.bf16.mxu0 %v2474
    %2611 = vmatpush1.bf16.msra.mxu0 %v2473
    %2612 = vmatprep.subr.bf16.mxu0 %v2472
    %2613 = vmatpush1.bf16.msra.mxu0 %v2471
    %2614 = vmatprep.subr.bf16.mxu0 %v2470
    %2615 = vmatpush1.bf16.msra.mxu0 %v2469
    %2616 = vmatprep.subr.bf16.mxu0 %v2468
    %2617 = vmatpush1.bf16.msra.mxu0 %v2467
    %2618 = vmatprep.subr.bf16.mxu0 %v2466
    %2619 = vmatpush1.bf16.msra.mxu0 %v2465
    %2620 = vmatprep.subr.bf16.mxu0 %v2496
    %2621 = vmatpush2.bf16.msra.mxu0 %v2495
    %2622 = vmatprep.subr.bf16.mxu0 %v2494
    %2623 = vmatpush2.bf16.msra.mxu0 %v2493
    %2624 = vmatprep.subr.bf16.mxu0 %v2492
    %2625 = vmatpush2.bf16.msra.mxu0 %v2491
    %2626 = vmatprep.subr.bf16.mxu0 %v2490
    %2627 = vmatpush2.bf16.msra.mxu0 %v2489
    %2628 = vmatprep.subr.bf16.mxu0 %v2488
    %2629 = vmatpush2.bf16.msra.mxu0 %v2487
    %2630 = vmatprep.subr.bf16.mxu0 %v2486
    %2631 = vmatpush2.bf16.msra.mxu0 %v2485
    %2632 = vmatprep.subr.bf16.mxu0 %v2484
    %2633 = vmatpush2.bf16.msra.mxu0 %v2483
    %2634 = vmatprep.subr.bf16.mxu0 %v2482
    %2635 = vmatpush2.bf16.msra.mxu0 %v2481
    %2636 = vmatprep.mubr.bf16.mxu0 %v2164
    %2637 = vmatmul.mubr.bf16.gmra.mxu0 %v2163
    %v2638 = vpop.f32.mrf.mxu0
    %v2639 = vadd.f32 %v2596, %v2638
    %v2640 = vpop.f32.mrf.mxu0
    %v2641 = vadd.f32 %v2598, %v2640
    %v2642 = vpop.f32.mrf.mxu0
    %v2643 = vadd.f32 %v2600, %v2642
    %v2644 = vpop.f32.mrf.mxu0
    %v2645 = vadd.f32 %v2602, %v2644
    %2646 = vdwg.mxu0
    %v2647 = vmax.f32 %v2639, 0.0
    %v2648 = vmax.f32 %v2641, 0.0
    %v2649 = vmax.f32 %v2643, 0.0
    %v2650 = vmax.f32 %v2645, 0.0
    %v2651 = vpack.c.bf16 %v2649, %v2647
    %v2652 = vpack.c.bf16 %v2650, %v2648
    %v2653 = vld [vmem:[#allocation11] sm:$0xf]
    %v2654 = vld [vmem:[#allocation11 + $0x4] sm:$0xf]
    %v2655 = vld [vmem:[#allocation11 + $0x8] sm:$0xf]
    %v2656 = vld [vmem:[#allocation11 + $0xc] sm:$0xf]
    %v2657 = vld [vmem:[#allocation11 + $0x10] sm:$0xf]
    %v2658 = vld [vmem:[#allocation11 + $0x14] sm:$0xf]
    %v2659 = vld [vmem:[#allocation11 + $0x18] sm:$0xf]
    %v2660 = vld [vmem:[#allocation11 + $0x1c] sm:$0xf]
    %v2661 = vld [vmem:[#allocation11 + $0x20] sm:$0xf]
    %v2662 = vld [vmem:[#allocation11 + $0x24] sm:$0xf]
    %v2663 = vld [vmem:[#allocation11 + $0x28] sm:$0xf]
    %v2664 = vld [vmem:[#allocation11 + $0x2c] sm:$0xf]
    %v2665 = vld [vmem:[#allocation11 + $0x30] sm:$0xf]
    %v2666 = vld [vmem:[#allocation11 + $0x34] sm:$0xf]
    %v2667 = vld [vmem:[#allocation11 + $0x38] sm:$0xf]
    %v2668 = vld [vmem:[#allocation11 + $0x3c] sm:$0xf]
    %v2669 = vld [vmem:[#allocation11 + $0x40] sm:$0xf]
    %v2670 = vld [vmem:[#allocation11 + $0x44] sm:$0xf]
    %v2671 = vld [vmem:[#allocation11 + $0x48] sm:$0xf]
    %v2672 = vld [vmem:[#allocation11 + $0x4c] sm:$0xf]
    %v2673 = vld [vmem:[#allocation11 + $0x50] sm:$0xf]
    %v2674 = vld [vmem:[#allocation11 + $0x54] sm:$0xf]
    %v2675 = vld [vmem:[#allocation11 + $0x58] sm:$0xf]
    %v2676 = vld [vmem:[#allocation11 + $0x5c] sm:$0xf]
    %v2677 = vld [vmem:[#allocation11 + $0x60] sm:$0xf]
    %v2678 = vld [vmem:[#allocation11 + $0x64] sm:$0xf]
    %v2679 = vld [vmem:[#allocation11 + $0x68] sm:$0xf]
    %v2680 = vld [vmem:[#allocation11 + $0x6c] sm:$0xf]
    %v2681 = vld [vmem:[#allocation11 + $0x70] sm:$0xf]
    %v2682 = vld [vmem:[#allocation11 + $0x74] sm:$0xf]
    %v2683 = vld [vmem:[#allocation11 + $0x78] sm:$0xf]
    %v2684 = vld [vmem:[#allocation11 + $0x7c] sm:$0xf]
    %v2685 = vld [vmem:[#allocation12] sm:$0x1]
    %v2687 = vlaneseq
    %v2688 = vshrl.u32 %v2687, 7
    %v2689 = vsub.s32 0, %v2688
    %v2690 = vrot.slane %v2685, %v2689
    %v2724 = vunpack.c.l.b16 %v2653
    %v2725 = vunpack.c.l.b16 %v2654
    %v2726 = vunpack.c.l.b16 %v2655
    %v2727 = vunpack.c.l.b16 %v2656
    %v2728 = vunpack.c.l.b16 %v2657
    %v2729 = vunpack.c.l.b16 %v2658
    %v2730 = vunpack.c.l.b16 %v2659
    %v2731 = vunpack.c.l.b16 %v2660
    %v2732 = vunpack.c.l.b16 %v2661
    %v2733 = vunpack.c.l.b16 %v2662
    %v2734 = vunpack.c.l.b16 %v2663
    %v2735 = vunpack.c.l.b16 %v2664
    %v2736 = vunpack.c.l.b16 %v2665
    %v2737 = vunpack.c.l.b16 %v2666
    %v2738 = vunpack.c.l.b16 %v2667
    %v2739 = vunpack.c.l.b16 %v2668
    %v2740 = vunpack.c.l.b16 %v2669
    %v2741 = vunpack.c.l.b16 %v2670
    %v2742 = vunpack.c.l.b16 %v2671
    %v2743 = vunpack.c.l.b16 %v2672
    %v2744 = vunpack.c.l.b16 %v2673
    %v2745 = vunpack.c.l.b16 %v2674
    %v2746 = vunpack.c.l.b16 %v2675
    %v2747 = vunpack.c.l.b16 %v2676
    %v2748 = vunpack.c.l.b16 %v2677
    %v2749 = vunpack.c.l.b16 %v2678
    %v2750 = vunpack.c.l.b16 %v2679
    %v2751 = vunpack.c.l.b16 %v2680
    %v2752 = vunpack.c.l.b16 %v2681
    %v2753 = vunpack.c.l.b16 %v2682
    %v2754 = vunpack.c.l.b16 %v2683
    %v2755 = vunpack.c.l.b16 %v2684
    %v2756 = vpack.c.b16 %v2725, %v2724
    %v2757 = vpack.c.b16 %v2727, %v2726
    %v2758 = vpack.c.b16 %v2729, %v2728
    %v2759 = vpack.c.b16 %v2731, %v2730
    %v2760 = vpack.c.b16 %v2733, %v2732
    %v2761 = vpack.c.b16 %v2735, %v2734
    %v2762 = vpack.c.b16 %v2737, %v2736
    %v2763 = vpack.c.b16 %v2739, %v2738
    %v2764 = vpack.c.b16 %v2741, %v2740
    %v2765 = vpack.c.b16 %v2743, %v2742
    %v2766 = vpack.c.b16 %v2745, %v2744
    %v2767 = vpack.c.b16 %v2747, %v2746
    %v2768 = vpack.c.b16 %v2749, %v2748
    %v2769 = vpack.c.b16 %v2751, %v2750
    %v2770 = vpack.c.b16 %v2753, %v2752
    %v2771 = vpack.c.b16 %v2755, %v2754
    %2788 = vmatprep.subr.bf16.mxu0 0
    %2789 = vmatpush1.bf16.msra.mxu0 %v2763
    %2790 = vmatprep.subr.bf16.mxu0 0
    %2791 = vmatpush1.bf16.msra.mxu0 %v2762
    %2792 = vmatprep.subr.bf16.mxu0 0
    %2793 = vmatpush1.bf16.msra.mxu0 %v2761
    %2794 = vmatprep.subr.bf16.mxu0 0
    %2795 = vmatpush1.bf16.msra.mxu0 %v2760
    %2796 = vmatprep.subr.bf16.mxu0 0
    %2797 = vmatpush1.bf16.msra.mxu0 %v2759
    %2798 = vmatprep.subr.bf16.mxu0 0
    %2799 = vmatpush1.bf16.msra.mxu0 %v2758
    %2800 = vmatprep.subr.bf16.mxu0 0
    %2801 = vmatpush1.bf16.msra.mxu0 %v2757
    %2802 = vmatprep.subr.bf16.mxu0 0
    %2803 = vmatpush1.bf16.msra.mxu0 %v2756
    %2804 = vmatprep.subr.bf16.mxu0 0
    %2805 = vmatpush2.bf16.msra.mxu0 %v2771
    %2806 = vmatprep.subr.bf16.mxu0 0
    %2807 = vmatpush2.bf16.msra.mxu0 %v2770
    %2808 = vmatprep.subr.bf16.mxu0 0
    %2809 = vmatpush2.bf16.msra.mxu0 %v2769
    %2810 = vmatprep.subr.bf16.mxu0 0
    %2811 = vmatpush2.bf16.msra.mxu0 %v2768
    %2812 = vmatprep.subr.bf16.mxu0 0
    %2813 = vmatpush2.bf16.msra.mxu0 %v2767
    %2814 = vmatprep.subr.bf16.mxu0 0
    %2815 = vmatpush2.bf16.msra.mxu0 %v2766
    %2816 = vmatprep.subr.bf16.mxu0 0
    %2817 = vmatpush2.bf16.msra.mxu0 %v2765
    %2818 = vmatprep.subr.bf16.mxu0 0
    %2819 = vmatpush2.bf16.msra.mxu0 %v2764
    %2820 = vmatprep.mubr.bf16.mxu0 %v2652
    %2821 = vmatmul.mubr.bf16.gmra.mxu0 %v2651
    %v2822 = vpop.f32.mrf.mxu0
    %v2823 = vadd.f32 %v2690, %v2822
    %v2824 = vpop.f32.mrf.mxu0
    %v2825 = vpop.f32.mrf.mxu0
    %v2826 = vadd.f32 %v2690, %v2825
    %v2827 = vpop.f32.mrf.mxu0
    %2828 = vdwg.mxu0
    %vm2829 = vcmask 261120
    %v2830 = vsel %vm2829, %v2823, 0.0
    %2831 = vadd.xlane.f32.xlu0 %v2830
    %v2832 = vpop.xlane.xlu0 %2831
    %v2833 = vsel %vm2829, %v2826, 0.0
    %2834 = vadd.xlane.f32.xlu0 %v2833
    %v2835 = vpop.xlane.xlu0 %2834
    %v2836 = vrcp.pop 32.0
    %v2837 = vmul.f32 %v2832, %v2836
    %v2838 = vmul.f32 %v2835, %v2836
    %v2839 = vsub.f32 %v2823, %v2837
    %v2840 = vsub.f32 %v2826, %v2838
    %v2841 = vmul.f32 %v2839, %v2839
    %v2842 = vmul.f32 %v2840, %v2840
    %v2843 = vsel %vm2829, %v2841, 0.0
    %2844 = vadd.xlane.f32.xlu0 %v2843
    %v2845 = vpop.xlane.xlu0 %2844
    %v2846 = vsel %vm2829, %v2842, 0.0
    %2847 = vadd.xlane.f32.xlu0 %v2846
    %v2848 = vpop.xlane.xlu0 %2847
    %v2849 = vmul.f32 %v2845, %v2836
    %v2850 = vmul.f32 %v2848, %v2836
    %v2851 = vadd.f32 %v2849, 1e-05
    %v2852 = vadd.f32 %v2850, 1e-05
    %v2853 = vrsqrt.pop %v2851
    %v2854 = vrsqrt.pop %v2852
    %v2855 = vmul.f32 %v2839, %v2853
    %v2856 = vmul.f32 %v2840, %v2854
    %v2857 = vld [vmem:[%s7] sm:$0x1]
    %v2859 = vlaneseq
    %v2860 = vshrl.u32 %v2859, 7
    %v2861 = vsub.s32 0, %v2860
    %v2862 = vrot.slane %v2857, %v2861
    %v2864 = vmul.f32 %v2855, %v2862
    %v2865 = vmul.f32 %v2856, %v2862
    %v2866 = vld [vmem:[%s8] sm:$0x1]
    %v2868 = vlaneseq
    %v2869 = vshrl.u32 %v2868, 7
    %v2870 = vsub.s32 0, %v2869
    %v2871 = vrot.slane %v2866, %v2870
    %v2873 = vadd.f32 %v2864, %v2871
    %v2874 = vadd.f32 %v2865, %v2871
    %v2875 = vmax.f32 %v2873, 0.0
    %v2876 = vmax.f32 %v2874, 0.0
    %v2877 = vpack.c.bf16 %v2876, %v2875
    %v2878 = vld [vmem:[#allocation14] sm:$0xff]
    %v2879 = vld [vmem:[#allocation14 + $0x8] sm:$0xff]
    %v2880 = vld [vmem:[#allocation14 + $0x10] sm:$0xff]
    %v2881 = vld [vmem:[#allocation14 + $0x18] sm:$0xff]
    %v2882 = vld [vmem:[#allocation15] sm:$0x3]
    %v2884 = vlaneseq
    %v2885 = vshrl.u32 %v2884, 7
    %v2886 = vsub.s32 0, %v2885
    %v2887 = vrot.slane %v2882, %v2886
    %v2888 = vlaneseq
    %v2889 = vshrl.u32 %v2888, 7
    %v2890 = vsub.s32 1, %v2889
    %v2891 = vrot.slane %v2882, %v2890
    %v2898 = vunpack.c.l.b16 %v2878
    %v2899 = vunpack.c.h.b16 %v2878
    %v2900 = vunpack.c.l.b16 %v2879
    %v2901 = vunpack.c.h.b16 %v2879
    %v2902 = vunpack.c.l.b16 %v2880
    %v2903 = vunpack.c.h.b16 %v2880
    %v2904 = vunpack.c.l.b16 %v2881
    %v2905 = vunpack.c.h.b16 %v2881
    %v2906 = vpack.c.b16 %v2900, %v2898
    %v2907 = vpack.c.b16 %v2901, %v2899
    %v2908 = vpack.c.b16 %v2904, %v2902
    %v2909 = vpack.c.b16 %v2905, %v2903
    %v2915 = vsel %vm2829, %v2877, 0
    %2917 = vmatprep.subr.bf16.mxu0 0
    %2918 = vmatpush1.bf16.msra.mxu0 0
    %2919 = vmatprep.subr.bf16.mxu0 0
    %2920 = vmatpush1.bf16.msra.mxu0 0
    %2921 = vmatprep.subr.bf16.mxu0 0
    %2922 = vmatpush1.bf16.msra.mxu0 0
    %2923 = vmatprep.subr.bf16.mxu0 0
    %2924 = vmatpush1.bf16.msra.mxu0 0
    %2925 = vmatprep.subr.bf16.mxu0 0
    %2926 = vmatpush1.bf16.msra.mxu0 0
    %2927 = vmatprep.subr.bf16.mxu0 0
    %2928 = vmatpush1.bf16.msra.mxu0 0
    %2929 = vmatprep.subr.bf16.mxu0 %v2909
    %2930 = vmatpush1.bf16.msra.mxu0 %v2908
    %2931 = vmatprep.subr.bf16.mxu0 %v2907
    %2932 = vmatpush1.bf16.msra.mxu0 %v2906
    %2933 = vmatprep.subr.bf16.mxu0 0
    %2934 = vmatpush2.bf16.msra.mxu0 0
    %2935 = vmatprep.subr.bf16.mxu0 0
    %2936 = vmatpush2.bf16.msra.mxu0 0
    %2937 = vmatprep.subr.bf16.mxu0 0
    %2938 = vmatpush2.bf16.msra.mxu0 0
    %2939 = vmatprep.subr.bf16.mxu0 0
    %2940 = vmatpush2.bf16.msra.mxu0 0
    %2941 = vmatprep.subr.bf16.mxu0 0
    %2942 = vmatpush2.bf16.msra.mxu0 0
    %2943 = vmatprep.subr.bf16.mxu0 0
    %2944 = vmatpush2.bf16.msra.mxu0 0
    %2945 = vmatprep.subr.bf16.mxu0 0
    %2946 = vmatpush2.bf16.msra.mxu0 0
    %2947 = vmatprep.subr.bf16.mxu0 0
    %2948 = vmatpush2.bf16.msra.mxu0 0
    %2949 = vmatprep.mubr.bf16.mxu0 0
    %2950 = vmatmul.mubr.bf16.gmra.mxu0 %v2915
    %v2951 = vpop.f32.mrf.mxu0
    %v2952 = vadd.f32 %v2887, %v2951
    %v2953 = vpop.f32.mrf.mxu0
    %v2954 = vadd.f32 %v2891, %v2953
    %v2955 = vpop.f32.mrf.mxu0
    %v2956 = vadd.f32 %v2887, %v2955
    %v2957 = vpop.f32.mrf.mxu0
    %v2958 = vadd.f32 %v2891, %v2957
    %2959 = vdwg.mxu0
    %v2960 = vadd.f32 %v2952, %v2954
    %2961 = vadd.xlane.f32.xlu0 %v2960
    %v2962 = vpop.xlane.xlu0 %2961
    %v2963 = vadd.f32 %v2956, %v2958
    %2964 = vadd.xlane.f32.xlu0 %v2963
    %v2965 = vpop.xlane.xlu0 %2964
    %v2966 = vrcp.pop 256.0
    %v2967 = vmul.f32 %v2962, %v2966
    %v2968 = vmul.f32 %v2965, %v2966
    %v2969 = vsub.f32 %v2952, %v2967
    %v2970 = vsub.f32 %v2954, %v2967
    %v2971 = vsub.f32 %v2956, %v2968
    %v2972 = vsub.f32 %v2958, %v2968
    %v2973 = vmul.f32 %v2969, %v2969
    %v2974 = vmul.f32 %v2970, %v2970
    %v2975 = vmul.f32 %v2971, %v2971
    %v2976 = vmul.f32 %v2972, %v2972
    %v2977 = vadd.f32 %v2973, %v2974
    %2978 = vadd.xlane.f32.xlu0 %v2977
    %v2979 = vpop.xlane.xlu0 %2978
    %v2980 = vadd.f32 %v2975, %v2976
    %2981 = vadd.xlane.f32.xlu0 %v2980
    %v2982 = vpop.xlane.xlu0 %2981
    %v2983 = vmul.f32 %v2979, %v2966
    %v2984 = vmul.f32 %v2982, %v2966
    %v2985 = vadd.f32 %v2983, 1e-05
    %v2986 = vadd.f32 %v2984, 1e-05
    %v2987 = vrsqrt.pop %v2985
    %v2988 = vrsqrt.pop %v2986
    %v2989 = vmul.f32 %v2969, %v2987
    %v2990 = vmul.f32 %v2970, %v2987
    %v2991 = vmul.f32 %v2971, %v2988
    %v2992 = vmul.f32 %v2972, %v2988
    %v2993 = vld [vmem:[%s11] sm:$0x3]
    %v2995 = vlaneseq
    %v2996 = vshrl.u32 %v2995, 7
    %v2997 = vsub.s32 0, %v2996
    %v2998 = vrot.slane %v2993, %v2997
    %v2999 = vlaneseq
    %v3000 = vshrl.u32 %v2999, 7
    %v3001 = vsub.s32 1, %v3000
    %v3002 = vrot.slane %v2993, %v3001
    %v3005 = vmul.f32 %v2989, %v2998
    %v3006 = vmul.f32 %v2990, %v3002
    %v3007 = vmul.f32 %v2991, %v2998
    %v3008 = vmul.f32 %v2992, %v3002
    %v3009 = vld [vmem:[%s12] sm:$0x3]
    %v3011 = vlaneseq
    %v3012 = vshrl.u32 %v3011, 7
    %v3013 = vsub.s32 0, %v3012
    %v3014 = vrot.slane %v3009, %v3013
    %v3015 = vlaneseq
    %v3016 = vshrl.u32 %v3015, 7
    %v3017 = vsub.s32 1, %v3016
    %v3018 = vrot.slane %v3009, %v3017
    %v3021 = vadd.f32 %v3005, %v3014
    %v3022 = vadd.f32 %v3006, %v3018
    %v3023 = vadd.f32 %v3007, %v3014
    %v3024 = vadd.f32 %v3008, %v3018
    %v3025 = vmax.f32 %v3021, 0.0
    %v3026 = vmax.f32 %v3022, 0.0
    %v3027 = vmax.f32 %v3023, 0.0
    %v3028 = vmax.f32 %v3024, 0.0
    %v3029 = vpack.c.bf16 %v3027, %v3025
    %v3030 = vpack.c.bf16 %v3028, %v3026
    %v3031 = vld [vmem:[#allocation17] sm:$0xff]
    %v3032 = vld [vmem:[#allocation17 + $0x8] sm:$0xff]
    %v3033 = vld [vmem:[#allocation17 + $0x10] sm:$0xff]
    %v3034 = vld [vmem:[#allocation17 + $0x18] sm:$0xff]
    %v3035 = vld [vmem:[#allocation17 + $0x20] sm:$0xff]
    %v3036 = vld [vmem:[#allocation17 + $0x28] sm:$0xff]
    %v3037 = vld [vmem:[#allocation17 + $0x30] sm:$0xff]
    %v3038 = vld [vmem:[#allocation17 + $0x38] sm:$0xff]
    %v3039 = vld [vmem:[#allocation17 + $0x40] sm:$0xff]
    %v3040 = vld [vmem:[#allocation17 + $0x48] sm:$0xff]
    %v3041 = vld [vmem:[#allocation17 + $0x50] sm:$0xff]
    %v3042 = vld [vmem:[#allocation17 + $0x58] sm:$0xff]
    %v3043 = vld [vmem:[#allocation17 + $0x60] sm:$0xff]
    %v3044 = vld [vmem:[#allocation17 + $0x68] sm:$0xff]
    %v3045 = vld [vmem:[#allocation17 + $0x70] sm:$0xff]
    %v3046 = vld [vmem:[#allocation17 + $0x78] sm:$0xff]
    %v3047 = vld [vmem:[#allocation17 + $0x80] sm:$0xff]
    %v3048 = vld [vmem:[#allocation17 + $0x88] sm:$0xff]
    %v3049 = vld [vmem:[#allocation17 + $0x90] sm:$0xff]
    %v3050 = vld [vmem:[#allocation17 + $0x98] sm:$0xff]
    %v3051 = vld [vmem:[#allocation17 + $0xa0] sm:$0xff]
    %v3052 = vld [vmem:[#allocation17 + $0xa8] sm:$0xff]
    %v3053 = vld [vmem:[#allocation17 + $0xb0] sm:$0xff]
    %v3054 = vld [vmem:[#allocation17 + $0xb8] sm:$0xff]
    %v3055 = vld [vmem:[#allocation17 + $0xc0] sm:$0xff]
    %v3056 = vld [vmem:[#allocation17 + $0xc8] sm:$0xff]
    %v3057 = vld [vmem:[#allocation17 + $0xd0] sm:$0xff]
    %v3058 = vld [vmem:[#allocation17 + $0xd8] sm:$0xff]
    %v3059 = vld [vmem:[#allocation17 + $0xe0] sm:$0xff]
    %v3060 = vld [vmem:[#allocation17 + $0xe8] sm:$0xff]
    %v3061 = vld [vmem:[#allocation17 + $0xf0] sm:$0xff]
    %v3062 = vld [vmem:[#allocation17 + $0xf8] sm:$0xff]
    %v3063 = vld [vmem:[#allocation17 + $0x100] sm:$0xff]
    %v3064 = vld [vmem:[#allocation17 + $0x108] sm:$0xff]
    %v3065 = vld [vmem:[#allocation17 + $0x110] sm:$0xff]
    %v3066 = vld [vmem:[#allocation17 + $0x118] sm:$0xff]
    %v3067 = vld [vmem:[#allocation17 + $0x120] sm:$0xff]
    %v3068 = vld [vmem:[#allocation17 + $0x128] sm:$0xff]
    %v3069 = vld [vmem:[#allocation17 + $0x130] sm:$0xff]
    %v3070 = vld [vmem:[#allocation17 + $0x138] sm:$0xff]
    %v3071 = vld [vmem:[#allocation17 + $0x140] sm:$0xff]
    %v3072 = vld [vmem:[#allocation17 + $0x148] sm:$0xff]
    %v3073 = vld [vmem:[#allocation17 + $0x150] sm:$0xff]
    %v3074 = vld [vmem:[#allocation17 + $0x158] sm:$0xff]
    %v3075 = vld [vmem:[#allocation17 + $0x160] sm:$0xff]
    %v3076 = vld [vmem:[#allocation17 + $0x168] sm:$0xff]
    %v3077 = vld [vmem:[#allocation17 + $0x170] sm:$0xff]
    %v3078 = vld [vmem:[#allocation17 + $0x178] sm:$0xff]
    %v3079 = vld [vmem:[#allocation17 + $0x180] sm:$0xff]
    %v3080 = vld [vmem:[#allocation17 + $0x188] sm:$0xff]
    %v3081 = vld [vmem:[#allocation17 + $0x190] sm:$0xff]
    %v3082 = vld [vmem:[#allocation17 + $0x198] sm:$0xff]
    %v3083 = vld [vmem:[#allocation17 + $0x1a0] sm:$0xff]
    %v3084 = vld [vmem:[#allocation17 + $0x1a8] sm:$0xff]
    %v3085 = vld [vmem:[#allocation17 + $0x1b0] sm:$0xff]
    %v3086 = vld [vmem:[#allocation17 + $0x1b8] sm:$0xff]
    %v3087 = vld [vmem:[#allocation17 + $0x1c0] sm:$0xff]
    %v3088 = vld [vmem:[#allocation17 + $0x1c8] sm:$0xff]
    %v3089 = vld [vmem:[#allocation17 + $0x1d0] sm:$0xff]
    %v3090 = vld [vmem:[#allocation17 + $0x1d8] sm:$0xff]
    %v3091 = vld [vmem:[#allocation17 + $0x1e0] sm:$0xff]
    %v3092 = vld [vmem:[#allocation17 + $0x1e8] sm:$0xff]
    %v3093 = vld [vmem:[#allocation17 + $0x1f0] sm:$0xff]
    %v3094 = vld [vmem:[#allocation17 + $0x1f8] sm:$0xff]
    %v3095 = vld [vmem:[#allocation17 + $0x200] sm:$0xff]
    %v3096 = vld [vmem:[#allocation17 + $0x208] sm:$0xff]
    %v3097 = vld [vmem:[#allocation17 + $0x210] sm:$0xff]
    %v3098 = vld [vmem:[#allocation17 + $0x218] sm:$0xff]
    %v3099 = vld [vmem:[#allocation17 + $0x220] sm:$0xff]
    %v3100 = vld [vmem:[#allocation17 + $0x228] sm:$0xff]
    %v3101 = vld [vmem:[#allocation17 + $0x230] sm:$0xff]
    %v3102 = vld [vmem:[#allocation17 + $0x238] sm:$0xff]
    %v3103 = vld [vmem:[#allocation17 + $0x240] sm:$0xff]
    %v3104 = vld [vmem:[#allocation17 + $0x248] sm:$0xff]
    %v3105 = vld [vmem:[#allocation17 + $0x250] sm:$0xff]
    %v3106 = vld [vmem:[#allocation17 + $0x258] sm:$0xff]
    %v3107 = vld [vmem:[#allocation17 + $0x260] sm:$0xff]
    %v3108 = vld [vmem:[#allocation17 + $0x268] sm:$0xff]
    %v3109 = vld [vmem:[#allocation17 + $0x270] sm:$0xff]
    %v3110 = vld [vmem:[#allocation17 + $0x278] sm:$0xff]
    %v3111 = vld [vmem:[#allocation17 + $0x280] sm:$0xff]
    %v3112 = vld [vmem:[#allocation17 + $0x288] sm:$0xff]
    %v3113 = vld [vmem:[#allocation17 + $0x290] sm:$0xff]
    %v3114 = vld [vmem:[#allocation17 + $0x298] sm:$0xff]
    %v3115 = vld [vmem:[#allocation17 + $0x2a0] sm:$0xff]
    %v3116 = vld [vmem:[#allocation17 + $0x2a8] sm:$0xff]
    %v3117 = vld [vmem:[#allocation17 + $0x2b0] sm:$0xff]
    %v3118 = vld [vmem:[#allocation17 + $0x2b8] sm:$0xff]
    %v3119 = vld [vmem:[#allocation17 + $0x2c0] sm:$0xff]
    %v3120 = vld [vmem:[#allocation17 + $0x2c8] sm:$0xff]
    %v3121 = vld [vmem:[#allocation17 + $0x2d0] sm:$0xff]
    %v3122 = vld [vmem:[#allocation17 + $0x2d8] sm:$0xff]
    %v3123 = vld [vmem:[#allocation17 + $0x2e0] sm:$0xff]
    %v3124 = vld [vmem:[#allocation17 + $0x2e8] sm:$0xff]
    %v3125 = vld [vmem:[#allocation17 + $0x2f0] sm:$0xff]
    %v3126 = vld [vmem:[#allocation17 + $0x2f8] sm:$0xff]
    %v3127 = vld [vmem:[#allocation17 + $0x300] sm:$0xff]
    %v3128 = vld [vmem:[#allocation17 + $0x308] sm:$0xff]
    %v3129 = vld [vmem:[#allocation17 + $0x310] sm:$0xff]
    %v3130 = vld [vmem:[#allocation17 + $0x318] sm:$0xff]
    %v3131 = vld [vmem:[#allocation17 + $0x320] sm:$0xff]
    %v3132 = vld [vmem:[#allocation17 + $0x328] sm:$0xff]
    %v3133 = vld [vmem:[#allocation17 + $0x330] sm:$0xff]
    %v3134 = vld [vmem:[#allocation17 + $0x338] sm:$0xff]
    %v3135 = vld [vmem:[#allocation17 + $0x340] sm:$0xff]
    %v3136 = vld [vmem:[#allocation17 + $0x348] sm:$0xff]
    %v3137 = vld [vmem:[#allocation17 + $0x350] sm:$0xff]
    %v3138 = vld [vmem:[#allocation17 + $0x358] sm:$0xff]
    %v3139 = vld [vmem:[#allocation17 + $0x360] sm:$0xff]
    %v3140 = vld [vmem:[#allocation17 + $0x368] sm:$0xff]
    %v3141 = vld [vmem:[#allocation17 + $0x370] sm:$0xff]
    %v3142 = vld [vmem:[#allocation17 + $0x378] sm:$0xff]
    %v3143 = vld [vmem:[#allocation17 + $0x380] sm:$0xff]
    %v3144 = vld [vmem:[#allocation17 + $0x388] sm:$0xff]
    %v3145 = vld [vmem:[#allocation17 + $0x390] sm:$0xff]
    %v3146 = vld [vmem:[#allocation17 + $0x398] sm:$0xff]
    %v3147 = vld [vmem:[#allocation17 + $0x3a0] sm:$0xff]
    %v3148 = vld [vmem:[#allocation17 + $0x3a8] sm:$0xff]
    %v3149 = vld [vmem:[#allocation17 + $0x3b0] sm:$0xff]
    %v3150 = vld [vmem:[#allocation17 + $0x3b8] sm:$0xff]
    %v3151 = vld [vmem:[#allocation17 + $0x3c0] sm:$0xff]
    %v3152 = vld [vmem:[#allocation17 + $0x3c8] sm:$0xff]
    %v3153 = vld [vmem:[#allocation17 + $0x3d0] sm:$0xff]
    %v3154 = vld [vmem:[#allocation17 + $0x3d8] sm:$0xff]
    %v3155 = vld [vmem:[#allocation17 + $0x3e0] sm:$0xff]
    %v3156 = vld [vmem:[#allocation17 + $0x3e8] sm:$0xff]
    %v3157 = vld [vmem:[#allocation17 + $0x3f0] sm:$0xff]
    %v3158 = vld [vmem:[#allocation17 + $0x3f8] sm:$0xff]
    %v3159 = vld [vmem:[#allocation18] sm:$0xff]
    %v3161 = vlaneseq
    %v3162 = vshrl.u32 %v3161, 7
    %v3163 = vsub.s32 0, %v3162
    %v3164 = vrot.slane %v3159, %v3163
    %v3165 = vlaneseq
    %v3166 = vshrl.u32 %v3165, 7
    %v3167 = vsub.s32 1, %v3166
    %v3168 = vrot.slane %v3159, %v3167
    %v3169 = vlaneseq
    %v3170 = vshrl.u32 %v3169, 7
    %v3171 = vsub.s32 2, %v3170
    %v3172 = vrot.slane %v3159, %v3171
    %v3173 = vlaneseq
    %v3174 = vshrl.u32 %v3173, 7
    %v3175 = vsub.s32 3, %v3174
    %v3176 = vrot.slane %v3159, %v3175
    %v3177 = vlaneseq
    %v3178 = vshrl.u32 %v3177, 7
    %v3179 = vsub.s32 4, %v3178
    %v3180 = vrot.slane %v3159, %v3179
    %v3181 = vlaneseq
    %v3182 = vshrl.u32 %v3181, 7
    %v3183 = vsub.s32 5, %v3182
    %v3184 = vrot.slane %v3159, %v3183
    %v3185 = vlaneseq
    %v3186 = vshrl.u32 %v3185, 7
    %v3187 = vsub.s32 6, %v3186
    %v3188 = vrot.slane %v3159, %v3187
    %v3189 = vlaneseq
    %v3190 = vshrl.u32 %v3189, 7
    %v3191 = vsub.s32 7, %v3190
    %v3192 = vrot.slane %v3159, %v3191
    %v3329 = vunpack.c.l.b16 %v3031
    %v3330 = vunpack.c.h.b16 %v3031
    %v3331 = vunpack.c.l.b16 %v3032
    %v3332 = vunpack.c.h.b16 %v3032
    %v3333 = vunpack.c.l.b16 %v3033
    %v3334 = vunpack.c.h.b16 %v3033
    %v3335 = vunpack.c.l.b16 %v3034
    %v3336 = vunpack.c.h.b16 %v3034
    %v3337 = vunpack.c.l.b16 %v3035
    %v3338 = vunpack.c.h.b16 %v3035
    %v3339 = vunpack.c.l.b16 %v3036
    %v3340 = vunpack.c.h.b16 %v3036
    %v3341 = vunpack.c.l.b16 %v3037
    %v3342 = vunpack.c.h.b16 %v3037
    %v3343 = vunpack.c.l.b16 %v3038
    %v3344 = vunpack.c.h.b16 %v3038
    %v3345 = vunpack.c.l.b16 %v3039
    %v3346 = vunpack.c.h.b16 %v3039
    %v3347 = vunpack.c.l.b16 %v3040
    %v3348 = vunpack.c.h.b16 %v3040
    %v3349 = vunpack.c.l.b16 %v3041
    %v3350 = vunpack.c.h.b16 %v3041
    %v3351 = vunpack.c.l.b16 %v3042
    %v3352 = vunpack.c.h.b16 %v3042
    %v3353 = vunpack.c.l.b16 %v3043
    %v3354 = vunpack.c.h.b16 %v3043
    %v3355 = vunpack.c.l.b16 %v3044
    %v3356 = vunpack.c.h.b16 %v3044
    %v3357 = vunpack.c.l.b16 %v3045
    %v3358 = vunpack.c.h.b16 %v3045
    %v3359 = vunpack.c.l.b16 %v3046
    %v3360 = vunpack.c.h.b16 %v3046
    %v3361 = vunpack.c.l.b16 %v3047
    %v3362 = vunpack.c.h.b16 %v3047
    %v3363 = vunpack.c.l.b16 %v3048
    %v3364 = vunpack.c.h.b16 %v3048
    %v3365 = vunpack.c.l.b16 %v3049
    %v3366 = vunpack.c.h.b16 %v3049
    %v3367 = vunpack.c.l.b16 %v3050
    %v3368 = vunpack.c.h.b16 %v3050
    %v3369 = vunpack.c.l.b16 %v3051
    %v3370 = vunpack.c.h.b16 %v3051
    %v3371 = vunpack.c.l.b16 %v3052
    %v3372 = vunpack.c.h.b16 %v3052
    %v3373 = vunpack.c.l.b16 %v3053
    %v3374 = vunpack.c.h.b16 %v3053
    %v3375 = vunpack.c.l.b16 %v3054
    %v3376 = vunpack.c.h.b16 %v3054
    %v3377 = vunpack.c.l.b16 %v3055
    %v3378 = vunpack.c.h.b16 %v3055
    %v3379 = vunpack.c.l.b16 %v3056
    %v3380 = vunpack.c.h.b16 %v3056
    %v3381 = vunpack.c.l.b16 %v3057
    %v3382 = vunpack.c.h.b16 %v3057
    %v3383 = vunpack.c.l.b16 %v3058
    %v3384 = vunpack.c.h.b16 %v3058
    %v3385 = vunpack.c.l.b16 %v3059
    %v3386 = vunpack.c.h.b16 %v3059
    %v3387 = vunpack.c.l.b16 %v3060
    %v3388 = vunpack.c.h.b16 %v3060
    %v3389 = vunpack.c.l.b16 %v3061
    %v3390 = vunpack.c.h.b16 %v3061
    %v3391 = vunpack.c.l.b16 %v3062
    %v3392 = vunpack.c.h.b16 %v3062
    %v3393 = vunpack.c.l.b16 %v3063
    %v3394 = vunpack.c.h.b16 %v3063
    %v3395 = vunpack.c.l.b16 %v3064
    %v3396 = vunpack.c.h.b16 %v3064
    %v3397 = vunpack.c.l.b16 %v3065
    %v3398 = vunpack.c.h.b16 %v3065
    %v3399 = vunpack.c.l.b16 %v3066
    %v3400 = vunpack.c.h.b16 %v3066
    %v3401 = vunpack.c.l.b16 %v3067
    %v3402 = vunpack.c.h.b16 %v3067
    %v3403 = vunpack.c.l.b16 %v3068
    %v3404 = vunpack.c.h.b16 %v3068
    %v3405 = vunpack.c.l.b16 %v3069
    %v3406 = vunpack.c.h.b16 %v3069
    %v3407 = vunpack.c.l.b16 %v3070
    %v3408 = vunpack.c.h.b16 %v3070
    %v3409 = vunpack.c.l.b16 %v3071
    %v3410 = vunpack.c.h.b16 %v3071
    %v3411 = vunpack.c.l.b16 %v3072
    %v3412 = vunpack.c.h.b16 %v3072
    %v3413 = vunpack.c.l.b16 %v3073
    %v3414 = vunpack.c.h.b16 %v3073
    %v3415 = vunpack.c.l.b16 %v3074
    %v3416 = vunpack.c.h.b16 %v3074
    %v3417 = vunpack.c.l.b16 %v3075
    %v3418 = vunpack.c.h.b16 %v3075
    %v3419 = vunpack.c.l.b16 %v3076
    %v3420 = vunpack.c.h.b16 %v3076
    %v3421 = vunpack.c.l.b16 %v3077
    %v3422 = vunpack.c.h.b16 %v3077
    %v3423 = vunpack.c.l.b16 %v3078
    %v3424 = vunpack.c.h.b16 %v3078
    %v3425 = vunpack.c.l.b16 %v3079
    %v3426 = vunpack.c.h.b16 %v3079
    %v3427 = vunpack.c.l.b16 %v3080
    %v3428 = vunpack.c.h.b16 %v3080
    %v3429 = vunpack.c.l.b16 %v3081
    %v3430 = vunpack.c.h.b16 %v3081
    %v3431 = vunpack.c.l.b16 %v3082
    %v3432 = vunpack.c.h.b16 %v3082
    %v3433 = vunpack.c.l.b16 %v3083
    %v3434 = vunpack.c.h.b16 %v3083
    %v3435 = vunpack.c.l.b16 %v3084
    %v3436 = vunpack.c.h.b16 %v3084
    %v3437 = vunpack.c.l.b16 %v3085
    %v3438 = vunpack.c.h.b16 %v3085
    %v3439 = vunpack.c.l.b16 %v3086
    %v3440 = vunpack.c.h.b16 %v3086
    %v3441 = vunpack.c.l.b16 %v3087
    %v3442 = vunpack.c.h.b16 %v3087
    %v3443 = vunpack.c.l.b16 %v3088
    %v3444 = vunpack.c.h.b16 %v3088
    %v3445 = vunpack.c.l.b16 %v3089
    %v3446 = vunpack.c.h.b16 %v3089
    %v3447 = vunpack.c.l.b16 %v3090
    %v3448 = vunpack.c.h.b16 %v3090
    %v3449 = vunpack.c.l.b16 %v3091
    %v3450 = vunpack.c.h.b16 %v3091
    %v3451 = vunpack.c.l.b16 %v3092
    %v3452 = vunpack.c.h.b16 %v3092
    %v3453 = vunpack.c.l.b16 %v3093
    %v3454 = vunpack.c.h.b16 %v3093
    %v3455 = vunpack.c.l.b16 %v3094
    %v3456 = vunpack.c.h.b16 %v3094
    %v3457 = vunpack.c.l.b16 %v3095
    %v3458 = vunpack.c.h.b16 %v3095
    %v3459 = vunpack.c.l.b16 %v3096
    %v3460 = vunpack.c.h.b16 %v3096
    %v3461 = vunpack.c.l.b16 %v3097
    %v3462 = vunpack.c.h.b16 %v3097
    %v3463 = vunpack.c.l.b16 %v3098
    %v3464 = vunpack.c.h.b16 %v3098
    %v3465 = vunpack.c.l.b16 %v3099
    %v3466 = vunpack.c.h.b16 %v3099
    %v3467 = vunpack.c.l.b16 %v3100
    %v3468 = vunpack.c.h.b16 %v3100
    %v3469 = vunpack.c.l.b16 %v3101
    %v3470 = vunpack.c.h.b16 %v3101
    %v3471 = vunpack.c.l.b16 %v3102
    %v3472 = vunpack.c.h.b16 %v3102
    %v3473 = vunpack.c.l.b16 %v3103
    %v3474 = vunpack.c.h.b16 %v3103
    %v3475 = vunpack.c.l.b16 %v3104
    %v3476 = vunpack.c.h.b16 %v3104
    %v3477 = vunpack.c.l.b16 %v3105
    %v3478 = vunpack.c.h.b16 %v3105
    %v3479 = vunpack.c.l.b16 %v3106
    %v3480 = vunpack.c.h.b16 %v3106
    %v3481 = vunpack.c.l.b16 %v3107
    %v3482 = vunpack.c.h.b16 %v3107
    %v3483 = vunpack.c.l.b16 %v3108
    %v3484 = vunpack.c.h.b16 %v3108
    %v3485 = vunpack.c.l.b16 %v3109
    %v3486 = vunpack.c.h.b16 %v3109
    %v3487 = vunpack.c.l.b16 %v3110
    %v3488 = vunpack.c.h.b16 %v3110
    %v3489 = vunpack.c.l.b16 %v3111
    %v3490 = vunpack.c.h.b16 %v3111
    %v3491 = vunpack.c.l.b16 %v3112
    %v3492 = vunpack.c.h.b16 %v3112
    %v3493 = vunpack.c.l.b16 %v3113
    %v3494 = vunpack.c.h.b16 %v3113
    %v3495 = vunpack.c.l.b16 %v3114
    %v3496 = vunpack.c.h.b16 %v3114
    %v3497 = vunpack.c.l.b16 %v3115
    %v3498 = vunpack.c.h.b16 %v3115
    %v3499 = vunpack.c.l.b16 %v3116
    %v3500 = vunpack.c.h.b16 %v3116
    %v3501 = vunpack.c.l.b16 %v3117
    %v3502 = vunpack.c.h.b16 %v3117
    %v3503 = vunpack.c.l.b16 %v3118
    %v3504 = vunpack.c.h.b16 %v3118
    %v3505 = vunpack.c.l.b16 %v3119
    %v3506 = vunpack.c.h.b16 %v3119
    %v3507 = vunpack.c.l.b16 %v3120
    %v3508 = vunpack.c.h.b16 %v3120
    %v3509 = vunpack.c.l.b16 %v3121
    %v3510 = vunpack.c.h.b16 %v3121
    %v3511 = vunpack.c.l.b16 %v3122
    %v3512 = vunpack.c.h.b16 %v3122
    %v3513 = vunpack.c.l.b16 %v3123
    %v3514 = vunpack.c.h.b16 %v3123
    %v3515 = vunpack.c.l.b16 %v3124
    %v3516 = vunpack.c.h.b16 %v3124
    %v3517 = vunpack.c.l.b16 %v3125
    %v3518 = vunpack.c.h.b16 %v3125
    %v3519 = vunpack.c.l.b16 %v3126
    %v3520 = vunpack.c.h.b16 %v3126
    %v3521 = vunpack.c.l.b16 %v3127
    %v3522 = vunpack.c.h.b16 %v3127
    %v3523 = vunpack.c.l.b16 %v3128
    %v3524 = vunpack.c.h.b16 %v3128
    %v3525 = vunpack.c.l.b16 %v3129
    %v3526 = vunpack.c.h.b16 %v3129
    %v3527 = vunpack.c.l.b16 %v3130
    %v3528 = vunpack.c.h.b16 %v3130
    %v3529 = vunpack.c.l.b16 %v3131
    %v3530 = vunpack.c.h.b16 %v3131
    %v3531 = vunpack.c.l.b16 %v3132
    %v3532 = vunpack.c.h.b16 %v3132
    %v3533 = vunpack.c.l.b16 %v3133
    %v3534 = vunpack.c.h.b16 %v3133
    %v3535 = vunpack.c.l.b16 %v3134
    %v3536 = vunpack.c.h.b16 %v3134
    %v3537 = vunpack.c.l.b16 %v3135
    %v3538 = vunpack.c.h.b16 %v3135
    %v3539 = vunpack.c.l.b16 %v3136
    %v3540 = vunpack.c.h.b16 %v3136
    %v3541 = vunpack.c.l.b16 %v3137
    %v3542 = vunpack.c.h.b16 %v3137
    %v3543 = vunpack.c.l.b16 %v3138
    %v3544 = vunpack.c.h.b16 %v3138
    %v3545 = vunpack.c.l.b16 %v3139
    %v3546 = vunpack.c.h.b16 %v3139
    %v3547 = vunpack.c.l.b16 %v3140
    %v3548 = vunpack.c.h.b16 %v3140
    %v3549 = vunpack.c.l.b16 %v3141
    %v3550 = vunpack.c.h.b16 %v3141
    %v3551 = vunpack.c.l.b16 %v3142
    %v3552 = vunpack.c.h.b16 %v3142
    %v3553 = vunpack.c.l.b16 %v3143
    %v3554 = vunpack.c.h.b16 %v3143
    %v3555 = vunpack.c.l.b16 %v3144
    %v3556 = vunpack.c.h.b16 %v3144
    %v3557 = vunpack.c.l.b16 %v3145
    %v3558 = vunpack.c.h.b16 %v3145
    %v3559 = vunpack.c.l.b16 %v3146
    %v3560 = vunpack.c.h.b16 %v3146
    %v3561 = vunpack.c.l.b16 %v3147
    %v3562 = vunpack.c.h.b16 %v3147
    %v3563 = vunpack.c.l.b16 %v3148
    %v3564 = vunpack.c.h.b16 %v3148
    %v3565 = vunpack.c.l.b16 %v3149
    %v3566 = vunpack.c.h.b16 %v3149
    %v3567 = vunpack.c.l.b16 %v3150
    %v3568 = vunpack.c.h.b16 %v3150
    %v3569 = vunpack.c.l.b16 %v3151
    %v3570 = vunpack.c.h.b16 %v3151
    %v3571 = vunpack.c.l.b16 %v3152
    %v3572 = vunpack.c.h.b16 %v3152
    %v3573 = vunpack.c.l.b16 %v3153
    %v3574 = vunpack.c.h.b16 %v3153
    %v3575 = vunpack.c.l.b16 %v3154
    %v3576 = vunpack.c.h.b16 %v3154
    %v3577 = vunpack.c.l.b16 %v3155
    %v3578 = vunpack.c.h.b16 %v3155
    %v3579 = vunpack.c.l.b16 %v3156
    %v3580 = vunpack.c.h.b16 %v3156
    %v3581 = vunpack.c.l.b16 %v3157
    %v3582 = vunpack.c.h.b16 %v3157
    %v3583 = vunpack.c.l.b16 %v3158
    %v3584 = vunpack.c.h.b16 %v3158
    %v3585 = vpack.c.b16 %v3337, %v3329
    %v3586 = vpack.c.b16 %v3338, %v3330
    %v3587 = vpack.c.b16 %v3339, %v3331
    %v3588 = vpack.c.b16 %v3340, %v3332
    %v3589 = vpack.c.b16 %v3341, %v3333
    %v3590 = vpack.c.b16 %v3342, %v3334
    %v3591 = vpack.c.b16 %v3343, %v3335
    %v3592 = vpack.c.b16 %v3344, %v3336
    %v3593 = vpack.c.b16 %v3353, %v3345
    %v3594 = vpack.c.b16 %v3354, %v3346
    %v3595 = vpack.c.b16 %v3355, %v3347
    %v3596 = vpack.c.b16 %v3356, %v3348
    %v3597 = vpack.c.b16 %v3357, %v3349
    %v3598 = vpack.c.b16 %v3358, %v3350
    %v3599 = vpack.c.b16 %v3359, %v3351
    %v3600 = vpack.c.b16 %v3360, %v3352
    %v3601 = vpack.c.b16 %v3369, %v3361
    %v3602 = vpack.c.b16 %v3370, %v3362
    %v3603 = vpack.c.b16 %v3371, %v3363
    %v3604 = vpack.c.b16 %v3372, %v3364
    %v3605 = vpack.c.b16 %v3373, %v3365
    %v3606 = vpack.c.b16 %v3374, %v3366
    %v3607 = vpack.c.b16 %v3375, %v3367
    %v3608 = vpack.c.b16 %v3376, %v3368
    %v3609 = vpack.c.b16 %v3385, %v3377
    %v3610 = vpack.c.b16 %v3386, %v3378
    %v3611 = vpack.c.b16 %v3387, %v3379
    %v3612 = vpack.c.b16 %v3388, %v3380
    %v3613 = vpack.c.b16 %v3389, %v3381
    %v3614 = vpack.c.b16 %v3390, %v3382
    %v3615 = vpack.c.b16 %v3391, %v3383
    %v3616 = vpack.c.b16 %v3392, %v3384
    %v3617 = vpack.c.b16 %v3401, %v3393
    %v3618 = vpack.c.b16 %v3402, %v3394
    %v3619 = vpack.c.b16 %v3403, %v3395
    %v3620 = vpack.c.b16 %v3404, %v3396
    %v3621 = vpack.c.b16 %v3405, %v3397
    %v3622 = vpack.c.b16 %v3406, %v3398
    %v3623 = vpack.c.b16 %v3407, %v3399
    %v3624 = vpack.c.b16 %v3408, %v3400
    %v3625 = vpack.c.b16 %v3417, %v3409
    %v3626 = vpack.c.b16 %v3418, %v3410
    %v3627 = vpack.c.b16 %v3419, %v3411
    %v3628 = vpack.c.b16 %v3420, %v3412
    %v3629 = vpack.c.b16 %v3421, %v3413
    %v3630 = vpack.c.b16 %v3422, %v3414
    %v3631 = vpack.c.b16 %v3423, %v3415
    %v3632 = vpack.c.b16 %v3424, %v3416
    %v3633 = vpack.c.b16 %v3433, %v3425
    %v3634 = vpack.c.b16 %v3434, %v3426
    %v3635 = vpack.c.b16 %v3435, %v3427
    %v3636 = vpack.c.b16 %v3436, %v3428
    %v3637 = vpack.c.b16 %v3437, %v3429
    %v3638 = vpack.c.b16 %v3438, %v3430
    %v3639 = vpack.c.b16 %v3439, %v3431
    %v3640 = vpack.c.b16 %v3440, %v3432
    %v3641 = vpack.c.b16 %v3449, %v3441
    %v3642 = vpack.c.b16 %v3450, %v3442
    %v3643 = vpack.c.b16 %v3451, %v3443
    %v3644 = vpack.c.b16 %v3452, %v3444
    %v3645 = vpack.c.b16 %v3453, %v3445
    %v3646 = vpack.c.b16 %v3454, %v3446
    %v3647 = vpack.c.b16 %v3455, %v3447
    %v3648 = vpack.c.b16 %v3456, %v3448
    %v3649 = vpack.c.b16 %v3465, %v3457
    %v3650 = vpack.c.b16 %v3466, %v3458
    %v3651 = vpack.c.b16 %v3467, %v3459
    %v3652 = vpack.c.b16 %v3468, %v3460
    %v3653 = vpack.c.b16 %v3469, %v3461
    %v3654 = vpack.c.b16 %v3470, %v3462
    %v3655 = vpack.c.b16 %v3471, %v3463
    %v3656 = vpack.c.b16 %v3472, %v3464
    %v3657 = vpack.c.b16 %v3481, %v3473
    %v3658 = vpack.c.b16 %v3482, %v3474
    %v3659 = vpack.c.b16 %v3483, %v3475
    %v3660 = vpack.c.b16 %v3484, %v3476
    %v3661 = vpack.c.b16 %v3485, %v3477
    %v3662 = vpack.c.b16 %v3486, %v3478
    %v3663 = vpack.c.b16 %v3487, %v3479
    %v3664 = vpack.c.b16 %v3488, %v3480
    %v3665 = vpack.c.b16 %v3497, %v3489
    %v3666 = vpack.c.b16 %v3498, %v3490
    %v3667 = vpack.c.b16 %v3499, %v3491
    %v3668 = vpack.c.b16 %v3500, %v3492
    %v3669 = vpack.c.b16 %v3501, %v3493
    %v3670 = vpack.c.b16 %v3502, %v3494
    %v3671 = vpack.c.b16 %v3503, %v3495
    %v3672 = vpack.c.b16 %v3504, %v3496
    %v3673 = vpack.c.b16 %v3513, %v3505
    %v3674 = vpack.c.b16 %v3514, %v3506
    %v3675 = vpack.c.b16 %v3515, %v3507
    %v3676 = vpack.c.b16 %v3516, %v3508
    %v3677 = vpack.c.b16 %v3517, %v3509
    %v3678 = vpack.c.b16 %v3518, %v3510
    %v3679 = vpack.c.b16 %v3519, %v3511
    %v3680 = vpack.c.b16 %v3520, %v3512
    %v3681 = vpack.c.b16 %v3529, %v3521
    %v3682 = vpack.c.b16 %v3530, %v3522
    %v3683 = vpack.c.b16 %v3531, %v3523
    %v3684 = vpack.c.b16 %v3532, %v3524
    %v3685 = vpack.c.b16 %v3533, %v3525
    %v3686 = vpack.c.b16 %v3534, %v3526
    %v3687 = vpack.c.b16 %v3535, %v3527
    %v3688 = vpack.c.b16 %v3536, %v3528
    %v3689 = vpack.c.b16 %v3545, %v3537
    %v3690 = vpack.c.b16 %v3546, %v3538
    %v3691 = vpack.c.b16 %v3547, %v3539
    %v3692 = vpack.c.b16 %v3548, %v3540
    %v3693 = vpack.c.b16 %v3549, %v3541
    %v3694 = vpack.c.b16 %v3550, %v3542
    %v3695 = vpack.c.b16 %v3551, %v3543
    %v3696 = vpack.c.b16 %v3552, %v3544
    %v3697 = vpack.c.b16 %v3561, %v3553
    %v3698 = vpack.c.b16 %v3562, %v3554
    %v3699 = vpack.c.b16 %v3563, %v3555
    %v3700 = vpack.c.b16 %v3564, %v3556
    %v3701 = vpack.c.b16 %v3565, %v3557
    %v3702 = vpack.c.b16 %v3566, %v3558
    %v3703 = vpack.c.b16 %v3567, %v3559
    %v3704 = vpack.c.b16 %v3568, %v3560
    %v3705 = vpack.c.b16 %v3577, %v3569
    %v3706 = vpack.c.b16 %v3578, %v3570
    %v3707 = vpack.c.b16 %v3579, %v3571
    %v3708 = vpack.c.b16 %v3580, %v3572
    %v3709 = vpack.c.b16 %v3581, %v3573
    %v3710 = vpack.c.b16 %v3582, %v3574
    %v3711 = vpack.c.b16 %v3583, %v3575
    %v3712 = vpack.c.b16 %v3584, %v3576
    %3841 = vmatprep.subr.bf16.mxu0 %v3642
    %3842 = vmatpush1.bf16.msra.mxu0 %v3641
    %3843 = vmatprep.subr.bf16.mxu0 %v3634
    %3844 = vmatpush1.bf16.msra.mxu0 %v3633
    %3845 = vmatprep.subr.bf16.mxu0 %v3626
    %3846 = vmatpush1.bf16.msra.mxu0 %v3625
    %3847 = vmatprep.subr.bf16.mxu0 %v3618
    %3848 = vmatpush1.bf16.msra.mxu0 %v3617
    %3849 = vmatprep.subr.bf16.mxu0 %v3610
    %3850 = vmatpush1.bf16.msra.mxu0 %v3609
    %3851 = vmatprep.subr.bf16.mxu0 %v3602
    %3852 = vmatpush1.bf16.msra.mxu0 %v3601
    %3853 = vmatprep.subr.bf16.mxu0 %v3594
    %3854 = vmatpush1.bf16.msra.mxu0 %v3593
    %3855 = vmatprep.subr.bf16.mxu0 %v3586
    %3856 = vmatpush1.bf16.msra.mxu0 %v3585
    %3857 = vmatprep.subr.bf16.mxu0 %v3706
    %3858 = vmatpush2.bf16.msra.mxu0 %v3705
    %3859 = vmatprep.subr.bf16.mxu0 %v3698
    %3860 = vmatpush2.bf16.msra.mxu0 %v3697
    %3861 = vmatprep.subr.bf16.mxu0 %v3690
    %3862 = vmatpush2.bf16.msra.mxu0 %v3689
    %3863 = vmatprep.subr.bf16.mxu0 %v3682
    %3864 = vmatpush2.bf16.msra.mxu0 %v3681
    %3865 = vmatprep.subr.bf16.mxu0 %v3674
    %3866 = vmatpush2.bf16.msra.mxu0 %v3673
    %3867 = vmatprep.subr.bf16.mxu0 %v3666
    %3868 = vmatpush2.bf16.msra.mxu0 %v3665
    %3869 = vmatprep.subr.bf16.mxu0 %v3658
    %3870 = vmatpush2.bf16.msra.mxu0 %v3657
    %3871 = vmatprep.subr.bf16.mxu0 %v3650
    %3872 = vmatpush2.bf16.msra.mxu0 %v3649
    %3873 = vmatprep.mubr.bf16.mxu0 %v3030
    %3874 = vmatmul.mubr.bf16.gmra.mxu0 %v3029
    %v3875 = vpop.f32.mrf.mxu0
    %v3876 = vadd.f32 %v3164, %v3875
    %v3877 = vpop.f32.mrf.mxu0
    %v3878 = vadd.f32 %v3168, %v3877
    %v3879 = vpop.f32.mrf.mxu0
    %v3880 = vadd.f32 %v3164, %v3879
    %v3881 = vpop.f32.mrf.mxu0
    %v3882 = vadd.f32 %v3168, %v3881
    %3883 = vdwg.mxu0
    %3884 = vmatprep.subr.bf16.mxu0 %v3644
    %3885 = vmatpush1.bf16.msra.mxu0 %v3643
    %3886 = vmatprep.subr.bf16.mxu0 %v3636
    %3887 = vmatpush1.bf16.msra.mxu0 %v3635
    %3888 = vmatprep.subr.bf16.mxu0 %v3628
    %3889 = vmatpush1.bf16.msra.mxu0 %v3627
    %3890 = vmatprep.subr.bf16.mxu0 %v3620
    %3891 = vmatpush1.bf16.msra.mxu0 %v3619
    %3892 = vmatprep.subr.bf16.mxu0 %v3612
    %3893 = vmatpush1.bf16.msra.mxu0 %v3611
    %3894 = vmatprep.subr.bf16.mxu0 %v3604
    %3895 = vmatpush1.bf16.msra.mxu0 %v3603
    %3896 = vmatprep.subr.bf16.mxu0 %v3596
    %3897 = vmatpush1.bf16.msra.mxu0 %v3595
    %3898 = vmatprep.subr.bf16.mxu0 %v3588
    %3899 = vmatpush1.bf16.msra.mxu0 %v3587
    %3900 = vmatprep.subr.bf16.mxu0 %v3708
    %3901 = vmatpush2.bf16.msra.mxu0 %v3707
    %3902 = vmatprep.subr.bf16.mxu0 %v3700
    %3903 = vmatpush2.bf16.msra.mxu0 %v3699
    %3904 = vmatprep.subr.bf16.mxu0 %v3692
    %3905 = vmatpush2.bf16.msra.mxu0 %v3691
    %3906 = vmatprep.subr.bf16.mxu0 %v3684
    %3907 = vmatpush2.bf16.msra.mxu0 %v3683
    %3908 = vmatprep.subr.bf16.mxu0 %v3676
    %3909 = vmatpush2.bf16.msra.mxu0 %v3675
    %3910 = vmatprep.subr.bf16.mxu0 %v3668
    %3911 = vmatpush2.bf16.msra.mxu0 %v3667
    %3912 = vmatprep.subr.bf16.mxu0 %v3660
    %3913 = vmatpush2.bf16.msra.mxu0 %v3659
    %3914 = vmatprep.subr.bf16.mxu0 %v3652
    %3915 = vmatpush2.bf16.msra.mxu0 %v3651
    %3916 = vmatprep.mubr.bf16.mxu0 %v3030
    %3917 = vmatmul.mubr.bf16.gmra.mxu0 %v3029
    %v3918 = vpop.f32.mrf.mxu0
    %v3919 = vadd.f32 %v3172, %v3918
    %v3920 = vpop.f32.mrf.mxu0
    %v3921 = vadd.f32 %v3176, %v3920
    %v3922 = vpop.f32.mrf.mxu0
    %v3923 = vadd.f32 %v3172, %v3922
    %v3924 = vpop.f32.mrf.mxu0
    %v3925 = vadd.f32 %v3176, %v3924
    %3926 = vdwg.mxu0
    %3927 = vmatprep.subr.bf16.mxu0 %v3646
    %3928 = vmatpush1.bf16.msra.mxu0 %v3645
    %3929 = vmatprep.subr.bf16.mxu0 %v3638
    %3930 = vmatpush1.bf16.msra.mxu0 %v3637
    %3931 = vmatprep.subr.bf16.mxu0 %v3630
    %3932 = vmatpush1.bf16.msra.mxu0 %v3629
    %3933 = vmatprep.subr.bf16.mxu0 %v3622
    %3934 = vmatpush1.bf16.msra.mxu0 %v3621
    %3935 = vmatprep.subr.bf16.mxu0 %v3614
    %3936 = vmatpush1.bf16.msra.mxu0 %v3613
    %3937 = vmatprep.subr.bf16.mxu0 %v3606
    %3938 = vmatpush1.bf16.msra.mxu0 %v3605
    %3939 = vmatprep.subr.bf16.mxu0 %v3598
    %3940 = vmatpush1.bf16.msra.mxu0 %v3597
    %3941 = vmatprep.subr.bf16.mxu0 %v3590
    %3942 = vmatpush1.bf16.msra.mxu0 %v3589
    %3943 = vmatprep.subr.bf16.mxu0 %v3710
    %3944 = vmatpush2.bf16.msra.mxu0 %v3709
    %3945 = vmatprep.subr.bf16.mxu0 %v3702
    %3946 = vmatpush2.bf16.msra.mxu0 %v3701
    %3947 = vmatprep.subr.bf16.mxu0 %v3694
    %3948 = vmatpush2.bf16.msra.mxu0 %v3693
    %3949 = vmatprep.subr.bf16.mxu0 %v3686
    %3950 = vmatpush2.bf16.msra.mxu0 %v3685
    %3951 = vmatprep.subr.bf16.mxu0 %v3678
    %3952 = vmatpush2.bf16.msra.mxu0 %v3677
    %3953 = vmatprep.subr.bf16.mxu0 %v3670
    %3954 = vmatpush2.bf16.msra.mxu0 %v3669
    %3955 = vmatprep.subr.bf16.mxu0 %v3662
    %3956 = vmatpush2.bf16.msra.mxu0 %v3661
    %3957 = vmatprep.subr.bf16.mxu0 %v3654
    %3958 = vmatpush2.bf16.msra.mxu0 %v3653
    %3959 = vmatprep.mubr.bf16.mxu0 %v3030
    %3960 = vmatmul.mubr.bf16.gmra.mxu0 %v3029
    %v3961 = vpop.f32.mrf.mxu0
    %v3962 = vadd.f32 %v3180, %v3961
    %v3963 = vpop.f32.mrf.mxu0
    %v3964 = vadd.f32 %v3184, %v3963
    %v3965 = vpop.f32.mrf.mxu0
    %v3966 = vadd.f32 %v3180, %v3965
    %v3967 = vpop.f32.mrf.mxu0
    %v3968 = vadd.f32 %v3184, %v3967
    %3969 = vdwg.mxu0
    %3970 = vmatprep.subr.bf16.mxu0 %v3648
    %3971 = vmatpush1.bf16.msra.mxu0 %v3647
    %3972 = vmatprep.subr.bf16.mxu0 %v3640
    %3973 = vmatpush1.bf16.msra.mxu0 %v3639
    %3974 = vmatprep.subr.bf16.mxu0 %v3632
    %3975 = vmatpush1.bf16.msra.mxu0 %v3631
    %3976 = vmatprep.subr.bf16.mxu0 %v3624
    %3977 = vmatpush1.bf16.msra.mxu0 %v3623
    %3978 = vmatprep.subr.bf16.mxu0 %v3616
    %3979 = vmatpush1.bf16.msra.mxu0 %v3615
    %3980 = vmatprep.subr.bf16.mxu0 %v3608
    %3981 = vmatpush1.bf16.msra.mxu0 %v3607
    %3982 = vmatprep.subr.bf16.mxu0 %v3600
    %3983 = vmatpush1.bf16.msra.mxu0 %v3599
    %3984 = vmatprep.subr.bf16.mxu0 %v3592
    %3985 = vmatpush1.bf16.msra.mxu0 %v3591
    %3986 = vmatprep.subr.bf16.mxu0 %v3712
    %3987 = vmatpush2.bf16.msra.mxu0 %v3711
    %3988 = vmatprep.subr.bf16.mxu0 %v3704
    %3989 = vmatpush2.bf16.msra.mxu0 %v3703
    %3990 = vmatprep.subr.bf16.mxu0 %v3696
    %3991 = vmatpush2.bf16.msra.mxu0 %v3695
    %3992 = vmatprep.subr.bf16.mxu0 %v3688
    %3993 = vmatpush2.bf16.msra.mxu0 %v3687
    %3994 = vmatprep.subr.bf16.mxu0 %v3680
    %3995 = vmatpush2.bf16.msra.mxu0 %v3679
    %3996 = vmatprep.subr.bf16.mxu0 %v3672
    %3997 = vmatpush2.bf16.msra.mxu0 %v3671
    %3998 = vmatprep.subr.bf16.mxu0 %v3664
    %3999 = vmatpush2.bf16.msra.mxu0 %v3663
    %4000 = vmatprep.subr.bf16.mxu0 %v3656
    %4001 = vmatpush2.bf16.msra.mxu0 %v3655
    %4002 = vmatprep.mubr.bf16.mxu0 %v3030
    %4003 = vmatmul.mubr.bf16.gmra.mxu0 %v3029
    %v4004 = vpop.f32.mrf.mxu0
    %v4005 = vadd.f32 %v3188, %v4004
    %v4006 = vpop.f32.mrf.mxu0
    %v4007 = vadd.f32 %v3192, %v4006
    %v4008 = vpop.f32.mrf.mxu0
    %v4009 = vadd.f32 %v3188, %v4008
    %v4010 = vpop.f32.mrf.mxu0
    %v4011 = vadd.f32 %v3192, %v4010
    %4012 = vdwg.mxu0
    %v4013 = vmax.f32 %v3876, 0.0
    %v4014 = vmax.f32 %v3878, 0.0
    %v4015 = vmax.f32 %v3919, 0.0
    %v4016 = vmax.f32 %v3921, 0.0
    %v4017 = vmax.f32 %v3962, 0.0
    %v4018 = vmax.f32 %v3964, 0.0
    %v4019 = vmax.f32 %v4005, 0.0
    %v4020 = vmax.f32 %v4007, 0.0
    %v4021 = vmax.f32 %v3880, 0.0
    %v4022 = vmax.f32 %v3882, 0.0
    %v4023 = vmax.f32 %v3923, 0.0
    %v4024 = vmax.f32 %v3925, 0.0
    %v4025 = vmax.f32 %v3966, 0.0
    %v4026 = vmax.f32 %v3968, 0.0
    %v4027 = vmax.f32 %v4009, 0.0
    %v4028 = vmax.f32 %v4011, 0.0
    %s4029 = smul.u32 4, 128
    %s4030 = smul.u32 %s4029, 8
    %s4031 = sshll.u32 %s4030, 4
    %4032 = dma.done [#allocation3], %s4031
    %v4033 = vpack.c.bf16 %v4021, %v4013
    %v4034 = vpack.c.bf16 %v4022, %v4014
    %v4035 = vpack.c.bf16 %v4023, %v4015
    %v4036 = vpack.c.bf16 %v4024, %v4016
    %v4037 = vpack.c.bf16 %v4025, %v4017
    %v4038 = vpack.c.bf16 %v4026, %v4018
    %v4039 = vpack.c.bf16 %v4027, %v4019
    %v4040 = vpack.c.bf16 %v4028, %v4020
    %v4041 = vld [vmem:[#allocation2] sm:$0xff]
    %v4042 = vld [vmem:[#allocation2 + $0x8] sm:$0xff]
    %v4043 = vld [vmem:[#allocation2 + $0x10] sm:$0xff]
    %v4044 = vld [vmem:[#allocation2 + $0x18] sm:$0xff]
    %v4045 = vld [vmem:[#allocation2 + $0x20] sm:$0xff]
    %v4046 = vld [vmem:[#allocation2 + $0x28] sm:$0xff]
    %v4047 = vld [vmem:[#allocation2 + $0x30] sm:$0xff]
    %v4048 = vld [vmem:[#allocation2 + $0x38] sm:$0xff]
    %v4049 = vld [vmem:[#allocation2 + $0x40] sm:$0xff]
    %v4050 = vld [vmem:[#allocation2 + $0x48] sm:$0xff]
    %v4051 = vld [vmem:[#allocation2 + $0x50] sm:$0xff]
    %v4052 = vld [vmem:[#allocation2 + $0x58] sm:$0xff]
    %v4053 = vld [vmem:[#allocation2 + $0x60] sm:$0xff]
    %v4054 = vld [vmem:[#allocation2 + $0x68] sm:$0xff]
    %v4055 = vld [vmem:[#allocation2 + $0x70] sm:$0xff]
    %v4056 = vld [vmem:[#allocation2 + $0x78] sm:$0xff]
    %v4057 = vld [vmem:[#allocation2 + $0x80] sm:$0xff]
    %v4058 = vld [vmem:[#allocation2 + $0x88] sm:$0xff]
    %v4059 = vld [vmem:[#allocation2 + $0x90] sm:$0xff]
    %v4060 = vld [vmem:[#allocation2 + $0x98] sm:$0xff]
    %v4061 = vld [vmem:[#allocation2 + $0xa0] sm:$0xff]
    %v4062 = vld [vmem:[#allocation2 + $0xa8] sm:$0xff]
    %v4063 = vld [vmem:[#allocation2 + $0xb0] sm:$0xff]
    %v4064 = vld [vmem:[#allocation2 + $0xb8] sm:$0xff]
    %v4065 = vld [vmem:[#allocation2 + $0xc0] sm:$0xff]
    %v4066 = vld [vmem:[#allocation2 + $0xc8] sm:$0xff]
    %v4067 = vld [vmem:[#allocation2 + $0xd0] sm:$0xff]
    %v4068 = vld [vmem:[#allocation2 + $0xd8] sm:$0xff]
    %v4069 = vld [vmem:[#allocation2 + $0xe0] sm:$0xff]
    %v4070 = vld [vmem:[#allocation2 + $0xe8] sm:$0xff]
    %v4071 = vld [vmem:[#allocation2 + $0xf0] sm:$0xff]
    %v4072 = vld [vmem:[#allocation2 + $0xf8] sm:$0xff]
    %v4073 = vld [vmem:[#allocation2 + $0x100] sm:$0xff]
    %v4074 = vld [vmem:[#allocation2 + $0x108] sm:$0xff]
    %v4075 = vld [vmem:[#allocation2 + $0x110] sm:$0xff]
    %v4076 = vld [vmem:[#allocation2 + $0x118] sm:$0xff]
    %v4077 = vld [vmem:[#allocation2 + $0x120] sm:$0xff]
    %v4078 = vld [vmem:[#allocation2 + $0x128] sm:$0xff]
    %v4079 = vld [vmem:[#allocation2 + $0x130] sm:$0xff]
    %v4080 = vld [vmem:[#allocation2 + $0x138] sm:$0xff]
    %v4081 = vld [vmem:[#allocation2 + $0x140] sm:$0xff]
    %v4082 = vld [vmem:[#allocation2 + $0x148] sm:$0xff]
    %v4083 = vld [vmem:[#allocation2 + $0x150] sm:$0xff]
    %v4084 = vld [vmem:[#allocation2 + $0x158] sm:$0xff]
    %v4085 = vld [vmem:[#allocation2 + $0x160] sm:$0xff]
    %v4086 = vld [vmem:[#allocation2 + $0x168] sm:$0xff]
    %v4087 = vld [vmem:[#allocation2 + $0x170] sm:$0xff]
    %v4088 = vld [vmem:[#allocation2 + $0x178] sm:$0xff]
    %v4089 = vld [vmem:[#allocation2 + $0x180] sm:$0xff]
    %v4090 = vld [vmem:[#allocation2 + $0x188] sm:$0xff]
    %v4091 = vld [vmem:[#allocation2 + $0x190] sm:$0xff]
    %v4092 = vld [vmem:[#allocation2 + $0x198] sm:$0xff]
    %v4093 = vld [vmem:[#allocation2 + $0x1a0] sm:$0xff]
    %v4094 = vld [vmem:[#allocation2 + $0x1a8] sm:$0xff]
    %v4095 = vld [vmem:[#allocation2 + $0x1b0] sm:$0xff]
    %v4096 = vld [vmem:[#allocation2 + $0x1b8] sm:$0xff]
    %v4097 = vld [vmem:[#allocation2 + $0x1c0] sm:$0xff]
    %v4098 = vld [vmem:[#allocation2 + $0x1c8] sm:$0xff]
    %v4099 = vld [vmem:[#allocation2 + $0x1d0] sm:$0xff]
    %v4100 = vld [vmem:[#allocation2 + $0x1d8] sm:$0xff]
    %v4101 = vld [vmem:[#allocation2 + $0x1e0] sm:$0xff]
    %v4102 = vld [vmem:[#allocation2 + $0x1e8] sm:$0xff]
    %v4103 = vld [vmem:[#allocation2 + $0x1f0] sm:$0xff]
    %v4104 = vld [vmem:[#allocation2 + $0x1f8] sm:$0xff]
    %v4105 = vld [vmem:[#allocation2 + $0x200] sm:$0xff]
    %v4106 = vld [vmem:[#allocation2 + $0x208] sm:$0xff]
    %v4107 = vld [vmem:[#allocation2 + $0x210] sm:$0xff]
    %v4108 = vld [vmem:[#allocation2 + $0x218] sm:$0xff]
    %v4109 = vld [vmem:[#allocation2 + $0x220] sm:$0xff]
    %v4110 = vld [vmem:[#allocation2 + $0x228] sm:$0xff]
    %v4111 = vld [vmem:[#allocation2 + $0x230] sm:$0xff]
    %v4112 = vld [vmem:[#allocation2 + $0x238] sm:$0xff]
    %v4113 = vld [vmem:[#allocation2 + $0x240] sm:$0xff]
    %v4114 = vld [vmem:[#allocation2 + $0x248] sm:$0xff]
    %v4115 = vld [vmem:[#allocation2 + $0x250] sm:$0xff]
    %v4116 = vld [vmem:[#allocation2 + $0x258] sm:$0xff]
    %v4117 = vld [vmem:[#allocation2 + $0x260] sm:$0xff]
    %v4118 = vld [vmem:[#allocation2 + $0x268] sm:$0xff]
    %v4119 = vld [vmem:[#allocation2 + $0x270] sm:$0xff]
    %v4120 = vld [vmem:[#allocation2 + $0x278] sm:$0xff]
    %v4121 = vld [vmem:[#allocation2 + $0x280] sm:$0xff]
    %v4122 = vld [vmem:[#allocation2 + $0x288] sm:$0xff]
    %v4123 = vld [vmem:[#allocation2 + $0x290] sm:$0xff]
    %v4124 = vld [vmem:[#allocation2 + $0x298] sm:$0xff]
    %v4125 = vld [vmem:[#allocation2 + $0x2a0] sm:$0xff]
    %v4126 = vld [vmem:[#allocation2 + $0x2a8] sm:$0xff]
    %v4127 = vld [vmem:[#allocation2 + $0x2b0] sm:$0xff]
    %v4128 = vld [vmem:[#allocation2 + $0x2b8] sm:$0xff]
    %v4129 = vld [vmem:[#allocation2 + $0x2c0] sm:$0xff]
    %v4130 = vld [vmem:[#allocation2 + $0x2c8] sm:$0xff]
    %v4131 = vld [vmem:[#allocation2 + $0x2d0] sm:$0xff]
    %v4132 = vld [vmem:[#allocation2 + $0x2d8] sm:$0xff]
    %v4133 = vld [vmem:[#allocation2 + $0x2e0] sm:$0xff]
    %v4134 = vld [vmem:[#allocation2 + $0x2e8] sm:$0xff]
    %v4135 = vld [vmem:[#allocation2 + $0x2f0] sm:$0xff]
    %v4136 = vld [vmem:[#allocation2 + $0x2f8] sm:$0xff]
    %v4137 = vld [vmem:[#allocation2 + $0x300] sm:$0xff]
    %v4138 = vld [vmem:[#allocation2 + $0x308] sm:$0xff]
    %v4139 = vld [vmem:[#allocation2 + $0x310] sm:$0xff]
    %v4140 = vld [vmem:[#allocation2 + $0x318] sm:$0xff]
    %v4141 = vld [vmem:[#allocation2 + $0x320] sm:$0xff]
    %v4142 = vld [vmem:[#allocation2 + $0x328] sm:$0xff]
    %v4143 = vld [vmem:[#allocation2 + $0x330] sm:$0xff]
    %v4144 = vld [vmem:[#allocation2 + $0x338] sm:$0xff]
    %v4145 = vld [vmem:[#allocation2 + $0x340] sm:$0xff]
    %v4146 = vld [vmem:[#allocation2 + $0x348] sm:$0xff]
    %v4147 = vld [vmem:[#allocation2 + $0x350] sm:$0xff]
    %v4148 = vld [vmem:[#allocation2 + $0x358] sm:$0xff]
    %v4149 = vld [vmem:[#allocation2 + $0x360] sm:$0xff]
    %v4150 = vld [vmem:[#allocation2 + $0x368] sm:$0xff]
    %v4151 = vld [vmem:[#allocation2 + $0x370] sm:$0xff]
    %v4152 = vld [vmem:[#allocation2 + $0x378] sm:$0xff]
    %v4153 = vld [vmem:[#allocation2 + $0x380] sm:$0xff]
    %v4154 = vld [vmem:[#allocation2 + $0x388] sm:$0xff]
    %v4155 = vld [vmem:[#allocation2 + $0x390] sm:$0xff]
    %v4156 = vld [vmem:[#allocation2 + $0x398] sm:$0xff]
    %v4157 = vld [vmem:[#allocation2 + $0x3a0] sm:$0xff]
    %v4158 = vld [vmem:[#allocation2 + $0x3a8] sm:$0xff]
    %v4159 = vld [vmem:[#allocation2 + $0x3b0] sm:$0xff]
    %v4160 = vld [vmem:[#allocation2 + $0x3b8] sm:$0xff]
    %v4161 = vld [vmem:[#allocation2 + $0x3c0] sm:$0xff]
    %v4162 = vld [vmem:[#allocation2 + $0x3c8] sm:$0xff]
    %v4163 = vld [vmem:[#allocation2 + $0x3d0] sm:$0xff]
    %v4164 = vld [vmem:[#allocation2 + $0x3d8] sm:$0xff]
    %v4165 = vld [vmem:[#allocation2 + $0x3e0] sm:$0xff]
    %v4166 = vld [vmem:[#allocation2 + $0x3e8] sm:$0xff]
    %v4167 = vld [vmem:[#allocation2 + $0x3f0] sm:$0xff]
    %v4168 = vld [vmem:[#allocation2 + $0x3f8] sm:$0xff]
    %v4169 = vld [vmem:[#allocation2 + $0x400] sm:$0xff]
    %v4170 = vld [vmem:[#allocation2 + $0x408] sm:$0xff]
    %v4171 = vld [vmem:[#allocation2 + $0x410] sm:$0xff]
    %v4172 = vld [vmem:[#allocation2 + $0x418] sm:$0xff]
    %v4173 = vld [vmem:[#allocation2 + $0x420] sm:$0xff]
    %v4174 = vld [vmem:[#allocation2 + $0x428] sm:$0xff]
    %v4175 = vld [vmem:[#allocation2 + $0x430] sm:$0xff]
    %v4176 = vld [vmem:[#allocation2 + $0x438] sm:$0xff]
    %v4177 = vld [vmem:[#allocation2 + $0x440] sm:$0xff]
    %v4178 = vld [vmem:[#allocation2 + $0x448] sm:$0xff]
    %v4179 = vld [vmem:[#allocation2 + $0x450] sm:$0xff]
    %v4180 = vld [vmem:[#allocation2 + $0x458] sm:$0xff]
    %v4181 = vld [vmem:[#allocation2 + $0x460] sm:$0xff]
    %v4182 = vld [vmem:[#allocation2 + $0x468] sm:$0xff]
    %v4183 = vld [vmem:[#allocation2 + $0x470] sm:$0xff]
    %v4184 = vld [vmem:[#allocation2 + $0x478] sm:$0xff]
    %v4185 = vld [vmem:[#allocation2 + $0x480] sm:$0xff]
    %v4186 = vld [vmem:[#allocation2 + $0x488] sm:$0xff]
    %v4187 = vld [vmem:[#allocation2 + $0x490] sm:$0xff]
    %v4188 = vld [vmem:[#allocation2 + $0x498] sm:$0xff]
    %v4189 = vld [vmem:[#allocation2 + $0x4a0] sm:$0xff]
    %v4190 = vld [vmem:[#allocation2 + $0x4a8] sm:$0xff]
    %v4191 = vld [vmem:[#allocation2 + $0x4b0] sm:$0xff]
    %v4192 = vld [vmem:[#allocation2 + $0x4b8] sm:$0xff]
    %v4193 = vld [vmem:[#allocation2 + $0x4c0] sm:$0xff]
    %v4194 = vld [vmem:[#allocation2 + $0x4c8] sm:$0xff]
    %v4195 = vld [vmem:[#allocation2 + $0x4d0] sm:$0xff]
    %v4196 = vld [vmem:[#allocation2 + $0x4d8] sm:$0xff]
    %v4197 = vld [vmem:[#allocation2 + $0x4e0] sm:$0xff]
    %v4198 = vld [vmem:[#allocation2 + $0x4e8] sm:$0xff]
    %v4199 = vld [vmem:[#allocation2 + $0x4f0] sm:$0xff]
    %v4200 = vld [vmem:[#allocation2 + $0x4f8] sm:$0xff]
    %v4201 = vld [vmem:[#allocation2 + $0x500] sm:$0xff]
    %v4202 = vld [vmem:[#allocation2 + $0x508] sm:$0xff]
    %v4203 = vld [vmem:[#allocation2 + $0x510] sm:$0xff]
    %v4204 = vld [vmem:[#allocation2 + $0x518] sm:$0xff]
    %v4205 = vld [vmem:[#allocation2 + $0x520] sm:$0xff]
    %v4206 = vld [vmem:[#allocation2 + $0x528] sm:$0xff]
    %v4207 = vld [vmem:[#allocation2 + $0x530] sm:$0xff]
    %v4208 = vld [vmem:[#allocation2 + $0x538] sm:$0xff]
    %v4209 = vld [vmem:[#allocation2 + $0x540] sm:$0xff]
    %v4210 = vld [vmem:[#allocation2 + $0x548] sm:$0xff]
    %v4211 = vld [vmem:[#allocation2 + $0x550] sm:$0xff]
    %v4212 = vld [vmem:[#allocation2 + $0x558] sm:$0xff]
    %v4213 = vld [vmem:[#allocation2 + $0x560] sm:$0xff]
    %v4214 = vld [vmem:[#allocation2 + $0x568] sm:$0xff]
    %v4215 = vld [vmem:[#allocation2 + $0x570] sm:$0xff]
    %v4216 = vld [vmem:[#allocation2 + $0x578] sm:$0xff]
    %v4217 = vld [vmem:[#allocation2 + $0x580] sm:$0xff]
    %v4218 = vld [vmem:[#allocation2 + $0x588] sm:$0xff]
    %v4219 = vld [vmem:[#allocation2 + $0x590] sm:$0xff]
    %v4220 = vld [vmem:[#allocation2 + $0x598] sm:$0xff]
    %v4221 = vld [vmem:[#allocation2 + $0x5a0] sm:$0xff]
    %v4222 = vld [vmem:[#allocation2 + $0x5a8] sm:$0xff]
    %v4223 = vld [vmem:[#allocation2 + $0x5b0] sm:$0xff]
    %v4224 = vld [vmem:[#allocation2 + $0x5b8] sm:$0xff]
    %v4225 = vld [vmem:[#allocation2 + $0x5c0] sm:$0xff]
    %v4226 = vld [vmem:[#allocation2 + $0x5c8] sm:$0xff]
    %v4227 = vld [vmem:[#allocation2 + $0x5d0] sm:$0xff]
    %v4228 = vld [vmem:[#allocation2 + $0x5d8] sm:$0xff]
    %v4229 = vld [vmem:[#allocation2 + $0x5e0] sm:$0xff]
    %v4230 = vld [vmem:[#allocation2 + $0x5e8] sm:$0xff]
    %v4231 = vld [vmem:[#allocation2 + $0x5f0] sm:$0xff]
    %v4232 = vld [vmem:[#allocation2 + $0x5f8] sm:$0xff]
    %v4233 = vld [vmem:[#allocation2 + $0x600] sm:$0xff]
    %v4234 = vld [vmem:[#allocation2 + $0x608] sm:$0xff]
    %v4235 = vld [vmem:[#allocation2 + $0x610] sm:$0xff]
    %v4236 = vld [vmem:[#allocation2 + $0x618] sm:$0xff]
    %v4237 = vld [vmem:[#allocation2 + $0x620] sm:$0xff]
    %v4238 = vld [vmem:[#allocation2 + $0x628] sm:$0xff]
    %v4239 = vld [vmem:[#allocation2 + $0x630] sm:$0xff]
    %v4240 = vld [vmem:[#allocation2 + $0x638] sm:$0xff]
    %v4241 = vld [vmem:[#allocation2 + $0x640] sm:$0xff]
    %v4242 = vld [vmem:[#allocation2 + $0x648] sm:$0xff]
    %v4243 = vld [vmem:[#allocation2 + $0x650] sm:$0xff]
    %v4244 = vld [vmem:[#allocation2 + $0x658] sm:$0xff]
    %v4245 = vld [vmem:[#allocation2 + $0x660] sm:$0xff]
    %v4246 = vld [vmem:[#allocation2 + $0x668] sm:$0xff]
    %v4247 = vld [vmem:[#allocation2 + $0x670] sm:$0xff]
    %v4248 = vld [vmem:[#allocation2 + $0x678] sm:$0xff]
    %v4249 = vld [vmem:[#allocation2 + $0x680] sm:$0xff]
    %v4250 = vld [vmem:[#allocation2 + $0x688] sm:$0xff]
    %v4251 = vld [vmem:[#allocation2 + $0x690] sm:$0xff]
    %v4252 = vld [vmem:[#allocation2 + $0x698] sm:$0xff]
    %v4253 = vld [vmem:[#allocation2 + $0x6a0] sm:$0xff]
    %v4254 = vld [vmem:[#allocation2 + $0x6a8] sm:$0xff]
    %v4255 = vld [vmem:[#allocation2 + $0x6b0] sm:$0xff]
    %v4256 = vld [vmem:[#allocation2 + $0x6b8] sm:$0xff]
    %v4257 = vld [vmem:[#allocation2 + $0x6c0] sm:$0xff]
    %v4258 = vld [vmem:[#allocation2 + $0x6c8] sm:$0xff]
    %v4259 = vld [vmem:[#allocation2 + $0x6d0] sm:$0xff]
    %v4260 = vld [vmem:[#allocation2 + $0x6d8] sm:$0xff]
    %v4261 = vld [vmem:[#allocation2 + $0x6e0] sm:$0xff]
    %v4262 = vld [vmem:[#allocation2 + $0x6e8] sm:$0xff]
    %v4263 = vld [vmem:[#allocation2 + $0x6f0] sm:$0xff]
    %v4264 = vld [vmem:[#allocation2 + $0x6f8] sm:$0xff]
    %v4265 = vld [vmem:[#allocation2 + $0x700] sm:$0xff]
    %v4266 = vld [vmem:[#allocation2 + $0x708] sm:$0xff]
    %v4267 = vld [vmem:[#allocation2 + $0x710] sm:$0xff]
    %v4268 = vld [vmem:[#allocation2 + $0x718] sm:$0xff]
    %v4269 = vld [vmem:[#allocation2 + $0x720] sm:$0xff]
    %v4270 = vld [vmem:[#allocation2 + $0x728] sm:$0xff]
    %v4271 = vld [vmem:[#allocation2 + $0x730] sm:$0xff]
    %v4272 = vld [vmem:[#allocation2 + $0x738] sm:$0xff]
    %v4273 = vld [vmem:[#allocation2 + $0x740] sm:$0xff]
    %v4274 = vld [vmem:[#allocation2 + $0x748] sm:$0xff]
    %v4275 = vld [vmem:[#allocation2 + $0x750] sm:$0xff]
    %v4276 = vld [vmem:[#allocation2 + $0x758] sm:$0xff]
    %v4277 = vld [vmem:[#allocation2 + $0x760] sm:$0xff]
    %v4278 = vld [vmem:[#allocation2 + $0x768] sm:$0xff]
    %v4279 = vld [vmem:[#allocation2 + $0x770] sm:$0xff]
    %v4280 = vld [vmem:[#allocation2 + $0x778] sm:$0xff]
    %v4281 = vld [vmem:[#allocation2 + $0x780] sm:$0xff]
    %v4282 = vld [vmem:[#allocation2 + $0x788] sm:$0xff]
    %v4283 = vld [vmem:[#allocation2 + $0x790] sm:$0xff]
    %v4284 = vld [vmem:[#allocation2 + $0x798] sm:$0xff]
    %v4285 = vld [vmem:[#allocation2 + $0x7a0] sm:$0xff]
    %v4286 = vld [vmem:[#allocation2 + $0x7a8] sm:$0xff]
    %v4287 = vld [vmem:[#allocation2 + $0x7b0] sm:$0xff]
    %v4288 = vld [vmem:[#allocation2 + $0x7b8] sm:$0xff]
    %v4289 = vld [vmem:[#allocation2 + $0x7c0] sm:$0xff]
    %v4290 = vld [vmem:[#allocation2 + $0x7c8] sm:$0xff]
    %v4291 = vld [vmem:[#allocation2 + $0x7d0] sm:$0xff]
    %v4292 = vld [vmem:[#allocation2 + $0x7d8] sm:$0xff]
    %v4293 = vld [vmem:[#allocation2 + $0x7e0] sm:$0xff]
    %v4294 = vld [vmem:[#allocation2 + $0x7e8] sm:$0xff]
    %v4295 = vld [vmem:[#allocation2 + $0x7f0] sm:$0xff]
    %v4296 = vld [vmem:[#allocation2 + $0x7f8] sm:$0xff]
    %v4297 = vld [vmem:[#allocation2 + $0x800] sm:$0xff]
    %v4298 = vld [vmem:[#allocation2 + $0x808] sm:$0xff]
    %v4299 = vld [vmem:[#allocation2 + $0x810] sm:$0xff]
    %v4300 = vld [vmem:[#allocation2 + $0x818] sm:$0xff]
    %v4301 = vld [vmem:[#allocation2 + $0x820] sm:$0xff]
    %v4302 = vld [vmem:[#allocation2 + $0x828] sm:$0xff]
    %v4303 = vld [vmem:[#allocation2 + $0x830] sm:$0xff]
    %v4304 = vld [vmem:[#allocation2 + $0x838] sm:$0xff]
    %v4305 = vld [vmem:[#allocation2 + $0x840] sm:$0xff]
    %v4306 = vld [vmem:[#allocation2 + $0x848] sm:$0xff]
    %v4307 = vld [vmem:[#allocation2 + $0x850] sm:$0xff]
    %v4308 = vld [vmem:[#allocation2 + $0x858] sm:$0xff]
    %v4309 = vld [vmem:[#allocation2 + $0x860] sm:$0xff]
    %v4310 = vld [vmem:[#allocation2 + $0x868] sm:$0xff]
    %v4311 = vld [vmem:[#allocation2 + $0x870] sm:$0xff]
    %v4312 = vld [vmem:[#allocation2 + $0x878] sm:$0xff]
    %v4313 = vld [vmem:[#allocation2 + $0x880] sm:$0xff]
    %v4314 = vld [vmem:[#allocation2 + $0x888] sm:$0xff]
    %v4315 = vld [vmem:[#allocation2 + $0x890] sm:$0xff]
    %v4316 = vld [vmem:[#allocation2 + $0x898] sm:$0xff]
    %v4317 = vld [vmem:[#allocation2 + $0x8a0] sm:$0xff]
    %v4318 = vld [vmem:[#allocation2 + $0x8a8] sm:$0xff]
    %v4319 = vld [vmem:[#allocation2 + $0x8b0] sm:$0xff]
    %v4320 = vld [vmem:[#allocation2 + $0x8b8] sm:$0xff]
    %v4321 = vld [vmem:[#allocation2 + $0x8c0] sm:$0xff]
    %v4322 = vld [vmem:[#allocation2 + $0x8c8] sm:$0xff]
    %v4323 = vld [vmem:[#allocation2 + $0x8d0] sm:$0xff]
    %v4324 = vld [vmem:[#allocation2 + $0x8d8] sm:$0xff]
    %v4325 = vld [vmem:[#allocation2 + $0x8e0] sm:$0xff]
    %v4326 = vld [vmem:[#allocation2 + $0x8e8] sm:$0xff]
    %v4327 = vld [vmem:[#allocation2 + $0x8f0] sm:$0xff]
    %v4328 = vld [vmem:[#allocation2 + $0x8f8] sm:$0xff]
    %v4329 = vld [vmem:[#allocation2 + $0x900] sm:$0xff]
    %v4330 = vld [vmem:[#allocation2 + $0x908] sm:$0xff]
    %v4331 = vld [vmem:[#allocation2 + $0x910] sm:$0xff]
    %v4332 = vld [vmem:[#allocation2 + $0x918] sm:$0xff]
    %v4333 = vld [vmem:[#allocation2 + $0x920] sm:$0xff]
    %v4334 = vld [vmem:[#allocation2 + $0x928] sm:$0xff]
    %v4335 = vld [vmem:[#allocation2 + $0x930] sm:$0xff]
    %v4336 = vld [vmem:[#allocation2 + $0x938] sm:$0xff]
    %v4337 = vld [vmem:[#allocation2 + $0x940] sm:$0xff]
    %v4338 = vld [vmem:[#allocation2 + $0x948] sm:$0xff]
    %v4339 = vld [vmem:[#allocation2 + $0x950] sm:$0xff]
    %v4340 = vld [vmem:[#allocation2 + $0x958] sm:$0xff]
    %v4341 = vld [vmem:[#allocation2 + $0x960] sm:$0xff]
    %v4342 = vld [vmem:[#allocation2 + $0x968] sm:$0xff]
    %v4343 = vld [vmem:[#allocation2 + $0x970] sm:$0xff]
    %v4344 = vld [vmem:[#allocation2 + $0x978] sm:$0xff]
    %v4345 = vld [vmem:[#allocation2 + $0x980] sm:$0xff]
    %v4346 = vld [vmem:[#allocation2 + $0x988] sm:$0xff]
    %v4347 = vld [vmem:[#allocation2 + $0x990] sm:$0xff]
    %v4348 = vld [vmem:[#allocation2 + $0x998] sm:$0xff]
    %v4349 = vld [vmem:[#allocation2 + $0x9a0] sm:$0xff]
    %v4350 = vld [vmem:[#allocation2 + $0x9a8] sm:$0xff]
    %v4351 = vld [vmem:[#allocation2 + $0x9b0] sm:$0xff]
    %v4352 = vld [vmem:[#allocation2 + $0x9b8] sm:$0xff]
    %v4353 = vld [vmem:[#allocation2 + $0x9c0] sm:$0xff]
    %v4354 = vld [vmem:[#allocation2 + $0x9c8] sm:$0xff]
    %v4355 = vld [vmem:[#allocation2 + $0x9d0] sm:$0xff]
    %v4356 = vld [vmem:[#allocation2 + $0x9d8] sm:$0xff]
    %v4357 = vld [vmem:[#allocation2 + $0x9e0] sm:$0xff]
    %v4358 = vld [vmem:[#allocation2 + $0x9e8] sm:$0xff]
    %v4359 = vld [vmem:[#allocation2 + $0x9f0] sm:$0xff]
    %v4360 = vld [vmem:[#allocation2 + $0x9f8] sm:$0xff]
    %v4361 = vld [vmem:[#allocation2 + $0xa00] sm:$0xff]
    %v4362 = vld [vmem:[#allocation2 + $0xa08] sm:$0xff]
    %v4363 = vld [vmem:[#allocation2 + $0xa10] sm:$0xff]
    %v4364 = vld [vmem:[#allocation2 + $0xa18] sm:$0xff]
    %v4365 = vld [vmem:[#allocation2 + $0xa20] sm:$0xff]
    %v4366 = vld [vmem:[#allocation2 + $0xa28] sm:$0xff]
    %v4367 = vld [vmem:[#allocation2 + $0xa30] sm:$0xff]
    %v4368 = vld [vmem:[#allocation2 + $0xa38] sm:$0xff]
    %v4369 = vld [vmem:[#allocation2 + $0xa40] sm:$0xff]
    %v4370 = vld [vmem:[#allocation2 + $0xa48] sm:$0xff]
    %v4371 = vld [vmem:[#allocation2 + $0xa50] sm:$0xff]
    %v4372 = vld [vmem:[#allocation2 + $0xa58] sm:$0xff]
    %v4373 = vld [vmem:[#allocation2 + $0xa60] sm:$0xff]
    %v4374 = vld [vmem:[#allocation2 + $0xa68] sm:$0xff]
    %v4375 = vld [vmem:[#allocation2 + $0xa70] sm:$0xff]
    %v4376 = vld [vmem:[#allocation2 + $0xa78] sm:$0xff]
    %v4377 = vld [vmem:[#allocation2 + $0xa80] sm:$0xff]
    %v4378 = vld [vmem:[#allocation2 + $0xa88] sm:$0xff]
    %v4379 = vld [vmem:[#allocation2 + $0xa90] sm:$0xff]
    %v4380 = vld [vmem:[#allocation2 + $0xa98] sm:$0xff]
    %v4381 = vld [vmem:[#allocation2 + $0xaa0] sm:$0xff]
    %v4382 = vld [vmem:[#allocation2 + $0xaa8] sm:$0xff]
    %v4383 = vld [vmem:[#allocation2 + $0xab0] sm:$0xff]
    %v4384 = vld [vmem:[#allocation2 + $0xab8] sm:$0xff]
    %v4385 = vld [vmem:[#allocation2 + $0xac0] sm:$0xff]
    %v4386 = vld [vmem:[#allocation2 + $0xac8] sm:$0xff]
    %v4387 = vld [vmem:[#allocation2 + $0xad0] sm:$0xff]
    %v4388 = vld [vmem:[#allocation2 + $0xad8] sm:$0xff]
    %v4389 = vld [vmem:[#allocation2 + $0xae0] sm:$0xff]
    %v4390 = vld [vmem:[#allocation2 + $0xae8] sm:$0xff]
    %v4391 = vld [vmem:[#allocation2 + $0xaf0] sm:$0xff]
    %v4392 = vld [vmem:[#allocation2 + $0xaf8] sm:$0xff]
    %v4393 = vld [vmem:[#allocation2 + $0xb00] sm:$0xff]
    %v4394 = vld [vmem:[#allocation2 + $0xb08] sm:$0xff]
    %v4395 = vld [vmem:[#allocation2 + $0xb10] sm:$0xff]
    %v4396 = vld [vmem:[#allocation2 + $0xb18] sm:$0xff]
    %v4397 = vld [vmem:[#allocation2 + $0xb20] sm:$0xff]
    %v4398 = vld [vmem:[#allocation2 + $0xb28] sm:$0xff]
    %v4399 = vld [vmem:[#allocation2 + $0xb30] sm:$0xff]
    %v4400 = vld [vmem:[#allocation2 + $0xb38] sm:$0xff]
    %v4401 = vld [vmem:[#allocation2 + $0xb40] sm:$0xff]
    %v4402 = vld [vmem:[#allocation2 + $0xb48] sm:$0xff]
    %v4403 = vld [vmem:[#allocation2 + $0xb50] sm:$0xff]
    %v4404 = vld [vmem:[#allocation2 + $0xb58] sm:$0xff]
    %v4405 = vld [vmem:[#allocation2 + $0xb60] sm:$0xff]
    %v4406 = vld [vmem:[#allocation2 + $0xb68] sm:$0xff]
    %v4407 = vld [vmem:[#allocation2 + $0xb70] sm:$0xff]
    %v4408 = vld [vmem:[#allocation2 + $0xb78] sm:$0xff]
    %v4409 = vld [vmem:[#allocation2 + $0xb80] sm:$0xff]
    %v4410 = vld [vmem:[#allocation2 + $0xb88] sm:$0xff]
    %v4411 = vld [vmem:[#allocation2 + $0xb90] sm:$0xff]
    %v4412 = vld [vmem:[#allocation2 + $0xb98] sm:$0xff]
    %v4413 = vld [vmem:[#allocation2 + $0xba0] sm:$0xff]
    %v4414 = vld [vmem:[#allocation2 + $0xba8] sm:$0xff]
    %v4415 = vld [vmem:[#allocation2 + $0xbb0] sm:$0xff]
    %v4416 = vld [vmem:[#allocation2 + $0xbb8] sm:$0xff]
    %v4417 = vld [vmem:[#allocation2 + $0xbc0] sm:$0xff]
    %v4418 = vld [vmem:[#allocation2 + $0xbc8] sm:$0xff]
    %v4419 = vld [vmem:[#allocation2 + $0xbd0] sm:$0xff]
    %v4420 = vld [vmem:[#allocation2 + $0xbd8] sm:$0xff]
    %v4421 = vld [vmem:[#allocation2 + $0xbe0] sm:$0xff]
    %v4422 = vld [vmem:[#allocation2 + $0xbe8] sm:$0xff]
    %v4423 = vld [vmem:[#allocation2 + $0xbf0] sm:$0xff]
    %v4424 = vld [vmem:[#allocation2 + $0xbf8] sm:$0xff]
    %v4425 = vld [vmem:[#allocation2 + $0xc00] sm:$0xff]
    %v4426 = vld [vmem:[#allocation2 + $0xc08] sm:$0xff]
    %v4427 = vld [vmem:[#allocation2 + $0xc10] sm:$0xff]
    %v4428 = vld [vmem:[#allocation2 + $0xc18] sm:$0xff]
    %v4429 = vld [vmem:[#allocation2 + $0xc20] sm:$0xff]
    %v4430 = vld [vmem:[#allocation2 + $0xc28] sm:$0xff]
    %v4431 = vld [vmem:[#allocation2 + $0xc30] sm:$0xff]
    %v4432 = vld [vmem:[#allocation2 + $0xc38] sm:$0xff]
    %v4433 = vld [vmem:[#allocation2 + $0xc40] sm:$0xff]
    %v4434 = vld [vmem:[#allocation2 + $0xc48] sm:$0xff]
    %v4435 = vld [vmem:[#allocation2 + $0xc50] sm:$0xff]
    %v4436 = vld [vmem:[#allocation2 + $0xc58] sm:$0xff]
    %v4437 = vld [vmem:[#allocation2 + $0xc60] sm:$0xff]
    %v4438 = vld [vmem:[#allocation2 + $0xc68] sm:$0xff]
    %v4439 = vld [vmem:[#allocation2 + $0xc70] sm:$0xff]
    %v4440 = vld [vmem:[#allocation2 + $0xc78] sm:$0xff]
    %v4441 = vld [vmem:[#allocation2 + $0xc80] sm:$0xff]
    %v4442 = vld [vmem:[#allocation2 + $0xc88] sm:$0xff]
    %v4443 = vld [vmem:[#allocation2 + $0xc90] sm:$0xff]
    %v4444 = vld [vmem:[#allocation2 + $0xc98] sm:$0xff]
    %v4445 = vld [vmem:[#allocation2 + $0xca0] sm:$0xff]
    %v4446 = vld [vmem:[#allocation2 + $0xca8] sm:$0xff]
    %v4447 = vld [vmem:[#allocation2 + $0xcb0] sm:$0xff]
    %v4448 = vld [vmem:[#allocation2 + $0xcb8] sm:$0xff]
    %v4449 = vld [vmem:[#allocation2 + $0xcc0] sm:$0xff]
    %v4450 = vld [vmem:[#allocation2 + $0xcc8] sm:$0xff]
    %v4451 = vld [vmem:[#allocation2 + $0xcd0] sm:$0xff]
    %v4452 = vld [vmem:[#allocation2 + $0xcd8] sm:$0xff]
    %v4453 = vld [vmem:[#allocation2 + $0xce0] sm:$0xff]
    %v4454 = vld [vmem:[#allocation2 + $0xce8] sm:$0xff]
    %v4455 = vld [vmem:[#allocation2 + $0xcf0] sm:$0xff]
    %v4456 = vld [vmem:[#allocation2 + $0xcf8] sm:$0xff]
    %v4457 = vld [vmem:[#allocation2 + $0xd00] sm:$0xff]
    %v4458 = vld [vmem:[#allocation2 + $0xd08] sm:$0xff]
    %v4459 = vld [vmem:[#allocation2 + $0xd10] sm:$0xff]
    %v4460 = vld [vmem:[#allocation2 + $0xd18] sm:$0xff]
    %v4461 = vld [vmem:[#allocation2 + $0xd20] sm:$0xff]
    %v4462 = vld [vmem:[#allocation2 + $0xd28] sm:$0xff]
    %v4463 = vld [vmem:[#allocation2 + $0xd30] sm:$0xff]
    %v4464 = vld [vmem:[#allocation2 + $0xd38] sm:$0xff]
    %v4465 = vld [vmem:[#allocation2 + $0xd40] sm:$0xff]
    %v4466 = vld [vmem:[#allocation2 + $0xd48] sm:$0xff]
    %v4467 = vld [vmem:[#allocation2 + $0xd50] sm:$0xff]
    %v4468 = vld [vmem:[#allocation2 + $0xd58] sm:$0xff]
    %v4469 = vld [vmem:[#allocation2 + $0xd60] sm:$0xff]
    %v4470 = vld [vmem:[#allocation2 + $0xd68] sm:$0xff]
    %v4471 = vld [vmem:[#allocation2 + $0xd70] sm:$0xff]
    %v4472 = vld [vmem:[#allocation2 + $0xd78] sm:$0xff]
    %v4473 = vld [vmem:[#allocation2 + $0xd80] sm:$0xff]
    %v4474 = vld [vmem:[#allocation2 + $0xd88] sm:$0xff]
    %v4475 = vld [vmem:[#allocation2 + $0xd90] sm:$0xff]
    %v4476 = vld [vmem:[#allocation2 + $0xd98] sm:$0xff]
    %v4477 = vld [vmem:[#allocation2 + $0xda0] sm:$0xff]
    %v4478 = vld [vmem:[#allocation2 + $0xda8] sm:$0xff]
    %v4479 = vld [vmem:[#allocation2 + $0xdb0] sm:$0xff]
    %v4480 = vld [vmem:[#allocation2 + $0xdb8] sm:$0xff]
    %v4481 = vld [vmem:[#allocation2 + $0xdc0] sm:$0xff]
    %v4482 = vld [vmem:[#allocation2 + $0xdc8] sm:$0xff]
    %v4483 = vld [vmem:[#allocation2 + $0xdd0] sm:$0xff]
    %v4484 = vld [vmem:[#allocation2 + $0xdd8] sm:$0xff]
    %v4485 = vld [vmem:[#allocation2 + $0xde0] sm:$0xff]
    %v4486 = vld [vmem:[#allocation2 + $0xde8] sm:$0xff]
    %v4487 = vld [vmem:[#allocation2 + $0xdf0] sm:$0xff]
    %v4488 = vld [vmem:[#allocation2 + $0xdf8] sm:$0xff]
    %v4489 = vld [vmem:[#allocation2 + $0xe00] sm:$0xff]
    %v4490 = vld [vmem:[#allocation2 + $0xe08] sm:$0xff]
    %v4491 = vld [vmem:[#allocation2 + $0xe10] sm:$0xff]
    %v4492 = vld [vmem:[#allocation2 + $0xe18] sm:$0xff]
    %v4493 = vld [vmem:[#allocation2 + $0xe20] sm:$0xff]
    %v4494 = vld [vmem:[#allocation2 + $0xe28] sm:$0xff]
    %v4495 = vld [vmem:[#allocation2 + $0xe30] sm:$0xff]
    %v4496 = vld [vmem:[#allocation2 + $0xe38] sm:$0xff]
    %v4497 = vld [vmem:[#allocation2 + $0xe40] sm:$0xff]
    %v4498 = vld [vmem:[#allocation2 + $0xe48] sm:$0xff]
    %v4499 = vld [vmem:[#allocation2 + $0xe50] sm:$0xff]
    %v4500 = vld [vmem:[#allocation2 + $0xe58] sm:$0xff]
    %v4501 = vld [vmem:[#allocation2 + $0xe60] sm:$0xff]
    %v4502 = vld [vmem:[#allocation2 + $0xe68] sm:$0xff]
    %v4503 = vld [vmem:[#allocation2 + $0xe70] sm:$0xff]
    %v4504 = vld [vmem:[#allocation2 + $0xe78] sm:$0xff]
    %v4505 = vld [vmem:[#allocation2 + $0xe80] sm:$0xff]
    %v4506 = vld [vmem:[#allocation2 + $0xe88] sm:$0xff]
    %v4507 = vld [vmem:[#allocation2 + $0xe90] sm:$0xff]
    %v4508 = vld [vmem:[#allocation2 + $0xe98] sm:$0xff]
    %v4509 = vld [vmem:[#allocation2 + $0xea0] sm:$0xff]
    %v4510 = vld [vmem:[#allocation2 + $0xea8] sm:$0xff]
    %v4511 = vld [vmem:[#allocation2 + $0xeb0] sm:$0xff]
    %v4512 = vld [vmem:[#allocation2 + $0xeb8] sm:$0xff]
    %v4513 = vld [vmem:[#allocation2 + $0xec0] sm:$0xff]
    %v4514 = vld [vmem:[#allocation2 + $0xec8] sm:$0xff]
    %v4515 = vld [vmem:[#allocation2 + $0xed0] sm:$0xff]
    %v4516 = vld [vmem:[#allocation2 + $0xed8] sm:$0xff]
    %v4517 = vld [vmem:[#allocation2 + $0xee0] sm:$0xff]
    %v4518 = vld [vmem:[#allocation2 + $0xee8] sm:$0xff]
    %v4519 = vld [vmem:[#allocation2 + $0xef0] sm:$0xff]
    %v4520 = vld [vmem:[#allocation2 + $0xef8] sm:$0xff]
    %v4521 = vld [vmem:[#allocation2 + $0xf00] sm:$0xff]
    %v4522 = vld [vmem:[#allocation2 + $0xf08] sm:$0xff]
    %v4523 = vld [vmem:[#allocation2 + $0xf10] sm:$0xff]
    %v4524 = vld [vmem:[#allocation2 + $0xf18] sm:$0xff]
    %v4525 = vld [vmem:[#allocation2 + $0xf20] sm:$0xff]
    %v4526 = vld [vmem:[#allocation2 + $0xf28] sm:$0xff]
    %v4527 = vld [vmem:[#allocation2 + $0xf30] sm:$0xff]
    %v4528 = vld [vmem:[#allocation2 + $0xf38] sm:$0xff]
    %v4529 = vld [vmem:[#allocation2 + $0xf40] sm:$0xff]
    %v4530 = vld [vmem:[#allocation2 + $0xf48] sm:$0xff]
    %v4531 = vld [vmem:[#allocation2 + $0xf50] sm:$0xff]
    %v4532 = vld [vmem:[#allocation2 + $0xf58] sm:$0xff]
    %v4533 = vld [vmem:[#allocation2 + $0xf60] sm:$0xff]
    %v4534 = vld [vmem:[#allocation2 + $0xf68] sm:$0xff]
    %v4535 = vld [vmem:[#allocation2 + $0xf70] sm:$0xff]
    %v4536 = vld [vmem:[#allocation2 + $0xf78] sm:$0xff]
    %v4537 = vld [vmem:[#allocation2 + $0xf80] sm:$0xff]
    %v4538 = vld [vmem:[#allocation2 + $0xf88] sm:$0xff]
    %v4539 = vld [vmem:[#allocation2 + $0xf90] sm:$0xff]
    %v4540 = vld [vmem:[#allocation2 + $0xf98] sm:$0xff]
    %v4541 = vld [vmem:[#allocation2 + $0xfa0] sm:$0xff]
    %v4542 = vld [vmem:[#allocation2 + $0xfa8] sm:$0xff]
    %v4543 = vld [vmem:[#allocation2 + $0xfb0] sm:$0xff]
    %v4544 = vld [vmem:[#allocation2 + $0xfb8] sm:$0xff]
    %v4545 = vld [vmem:[#allocation2 + $0xfc0] sm:$0xff]
    %v4546 = vld [vmem:[#allocation2 + $0xfc8] sm:$0xff]
    %v4547 = vld [vmem:[#allocation2 + $0xfd0] sm:$0xff]
    %v4548 = vld [vmem:[#allocation2 + $0xfd8] sm:$0xff]
    %v4549 = vld [vmem:[#allocation2 + $0xfe0] sm:$0xff]
    %v4550 = vld [vmem:[#allocation2 + $0xfe8] sm:$0xff]
    %v4551 = vld [vmem:[#allocation2 + $0xff0] sm:$0xff]
    %v4552 = vld [vmem:[#allocation2 + $0xff8] sm:$0xff]
    %v4553 = vld [vmem:[#allocation20] sm:$0xff]
    %v4555 = vlaneseq
    %v4556 = vshrl.u32 %v4555, 7
    %v4557 = vsub.s32 0, %v4556
    %v4558 = vrot.slane %v4553, %v4557
    %v4559 = vlaneseq
    %v4560 = vshrl.u32 %v4559, 7
    %v4561 = vsub.s32 1, %v4560
    %v4562 = vrot.slane %v4553, %v4561
    %v4563 = vlaneseq
    %v4564 = vshrl.u32 %v4563, 7
    %v4565 = vsub.s32 2, %v4564
    %v4566 = vrot.slane %v4553, %v4565
    %v4567 = vlaneseq
    %v4568 = vshrl.u32 %v4567, 7
    %v4569 = vsub.s32 3, %v4568
    %v4570 = vrot.slane %v4553, %v4569
    %v4571 = vlaneseq
    %v4572 = vshrl.u32 %v4571, 7
    %v4573 = vsub.s32 4, %v4572
    %v4574 = vrot.slane %v4553, %v4573
    %v4575 = vlaneseq
    %v4576 = vshrl.u32 %v4575, 7
    %v4577 = vsub.s32 5, %v4576
    %v4578 = vrot.slane %v4553, %v4577
    %v4579 = vlaneseq
    %v4580 = vshrl.u32 %v4579, 7
    %v4581 = vsub.s32 6, %v4580
    %v4582 = vrot.slane %v4553, %v4581
    %v4583 = vlaneseq
    %v4584 = vshrl.u32 %v4583, 7
    %v4585 = vsub.s32 7, %v4584
    %v4586 = vrot.slane %v4553, %v4585
    %v5107 = vunpack.c.l.b16 %v4041
    %v5108 = vunpack.c.h.b16 %v4041
    %v5109 = vunpack.c.l.b16 %v4042
    %v5110 = vunpack.c.h.b16 %v4042
    %v5111 = vunpack.c.l.b16 %v4043
    %v5112 = vunpack.c.h.b16 %v4043
    %v5113 = vunpack.c.l.b16 %v4044
    %v5114 = vunpack.c.h.b16 %v4044
    %v5115 = vunpack.c.l.b16 %v4045
    %v5116 = vunpack.c.h.b16 %v4045
    %v5117 = vunpack.c.l.b16 %v4046
    %v5118 = vunpack.c.h.b16 %v4046
    %v5119 = vunpack.c.l.b16 %v4047
    %v5120 = vunpack.c.h.b16 %v4047
    %v5121 = vunpack.c.l.b16 %v4048
    %v5122 = vunpack.c.h.b16 %v4048
    %v5123 = vunpack.c.l.b16 %v4049
    %v5124 = vunpack.c.h.b16 %v4049
    %v5125 = vunpack.c.l.b16 %v4050
    %v5126 = vunpack.c.h.b16 %v4050
    %v5127 = vunpack.c.l.b16 %v4051
    %v5128 = vunpack.c.h.b16 %v4051
    %v5129 = vunpack.c.l.b16 %v4052
    %v5130 = vunpack.c.h.b16 %v4052
    %v5131 = vunpack.c.l.b16 %v4053
    %v5132 = vunpack.c.h.b16 %v4053
    %v5133 = vunpack.c.l.b16 %v4054
    %v5134 = vunpack.c.h.b16 %v4054
    %v5135 = vunpack.c.l.b16 %v4055
    %v5136 = vunpack.c.h.b16 %v4055
    %v5137 = vunpack.c.l.b16 %v4056
    %v5138 = vunpack.c.h.b16 %v4056
    %v5139 = vunpack.c.l.b16 %v4057
    %v5140 = vunpack.c.h.b16 %v4057
    %v5141 = vunpack.c.l.b16 %v4058
    %v5142 = vunpack.c.h.b16 %v4058
    %v5143 = vunpack.c.l.b16 %v4059
    %v5144 = vunpack.c.h.b16 %v4059
    %v5145 = vunpack.c.l.b16 %v4060
    %v5146 = vunpack.c.h.b16 %v4060
    %v5147 = vunpack.c.l.b16 %v4061
    %v5148 = vunpack.c.h.b16 %v4061
    %v5149 = vunpack.c.l.b16 %v4062
    %v5150 = vunpack.c.h.b16 %v4062
    %v5151 = vunpack.c.l.b16 %v4063
    %v5152 = vunpack.c.h.b16 %v4063
    %v5153 = vunpack.c.l.b16 %v4064
    %v5154 = vunpack.c.h.b16 %v4064
    %v5155 = vunpack.c.l.b16 %v4065
    %v5156 = vunpack.c.h.b16 %v4065
    %v5157 = vunpack.c.l.b16 %v4066
    %v5158 = vunpack.c.h.b16 %v4066
    %v5159 = vunpack.c.l.b16 %v4067
    %v5160 = vunpack.c.h.b16 %v4067
    %v5161 = vunpack.c.l.b16 %v4068
    %v5162 = vunpack.c.h.b16 %v4068
    %v5163 = vunpack.c.l.b16 %v4069
    %v5164 = vunpack.c.h.b16 %v4069
    %v5165 = vunpack.c.l.b16 %v4070
    %v5166 = vunpack.c.h.b16 %v4070
    %v5167 = vunpack.c.l.b16 %v4071
    %v5168 = vunpack.c.h.b16 %v4071
    %v5169 = vunpack.c.l.b16 %v4072
    %v5170 = vunpack.c.h.b16 %v4072
    %v5171 = vunpack.c.l.b16 %v4073
    %v5172 = vunpack.c.h.b16 %v4073
    %v5173 = vunpack.c.l.b16 %v4074
    %v5174 = vunpack.c.h.b16 %v4074
    %v5175 = vunpack.c.l.b16 %v4075
    %v5176 = vunpack.c.h.b16 %v4075
    %v5177 = vunpack.c.l.b16 %v4076
    %v5178 = vunpack.c.h.b16 %v4076
    %v5179 = vunpack.c.l.b16 %v4077
    %v5180 = vunpack.c.h.b16 %v4077
    %v5181 = vunpack.c.l.b16 %v4078
    %v5182 = vunpack.c.h.b16 %v4078
    %v5183 = vunpack.c.l.b16 %v4079
    %v5184 = vunpack.c.h.b16 %v4079
    %v5185 = vunpack.c.l.b16 %v4080
    %v5186 = vunpack.c.h.b16 %v4080
    %v5187 = vunpack.c.l.b16 %v4081
    %v5188 = vunpack.c.h.b16 %v4081
    %v5189 = vunpack.c.l.b16 %v4082
    %v5190 = vunpack.c.h.b16 %v4082
    %v5191 = vunpack.c.l.b16 %v4083
    %v5192 = vunpack.c.h.b16 %v4083
    %v5193 = vunpack.c.l.b16 %v4084
    %v5194 = vunpack.c.h.b16 %v4084
    %v5195 = vunpack.c.l.b16 %v4085
    %v5196 = vunpack.c.h.b16 %v4085
    %v5197 = vunpack.c.l.b16 %v4086
    %v5198 = vunpack.c.h.b16 %v4086
    %v5199 = vunpack.c.l.b16 %v4087
    %v5200 = vunpack.c.h.b16 %v4087
    %v5201 = vunpack.c.l.b16 %v4088
    %v5202 = vunpack.c.h.b16 %v4088
    %v5203 = vunpack.c.l.b16 %v4089
    %v5204 = vunpack.c.h.b16 %v4089
    %v5205 = vunpack.c.l.b16 %v4090
    %v5206 = vunpack.c.h.b16 %v4090
    %v5207 = vunpack.c.l.b16 %v4091
    %v5208 = vunpack.c.h.b16 %v4091
    %v5209 = vunpack.c.l.b16 %v4092
    %v5210 = vunpack.c.h.b16 %v4092
    %v5211 = vunpack.c.l.b16 %v4093
    %v5212 = vunpack.c.h.b16 %v4093
    %v5213 = vunpack.c.l.b16 %v4094
    %v5214 = vunpack.c.h.b16 %v4094
    %v5215 = vunpack.c.l.b16 %v4095
    %v5216 = vunpack.c.h.b16 %v4095
    %v5217 = vunpack.c.l.b16 %v4096
    %v5218 = vunpack.c.h.b16 %v4096
    %v5219 = vunpack.c.l.b16 %v4097
    %v5220 = vunpack.c.h.b16 %v4097
    %v5221 = vunpack.c.l.b16 %v4098
    %v5222 = vunpack.c.h.b16 %v4098
    %v5223 = vunpack.c.l.b16 %v4099
    %v5224 = vunpack.c.h.b16 %v4099
    %v5225 = vunpack.c.l.b16 %v4100
    %v5226 = vunpack.c.h.b16 %v4100
    %v5227 = vunpack.c.l.b16 %v4101
    %v5228 = vunpack.c.h.b16 %v4101
    %v5229 = vunpack.c.l.b16 %v4102
    %v5230 = vunpack.c.h.b16 %v4102
    %v5231 = vunpack.c.l.b16 %v4103
    %v5232 = vunpack.c.h.b16 %v4103
    %v5233 = vunpack.c.l.b16 %v4104
    %v5234 = vunpack.c.h.b16 %v4104
    %v5235 = vunpack.c.l.b16 %v4105
    %v5236 = vunpack.c.h.b16 %v4105
    %v5237 = vunpack.c.l.b16 %v4106
    %v5238 = vunpack.c.h.b16 %v4106
    %v5239 = vunpack.c.l.b16 %v4107
    %v5240 = vunpack.c.h.b16 %v4107
    %v5241 = vunpack.c.l.b16 %v4108
    %v5242 = vunpack.c.h.b16 %v4108
    %v5243 = vunpack.c.l.b16 %v4109
    %v5244 = vunpack.c.h.b16 %v4109
    %v5245 = vunpack.c.l.b16 %v4110
    %v5246 = vunpack.c.h.b16 %v4110
    %v5247 = vunpack.c.l.b16 %v4111
    %v5248 = vunpack.c.h.b16 %v4111
    %v5249 = vunpack.c.l.b16 %v4112
    %v5250 = vunpack.c.h.b16 %v4112
    %v5251 = vunpack.c.l.b16 %v4113
    %v5252 = vunpack.c.h.b16 %v4113
    %v5253 = vunpack.c.l.b16 %v4114
    %v5254 = vunpack.c.h.b16 %v4114
    %v5255 = vunpack.c.l.b16 %v4115
    %v5256 = vunpack.c.h.b16 %v4115
    %v5257 = vunpack.c.l.b16 %v4116
    %v5258 = vunpack.c.h.b16 %v4116
    %v5259 = vunpack.c.l.b16 %v4117
    %v5260 = vunpack.c.h.b16 %v4117
    %v5261 = vunpack.c.l.b16 %v4118
    %v5262 = vunpack.c.h.b16 %v4118
    %v5263 = vunpack.c.l.b16 %v4119
    %v5264 = vunpack.c.h.b16 %v4119
    %v5265 = vunpack.c.l.b16 %v4120
    %v5266 = vunpack.c.h.b16 %v4120
    %v5267 = vunpack.c.l.b16 %v4121
    %v5268 = vunpack.c.h.b16 %v4121
    %v5269 = vunpack.c.l.b16 %v4122
    %v5270 = vunpack.c.h.b16 %v4122
    %v5271 = vunpack.c.l.b16 %v4123
    %v5272 = vunpack.c.h.b16 %v4123
    %v5273 = vunpack.c.l.b16 %v4124
    %v5274 = vunpack.c.h.b16 %v4124
    %v5275 = vunpack.c.l.b16 %v4125
    %v5276 = vunpack.c.h.b16 %v4125
    %v5277 = vunpack.c.l.b16 %v4126
    %v5278 = vunpack.c.h.b16 %v4126
    %v5279 = vunpack.c.l.b16 %v4127
    %v5280 = vunpack.c.h.b16 %v4127
    %v5281 = vunpack.c.l.b16 %v4128
    %v5282 = vunpack.c.h.b16 %v4128
    %v5283 = vunpack.c.l.b16 %v4129
    %v5284 = vunpack.c.h.b16 %v4129
    %v5285 = vunpack.c.l.b16 %v4130
    %v5286 = vunpack.c.h.b16 %v4130
    %v5287 = vunpack.c.l.b16 %v4131
    %v5288 = vunpack.c.h.b16 %v4131
    %v5289 = vunpack.c.l.b16 %v4132
    %v5290 = vunpack.c.h.b16 %v4132
    %v5291 = vunpack.c.l.b16 %v4133
    %v5292 = vunpack.c.h.b16 %v4133
    %v5293 = vunpack.c.l.b16 %v4134
    %v5294 = vunpack.c.h.b16 %v4134
    %v5295 = vunpack.c.l.b16 %v4135
    %v5296 = vunpack.c.h.b16 %v4135
    %v5297 = vunpack.c.l.b16 %v4136
    %v5298 = vunpack.c.h.b16 %v4136
    %v5299 = vunpack.c.l.b16 %v4137
    %v5300 = vunpack.c.h.b16 %v4137
    %v5301 = vunpack.c.l.b16 %v4138
    %v5302 = vunpack.c.h.b16 %v4138
    %v5303 = vunpack.c.l.b16 %v4139
    %v5304 = vunpack.c.h.b16 %v4139
    %v5305 = vunpack.c.l.b16 %v4140
    %v5306 = vunpack.c.h.b16 %v4140
    %v5307 = vunpack.c.l.b16 %v4141
    %v5308 = vunpack.c.h.b16 %v4141
    %v5309 = vunpack.c.l.b16 %v4142
    %v5310 = vunpack.c.h.b16 %v4142
    %v5311 = vunpack.c.l.b16 %v4143
    %v5312 = vunpack.c.h.b16 %v4143
    %v5313 = vunpack.c.l.b16 %v4144
    %v5314 = vunpack.c.h.b16 %v4144
    %v5315 = vunpack.c.l.b16 %v4145
    %v5316 = vunpack.c.h.b16 %v4145
    %v5317 = vunpack.c.l.b16 %v4146
    %v5318 = vunpack.c.h.b16 %v4146
    %v5319 = vunpack.c.l.b16 %v4147
    %v5320 = vunpack.c.h.b16 %v4147
    %v5321 = vunpack.c.l.b16 %v4148
    %v5322 = vunpack.c.h.b16 %v4148
    %v5323 = vunpack.c.l.b16 %v4149
    %v5324 = vunpack.c.h.b16 %v4149
    %v5325 = vunpack.c.l.b16 %v4150
    %v5326 = vunpack.c.h.b16 %v4150
    %v5327 = vunpack.c.l.b16 %v4151
    %v5328 = vunpack.c.h.b16 %v4151
    %v5329 = vunpack.c.l.b16 %v4152
    %v5330 = vunpack.c.h.b16 %v4152
    %v5331 = vunpack.c.l.b16 %v4153
    %v5332 = vunpack.c.h.b16 %v4153
    %v5333 = vunpack.c.l.b16 %v4154
    %v5334 = vunpack.c.h.b16 %v4154
    %v5335 = vunpack.c.l.b16 %v4155
    %v5336 = vunpack.c.h.b16 %v4155
    %v5337 = vunpack.c.l.b16 %v4156
    %v5338 = vunpack.c.h.b16 %v4156
    %v5339 = vunpack.c.l.b16 %v4157
    %v5340 = vunpack.c.h.b16 %v4157
    %v5341 = vunpack.c.l.b16 %v4158
    %v5342 = vunpack.c.h.b16 %v4158
    %v5343 = vunpack.c.l.b16 %v4159
    %v5344 = vunpack.c.h.b16 %v4159
    %v5345 = vunpack.c.l.b16 %v4160
    %v5346 = vunpack.c.h.b16 %v4160
    %v5347 = vunpack.c.l.b16 %v4161
    %v5348 = vunpack.c.h.b16 %v4161
    %v5349 = vunpack.c.l.b16 %v4162
    %v5350 = vunpack.c.h.b16 %v4162
    %v5351 = vunpack.c.l.b16 %v4163
    %v5352 = vunpack.c.h.b16 %v4163
    %v5353 = vunpack.c.l.b16 %v4164
    %v5354 = vunpack.c.h.b16 %v4164
    %v5355 = vunpack.c.l.b16 %v4165
    %v5356 = vunpack.c.h.b16 %v4165
    %v5357 = vunpack.c.l.b16 %v4166
    %v5358 = vunpack.c.h.b16 %v4166
    %v5359 = vunpack.c.l.b16 %v4167
    %v5360 = vunpack.c.h.b16 %v4167
    %v5361 = vunpack.c.l.b16 %v4168
    %v5362 = vunpack.c.h.b16 %v4168
    %v5363 = vunpack.c.l.b16 %v4169
    %v5364 = vunpack.c.h.b16 %v4169
    %v5365 = vunpack.c.l.b16 %v4170
    %v5366 = vunpack.c.h.b16 %v4170
    %v5367 = vunpack.c.l.b16 %v4171
    %v5368 = vunpack.c.h.b16 %v4171
    %v5369 = vunpack.c.l.b16 %v4172
    %v5370 = vunpack.c.h.b16 %v4172
    %v5371 = vunpack.c.l.b16 %v4173
    %v5372 = vunpack.c.h.b16 %v4173
    %v5373 = vunpack.c.l.b16 %v4174
    %v5374 = vunpack.c.h.b16 %v4174
    %v5375 = vunpack.c.l.b16 %v4175
    %v5376 = vunpack.c.h.b16 %v4175
    %v5377 = vunpack.c.l.b16 %v4176
    %v5378 = vunpack.c.h.b16 %v4176
    %v5379 = vunpack.c.l.b16 %v4177
    %v5380 = vunpack.c.h.b16 %v4177
    %v5381 = vunpack.c.l.b16 %v4178
    %v5382 = vunpack.c.h.b16 %v4178
    %v5383 = vunpack.c.l.b16 %v4179
    %v5384 = vunpack.c.h.b16 %v4179
    %v5385 = vunpack.c.l.b16 %v4180
    %v5386 = vunpack.c.h.b16 %v4180
    %v5387 = vunpack.c.l.b16 %v4181
    %v5388 = vunpack.c.h.b16 %v4181
    %v5389 = vunpack.c.l.b16 %v4182
    %v5390 = vunpack.c.h.b16 %v4182
    %v5391 = vunpack.c.l.b16 %v4183
    %v5392 = vunpack.c.h.b16 %v4183
    %v5393 = vunpack.c.l.b16 %v4184
    %v5394 = vunpack.c.h.b16 %v4184
    %v5395 = vunpack.c.l.b16 %v4185
    %v5396 = vunpack.c.h.b16 %v4185
    %v5397 = vunpack.c.l.b16 %v4186
    %v5398 = vunpack.c.h.b16 %v4186
    %v5399 = vunpack.c.l.b16 %v4187
    %v5400 = vunpack.c.h.b16 %v4187
    %v5401 = vunpack.c.l.b16 %v4188
    %v5402 = vunpack.c.h.b16 %v4188
    %v5403 = vunpack.c.l.b16 %v4189
    %v5404 = vunpack.c.h.b16 %v4189
    %v5405 = vunpack.c.l.b16 %v4190
    %v5406 = vunpack.c.h.b16 %v4190
    %v5407 = vunpack.c.l.b16 %v4191
    %v5408 = vunpack.c.h.b16 %v4191
    %v5409 = vunpack.c.l.b16 %v4192
    %v5410 = vunpack.c.h.b16 %v4192
    %v5411 = vunpack.c.l.b16 %v4193
    %v5412 = vunpack.c.h.b16 %v4193
    %v5413 = vunpack.c.l.b16 %v4194
    %v5414 = vunpack.c.h.b16 %v4194
    %v5415 = vunpack.c.l.b16 %v4195
    %v5416 = vunpack.c.h.b16 %v4195
    %v5417 = vunpack.c.l.b16 %v4196
    %v5418 = vunpack.c.h.b16 %v4196
    %v5419 = vunpack.c.l.b16 %v4197
    %v5420 = vunpack.c.h.b16 %v4197
    %v5421 = vunpack.c.l.b16 %v4198
    %v5422 = vunpack.c.h.b16 %v4198
    %v5423 = vunpack.c.l.b16 %v4199
    %v5424 = vunpack.c.h.b16 %v4199
    %v5425 = vunpack.c.l.b16 %v4200
    %v5426 = vunpack.c.h.b16 %v4200
    %v5427 = vunpack.c.l.b16 %v4201
    %v5428 = vunpack.c.h.b16 %v4201
    %v5429 = vunpack.c.l.b16 %v4202
    %v5430 = vunpack.c.h.b16 %v4202
    %v5431 = vunpack.c.l.b16 %v4203
    %v5432 = vunpack.c.h.b16 %v4203
    %v5433 = vunpack.c.l.b16 %v4204
    %v5434 = vunpack.c.h.b16 %v4204
    %v5435 = vunpack.c.l.b16 %v4205
    %v5436 = vunpack.c.h.b16 %v4205
    %v5437 = vunpack.c.l.b16 %v4206
    %v5438 = vunpack.c.h.b16 %v4206
    %v5439 = vunpack.c.l.b16 %v4207
    %v5440 = vunpack.c.h.b16 %v4207
    %v5441 = vunpack.c.l.b16 %v4208
    %v5442 = vunpack.c.h.b16 %v4208
    %v5443 = vunpack.c.l.b16 %v4209
    %v5444 = vunpack.c.h.b16 %v4209
    %v5445 = vunpack.c.l.b16 %v4210
    %v5446 = vunpack.c.h.b16 %v4210
    %v5447 = vunpack.c.l.b16 %v4211
    %v5448 = vunpack.c.h.b16 %v4211
    %v5449 = vunpack.c.l.b16 %v4212
    %v5450 = vunpack.c.h.b16 %v4212
    %v5451 = vunpack.c.l.b16 %v4213
    %v5452 = vunpack.c.h.b16 %v4213
    %v5453 = vunpack.c.l.b16 %v4214
    %v5454 = vunpack.c.h.b16 %v4214
    %v5455 = vunpack.c.l.b16 %v4215
    %v5456 = vunpack.c.h.b16 %v4215
    %v5457 = vunpack.c.l.b16 %v4216
    %v5458 = vunpack.c.h.b16 %v4216
    %v5459 = vunpack.c.l.b16 %v4217
    %v5460 = vunpack.c.h.b16 %v4217
    %v5461 = vunpack.c.l.b16 %v4218
    %v5462 = vunpack.c.h.b16 %v4218
    %v5463 = vunpack.c.l.b16 %v4219
    %v5464 = vunpack.c.h.b16 %v4219
    %v5465 = vunpack.c.l.b16 %v4220
    %v5466 = vunpack.c.h.b16 %v4220
    %v5467 = vunpack.c.l.b16 %v4221
    %v5468 = vunpack.c.h.b16 %v4221
    %v5469 = vunpack.c.l.b16 %v4222
    %v5470 = vunpack.c.h.b16 %v4222
    %v5471 = vunpack.c.l.b16 %v4223
    %v5472 = vunpack.c.h.b16 %v4223
    %v5473 = vunpack.c.l.b16 %v4224
    %v5474 = vunpack.c.h.b16 %v4224
    %v5475 = vunpack.c.l.b16 %v4225
    %v5476 = vunpack.c.h.b16 %v4225
    %v5477 = vunpack.c.l.b16 %v4226
    %v5478 = vunpack.c.h.b16 %v4226
    %v5479 = vunpack.c.l.b16 %v4227
    %v5480 = vunpack.c.h.b16 %v4227
    %v5481 = vunpack.c.l.b16 %v4228
    %v5482 = vunpack.c.h.b16 %v4228
    %v5483 = vunpack.c.l.b16 %v4229
    %v5484 = vunpack.c.h.b16 %v4229
    %v5485 = vunpack.c.l.b16 %v4230
    %v5486 = vunpack.c.h.b16 %v4230
    %v5487 = vunpack.c.l.b16 %v4231
    %v5488 = vunpack.c.h.b16 %v4231
    %v5489 = vunpack.c.l.b16 %v4232
    %v5490 = vunpack.c.h.b16 %v4232
    %v5491 = vunpack.c.l.b16 %v4233
    %v5492 = vunpack.c.h.b16 %v4233
    %v5493 = vunpack.c.l.b16 %v4234
    %v5494 = vunpack.c.h.b16 %v4234
    %v5495 = vunpack.c.l.b16 %v4235
    %v5496 = vunpack.c.h.b16 %v4235
    %v5497 = vunpack.c.l.b16 %v4236
    %v5498 = vunpack.c.h.b16 %v4236
    %v5499 = vunpack.c.l.b16 %v4237
    %v5500 = vunpack.c.h.b16 %v4237
    %v5501 = vunpack.c.l.b16 %v4238
    %v5502 = vunpack.c.h.b16 %v4238
    %v5503 = vunpack.c.l.b16 %v4239
    %v5504 = vunpack.c.h.b16 %v4239
    %v5505 = vunpack.c.l.b16 %v4240
    %v5506 = vunpack.c.h.b16 %v4240
    %v5507 = vunpack.c.l.b16 %v4241
    %v5508 = vunpack.c.h.b16 %v4241
    %v5509 = vunpack.c.l.b16 %v4242
    %v5510 = vunpack.c.h.b16 %v4242
    %v5511 = vunpack.c.l.b16 %v4243
    %v5512 = vunpack.c.h.b16 %v4243
    %v5513 = vunpack.c.l.b16 %v4244
    %v5514 = vunpack.c.h.b16 %v4244
    %v5515 = vunpack.c.l.b16 %v4245
    %v5516 = vunpack.c.h.b16 %v4245
    %v5517 = vunpack.c.l.b16 %v4246
    %v5518 = vunpack.c.h.b16 %v4246
    %v5519 = vunpack.c.l.b16 %v4247
    %v5520 = vunpack.c.h.b16 %v4247
    %v5521 = vunpack.c.l.b16 %v4248
    %v5522 = vunpack.c.h.b16 %v4248
    %v5523 = vunpack.c.l.b16 %v4249
    %v5524 = vunpack.c.h.b16 %v4249
    %v5525 = vunpack.c.l.b16 %v4250
    %v5526 = vunpack.c.h.b16 %v4250
    %v5527 = vunpack.c.l.b16 %v4251
    %v5528 = vunpack.c.h.b16 %v4251
    %v5529 = vunpack.c.l.b16 %v4252
    %v5530 = vunpack.c.h.b16 %v4252
    %v5531 = vunpack.c.l.b16 %v4253
    %v5532 = vunpack.c.h.b16 %v4253
    %v5533 = vunpack.c.l.b16 %v4254
    %v5534 = vunpack.c.h.b16 %v4254
    %v5535 = vunpack.c.l.b16 %v4255
    %v5536 = vunpack.c.h.b16 %v4255
    %v5537 = vunpack.c.l.b16 %v4256
    %v5538 = vunpack.c.h.b16 %v4256
    %v5539 = vunpack.c.l.b16 %v4257
    %v5540 = vunpack.c.h.b16 %v4257
    %v5541 = vunpack.c.l.b16 %v4258
    %v5542 = vunpack.c.h.b16 %v4258
    %v5543 = vunpack.c.l.b16 %v4259
    %v5544 = vunpack.c.h.b16 %v4259
    %v5545 = vunpack.c.l.b16 %v4260
    %v5546 = vunpack.c.h.b16 %v4260
    %v5547 = vunpack.c.l.b16 %v4261
    %v5548 = vunpack.c.h.b16 %v4261
    %v5549 = vunpack.c.l.b16 %v4262
    %v5550 = vunpack.c.h.b16 %v4262
    %v5551 = vunpack.c.l.b16 %v4263
    %v5552 = vunpack.c.h.b16 %v4263
    %v5553 = vunpack.c.l.b16 %v4264
    %v5554 = vunpack.c.h.b16 %v4264
    %v5555 = vunpack.c.l.b16 %v4265
    %v5556 = vunpack.c.h.b16 %v4265
    %v5557 = vunpack.c.l.b16 %v4266
    %v5558 = vunpack.c.h.b16 %v4266
    %v5559 = vunpack.c.l.b16 %v4267
    %v5560 = vunpack.c.h.b16 %v4267
    %v5561 = vunpack.c.l.b16 %v4268
    %v5562 = vunpack.c.h.b16 %v4268
    %v5563 = vunpack.c.l.b16 %v4269
    %v5564 = vunpack.c.h.b16 %v4269
    %v5565 = vunpack.c.l.b16 %v4270
    %v5566 = vunpack.c.h.b16 %v4270
    %v5567 = vunpack.c.l.b16 %v4271
    %v5568 = vunpack.c.h.b16 %v4271
    %v5569 = vunpack.c.l.b16 %v4272
    %v5570 = vunpack.c.h.b16 %v4272
    %v5571 = vunpack.c.l.b16 %v4273
    %v5572 = vunpack.c.h.b16 %v4273
    %v5573 = vunpack.c.l.b16 %v4274
    %v5574 = vunpack.c.h.b16 %v4274
    %v5575 = vunpack.c.l.b16 %v4275
    %v5576 = vunpack.c.h.b16 %v4275
    %v5577 = vunpack.c.l.b16 %v4276
    %v5578 = vunpack.c.h.b16 %v4276
    %v5579 = vunpack.c.l.b16 %v4277
    %v5580 = vunpack.c.h.b16 %v4277
    %v5581 = vunpack.c.l.b16 %v4278
    %v5582 = vunpack.c.h.b16 %v4278
    %v5583 = vunpack.c.l.b16 %v4279
    %v5584 = vunpack.c.h.b16 %v4279
    %v5585 = vunpack.c.l.b16 %v4280
    %v5586 = vunpack.c.h.b16 %v4280
    %v5587 = vunpack.c.l.b16 %v4281
    %v5588 = vunpack.c.h.b16 %v4281
    %v5589 = vunpack.c.l.b16 %v4282
    %v5590 = vunpack.c.h.b16 %v4282
    %v5591 = vunpack.c.l.b16 %v4283
    %v5592 = vunpack.c.h.b16 %v4283
    %v5593 = vunpack.c.l.b16 %v4284
    %v5594 = vunpack.c.h.b16 %v4284
    %v5595 = vunpack.c.l.b16 %v4285
    %v5596 = vunpack.c.h.b16 %v4285
    %v5597 = vunpack.c.l.b16 %v4286
    %v5598 = vunpack.c.h.b16 %v4286
    %v5599 = vunpack.c.l.b16 %v4287
    %v5600 = vunpack.c.h.b16 %v4287
    %v5601 = vunpack.c.l.b16 %v4288
    %v5602 = vunpack.c.h.b16 %v4288
    %v5603 = vunpack.c.l.b16 %v4289
    %v5604 = vunpack.c.h.b16 %v4289
    %v5605 = vunpack.c.l.b16 %v4290
    %v5606 = vunpack.c.h.b16 %v4290
    %v5607 = vunpack.c.l.b16 %v4291
    %v5608 = vunpack.c.h.b16 %v4291
    %v5609 = vunpack.c.l.b16 %v4292
    %v5610 = vunpack.c.h.b16 %v4292
    %v5611 = vunpack.c.l.b16 %v4293
    %v5612 = vunpack.c.h.b16 %v4293
    %v5613 = vunpack.c.l.b16 %v4294
    %v5614 = vunpack.c.h.b16 %v4294
    %v5615 = vunpack.c.l.b16 %v4295
    %v5616 = vunpack.c.h.b16 %v4295
    %v5617 = vunpack.c.l.b16 %v4296
    %v5618 = vunpack.c.h.b16 %v4296
    %v5619 = vunpack.c.l.b16 %v4297
    %v5620 = vunpack.c.h.b16 %v4297
    %v5621 = vunpack.c.l.b16 %v4298
    %v5622 = vunpack.c.h.b16 %v4298
    %v5623 = vunpack.c.l.b16 %v4299
    %v5624 = vunpack.c.h.b16 %v4299
    %v5625 = vunpack.c.l.b16 %v4300
    %v5626 = vunpack.c.h.b16 %v4300
    %v5627 = vunpack.c.l.b16 %v4301
    %v5628 = vunpack.c.h.b16 %v4301
    %v5629 = vunpack.c.l.b16 %v4302
    %v5630 = vunpack.c.h.b16 %v4302
    %v5631 = vunpack.c.l.b16 %v4303
    %v5632 = vunpack.c.h.b16 %v4303
    %v5633 = vunpack.c.l.b16 %v4304
    %v5634 = vunpack.c.h.b16 %v4304
    %v5635 = vunpack.c.l.b16 %v4305
    %v5636 = vunpack.c.h.b16 %v4305
    %v5637 = vunpack.c.l.b16 %v4306
    %v5638 = vunpack.c.h.b16 %v4306
    %v5639 = vunpack.c.l.b16 %v4307
    %v5640 = vunpack.c.h.b16 %v4307
    %v5641 = vunpack.c.l.b16 %v4308
    %v5642 = vunpack.c.h.b16 %v4308
    %v5643 = vunpack.c.l.b16 %v4309
    %v5644 = vunpack.c.h.b16 %v4309
    %v5645 = vunpack.c.l.b16 %v4310
    %v5646 = vunpack.c.h.b16 %v4310
    %v5647 = vunpack.c.l.b16 %v4311
    %v5648 = vunpack.c.h.b16 %v4311
    %v5649 = vunpack.c.l.b16 %v4312
    %v5650 = vunpack.c.h.b16 %v4312
    %v5651 = vunpack.c.l.b16 %v4313
    %v5652 = vunpack.c.h.b16 %v4313
    %v5653 = vunpack.c.l.b16 %v4314
    %v5654 = vunpack.c.h.b16 %v4314
    %v5655 = vunpack.c.l.b16 %v4315
    %v5656 = vunpack.c.h.b16 %v4315
    %v5657 = vunpack.c.l.b16 %v4316
    %v5658 = vunpack.c.h.b16 %v4316
    %v5659 = vunpack.c.l.b16 %v4317
    %v5660 = vunpack.c.h.b16 %v4317
    %v5661 = vunpack.c.l.b16 %v4318
    %v5662 = vunpack.c.h.b16 %v4318
    %v5663 = vunpack.c.l.b16 %v4319
    %v5664 = vunpack.c.h.b16 %v4319
    %v5665 = vunpack.c.l.b16 %v4320
    %v5666 = vunpack.c.h.b16 %v4320
    %v5667 = vunpack.c.l.b16 %v4321
    %v5668 = vunpack.c.h.b16 %v4321
    %v5669 = vunpack.c.l.b16 %v4322
    %v5670 = vunpack.c.h.b16 %v4322
    %v5671 = vunpack.c.l.b16 %v4323
    %v5672 = vunpack.c.h.b16 %v4323
    %v5673 = vunpack.c.l.b16 %v4324
    %v5674 = vunpack.c.h.b16 %v4324
    %v5675 = vunpack.c.l.b16 %v4325
    %v5676 = vunpack.c.h.b16 %v4325
    %v5677 = vunpack.c.l.b16 %v4326
    %v5678 = vunpack.c.h.b16 %v4326
    %v5679 = vunpack.c.l.b16 %v4327
    %v5680 = vunpack.c.h.b16 %v4327
    %v5681 = vunpack.c.l.b16 %v4328
    %v5682 = vunpack.c.h.b16 %v4328
    %v5683 = vunpack.c.l.b16 %v4329
    %v5684 = vunpack.c.h.b16 %v4329
    %v5685 = vunpack.c.l.b16 %v4330
    %v5686 = vunpack.c.h.b16 %v4330
    %v5687 = vunpack.c.l.b16 %v4331
    %v5688 = vunpack.c.h.b16 %v4331
    %v5689 = vunpack.c.l.b16 %v4332
    %v5690 = vunpack.c.h.b16 %v4332
    %v5691 = vunpack.c.l.b16 %v4333
    %v5692 = vunpack.c.h.b16 %v4333
    %v5693 = vunpack.c.l.b16 %v4334
    %v5694 = vunpack.c.h.b16 %v4334
    %v5695 = vunpack.c.l.b16 %v4335
    %v5696 = vunpack.c.h.b16 %v4335
    %v5697 = vunpack.c.l.b16 %v4336
    %v5698 = vunpack.c.h.b16 %v4336
    %v5699 = vunpack.c.l.b16 %v4337
    %v5700 = vunpack.c.h.b16 %v4337
    %v5701 = vunpack.c.l.b16 %v4338
    %v5702 = vunpack.c.h.b16 %v4338
    %v5703 = vunpack.c.l.b16 %v4339
    %v5704 = vunpack.c.h.b16 %v4339
    %v5705 = vunpack.c.l.b16 %v4340
    %v5706 = vunpack.c.h.b16 %v4340
    %v5707 = vunpack.c.l.b16 %v4341
    %v5708 = vunpack.c.h.b16 %v4341
    %v5709 = vunpack.c.l.b16 %v4342
    %v5710 = vunpack.c.h.b16 %v4342
    %v5711 = vunpack.c.l.b16 %v4343
    %v5712 = vunpack.c.h.b16 %v4343
    %v5713 = vunpack.c.l.b16 %v4344
    %v5714 = vunpack.c.h.b16 %v4344
    %v5715 = vunpack.c.l.b16 %v4345
    %v5716 = vunpack.c.h.b16 %v4345
    %v5717 = vunpack.c.l.b16 %v4346
    %v5718 = vunpack.c.h.b16 %v4346
    %v5719 = vunpack.c.l.b16 %v4347
    %v5720 = vunpack.c.h.b16 %v4347
    %v5721 = vunpack.c.l.b16 %v4348
    %v5722 = vunpack.c.h.b16 %v4348
    %v5723 = vunpack.c.l.b16 %v4349
    %v5724 = vunpack.c.h.b16 %v4349
    %v5725 = vunpack.c.l.b16 %v4350
    %v5726 = vunpack.c.h.b16 %v4350
    %v5727 = vunpack.c.l.b16 %v4351
    %v5728 = vunpack.c.h.b16 %v4351
    %v5729 = vunpack.c.l.b16 %v4352
    %v5730 = vunpack.c.h.b16 %v4352
    %v5731 = vunpack.c.l.b16 %v4353
    %v5732 = vunpack.c.h.b16 %v4353
    %v5733 = vunpack.c.l.b16 %v4354
    %v5734 = vunpack.c.h.b16 %v4354
    %v5735 = vunpack.c.l.b16 %v4355
    %v5736 = vunpack.c.h.b16 %v4355
    %v5737 = vunpack.c.l.b16 %v4356
    %v5738 = vunpack.c.h.b16 %v4356
    %v5739 = vunpack.c.l.b16 %v4357
    %v5740 = vunpack.c.h.b16 %v4357
    %v5741 = vunpack.c.l.b16 %v4358
    %v5742 = vunpack.c.h.b16 %v4358
    %v5743 = vunpack.c.l.b16 %v4359
    %v5744 = vunpack.c.h.b16 %v4359
    %v5745 = vunpack.c.l.b16 %v4360
    %v5746 = vunpack.c.h.b16 %v4360
    %v5747 = vunpack.c.l.b16 %v4361
    %v5748 = vunpack.c.h.b16 %v4361
    %v5749 = vunpack.c.l.b16 %v4362
    %v5750 = vunpack.c.h.b16 %v4362
    %v5751 = vunpack.c.l.b16 %v4363
    %v5752 = vunpack.c.h.b16 %v4363
    %v5753 = vunpack.c.l.b16 %v4364
    %v5754 = vunpack.c.h.b16 %v4364
    %v5755 = vunpack.c.l.b16 %v4365
    %v5756 = vunpack.c.h.b16 %v4365
    %v5757 = vunpack.c.l.b16 %v4366
    %v5758 = vunpack.c.h.b16 %v4366
    %v5759 = vunpack.c.l.b16 %v4367
    %v5760 = vunpack.c.h.b16 %v4367
    %v5761 = vunpack.c.l.b16 %v4368
    %v5762 = vunpack.c.h.b16 %v4368
    %v5763 = vunpack.c.l.b16 %v4369
    %v5764 = vunpack.c.h.b16 %v4369
    %v5765 = vunpack.c.l.b16 %v4370
    %v5766 = vunpack.c.h.b16 %v4370
    %v5767 = vunpack.c.l.b16 %v4371
    %v5768 = vunpack.c.h.b16 %v4371
    %v5769 = vunpack.c.l.b16 %v4372
    %v5770 = vunpack.c.h.b16 %v4372
    %v5771 = vunpack.c.l.b16 %v4373
    %v5772 = vunpack.c.h.b16 %v4373
    %v5773 = vunpack.c.l.b16 %v4374
    %v5774 = vunpack.c.h.b16 %v4374
    %v5775 = vunpack.c.l.b16 %v4375
    %v5776 = vunpack.c.h.b16 %v4375
    %v5777 = vunpack.c.l.b16 %v4376
    %v5778 = vunpack.c.h.b16 %v4376
    %v5779 = vunpack.c.l.b16 %v4377
    %v5780 = vunpack.c.h.b16 %v4377
    %v5781 = vunpack.c.l.b16 %v4378
    %v5782 = vunpack.c.h.b16 %v4378
    %v5783 = vunpack.c.l.b16 %v4379
    %v5784 = vunpack.c.h.b16 %v4379
    %v5785 = vunpack.c.l.b16 %v4380
    %v5786 = vunpack.c.h.b16 %v4380
    %v5787 = vunpack.c.l.b16 %v4381
    %v5788 = vunpack.c.h.b16 %v4381
    %v5789 = vunpack.c.l.b16 %v4382
    %v5790 = vunpack.c.h.b16 %v4382
    %v5791 = vunpack.c.l.b16 %v4383
    %v5792 = vunpack.c.h.b16 %v4383
    %v5793 = vunpack.c.l.b16 %v4384
    %v5794 = vunpack.c.h.b16 %v4384
    %v5795 = vunpack.c.l.b16 %v4385
    %v5796 = vunpack.c.h.b16 %v4385
    %v5797 = vunpack.c.l.b16 %v4386
    %v5798 = vunpack.c.h.b16 %v4386
    %v5799 = vunpack.c.l.b16 %v4387
    %v5800 = vunpack.c.h.b16 %v4387
    %v5801 = vunpack.c.l.b16 %v4388
    %v5802 = vunpack.c.h.b16 %v4388
    %v5803 = vunpack.c.l.b16 %v4389
    %v5804 = vunpack.c.h.b16 %v4389
    %v5805 = vunpack.c.l.b16 %v4390
    %v5806 = vunpack.c.h.b16 %v4390
    %v5807 = vunpack.c.l.b16 %v4391
    %v5808 = vunpack.c.h.b16 %v4391
    %v5809 = vunpack.c.l.b16 %v4392
    %v5810 = vunpack.c.h.b16 %v4392
    %v5811 = vunpack.c.l.b16 %v4393
    %v5812 = vunpack.c.h.b16 %v4393
    %v5813 = vunpack.c.l.b16 %v4394
    %v5814 = vunpack.c.h.b16 %v4394
    %v5815 = vunpack.c.l.b16 %v4395
    %v5816 = vunpack.c.h.b16 %v4395
    %v5817 = vunpack.c.l.b16 %v4396
    %v5818 = vunpack.c.h.b16 %v4396
    %v5819 = vunpack.c.l.b16 %v4397
    %v5820 = vunpack.c.h.b16 %v4397
    %v5821 = vunpack.c.l.b16 %v4398
    %v5822 = vunpack.c.h.b16 %v4398
    %v5823 = vunpack.c.l.b16 %v4399
    %v5824 = vunpack.c.h.b16 %v4399
    %v5825 = vunpack.c.l.b16 %v4400
    %v5826 = vunpack.c.h.b16 %v4400
    %v5827 = vunpack.c.l.b16 %v4401
    %v5828 = vunpack.c.h.b16 %v4401
    %v5829 = vunpack.c.l.b16 %v4402
    %v5830 = vunpack.c.h.b16 %v4402
    %v5831 = vunpack.c.l.b16 %v4403
    %v5832 = vunpack.c.h.b16 %v4403
    %v5833 = vunpack.c.l.b16 %v4404
    %v5834 = vunpack.c.h.b16 %v4404
    %v5835 = vunpack.c.l.b16 %v4405
    %v5836 = vunpack.c.h.b16 %v4405
    %v5837 = vunpack.c.l.b16 %v4406
    %v5838 = vunpack.c.h.b16 %v4406
    %v5839 = vunpack.c.l.b16 %v4407
    %v5840 = vunpack.c.h.b16 %v4407
    %v5841 = vunpack.c.l.b16 %v4408
    %v5842 = vunpack.c.h.b16 %v4408
    %v5843 = vunpack.c.l.b16 %v4409
    %v5844 = vunpack.c.h.b16 %v4409
    %v5845 = vunpack.c.l.b16 %v4410
    %v5846 = vunpack.c.h.b16 %v4410
    %v5847 = vunpack.c.l.b16 %v4411
    %v5848 = vunpack.c.h.b16 %v4411
    %v5849 = vunpack.c.l.b16 %v4412
    %v5850 = vunpack.c.h.b16 %v4412
    %v5851 = vunpack.c.l.b16 %v4413
    %v5852 = vunpack.c.h.b16 %v4413
    %v5853 = vunpack.c.l.b16 %v4414
    %v5854 = vunpack.c.h.b16 %v4414
    %v5855 = vunpack.c.l.b16 %v4415
    %v5856 = vunpack.c.h.b16 %v4415
    %v5857 = vunpack.c.l.b16 %v4416
    %v5858 = vunpack.c.h.b16 %v4416
    %v5859 = vunpack.c.l.b16 %v4417
    %v5860 = vunpack.c.h.b16 %v4417
    %v5861 = vunpack.c.l.b16 %v4418
    %v5862 = vunpack.c.h.b16 %v4418
    %v5863 = vunpack.c.l.b16 %v4419
    %v5864 = vunpack.c.h.b16 %v4419
    %v5865 = vunpack.c.l.b16 %v4420
    %v5866 = vunpack.c.h.b16 %v4420
    %v5867 = vunpack.c.l.b16 %v4421
    %v5868 = vunpack.c.h.b16 %v4421
    %v5869 = vunpack.c.l.b16 %v4422
    %v5870 = vunpack.c.h.b16 %v4422
    %v5871 = vunpack.c.l.b16 %v4423
    %v5872 = vunpack.c.h.b16 %v4423
    %v5873 = vunpack.c.l.b16 %v4424
    %v5874 = vunpack.c.h.b16 %v4424
    %v5875 = vunpack.c.l.b16 %v4425
    %v5876 = vunpack.c.h.b16 %v4425
    %v5877 = vunpack.c.l.b16 %v4426
    %v5878 = vunpack.c.h.b16 %v4426
    %v5879 = vunpack.c.l.b16 %v4427
    %v5880 = vunpack.c.h.b16 %v4427
    %v5881 = vunpack.c.l.b16 %v4428
    %v5882 = vunpack.c.h.b16 %v4428
    %v5883 = vunpack.c.l.b16 %v4429
    %v5884 = vunpack.c.h.b16 %v4429
    %v5885 = vunpack.c.l.b16 %v4430
    %v5886 = vunpack.c.h.b16 %v4430
    %v5887 = vunpack.c.l.b16 %v4431
    %v5888 = vunpack.c.h.b16 %v4431
    %v5889 = vunpack.c.l.b16 %v4432
    %v5890 = vunpack.c.h.b16 %v4432
    %v5891 = vunpack.c.l.b16 %v4433
    %v5892 = vunpack.c.h.b16 %v4433
    %v5893 = vunpack.c.l.b16 %v4434
    %v5894 = vunpack.c.h.b16 %v4434
    %v5895 = vunpack.c.l.b16 %v4435
    %v5896 = vunpack.c.h.b16 %v4435
    %v5897 = vunpack.c.l.b16 %v4436
    %v5898 = vunpack.c.h.b16 %v4436
    %v5899 = vunpack.c.l.b16 %v4437
    %v5900 = vunpack.c.h.b16 %v4437
    %v5901 = vunpack.c.l.b16 %v4438
    %v5902 = vunpack.c.h.b16 %v4438
    %v5903 = vunpack.c.l.b16 %v4439
    %v5904 = vunpack.c.h.b16 %v4439
    %v5905 = vunpack.c.l.b16 %v4440
    %v5906 = vunpack.c.h.b16 %v4440
    %v5907 = vunpack.c.l.b16 %v4441
    %v5908 = vunpack.c.h.b16 %v4441
    %v5909 = vunpack.c.l.b16 %v4442
    %v5910 = vunpack.c.h.b16 %v4442
    %v5911 = vunpack.c.l.b16 %v4443
    %v5912 = vunpack.c.h.b16 %v4443
    %v5913 = vunpack.c.l.b16 %v4444
    %v5914 = vunpack.c.h.b16 %v4444
    %v5915 = vunpack.c.l.b16 %v4445
    %v5916 = vunpack.c.h.b16 %v4445
    %v5917 = vunpack.c.l.b16 %v4446
    %v5918 = vunpack.c.h.b16 %v4446
    %v5919 = vunpack.c.l.b16 %v4447
    %v5920 = vunpack.c.h.b16 %v4447
    %v5921 = vunpack.c.l.b16 %v4448
    %v5922 = vunpack.c.h.b16 %v4448
    %v5923 = vunpack.c.l.b16 %v4449
    %v5924 = vunpack.c.h.b16 %v4449
    %v5925 = vunpack.c.l.b16 %v4450
    %v5926 = vunpack.c.h.b16 %v4450
    %v5927 = vunpack.c.l.b16 %v4451
    %v5928 = vunpack.c.h.b16 %v4451
    %v5929 = vunpack.c.l.b16 %v4452
    %v5930 = vunpack.c.h.b16 %v4452
    %v5931 = vunpack.c.l.b16 %v4453
    %v5932 = vunpack.c.h.b16 %v4453
    %v5933 = vunpack.c.l.b16 %v4454
    %v5934 = vunpack.c.h.b16 %v4454
    %v5935 = vunpack.c.l.b16 %v4455
    %v5936 = vunpack.c.h.b16 %v4455
    %v5937 = vunpack.c.l.b16 %v4456
    %v5938 = vunpack.c.h.b16 %v4456
    %v5939 = vunpack.c.l.b16 %v4457
    %v5940 = vunpack.c.h.b16 %v4457
    %v5941 = vunpack.c.l.b16 %v4458
    %v5942 = vunpack.c.h.b16 %v4458
    %v5943 = vunpack.c.l.b16 %v4459
    %v5944 = vunpack.c.h.b16 %v4459
    %v5945 = vunpack.c.l.b16 %v4460
    %v5946 = vunpack.c.h.b16 %v4460
    %v5947 = vunpack.c.l.b16 %v4461
    %v5948 = vunpack.c.h.b16 %v4461
    %v5949 = vunpack.c.l.b16 %v4462
    %v5950 = vunpack.c.h.b16 %v4462
    %v5951 = vunpack.c.l.b16 %v4463
    %v5952 = vunpack.c.h.b16 %v4463
    %v5953 = vunpack.c.l.b16 %v4464
    %v5954 = vunpack.c.h.b16 %v4464
    %v5955 = vunpack.c.l.b16 %v4465
    %v5956 = vunpack.c.h.b16 %v4465
    %v5957 = vunpack.c.l.b16 %v4466
    %v5958 = vunpack.c.h.b16 %v4466
    %v5959 = vunpack.c.l.b16 %v4467
    %v5960 = vunpack.c.h.b16 %v4467
    %v5961 = vunpack.c.l.b16 %v4468
    %v5962 = vunpack.c.h.b16 %v4468
    %v5963 = vunpack.c.l.b16 %v4469
    %v5964 = vunpack.c.h.b16 %v4469
    %v5965 = vunpack.c.l.b16 %v4470
    %v5966 = vunpack.c.h.b16 %v4470
    %v5967 = vunpack.c.l.b16 %v4471
    %v5968 = vunpack.c.h.b16 %v4471
    %v5969 = vunpack.c.l.b16 %v4472
    %v5970 = vunpack.c.h.b16 %v4472
    %v5971 = vunpack.c.l.b16 %v4473
    %v5972 = vunpack.c.h.b16 %v4473
    %v5973 = vunpack.c.l.b16 %v4474
    %v5974 = vunpack.c.h.b16 %v4474
    %v5975 = vunpack.c.l.b16 %v4475
    %v5976 = vunpack.c.h.b16 %v4475
    %v5977 = vunpack.c.l.b16 %v4476
    %v5978 = vunpack.c.h.b16 %v4476
    %v5979 = vunpack.c.l.b16 %v4477
    %v5980 = vunpack.c.h.b16 %v4477
    %v5981 = vunpack.c.l.b16 %v4478
    %v5982 = vunpack.c.h.b16 %v4478
    %v5983 = vunpack.c.l.b16 %v4479
    %v5984 = vunpack.c.h.b16 %v4479
    %v5985 = vunpack.c.l.b16 %v4480
    %v5986 = vunpack.c.h.b16 %v4480
    %v5987 = vunpack.c.l.b16 %v4481
    %v5988 = vunpack.c.h.b16 %v4481
    %v5989 = vunpack.c.l.b16 %v4482
    %v5990 = vunpack.c.h.b16 %v4482
    %v5991 = vunpack.c.l.b16 %v4483
    %v5992 = vunpack.c.h.b16 %v4483
    %v5993 = vunpack.c.l.b16 %v4484
    %v5994 = vunpack.c.h.b16 %v4484
    %v5995 = vunpack.c.l.b16 %v4485
    %v5996 = vunpack.c.h.b16 %v4485
    %v5997 = vunpack.c.l.b16 %v4486
    %v5998 = vunpack.c.h.b16 %v4486
    %v5999 = vunpack.c.l.b16 %v4487
    %v6000 = vunpack.c.h.b16 %v4487
    %v6001 = vunpack.c.l.b16 %v4488
    %v6002 = vunpack.c.h.b16 %v4488
    %v6003 = vunpack.c.l.b16 %v4489
    %v6004 = vunpack.c.h.b16 %v4489
    %v6005 = vunpack.c.l.b16 %v4490
    %v6006 = vunpack.c.h.b16 %v4490
    %v6007 = vunpack.c.l.b16 %v4491
    %v6008 = vunpack.c.h.b16 %v4491
    %v6009 = vunpack.c.l.b16 %v4492
    %v6010 = vunpack.c.h.b16 %v4492
    %v6011 = vunpack.c.l.b16 %v4493
    %v6012 = vunpack.c.h.b16 %v4493
    %v6013 = vunpack.c.l.b16 %v4494
    %v6014 = vunpack.c.h.b16 %v4494
    %v6015 = vunpack.c.l.b16 %v4495
    %v6016 = vunpack.c.h.b16 %v4495
    %v6017 = vunpack.c.l.b16 %v4496
    %v6018 = vunpack.c.h.b16 %v4496
    %v6019 = vunpack.c.l.b16 %v4497
    %v6020 = vunpack.c.h.b16 %v4497
    %v6021 = vunpack.c.l.b16 %v4498
    %v6022 = vunpack.c.h.b16 %v4498
    %v6023 = vunpack.c.l.b16 %v4499
    %v6024 = vunpack.c.h.b16 %v4499
    %v6025 = vunpack.c.l.b16 %v4500
    %v6026 = vunpack.c.h.b16 %v4500
    %v6027 = vunpack.c.l.b16 %v4501
    %v6028 = vunpack.c.h.b16 %v4501
    %v6029 = vunpack.c.l.b16 %v4502
    %v6030 = vunpack.c.h.b16 %v4502
    %v6031 = vunpack.c.l.b16 %v4503
    %v6032 = vunpack.c.h.b16 %v4503
    %v6033 = vunpack.c.l.b16 %v4504
    %v6034 = vunpack.c.h.b16 %v4504
    %v6035 = vunpack.c.l.b16 %v4505
    %v6036 = vunpack.c.h.b16 %v4505
    %v6037 = vunpack.c.l.b16 %v4506
    %v6038 = vunpack.c.h.b16 %v4506
    %v6039 = vunpack.c.l.b16 %v4507
    %v6040 = vunpack.c.h.b16 %v4507
    %v6041 = vunpack.c.l.b16 %v4508
    %v6042 = vunpack.c.h.b16 %v4508
    %v6043 = vunpack.c.l.b16 %v4509
    %v6044 = vunpack.c.h.b16 %v4509
    %v6045 = vunpack.c.l.b16 %v4510
    %v6046 = vunpack.c.h.b16 %v4510
    %v6047 = vunpack.c.l.b16 %v4511
    %v6048 = vunpack.c.h.b16 %v4511
    %v6049 = vunpack.c.l.b16 %v4512
    %v6050 = vunpack.c.h.b16 %v4512
    %v6051 = vunpack.c.l.b16 %v4513
    %v6052 = vunpack.c.h.b16 %v4513
    %v6053 = vunpack.c.l.b16 %v4514
    %v6054 = vunpack.c.h.b16 %v4514
    %v6055 = vunpack.c.l.b16 %v4515
    %v6056 = vunpack.c.h.b16 %v4515
    %v6057 = vunpack.c.l.b16 %v4516
    %v6058 = vunpack.c.h.b16 %v4516
    %v6059 = vunpack.c.l.b16 %v4517
    %v6060 = vunpack.c.h.b16 %v4517
    %v6061 = vunpack.c.l.b16 %v4518
    %v6062 = vunpack.c.h.b16 %v4518
    %v6063 = vunpack.c.l.b16 %v4519
    %v6064 = vunpack.c.h.b16 %v4519
    %v6065 = vunpack.c.l.b16 %v4520
    %v6066 = vunpack.c.h.b16 %v4520
    %v6067 = vunpack.c.l.b16 %v4521
    %v6068 = vunpack.c.h.b16 %v4521
    %v6069 = vunpack.c.l.b16 %v4522
    %v6070 = vunpack.c.h.b16 %v4522
    %v6071 = vunpack.c.l.b16 %v4523
    %v6072 = vunpack.c.h.b16 %v4523
    %v6073 = vunpack.c.l.b16 %v4524
    %v6074 = vunpack.c.h.b16 %v4524
    %v6075 = vunpack.c.l.b16 %v4525
    %v6076 = vunpack.c.h.b16 %v4525
    %v6077 = vunpack.c.l.b16 %v4526
    %v6078 = vunpack.c.h.b16 %v4526
    %v6079 = vunpack.c.l.b16 %v4527
    %v6080 = vunpack.c.h.b16 %v4527
    %v6081 = vunpack.c.l.b16 %v4528
    %v6082 = vunpack.c.h.b16 %v4528
    %v6083 = vunpack.c.l.b16 %v4529
    %v6084 = vunpack.c.h.b16 %v4529
    %v6085 = vunpack.c.l.b16 %v4530
    %v6086 = vunpack.c.h.b16 %v4530
    %v6087 = vunpack.c.l.b16 %v4531
    %v6088 = vunpack.c.h.b16 %v4531
    %v6089 = vunpack.c.l.b16 %v4532
    %v6090 = vunpack.c.h.b16 %v4532
    %v6091 = vunpack.c.l.b16 %v4533
    %v6092 = vunpack.c.h.b16 %v4533
    %v6093 = vunpack.c.l.b16 %v4534
    %v6094 = vunpack.c.h.b16 %v4534
    %v6095 = vunpack.c.l.b16 %v4535
    %v6096 = vunpack.c.h.b16 %v4535
    %v6097 = vunpack.c.l.b16 %v4536
    %v6098 = vunpack.c.h.b16 %v4536
    %v6099 = vunpack.c.l.b16 %v4537
    %v6100 = vunpack.c.h.b16 %v4537
    %v6101 = vunpack.c.l.b16 %v4538
    %v6102 = vunpack.c.h.b16 %v4538
    %v6103 = vunpack.c.l.b16 %v4539
    %v6104 = vunpack.c.h.b16 %v4539
    %v6105 = vunpack.c.l.b16 %v4540
    %v6106 = vunpack.c.h.b16 %v4540
    %v6107 = vunpack.c.l.b16 %v4541
    %v6108 = vunpack.c.h.b16 %v4541
    %v6109 = vunpack.c.l.b16 %v4542
    %v6110 = vunpack.c.h.b16 %v4542
    %v6111 = vunpack.c.l.b16 %v4543
    %v6112 = vunpack.c.h.b16 %v4543
    %v6113 = vunpack.c.l.b16 %v4544
    %v6114 = vunpack.c.h.b16 %v4544
    %v6115 = vunpack.c.l.b16 %v4545
    %v6116 = vunpack.c.h.b16 %v4545
    %v6117 = vunpack.c.l.b16 %v4546
    %v6118 = vunpack.c.h.b16 %v4546
    %v6119 = vunpack.c.l.b16 %v4547
    %v6120 = vunpack.c.h.b16 %v4547
    %v6121 = vunpack.c.l.b16 %v4548
    %v6122 = vunpack.c.h.b16 %v4548
    %v6123 = vunpack.c.l.b16 %v4549
    %v6124 = vunpack.c.h.b16 %v4549
    %v6125 = vunpack.c.l.b16 %v4550
    %v6126 = vunpack.c.h.b16 %v4550
    %v6127 = vunpack.c.l.b16 %v4551
    %v6128 = vunpack.c.h.b16 %v4551
    %v6129 = vunpack.c.l.b16 %v4552
    %v6130 = vunpack.c.h.b16 %v4552
    %v6131 = vpack.c.b16 %v5115, %v5107
    %v6132 = vpack.c.b16 %v5116, %v5108
    %v6133 = vpack.c.b16 %v5117, %v5109
    %v6134 = vpack.c.b16 %v5118, %v5110
    %v6135 = vpack.c.b16 %v5119, %v5111
    %v6136 = vpack.c.b16 %v5120, %v5112
    %v6137 = vpack.c.b16 %v5121, %v5113
    %v6138 = vpack.c.b16 %v5122, %v5114
    %v6139 = vpack.c.b16 %v5131, %v5123
    %v6140 = vpack.c.b16 %v5132, %v5124
    %v6141 = vpack.c.b16 %v5133, %v5125
    %v6142 = vpack.c.b16 %v5134, %v5126
    %v6143 = vpack.c.b16 %v5135, %v5127
    %v6144 = vpack.c.b16 %v5136, %v5128
    %v6145 = vpack.c.b16 %v5137, %v5129
    %v6146 = vpack.c.b16 %v5138, %v5130
    %v6147 = vpack.c.b16 %v5147, %v5139
    %v6148 = vpack.c.b16 %v5148, %v5140
    %v6149 = vpack.c.b16 %v5149, %v5141
    %v6150 = vpack.c.b16 %v5150, %v5142
    %v6151 = vpack.c.b16 %v5151, %v5143
    %v6152 = vpack.c.b16 %v5152, %v5144
    %v6153 = vpack.c.b16 %v5153, %v5145
    %v6154 = vpack.c.b16 %v5154, %v5146
    %v6155 = vpack.c.b16 %v5163, %v5155
    %v6156 = vpack.c.b16 %v5164, %v5156
    %v6157 = vpack.c.b16 %v5165, %v5157
    %v6158 = vpack.c.b16 %v5166, %v5158
    %v6159 = vpack.c.b16 %v5167, %v5159
    %v6160 = vpack.c.b16 %v5168, %v5160
    %v6161 = vpack.c.b16 %v5169, %v5161
    %v6162 = vpack.c.b16 %v5170, %v5162
    %v6163 = vpack.c.b16 %v5179, %v5171
    %v6164 = vpack.c.b16 %v5180, %v5172
    %v6165 = vpack.c.b16 %v5181, %v5173
    %v6166 = vpack.c.b16 %v5182, %v5174
    %v6167 = vpack.c.b16 %v5183, %v5175
    %v6168 = vpack.c.b16 %v5184, %v5176
    %v6169 = vpack.c.b16 %v5185, %v5177
    %v6170 = vpack.c.b16 %v5186, %v5178
    %v6171 = vpack.c.b16 %v5195, %v5187
    %v6172 = vpack.c.b16 %v5196, %v5188
    %v6173 = vpack.c.b16 %v5197, %v5189
    %v6174 = vpack.c.b16 %v5198, %v5190
    %v6175 = vpack.c.b16 %v5199, %v5191
    %v6176 = vpack.c.b16 %v5200, %v5192
    %v6177 = vpack.c.b16 %v5201, %v5193
    %v6178 = vpack.c.b16 %v5202, %v5194
    %v6179 = vpack.c.b16 %v5211, %v5203
    %v6180 = vpack.c.b16 %v5212, %v5204
    %v6181 = vpack.c.b16 %v5213, %v5205
    %v6182 = vpack.c.b16 %v5214, %v5206
    %v6183 = vpack.c.b16 %v5215, %v5207
    %v6184 = vpack.c.b16 %v5216, %v5208
    %v6185 = vpack.c.b16 %v5217, %v5209
    %v6186 = vpack.c.b16 %v5218, %v5210
    %v6187 = vpack.c.b16 %v5227, %v5219
    %v6188 = vpack.c.b16 %v5228, %v5220
    %v6189 = vpack.c.b16 %v5229, %v5221
    %v6190 = vpack.c.b16 %v5230, %v5222
    %v6191 = vpack.c.b16 %v5231, %v5223
    %v6192 = vpack.c.b16 %v5232, %v5224
    %v6193 = vpack.c.b16 %v5233, %v5225
    %v6194 = vpack.c.b16 %v5234, %v5226
    %v6195 = vpack.c.b16 %v5243, %v5235
    %v6196 = vpack.c.b16 %v5244, %v5236
    %v6197 = vpack.c.b16 %v5245, %v5237
    %v6198 = vpack.c.b16 %v5246, %v5238
    %v6199 = vpack.c.b16 %v5247, %v5239
    %v6200 = vpack.c.b16 %v5248, %v5240
    %v6201 = vpack.c.b16 %v5249, %v5241
    %v6202 = vpack.c.b16 %v5250, %v5242
    %v6203 = vpack.c.b16 %v5259, %v5251
    %v6204 = vpack.c.b16 %v5260, %v5252
    %v6205 = vpack.c.b16 %v5261, %v5253
    %v6206 = vpack.c.b16 %v5262, %v5254
    %v6207 = vpack.c.b16 %v5263, %v5255
    %v6208 = vpack.c.b16 %v5264, %v5256
    %v6209 = vpack.c.b16 %v5265, %v5257
    %v6210 = vpack.c.b16 %v5266, %v5258
    %v6211 = vpack.c.b16 %v5275, %v5267
    %v6212 = vpack.c.b16 %v5276, %v5268
    %v6213 = vpack.c.b16 %v5277, %v5269
    %v6214 = vpack.c.b16 %v5278, %v5270
    %v6215 = vpack.c.b16 %v5279, %v5271
    %v6216 = vpack.c.b16 %v5280, %v5272
    %v6217 = vpack.c.b16 %v5281, %v5273
    %v6218 = vpack.c.b16 %v5282, %v5274
    %v6219 = vpack.c.b16 %v5291, %v5283
    %v6220 = vpack.c.b16 %v5292, %v5284
    %v6221 = vpack.c.b16 %v5293, %v5285
    %v6222 = vpack.c.b16 %v5294, %v5286
    %v6223 = vpack.c.b16 %v5295, %v5287
    %v6224 = vpack.c.b16 %v5296, %v5288
    %v6225 = vpack.c.b16 %v5297, %v5289
    %v6226 = vpack.c.b16 %v5298, %v5290
    %v6227 = vpack.c.b16 %v5307, %v5299
    %v6228 = vpack.c.b16 %v5308, %v5300
    %v6229 = vpack.c.b16 %v5309, %v5301
    %v6230 = vpack.c.b16 %v5310, %v5302
    %v6231 = vpack.c.b16 %v5311, %v5303
    %v6232 = vpack.c.b16 %v5312, %v5304
    %v6233 = vpack.c.b16 %v5313, %v5305
    %v6234 = vpack.c.b16 %v5314, %v5306
    %v6235 = vpack.c.b16 %v5323, %v5315
    %v6236 = vpack.c.b16 %v5324, %v5316
    %v6237 = vpack.c.b16 %v5325, %v5317
    %v6238 = vpack.c.b16 %v5326, %v5318
    %v6239 = vpack.c.b16 %v5327, %v5319
    %v6240 = vpack.c.b16 %v5328, %v5320
    %v6241 = vpack.c.b16 %v5329, %v5321
    %v6242 = vpack.c.b16 %v5330, %v5322
    %v6243 = vpack.c.b16 %v5339, %v5331
    %v6244 = vpack.c.b16 %v5340, %v5332
    %v6245 = vpack.c.b16 %v5341, %v5333
    %v6246 = vpack.c.b16 %v5342, %v5334
    %v6247 = vpack.c.b16 %v5343, %v5335
    %v6248 = vpack.c.b16 %v5344, %v5336
    %v6249 = vpack.c.b16 %v5345, %v5337
    %v6250 = vpack.c.b16 %v5346, %v5338
    %v6251 = vpack.c.b16 %v5355, %v5347
    %v6252 = vpack.c.b16 %v5356, %v5348
    %v6253 = vpack.c.b16 %v5357, %v5349
    %v6254 = vpack.c.b16 %v5358, %v5350
    %v6255 = vpack.c.b16 %v5359, %v5351
    %v6256 = vpack.c.b16 %v5360, %v5352
    %v6257 = vpack.c.b16 %v5361, %v5353
    %v6258 = vpack.c.b16 %v5362, %v5354
    %v6259 = vpack.c.b16 %v5371, %v5363
    %v6260 = vpack.c.b16 %v5372, %v5364
    %v6261 = vpack.c.b16 %v5373, %v5365
    %v6262 = vpack.c.b16 %v5374, %v5366
    %v6263 = vpack.c.b16 %v5375, %v5367
    %v6264 = vpack.c.b16 %v5376, %v5368
    %v6265 = vpack.c.b16 %v5377, %v5369
    %v6266 = vpack.c.b16 %v5378, %v5370
    %v6267 = vpack.c.b16 %v5387, %v5379
    %v6268 = vpack.c.b16 %v5388, %v5380
    %v6269 = vpack.c.b16 %v5389, %v5381
    %v6270 = vpack.c.b16 %v5390, %v5382
    %v6271 = vpack.c.b16 %v5391, %v5383
    %v6272 = vpack.c.b16 %v5392, %v5384
    %v6273 = vpack.c.b16 %v5393, %v5385
    %v6274 = vpack.c.b16 %v5394, %v5386
    %v6275 = vpack.c.b16 %v5403, %v5395
    %v6276 = vpack.c.b16 %v5404, %v5396
    %v6277 = vpack.c.b16 %v5405, %v5397
    %v6278 = vpack.c.b16 %v5406, %v5398
    %v6279 = vpack.c.b16 %v5407, %v5399
    %v6280 = vpack.c.b16 %v5408, %v5400
    %v6281 = vpack.c.b16 %v5409, %v5401
    %v6282 = vpack.c.b16 %v5410, %v5402
    %v6283 = vpack.c.b16 %v5419, %v5411
    %v6284 = vpack.c.b16 %v5420, %v5412
    %v6285 = vpack.c.b16 %v5421, %v5413
    %v6286 = vpack.c.b16 %v5422, %v5414
    %v6287 = vpack.c.b16 %v5423, %v5415
    %v6288 = vpack.c.b16 %v5424, %v5416
    %v6289 = vpack.c.b16 %v5425, %v5417
    %v6290 = vpack.c.b16 %v5426, %v5418
    %v6291 = vpack.c.b16 %v5435, %v5427
    %v6292 = vpack.c.b16 %v5436, %v5428
    %v6293 = vpack.c.b16 %v5437, %v5429
    %v6294 = vpack.c.b16 %v5438, %v5430
    %v6295 = vpack.c.b16 %v5439, %v5431
    %v6296 = vpack.c.b16 %v5440, %v5432
    %v6297 = vpack.c.b16 %v5441, %v5433
    %v6298 = vpack.c.b16 %v5442, %v5434
    %v6299 = vpack.c.b16 %v5451, %v5443
    %v6300 = vpack.c.b16 %v5452, %v5444
    %v6301 = vpack.c.b16 %v5453, %v5445
    %v6302 = vpack.c.b16 %v5454, %v5446
    %v6303 = vpack.c.b16 %v5455, %v5447
    %v6304 = vpack.c.b16 %v5456, %v5448
    %v6305 = vpack.c.b16 %v5457, %v5449
    %v6306 = vpack.c.b16 %v5458, %v5450
    %v6307 = vpack.c.b16 %v5467, %v5459
    %v6308 = vpack.c.b16 %v5468, %v5460
    %v6309 = vpack.c.b16 %v5469, %v5461
    %v6310 = vpack.c.b16 %v5470, %v5462
    %v6311 = vpack.c.b16 %v5471, %v5463
    %v6312 = vpack.c.b16 %v5472, %v5464
    %v6313 = vpack.c.b16 %v5473, %v5465
    %v6314 = vpack.c.b16 %v5474, %v5466
    %v6315 = vpack.c.b16 %v5483, %v5475
    %v6316 = vpack.c.b16 %v5484, %v5476
    %v6317 = vpack.c.b16 %v5485, %v5477
    %v6318 = vpack.c.b16 %v5486, %v5478
    %v6319 = vpack.c.b16 %v5487, %v5479
    %v6320 = vpack.c.b16 %v5488, %v5480
    %v6321 = vpack.c.b16 %v5489, %v5481
    %v6322 = vpack.c.b16 %v5490, %v5482
    %v6323 = vpack.c.b16 %v5499, %v5491
    %v6324 = vpack.c.b16 %v5500, %v5492
    %v6325 = vpack.c.b16 %v5501, %v5493
    %v6326 = vpack.c.b16 %v5502, %v5494
    %v6327 = vpack.c.b16 %v5503, %v5495
    %v6328 = vpack.c.b16 %v5504, %v5496
    %v6329 = vpack.c.b16 %v5505, %v5497
    %v6330 = vpack.c.b16 %v5506, %v5498
    %v6331 = vpack.c.b16 %v5515, %v5507
    %v6332 = vpack.c.b16 %v5516, %v5508
    %v6333 = vpack.c.b16 %v5517, %v5509
    %v6334 = vpack.c.b16 %v5518, %v5510
    %v6335 = vpack.c.b16 %v5519, %v5511
    %v6336 = vpack.c.b16 %v5520, %v5512
    %v6337 = vpack.c.b16 %v5521, %v5513
    %v6338 = vpack.c.b16 %v5522, %v5514
    %v6339 = vpack.c.b16 %v5531, %v5523
    %v6340 = vpack.c.b16 %v5532, %v5524
    %v6341 = vpack.c.b16 %v5533, %v5525
    %v6342 = vpack.c.b16 %v5534, %v5526
    %v6343 = vpack.c.b16 %v5535, %v5527
    %v6344 = vpack.c.b16 %v5536, %v5528
    %v6345 = vpack.c.b16 %v5537, %v5529
    %v6346 = vpack.c.b16 %v5538, %v5530
    %v6347 = vpack.c.b16 %v5547, %v5539
    %v6348 = vpack.c.b16 %v5548, %v5540
    %v6349 = vpack.c.b16 %v5549, %v5541
    %v6350 = vpack.c.b16 %v5550, %v5542
    %v6351 = vpack.c.b16 %v5551, %v5543
    %v6352 = vpack.c.b16 %v5552, %v5544
    %v6353 = vpack.c.b16 %v5553, %v5545
    %v6354 = vpack.c.b16 %v5554, %v5546
    %v6355 = vpack.c.b16 %v5563, %v5555
    %v6356 = vpack.c.b16 %v5564, %v5556
    %v6357 = vpack.c.b16 %v5565, %v5557
    %v6358 = vpack.c.b16 %v5566, %v5558
    %v6359 = vpack.c.b16 %v5567, %v5559
    %v6360 = vpack.c.b16 %v5568, %v5560
    %v6361 = vpack.c.b16 %v5569, %v5561
    %v6362 = vpack.c.b16 %v5570, %v5562
    %v6363 = vpack.c.b16 %v5579, %v5571
    %v6364 = vpack.c.b16 %v5580, %v5572
    %v6365 = vpack.c.b16 %v5581, %v5573
    %v6366 = vpack.c.b16 %v5582, %v5574
    %v6367 = vpack.c.b16 %v5583, %v5575
    %v6368 = vpack.c.b16 %v5584, %v5576
    %v6369 = vpack.c.b16 %v5585, %v5577
    %v6370 = vpack.c.b16 %v5586, %v5578
    %v6371 = vpack.c.b16 %v5595, %v5587
    %v6372 = vpack.c.b16 %v5596, %v5588
    %v6373 = vpack.c.b16 %v5597, %v5589
    %v6374 = vpack.c.b16 %v5598, %v5590
    %v6375 = vpack.c.b16 %v5599, %v5591
    %v6376 = vpack.c.b16 %v5600, %v5592
    %v6377 = vpack.c.b16 %v5601, %v5593
    %v6378 = vpack.c.b16 %v5602, %v5594
    %v6379 = vpack.c.b16 %v5611, %v5603
    %v6380 = vpack.c.b16 %v5612, %v5604
    %v6381 = vpack.c.b16 %v5613, %v5605
    %v6382 = vpack.c.b16 %v5614, %v5606
    %v6383 = vpack.c.b16 %v5615, %v5607
    %v6384 = vpack.c.b16 %v5616, %v5608
    %v6385 = vpack.c.b16 %v5617, %v5609
    %v6386 = vpack.c.b16 %v5618, %v5610
    %v6387 = vpack.c.b16 %v5627, %v5619
    %v6388 = vpack.c.b16 %v5628, %v5620
    %v6389 = vpack.c.b16 %v5629, %v5621
    %v6390 = vpack.c.b16 %v5630, %v5622
    %v6391 = vpack.c.b16 %v5631, %v5623
    %v6392 = vpack.c.b16 %v5632, %v5624
    %v6393 = vpack.c.b16 %v5633, %v5625
    %v6394 = vpack.c.b16 %v5634, %v5626
    %v6395 = vpack.c.b16 %v5643, %v5635
    %v6396 = vpack.c.b16 %v5644, %v5636
    %v6397 = vpack.c.b16 %v5645, %v5637
    %v6398 = vpack.c.b16 %v5646, %v5638
    %v6399 = vpack.c.b16 %v5647, %v5639
    %v6400 = vpack.c.b16 %v5648, %v5640
    %v6401 = vpack.c.b16 %v5649, %v5641
    %v6402 = vpack.c.b16 %v5650, %v5642
    %v6403 = vpack.c.b16 %v5659, %v5651
    %v6404 = vpack.c.b16 %v5660, %v5652
    %v6405 = vpack.c.b16 %v5661, %v5653
    %v6406 = vpack.c.b16 %v5662, %v5654
    %v6407 = vpack.c.b16 %v5663, %v5655
    %v6408 = vpack.c.b16 %v5664, %v5656
    %v6409 = vpack.c.b16 %v5665, %v5657
    %v6410 = vpack.c.b16 %v5666, %v5658
    %v6411 = vpack.c.b16 %v5675, %v5667
    %v6412 = vpack.c.b16 %v5676, %v5668
    %v6413 = vpack.c.b16 %v5677, %v5669
    %v6414 = vpack.c.b16 %v5678, %v5670
    %v6415 = vpack.c.b16 %v5679, %v5671
    %v6416 = vpack.c.b16 %v5680, %v5672
    %v6417 = vpack.c.b16 %v5681, %v5673
    %v6418 = vpack.c.b16 %v5682, %v5674
    %v6419 = vpack.c.b16 %v5691, %v5683
    %v6420 = vpack.c.b16 %v5692, %v5684
    %v6421 = vpack.c.b16 %v5693, %v5685
    %v6422 = vpack.c.b16 %v5694, %v5686
    %v6423 = vpack.c.b16 %v5695, %v5687
    %v6424 = vpack.c.b16 %v5696, %v5688
    %v6425 = vpack.c.b16 %v5697, %v5689
    %v6426 = vpack.c.b16 %v5698, %v5690
    %v6427 = vpack.c.b16 %v5707, %v5699
    %v6428 = vpack.c.b16 %v5708, %v5700
    %v6429 = vpack.c.b16 %v5709, %v5701
    %v6430 = vpack.c.b16 %v5710, %v5702
    %v6431 = vpack.c.b16 %v5711, %v5703
    %v6432 = vpack.c.b16 %v5712, %v5704
    %v6433 = vpack.c.b16 %v5713, %v5705
    %v6434 = vpack.c.b16 %v5714, %v5706
    %v6435 = vpack.c.b16 %v5723, %v5715
    %v6436 = vpack.c.b16 %v5724, %v5716
    %v6437 = vpack.c.b16 %v5725, %v5717
    %v6438 = vpack.c.b16 %v5726, %v5718
    %v6439 = vpack.c.b16 %v5727, %v5719
    %v6440 = vpack.c.b16 %v5728, %v5720
    %v6441 = vpack.c.b16 %v5729, %v5721
    %v6442 = vpack.c.b16 %v5730, %v5722
    %v6443 = vpack.c.b16 %v5739, %v5731
    %v6444 = vpack.c.b16 %v5740, %v5732
    %v6445 = vpack.c.b16 %v5741, %v5733
    %v6446 = vpack.c.b16 %v5742, %v5734
    %v6447 = vpack.c.b16 %v5743, %v5735
    %v6448 = vpack.c.b16 %v5744, %v5736
    %v6449 = vpack.c.b16 %v5745, %v5737
    %v6450 = vpack.c.b16 %v5746, %v5738
    %v6451 = vpack.c.b16 %v5755, %v5747
    %v6452 = vpack.c.b16 %v5756, %v5748
    %v6453 = vpack.c.b16 %v5757, %v5749
    %v6454 = vpack.c.b16 %v5758, %v5750
    %v6455 = vpack.c.b16 %v5759, %v5751
    %v6456 = vpack.c.b16 %v5760, %v5752
    %v6457 = vpack.c.b16 %v5761, %v5753
    %v6458 = vpack.c.b16 %v5762, %v5754
    %v6459 = vpack.c.b16 %v5771, %v5763
    %v6460 = vpack.c.b16 %v5772, %v5764
    %v6461 = vpack.c.b16 %v5773, %v5765
    %v6462 = vpack.c.b16 %v5774, %v5766
    %v6463 = vpack.c.b16 %v5775, %v5767
    %v6464 = vpack.c.b16 %v5776, %v5768
    %v6465 = vpack.c.b16 %v5777, %v5769
    %v6466 = vpack.c.b16 %v5778, %v5770
    %v6467 = vpack.c.b16 %v5787, %v5779
    %v6468 = vpack.c.b16 %v5788, %v5780
    %v6469 = vpack.c.b16 %v5789, %v5781
    %v6470 = vpack.c.b16 %v5790, %v5782
    %v6471 = vpack.c.b16 %v5791, %v5783
    %v6472 = vpack.c.b16 %v5792, %v5784
    %v6473 = vpack.c.b16 %v5793, %v5785
    %v6474 = vpack.c.b16 %v5794, %v5786
    %v6475 = vpack.c.b16 %v5803, %v5795
    %v6476 = vpack.c.b16 %v5804, %v5796
    %v6477 = vpack.c.b16 %v5805, %v5797
    %v6478 = vpack.c.b16 %v5806, %v5798
    %v6479 = vpack.c.b16 %v5807, %v5799
    %v6480 = vpack.c.b16 %v5808, %v5800
    %v6481 = vpack.c.b16 %v5809, %v5801
    %v6482 = vpack.c.b16 %v5810, %v5802
    %v6483 = vpack.c.b16 %v5819, %v5811
    %v6484 = vpack.c.b16 %v5820, %v5812
    %v6485 = vpack.c.b16 %v5821, %v5813
    %v6486 = vpack.c.b16 %v5822, %v5814
    %v6487 = vpack.c.b16 %v5823, %v5815
    %v6488 = vpack.c.b16 %v5824, %v5816
    %v6489 = vpack.c.b16 %v5825, %v5817
    %v6490 = vpack.c.b16 %v5826, %v5818
    %v6491 = vpack.c.b16 %v5835, %v5827
    %v6492 = vpack.c.b16 %v5836, %v5828
    %v6493 = vpack.c.b16 %v5837, %v5829
    %v6494 = vpack.c.b16 %v5838, %v5830
    %v6495 = vpack.c.b16 %v5839, %v5831
    %v6496 = vpack.c.b16 %v5840, %v5832
    %v6497 = vpack.c.b16 %v5841, %v5833
    %v6498 = vpack.c.b16 %v5842, %v5834
    %v6499 = vpack.c.b16 %v5851, %v5843
    %v6500 = vpack.c.b16 %v5852, %v5844
    %v6501 = vpack.c.b16 %v5853, %v5845
    %v6502 = vpack.c.b16 %v5854, %v5846
    %v6503 = vpack.c.b16 %v5855, %v5847
    %v6504 = vpack.c.b16 %v5856, %v5848
    %v6505 = vpack.c.b16 %v5857, %v5849
    %v6506 = vpack.c.b16 %v5858, %v5850
    %v6507 = vpack.c.b16 %v5867, %v5859
    %v6508 = vpack.c.b16 %v5868, %v5860
    %v6509 = vpack.c.b16 %v5869, %v5861
    %v6510 = vpack.c.b16 %v5870, %v5862
    %v6511 = vpack.c.b16 %v5871, %v5863
    %v6512 = vpack.c.b16 %v5872, %v5864
    %v6513 = vpack.c.b16 %v5873, %v5865
    %v6514 = vpack.c.b16 %v5874, %v5866
    %v6515 = vpack.c.b16 %v5883, %v5875
    %v6516 = vpack.c.b16 %v5884, %v5876
    %v6517 = vpack.c.b16 %v5885, %v5877
    %v6518 = vpack.c.b16 %v5886, %v5878
    %v6519 = vpack.c.b16 %v5887, %v5879
    %v6520 = vpack.c.b16 %v5888, %v5880
    %v6521 = vpack.c.b16 %v5889, %v5881
    %v6522 = vpack.c.b16 %v5890, %v5882
    %v6523 = vpack.c.b16 %v5899, %v5891
    %v6524 = vpack.c.b16 %v5900, %v5892
    %v6525 = vpack.c.b16 %v5901, %v5893
    %v6526 = vpack.c.b16 %v5902, %v5894
    %v6527 = vpack.c.b16 %v5903, %v5895
    %v6528 = vpack.c.b16 %v5904, %v5896
    %v6529 = vpack.c.b16 %v5905, %v5897
    %v6530 = vpack.c.b16 %v5906, %v5898
    %v6531 = vpack.c.b16 %v5915, %v5907
    %v6532 = vpack.c.b16 %v5916, %v5908
    %v6533 = vpack.c.b16 %v5917, %v5909
    %v6534 = vpack.c.b16 %v5918, %v5910
    %v6535 = vpack.c.b16 %v5919, %v5911
    %v6536 = vpack.c.b16 %v5920, %v5912
    %v6537 = vpack.c.b16 %v5921, %v5913
    %v6538 = vpack.c.b16 %v5922, %v5914
    %v6539 = vpack.c.b16 %v5931, %v5923
    %v6540 = vpack.c.b16 %v5932, %v5924
    %v6541 = vpack.c.b16 %v5933, %v5925
    %v6542 = vpack.c.b16 %v5934, %v5926
    %v6543 = vpack.c.b16 %v5935, %v5927
    %v6544 = vpack.c.b16 %v5936, %v5928
    %v6545 = vpack.c.b16 %v5937, %v5929
    %v6546 = vpack.c.b16 %v5938, %v5930
    %v6547 = vpack.c.b16 %v5947, %v5939
    %v6548 = vpack.c.b16 %v5948, %v5940
    %v6549 = vpack.c.b16 %v5949, %v5941
    %v6550 = vpack.c.b16 %v5950, %v5942
    %v6551 = vpack.c.b16 %v5951, %v5943
    %v6552 = vpack.c.b16 %v5952, %v5944
    %v6553 = vpack.c.b16 %v5953, %v5945
    %v6554 = vpack.c.b16 %v5954, %v5946
    %v6555 = vpack.c.b16 %v5963, %v5955
    %v6556 = vpack.c.b16 %v5964, %v5956
    %v6557 = vpack.c.b16 %v5965, %v5957
    %v6558 = vpack.c.b16 %v5966, %v5958
    %v6559 = vpack.c.b16 %v5967, %v5959
    %v6560 = vpack.c.b16 %v5968, %v5960
    %v6561 = vpack.c.b16 %v5969, %v5961
    %v6562 = vpack.c.b16 %v5970, %v5962
    %v6563 = vpack.c.b16 %v5979, %v5971
    %v6564 = vpack.c.b16 %v5980, %v5972
    %v6565 = vpack.c.b16 %v5981, %v5973
    %v6566 = vpack.c.b16 %v5982, %v5974
    %v6567 = vpack.c.b16 %v5983, %v5975
    %v6568 = vpack.c.b16 %v5984, %v5976
    %v6569 = vpack.c.b16 %v5985, %v5977
    %v6570 = vpack.c.b16 %v5986, %v5978
    %v6571 = vpack.c.b16 %v5995, %v5987
    %v6572 = vpack.c.b16 %v5996, %v5988
    %v6573 = vpack.c.b16 %v5997, %v5989
    %v6574 = vpack.c.b16 %v5998, %v5990
    %v6575 = vpack.c.b16 %v5999, %v5991
    %v6576 = vpack.c.b16 %v6000, %v5992
    %v6577 = vpack.c.b16 %v6001, %v5993
    %v6578 = vpack.c.b16 %v6002, %v5994
    %v6579 = vpack.c.b16 %v6011, %v6003
    %v6580 = vpack.c.b16 %v6012, %v6004
    %v6581 = vpack.c.b16 %v6013, %v6005
    %v6582 = vpack.c.b16 %v6014, %v6006
    %v6583 = vpack.c.b16 %v6015, %v6007
    %v6584 = vpack.c.b16 %v6016, %v6008
    %v6585 = vpack.c.b16 %v6017, %v6009
    %v6586 = vpack.c.b16 %v6018, %v6010
    %v6587 = vpack.c.b16 %v6027, %v6019
    %v6588 = vpack.c.b16 %v6028, %v6020
    %v6589 = vpack.c.b16 %v6029, %v6021
    %v6590 = vpack.c.b16 %v6030, %v6022
    %v6591 = vpack.c.b16 %v6031, %v6023
    %v6592 = vpack.c.b16 %v6032, %v6024
    %v6593 = vpack.c.b16 %v6033, %v6025
    %v6594 = vpack.c.b16 %v6034, %v6026
    %v6595 = vpack.c.b16 %v6043, %v6035
    %v6596 = vpack.c.b16 %v6044, %v6036
    %v6597 = vpack.c.b16 %v6045, %v6037
    %v6598 = vpack.c.b16 %v6046, %v6038
    %v6599 = vpack.c.b16 %v6047, %v6039
    %v6600 = vpack.c.b16 %v6048, %v6040
    %v6601 = vpack.c.b16 %v6049, %v6041
    %v6602 = vpack.c.b16 %v6050, %v6042
    %v6603 = vpack.c.b16 %v6059, %v6051
    %v6604 = vpack.c.b16 %v6060, %v6052
    %v6605 = vpack.c.b16 %v6061, %v6053
    %v6606 = vpack.c.b16 %v6062, %v6054
    %v6607 = vpack.c.b16 %v6063, %v6055
    %v6608 = vpack.c.b16 %v6064, %v6056
    %v6609 = vpack.c.b16 %v6065, %v6057
    %v6610 = vpack.c.b16 %v6066, %v6058
    %v6611 = vpack.c.b16 %v6075, %v6067
    %v6612 = vpack.c.b16 %v6076, %v6068
    %v6613 = vpack.c.b16 %v6077, %v6069
    %v6614 = vpack.c.b16 %v6078, %v6070
    %v6615 = vpack.c.b16 %v6079, %v6071
    %v6616 = vpack.c.b16 %v6080, %v6072
    %v6617 = vpack.c.b16 %v6081, %v6073
    %v6618 = vpack.c.b16 %v6082, %v6074
    %v6619 = vpack.c.b16 %v6091, %v6083
    %v6620 = vpack.c.b16 %v6092, %v6084
    %v6621 = vpack.c.b16 %v6093, %v6085
    %v6622 = vpack.c.b16 %v6094, %v6086
    %v6623 = vpack.c.b16 %v6095, %v6087
    %v6624 = vpack.c.b16 %v6096, %v6088
    %v6625 = vpack.c.b16 %v6097, %v6089
    %v6626 = vpack.c.b16 %v6098, %v6090
    %v6627 = vpack.c.b16 %v6107, %v6099
    %v6628 = vpack.c.b16 %v6108, %v6100
    %v6629 = vpack.c.b16 %v6109, %v6101
    %v6630 = vpack.c.b16 %v6110, %v6102
    %v6631 = vpack.c.b16 %v6111, %v6103
    %v6632 = vpack.c.b16 %v6112, %v6104
    %v6633 = vpack.c.b16 %v6113, %v6105
    %v6634 = vpack.c.b16 %v6114, %v6106
    %v6635 = vpack.c.b16 %v6123, %v6115
    %v6636 = vpack.c.b16 %v6124, %v6116
    %v6637 = vpack.c.b16 %v6125, %v6117
    %v6638 = vpack.c.b16 %v6126, %v6118
    %v6639 = vpack.c.b16 %v6127, %v6119
    %v6640 = vpack.c.b16 %v6128, %v6120
    %v6641 = vpack.c.b16 %v6129, %v6121
    %v6642 = vpack.c.b16 %v6130, %v6122
    %7155 = vmatprep.subr.bf16.mxu0 %v6188
    %7156 = vmatpush1.bf16.msra.mxu0 %v6187
    %7157 = vmatprep.subr.bf16.mxu0 %v6180
    %7158 = vmatpush1.bf16.msra.mxu0 %v6179
    %7159 = vmatprep.subr.bf16.mxu0 %v6172
    %7160 = vmatpush1.bf16.msra.mxu0 %v6171
    %7161 = vmatprep.subr.bf16.mxu0 %v6164
    %7162 = vmatpush1.bf16.msra.mxu0 %v6163
    %7163 = vmatprep.subr.bf16.mxu0 %v6156
    %7164 = vmatpush1.bf16.msra.mxu0 %v6155
    %7165 = vmatprep.subr.bf16.mxu0 %v6148
    %7166 = vmatpush1.bf16.msra.mxu0 %v6147
    %7167 = vmatprep.subr.bf16.mxu0 %v6140
    %7168 = vmatpush1.bf16.msra.mxu0 %v6139
    %7169 = vmatprep.subr.bf16.mxu0 %v6132
    %7170 = vmatpush1.bf16.msra.mxu0 %v6131
    %7171 = vmatprep.subr.bf16.mxu0 %v6252
    %7172 = vmatpush2.bf16.msra.mxu0 %v6251
    %7173 = vmatprep.subr.bf16.mxu0 %v6244
    %7174 = vmatpush2.bf16.msra.mxu0 %v6243
    %7175 = vmatprep.subr.bf16.mxu0 %v6236
    %7176 = vmatpush2.bf16.msra.mxu0 %v6235
    %7177 = vmatprep.subr.bf16.mxu0 %v6228
    %7178 = vmatpush2.bf16.msra.mxu0 %v6227
    %7179 = vmatprep.subr.bf16.mxu0 %v6220
    %7180 = vmatpush2.bf16.msra.mxu0 %v6219
    %7181 = vmatprep.subr.bf16.mxu0 %v6212
    %7182 = vmatpush2.bf16.msra.mxu0 %v6211
    %7183 = vmatprep.subr.bf16.mxu0 %v6204
    %7184 = vmatpush2.bf16.msra.mxu0 %v6203
    %7185 = vmatprep.subr.bf16.mxu0 %v6196
    %7186 = vmatpush2.bf16.msra.mxu0 %v6195
    %7187 = vmatprep.mubr.bf16.mxu0 %v4034
    %7188 = vmatmul.mubr.bf16.gmra.mxu0 %v4033
    %v7189 = vpop.f32.mrf.mxu0
    %v7190 = vadd.f32 %v4558, %v7189
    %v7191 = vpop.f32.mrf.mxu0
    %v7192 = vadd.f32 %v4562, %v7191
    %v7193 = vpop.f32.mrf.mxu0
    %v7194 = vadd.f32 %v4558, %v7193
    %v7195 = vpop.f32.mrf.mxu0
    %v7196 = vadd.f32 %v4562, %v7195
    %7197 = vdwg.mxu0
    %7198 = vmatprep.subr.bf16.mxu0 %v6316
    %7199 = vmatpush1.bf16.msra.mxu0 %v6315
    %7200 = vmatprep.subr.bf16.mxu0 %v6308
    %7201 = vmatpush1.bf16.msra.mxu0 %v6307
    %7202 = vmatprep.subr.bf16.mxu0 %v6300
    %7203 = vmatpush1.bf16.msra.mxu0 %v6299
    %7204 = vmatprep.subr.bf16.mxu0 %v6292
    %7205 = vmatpush1.bf16.msra.mxu0 %v6291
    %7206 = vmatprep.subr.bf16.mxu0 %v6284
    %7207 = vmatpush1.bf16.msra.mxu0 %v6283
    %7208 = vmatprep.subr.bf16.mxu0 %v6276
    %7209 = vmatpush1.bf16.msra.mxu0 %v6275
    %7210 = vmatprep.subr.bf16.mxu0 %v6268
    %7211 = vmatpush1.bf16.msra.mxu0 %v6267
    %7212 = vmatprep.subr.bf16.mxu0 %v6260
    %7213 = vmatpush1.bf16.msra.mxu0 %v6259
    %7214 = vmatprep.subr.bf16.mxu0 %v6380
    %7215 = vmatpush2.bf16.msra.mxu0 %v6379
    %7216 = vmatprep.subr.bf16.mxu0 %v6372
    %7217 = vmatpush2.bf16.msra.mxu0 %v6371
    %7218 = vmatprep.subr.bf16.mxu0 %v6364
    %7219 = vmatpush2.bf16.msra.mxu0 %v6363
    %7220 = vmatprep.subr.bf16.mxu0 %v6356
    %7221 = vmatpush2.bf16.msra.mxu0 %v6355
    %7222 = vmatprep.subr.bf16.mxu0 %v6348
    %7223 = vmatpush2.bf16.msra.mxu0 %v6347
    %7224 = vmatprep.subr.bf16.mxu0 %v6340
    %7225 = vmatpush2.bf16.msra.mxu0 %v6339
    %7226 = vmatprep.subr.bf16.mxu0 %v6332
    %7227 = vmatpush2.bf16.msra.mxu0 %v6331
    %7228 = vmatprep.subr.bf16.mxu0 %v6324
    %7229 = vmatpush2.bf16.msra.mxu0 %v6323
    %7230 = vmatprep.mubr.bf16.mxu0 %v4036
    %7231 = vmatmul.mubr.bf16.gmra.mxu0 %v4035
    %v7232 = vpop.f32.mrf.mxu0
    %v7233 = vadd.f32 %v7190, %v7232
    %v7234 = vpop.f32.mrf.mxu0
    %v7235 = vadd.f32 %v7192, %v7234
    %v7236 = vpop.f32.mrf.mxu0
    %v7237 = vadd.f32 %v7194, %v7236
    %v7238 = vpop.f32.mrf.mxu0
    %v7239 = vadd.f32 %v7196, %v7238
    %7240 = vdwg.mxu0
    %7241 = vmatprep.subr.bf16.mxu0 %v6444
    %7242 = vmatpush1.bf16.msra.mxu0 %v6443
    %7243 = vmatprep.subr.bf16.mxu0 %v6436
    %7244 = vmatpush1.bf16.msra.mxu0 %v6435
    %7245 = vmatprep.subr.bf16.mxu0 %v6428
    %7246 = vmatpush1.bf16.msra.mxu0 %v6427
    %7247 = vmatprep.subr.bf16.mxu0 %v6420
    %7248 = vmatpush1.bf16.msra.mxu0 %v6419
    %7249 = vmatprep.subr.bf16.mxu0 %v6412
    %7250 = vmatpush1.bf16.msra.mxu0 %v6411
    %7251 = vmatprep.subr.bf16.mxu0 %v6404
    %7252 = vmatpush1.bf16.msra.mxu0 %v6403
    %7253 = vmatprep.subr.bf16.mxu0 %v6396
    %7254 = vmatpush1.bf16.msra.mxu0 %v6395
    %7255 = vmatprep.subr.bf16.mxu0 %v6388
    %7256 = vmatpush1.bf16.msra.mxu0 %v6387
    %7257 = vmatprep.subr.bf16.mxu0 %v6508
    %7258 = vmatpush2.bf16.msra.mxu0 %v6507
    %7259 = vmatprep.subr.bf16.mxu0 %v6500
    %7260 = vmatpush2.bf16.msra.mxu0 %v6499
    %7261 = vmatprep.subr.bf16.mxu0 %v6492
    %7262 = vmatpush2.bf16.msra.mxu0 %v6491
    %7263 = vmatprep.subr.bf16.mxu0 %v6484
    %7264 = vmatpush2.bf16.msra.mxu0 %v6483
    %7265 = vmatprep.subr.bf16.mxu0 %v6476
    %7266 = vmatpush2.bf16.msra.mxu0 %v6475
    %7267 = vmatprep.subr.bf16.mxu0 %v6468
    %7268 = vmatpush2.bf16.msra.mxu0 %v6467
    %7269 = vmatprep.subr.bf16.mxu0 %v6460
    %7270 = vmatpush2.bf16.msra.mxu0 %v6459
    %7271 = vmatprep.subr.bf16.mxu0 %v6452
    %7272 = vmatpush2.bf16.msra.mxu0 %v6451
    %7273 = vmatprep.mubr.bf16.mxu0 %v4038
    %7274 = vmatmul.mubr.bf16.gmra.mxu0 %v4037
    %v7275 = vpop.f32.mrf.mxu0
    %v7276 = vadd.f32 %v7233, %v7275
    %v7277 = vpop.f32.mrf.mxu0
    %v7278 = vadd.f32 %v7235, %v7277
    %v7279 = vpop.f32.mrf.mxu0
    %v7280 = vadd.f32 %v7237, %v7279
    %v7281 = vpop.f32.mrf.mxu0
    %v7282 = vadd.f32 %v7239, %v7281
    %7283 = vdwg.mxu0
    %7284 = vmatprep.subr.bf16.mxu0 %v6572
    %7285 = vmatpush1.bf16.msra.mxu0 %v6571
    %7286 = vmatprep.subr.bf16.mxu0 %v6564
    %7287 = vmatpush1.bf16.msra.mxu0 %v6563
    %7288 = vmatprep.subr.bf16.mxu0 %v6556
    %7289 = vmatpush1.bf16.msra.mxu0 %v6555
    %7290 = vmatprep.subr.bf16.mxu0 %v6548
    %7291 = vmatpush1.bf16.msra.mxu0 %v6547
    %7292 = vmatprep.subr.bf16.mxu0 %v6540
    %7293 = vmatpush1.bf16.msra.mxu0 %v6539
    %7294 = vmatprep.subr.bf16.mxu0 %v6532
    %7295 = vmatpush1.bf16.msra.mxu0 %v6531
    %7296 = vmatprep.subr.bf16.mxu0 %v6524
    %7297 = vmatpush1.bf16.msra.mxu0 %v6523
    %7298 = vmatprep.subr.bf16.mxu0 %v6516
    %7299 = vmatpush1.bf16.msra.mxu0 %v6515
    %7300 = vmatprep.subr.bf16.mxu0 %v6636
    %7301 = vmatpush2.bf16.msra.mxu0 %v6635
    %7302 = vmatprep.subr.bf16.mxu0 %v6628
    %7303 = vmatpush2.bf16.msra.mxu0 %v6627
    %7304 = vmatprep.subr.bf16.mxu0 %v6620
    %7305 = vmatpush2.bf16.msra.mxu0 %v6619
    %7306 = vmatprep.subr.bf16.mxu0 %v6612
    %7307 = vmatpush2.bf16.msra.mxu0 %v6611
    %7308 = vmatprep.subr.bf16.mxu0 %v6604
    %7309 = vmatpush2.bf16.msra.mxu0 %v6603
    %7310 = vmatprep.subr.bf16.mxu0 %v6596
    %7311 = vmatpush2.bf16.msra.mxu0 %v6595
    %7312 = vmatprep.subr.bf16.mxu0 %v6588
    %7313 = vmatpush2.bf16.msra.mxu0 %v6587
    %7314 = vmatprep.subr.bf16.mxu0 %v6580
    %7315 = vmatpush2.bf16.msra.mxu0 %v6579
    %7316 = vmatprep.mubr.bf16.mxu0 %v4040
    %7317 = vmatmul.mubr.bf16.gmra.mxu0 %v4039
    %v7318 = vpop.f32.mrf.mxu0
    %v7319 = vadd.f32 %v7276, %v7318
    %v7320 = vpop.f32.mrf.mxu0
    %v7321 = vadd.f32 %v7278, %v7320
    %v7322 = vpop.f32.mrf.mxu0
    %v7323 = vadd.f32 %v7280, %v7322
    %v7324 = vpop.f32.mrf.mxu0
    %v7325 = vadd.f32 %v7282, %v7324
    %7326 = vdwg.mxu0
    %7327 = vmatprep.subr.bf16.mxu0 %v6190
    %7328 = vmatpush1.bf16.msra.mxu0 %v6189
    %7329 = vmatprep.subr.bf16.mxu0 %v6182
    %7330 = vmatpush1.bf16.msra.mxu0 %v6181
    %7331 = vmatprep.subr.bf16.mxu0 %v6174
    %7332 = vmatpush1.bf16.msra.mxu0 %v6173
    %7333 = vmatprep.subr.bf16.mxu0 %v6166
    %7334 = vmatpush1.bf16.msra.mxu0 %v6165
    %7335 = vmatprep.subr.bf16.mxu0 %v6158
    %7336 = vmatpush1.bf16.msra.mxu0 %v6157
    %7337 = vmatprep.subr.bf16.mxu0 %v6150
    %7338 = vmatpush1.bf16.msra.mxu0 %v6149
    %7339 = vmatprep.subr.bf16.mxu0 %v6142
    %7340 = vmatpush1.bf16.msra.mxu0 %v6141
    %7341 = vmatprep.subr.bf16.mxu0 %v6134
    %7342 = vmatpush1.bf16.msra.mxu0 %v6133
    %7343 = vmatprep.subr.bf16.mxu0 %v6254
    %7344 = vmatpush2.bf16.msra.mxu0 %v6253
    %7345 = vmatprep.subr.bf16.mxu0 %v6246
    %7346 = vmatpush2.bf16.msra.mxu0 %v6245
    %7347 = vmatprep.subr.bf16.mxu0 %v6238
    %7348 = vmatpush2.bf16.msra.mxu0 %v6237
    %7349 = vmatprep.subr.bf16.mxu0 %v6230
    %7350 = vmatpush2.bf16.msra.mxu0 %v6229
    %7351 = vmatprep.subr.bf16.mxu0 %v6222
    %7352 = vmatpush2.bf16.msra.mxu0 %v6221
    %7353 = vmatprep.subr.bf16.mxu0 %v6214
    %7354 = vmatpush2.bf16.msra.mxu0 %v6213
    %7355 = vmatprep.subr.bf16.mxu0 %v6206
    %7356 = vmatpush2.bf16.msra.mxu0 %v6205
    %7357 = vmatprep.subr.bf16.mxu0 %v6198
    %7358 = vmatpush2.bf16.msra.mxu0 %v6197
    %7359 = vmatprep.mubr.bf16.mxu0 %v4034
    %7360 = vmatmul.mubr.bf16.gmra.mxu0 %v4033
    %v7361 = vpop.f32.mrf.mxu0
    %v7362 = vadd.f32 %v4566, %v7361
    %v7363 = vpop.f32.mrf.mxu0
    %v7364 = vadd.f32 %v4570, %v7363
    %v7365 = vpop.f32.mrf.mxu0
    %v7366 = vadd.f32 %v4566, %v7365
    %v7367 = vpop.f32.mrf.mxu0
    %v7368 = vadd.f32 %v4570, %v7367
    %7369 = vdwg.mxu0
    %7370 = vmatprep.subr.bf16.mxu0 %v6318
    %7371 = vmatpush1.bf16.msra.mxu0 %v6317
    %7372 = vmatprep.subr.bf16.mxu0 %v6310
    %7373 = vmatpush1.bf16.msra.mxu0 %v6309
    %7374 = vmatprep.subr.bf16.mxu0 %v6302
    %7375 = vmatpush1.bf16.msra.mxu0 %v6301
    %7376 = vmatprep.subr.bf16.mxu0 %v6294
    %7377 = vmatpush1.bf16.msra.mxu0 %v6293
    %7378 = vmatprep.subr.bf16.mxu0 %v6286
    %7379 = vmatpush1.bf16.msra.mxu0 %v6285
    %7380 = vmatprep.subr.bf16.mxu0 %v6278
    %7381 = vmatpush1.bf16.msra.mxu0 %v6277
    %7382 = vmatprep.subr.bf16.mxu0 %v6270
    %7383 = vmatpush1.bf16.msra.mxu0 %v6269
    %7384 = vmatprep.subr.bf16.mxu0 %v6262
    %7385 = vmatpush1.bf16.msra.mxu0 %v6261
    %7386 = vmatprep.subr.bf16.mxu0 %v6382
    %7387 = vmatpush2.bf16.msra.mxu0 %v6381
    %7388 = vmatprep.subr.bf16.mxu0 %v6374
    %7389 = vmatpush2.bf16.msra.mxu0 %v6373
    %7390 = vmatprep.subr.bf16.mxu0 %v6366
    %7391 = vmatpush2.bf16.msra.mxu0 %v6365
    %7392 = vmatprep.subr.bf16.mxu0 %v6358
    %7393 = vmatpush2.bf16.msra.mxu0 %v6357
    %7394 = vmatprep.subr.bf16.mxu0 %v6350
    %7395 = vmatpush2.bf16.msra.mxu0 %v6349
    %7396 = vmatprep.subr.bf16.mxu0 %v6342
    %7397 = vmatpush2.bf16.msra.mxu0 %v6341
    %7398 = vmatprep.subr.bf16.mxu0 %v6334
    %7399 = vmatpush2.bf16.msra.mxu0 %v6333
    %7400 = vmatprep.subr.bf16.mxu0 %v6326
    %7401 = vmatpush2.bf16.msra.mxu0 %v6325
    %7402 = vmatprep.mubr.bf16.mxu0 %v4036
    %7403 = vmatmul.mubr.bf16.gmra.mxu0 %v4035
    %v7404 = vpop.f32.mrf.mxu0
    %v7405 = vadd.f32 %v7362, %v7404
    %v7406 = vpop.f32.mrf.mxu0
    %v7407 = vadd.f32 %v7364, %v7406
    %v7408 = vpop.f32.mrf.mxu0
    %v7409 = vadd.f32 %v7366, %v7408
    %v7410 = vpop.f32.mrf.mxu0
    %v7411 = vadd.f32 %v7368, %v7410
    %7412 = vdwg.mxu0
    %7413 = vmatprep.subr.bf16.mxu0 %v6446
    %7414 = vmatpush1.bf16.msra.mxu0 %v6445
    %7415 = vmatprep.subr.bf16.mxu0 %v6438
    %7416 = vmatpush1.bf16.msra.mxu0 %v6437
    %7417 = vmatprep.subr.bf16.mxu0 %v6430
    %7418 = vmatpush1.bf16.msra.mxu0 %v6429
    %7419 = vmatprep.subr.bf16.mxu0 %v6422
    %7420 = vmatpush1.bf16.msra.mxu0 %v6421
    %7421 = vmatprep.subr.bf16.mxu0 %v6414
    %7422 = vmatpush1.bf16.msra.mxu0 %v6413
    %7423 = vmatprep.subr.bf16.mxu0 %v6406
    %7424 = vmatpush1.bf16.msra.mxu0 %v6405
    %7425 = vmatprep.subr.bf16.mxu0 %v6398
    %7426 = vmatpush1.bf16.msra.mxu0 %v6397
    %7427 = vmatprep.subr.bf16.mxu0 %v6390
    %7428 = vmatpush1.bf16.msra.mxu0 %v6389
    %7429 = vmatprep.subr.bf16.mxu0 %v6510
    %7430 = vmatpush2.bf16.msra.mxu0 %v6509
    %7431 = vmatprep.subr.bf16.mxu0 %v6502
    %7432 = vmatpush2.bf16.msra.mxu0 %v6501
    %7433 = vmatprep.subr.bf16.mxu0 %v6494
    %7434 = vmatpush2.bf16.msra.mxu0 %v6493
    %7435 = vmatprep.subr.bf16.mxu0 %v6486
    %7436 = vmatpush2.bf16.msra.mxu0 %v6485
    %7437 = vmatprep.subr.bf16.mxu0 %v6478
    %7438 = vmatpush2.bf16.msra.mxu0 %v6477
    %7439 = vmatprep.subr.bf16.mxu0 %v6470
    %7440 = vmatpush2.bf16.msra.mxu0 %v6469
    %7441 = vmatprep.subr.bf16.mxu0 %v6462
    %7442 = vmatpush2.bf16.msra.mxu0 %v6461
    %7443 = vmatprep.subr.bf16.mxu0 %v6454
    %7444 = vmatpush2.bf16.msra.mxu0 %v6453
    %7445 = vmatprep.mubr.bf16.mxu0 %v4038
    %7446 = vmatmul.mubr.bf16.gmra.mxu0 %v4037
    %v7447 = vpop.f32.mrf.mxu0
    %v7448 = vadd.f32 %v7405, %v7447
    %v7449 = vpop.f32.mrf.mxu0
    %v7450 = vadd.f32 %v7407, %v7449
    %v7451 = vpop.f32.mrf.mxu0
    %v7452 = vadd.f32 %v7409, %v7451
    %v7453 = vpop.f32.mrf.mxu0
    %v7454 = vadd.f32 %v7411, %v7453
    %7455 = vdwg.mxu0
    %7456 = vmatprep.subr.bf16.mxu0 %v6574
    %7457 = vmatpush1.bf16.msra.mxu0 %v6573
    %7458 = vmatprep.subr.bf16.mxu0 %v6566
    %7459 = vmatpush1.bf16.msra.mxu0 %v6565
    %7460 = vmatprep.subr.bf16.mxu0 %v6558
    %7461 = vmatpush1.bf16.msra.mxu0 %v6557
    %7462 = vmatprep.subr.bf16.mxu0 %v6550
    %7463 = vmatpush1.bf16.msra.mxu0 %v6549
    %7464 = vmatprep.subr.bf16.mxu0 %v6542
    %7465 = vmatpush1.bf16.msra.mxu0 %v6541
    %7466 = vmatprep.subr.bf16.mxu0 %v6534
    %7467 = vmatpush1.bf16.msra.mxu0 %v6533
    %7468 = vmatprep.subr.bf16.mxu0 %v6526
    %7469 = vmatpush1.bf16.msra.mxu0 %v6525
    %7470 = vmatprep.subr.bf16.mxu0 %v6518
    %7471 = vmatpush1.bf16.msra.mxu0 %v6517
    %7472 = vmatprep.subr.bf16.mxu0 %v6638
    %7473 = vmatpush2.bf16.msra.mxu0 %v6637
    %7474 = vmatprep.subr.bf16.mxu0 %v6630
    %7475 = vmatpush2.bf16.msra.mxu0 %v6629
    %7476 = vmatprep.subr.bf16.mxu0 %v6622
    %7477 = vmatpush2.bf16.msra.mxu0 %v6621
    %7478 = vmatprep.subr.bf16.mxu0 %v6614
    %7479 = vmatpush2.bf16.msra.mxu0 %v6613
    %7480 = vmatprep.subr.bf16.mxu0 %v6606
    %7481 = vmatpush2.bf16.msra.mxu0 %v6605
    %7482 = vmatprep.subr.bf16.mxu0 %v6598
    %7483 = vmatpush2.bf16.msra.mxu0 %v6597
    %7484 = vmatprep.subr.bf16.mxu0 %v6590
    %7485 = vmatpush2.bf16.msra.mxu0 %v6589
    %7486 = vmatprep.subr.bf16.mxu0 %v6582
    %7487 = vmatpush2.bf16.msra.mxu0 %v6581
    %7488 = vmatprep.mubr.bf16.mxu0 %v4040
    %7489 = vmatmul.mubr.bf16.gmra.mxu0 %v4039
    %v7490 = vpop.f32.mrf.mxu0
    %v7491 = vadd.f32 %v7448, %v7490
    %v7492 = vpop.f32.mrf.mxu0
    %v7493 = vadd.f32 %v7450, %v7492
    %v7494 = vpop.f32.mrf.mxu0
    %v7495 = vadd.f32 %v7452, %v7494
    %v7496 = vpop.f32.mrf.mxu0
    %v7497 = vadd.f32 %v7454, %v7496
    %7498 = vdwg.mxu0
    %7499 = vmatprep.subr.bf16.mxu0 %v6192
    %7500 = vmatpush1.bf16.msra.mxu0 %v6191
    %7501 = vmatprep.subr.bf16.mxu0 %v6184
    %7502 = vmatpush1.bf16.msra.mxu0 %v6183
    %7503 = vmatprep.subr.bf16.mxu0 %v6176
    %7504 = vmatpush1.bf16.msra.mxu0 %v6175
    %7505 = vmatprep.subr.bf16.mxu0 %v6168
    %7506 = vmatpush1.bf16.msra.mxu0 %v6167
    %7507 = vmatprep.subr.bf16.mxu0 %v6160
    %7508 = vmatpush1.bf16.msra.mxu0 %v6159
    %7509 = vmatprep.subr.bf16.mxu0 %v6152
    %7510 = vmatpush1.bf16.msra.mxu0 %v6151
    %7511 = vmatprep.subr.bf16.mxu0 %v6144
    %7512 = vmatpush1.bf16.msra.mxu0 %v6143
    %7513 = vmatprep.subr.bf16.mxu0 %v6136
    %7514 = vmatpush1.bf16.msra.mxu0 %v6135
    %7515 = vmatprep.subr.bf16.mxu0 %v6256
    %7516 = vmatpush2.bf16.msra.mxu0 %v6255
    %7517 = vmatprep.subr.bf16.mxu0 %v6248
    %7518 = vmatpush2.bf16.msra.mxu0 %v6247
    %7519 = vmatprep.subr.bf16.mxu0 %v6240
    %7520 = vmatpush2.bf16.msra.mxu0 %v6239
    %7521 = vmatprep.subr.bf16.mxu0 %v6232
    %7522 = vmatpush2.bf16.msra.mxu0 %v6231
    %7523 = vmatprep.subr.bf16.mxu0 %v6224
    %7524 = vmatpush2.bf16.msra.mxu0 %v6223
    %7525 = vmatprep.subr.bf16.mxu0 %v6216
    %7526 = vmatpush2.bf16.msra.mxu0 %v6215
    %7527 = vmatprep.subr.bf16.mxu0 %v6208
    %7528 = vmatpush2.bf16.msra.mxu0 %v6207
    %7529 = vmatprep.subr.bf16.mxu0 %v6200
    %7530 = vmatpush2.bf16.msra.mxu0 %v6199
    %7531 = vmatprep.mubr.bf16.mxu0 %v4034
    %7532 = vmatmul.mubr.bf16.gmra.mxu0 %v4033
    %v7533 = vpop.f32.mrf.mxu0
    %v7534 = vadd.f32 %v4574, %v7533
    %v7535 = vpop.f32.mrf.mxu0
    %v7536 = vadd.f32 %v4578, %v7535
    %v7537 = vpop.f32.mrf.mxu0
    %v7538 = vadd.f32 %v4574, %v7537
    %v7539 = vpop.f32.mrf.mxu0
    %v7540 = vadd.f32 %v4578, %v7539
    %7541 = vdwg.mxu0
    %7542 = vmatprep.subr.bf16.mxu0 %v6320
    %7543 = vmatpush1.bf16.msra.mxu0 %v6319
    %7544 = vmatprep.subr.bf16.mxu0 %v6312
    %7545 = vmatpush1.bf16.msra.mxu0 %v6311
    %7546 = vmatprep.subr.bf16.mxu0 %v6304
    %7547 = vmatpush1.bf16.msra.mxu0 %v6303
    %7548 = vmatprep.subr.bf16.mxu0 %v6296
    %7549 = vmatpush1.bf16.msra.mxu0 %v6295
    %7550 = vmatprep.subr.bf16.mxu0 %v6288
    %7551 = vmatpush1.bf16.msra.mxu0 %v6287
    %7552 = vmatprep.subr.bf16.mxu0 %v6280
    %7553 = vmatpush1.bf16.msra.mxu0 %v6279
    %7554 = vmatprep.subr.bf16.mxu0 %v6272
    %7555 = vmatpush1.bf16.msra.mxu0 %v6271
    %7556 = vmatprep.subr.bf16.mxu0 %v6264
    %7557 = vmatpush1.bf16.msra.mxu0 %v6263
    %7558 = vmatprep.subr.bf16.mxu0 %v6384
    %7559 = vmatpush2.bf16.msra.mxu0 %v6383
    %7560 = vmatprep.subr.bf16.mxu0 %v6376
    %7561 = vmatpush2.bf16.msra.mxu0 %v6375
    %7562 = vmatprep.subr.bf16.mxu0 %v6368
    %7563 = vmatpush2.bf16.msra.mxu0 %v6367
    %7564 = vmatprep.subr.bf16.mxu0 %v6360
    %7565 = vmatpush2.bf16.msra.mxu0 %v6359
    %7566 = vmatprep.subr.bf16.mxu0 %v6352
    %7567 = vmatpush2.bf16.msra.mxu0 %v6351
    %7568 = vmatprep.subr.bf16.mxu0 %v6344
    %7569 = vmatpush2.bf16.msra.mxu0 %v6343
    %7570 = vmatprep.subr.bf16.mxu0 %v6336
    %7571 = vmatpush2.bf16.msra.mxu0 %v6335
    %7572 = vmatprep.subr.bf16.mxu0 %v6328
    %7573 = vmatpush2.bf16.msra.mxu0 %v6327
    %7574 = vmatprep.mubr.bf16.mxu0 %v4036
    %7575 = vmatmul.mubr.bf16.gmra.mxu0 %v4035
    %v7576 = vpop.f32.mrf.mxu0
    %v7577 = vadd.f32 %v7534, %v7576
    %v7578 = vpop.f32.mrf.mxu0
    %v7579 = vadd.f32 %v7536, %v7578
    %v7580 = vpop.f32.mrf.mxu0
    %v7581 = vadd.f32 %v7538, %v7580
    %v7582 = vpop.f32.mrf.mxu0
    %v7583 = vadd.f32 %v7540, %v7582
    %7584 = vdwg.mxu0
    %7585 = vmatprep.subr.bf16.mxu0 %v6448
    %7586 = vmatpush1.bf16.msra.mxu0 %v6447
    %7587 = vmatprep.subr.bf16.mxu0 %v6440
    %7588 = vmatpush1.bf16.msra.mxu0 %v6439
    %7589 = vmatprep.subr.bf16.mxu0 %v6432
    %7590 = vmatpush1.bf16.msra.mxu0 %v6431
    %7591 = vmatprep.subr.bf16.mxu0 %v6424
    %7592 = vmatpush1.bf16.msra.mxu0 %v6423
    %7593 = vmatprep.subr.bf16.mxu0 %v6416
    %7594 = vmatpush1.bf16.msra.mxu0 %v6415
    %7595 = vmatprep.subr.bf16.mxu0 %v6408
    %7596 = vmatpush1.bf16.msra.mxu0 %v6407
    %7597 = vmatprep.subr.bf16.mxu0 %v6400
    %7598 = vmatpush1.bf16.msra.mxu0 %v6399
    %7599 = vmatprep.subr.bf16.mxu0 %v6392
    %7600 = vmatpush1.bf16.msra.mxu0 %v6391
    %7601 = vmatprep.subr.bf16.mxu0 %v6512
    %7602 = vmatpush2.bf16.msra.mxu0 %v6511
    %7603 = vmatprep.subr.bf16.mxu0 %v6504
    %7604 = vmatpush2.bf16.msra.mxu0 %v6503
    %7605 = vmatprep.subr.bf16.mxu0 %v6496
    %7606 = vmatpush2.bf16.msra.mxu0 %v6495
    %7607 = vmatprep.subr.bf16.mxu0 %v6488
    %7608 = vmatpush2.bf16.msra.mxu0 %v6487
    %7609 = vmatprep.subr.bf16.mxu0 %v6480
    %7610 = vmatpush2.bf16.msra.mxu0 %v6479
    %7611 = vmatprep.subr.bf16.mxu0 %v6472
    %7612 = vmatpush2.bf16.msra.mxu0 %v6471
    %7613 = vmatprep.subr.bf16.mxu0 %v6464
    %7614 = vmatpush2.bf16.msra.mxu0 %v6463
    %7615 = vmatprep.subr.bf16.mxu0 %v6456
    %7616 = vmatpush2.bf16.msra.mxu0 %v6455
    %7617 = vmatprep.mubr.bf16.mxu0 %v4038
    %7618 = vmatmul.mubr.bf16.gmra.mxu0 %v4037
    %v7619 = vpop.f32.mrf.mxu0
    %v7620 = vadd.f32 %v7577, %v7619
    %v7621 = vpop.f32.mrf.mxu0
    %v7622 = vadd.f32 %v7579, %v7621
    %v7623 = vpop.f32.mrf.mxu0
    %v7624 = vadd.f32 %v7581, %v7623
    %v7625 = vpop.f32.mrf.mxu0
    %v7626 = vadd.f32 %v7583, %v7625
    %7627 = vdwg.mxu0
    %7628 = vmatprep.subr.bf16.mxu0 %v6576
    %7629 = vmatpush1.bf16.msra.mxu0 %v6575
    %7630 = vmatprep.subr.bf16.mxu0 %v6568
    %7631 = vmatpush1.bf16.msra.mxu0 %v6567
    %7632 = vmatprep.subr.bf16.mxu0 %v6560
    %7633 = vmatpush1.bf16.msra.mxu0 %v6559
    %7634 = vmatprep.subr.bf16.mxu0 %v6552
    %7635 = vmatpush1.bf16.msra.mxu0 %v6551
    %7636 = vmatprep.subr.bf16.mxu0 %v6544
    %7637 = vmatpush1.bf16.msra.mxu0 %v6543
    %7638 = vmatprep.subr.bf16.mxu0 %v6536
    %7639 = vmatpush1.bf16.msra.mxu0 %v6535
    %7640 = vmatprep.subr.bf16.mxu0 %v6528
    %7641 = vmatpush1.bf16.msra.mxu0 %v6527
    %7642 = vmatprep.subr.bf16.mxu0 %v6520
    %7643 = vmatpush1.bf16.msra.mxu0 %v6519
    %7644 = vmatprep.subr.bf16.mxu0 %v6640
    %7645 = vmatpush2.bf16.msra.mxu0 %v6639
    %7646 = vmatprep.subr.bf16.mxu0 %v6632
    %7647 = vmatpush2.bf16.msra.mxu0 %v6631
    %7648 = vmatprep.subr.bf16.mxu0 %v6624
    %7649 = vmatpush2.bf16.msra.mxu0 %v6623
    %7650 = vmatprep.subr.bf16.mxu0 %v6616
    %7651 = vmatpush2.bf16.msra.mxu0 %v6615
    %7652 = vmatprep.subr.bf16.mxu0 %v6608
    %7653 = vmatpush2.bf16.msra.mxu0 %v6607
    %7654 = vmatprep.subr.bf16.mxu0 %v6600
    %7655 = vmatpush2.bf16.msra.mxu0 %v6599
    %7656 = vmatprep.subr.bf16.mxu0 %v6592
    %7657 = vmatpush2.bf16.msra.mxu0 %v6591
    %7658 = vmatprep.subr.bf16.mxu0 %v6584
    %7659 = vmatpush2.bf16.msra.mxu0 %v6583
    %7660 = vmatprep.mubr.bf16.mxu0 %v4040
    %7661 = vmatmul.mubr.bf16.gmra.mxu0 %v4039
    %v7662 = vpop.f32.mrf.mxu0
    %v7663 = vadd.f32 %v7620, %v7662
    %v7664 = vpop.f32.mrf.mxu0
    %v7665 = vadd.f32 %v7622, %v7664
    %v7666 = vpop.f32.mrf.mxu0
    %v7667 = vadd.f32 %v7624, %v7666
    %v7668 = vpop.f32.mrf.mxu0
    %v7669 = vadd.f32 %v7626, %v7668
    %7670 = vdwg.mxu0
    %7671 = vmatprep.subr.bf16.mxu0 %v6194
    %7672 = vmatpush1.bf16.msra.mxu0 %v6193
    %7673 = vmatprep.subr.bf16.mxu0 %v6186
    %7674 = vmatpush1.bf16.msra.mxu0 %v6185
    %7675 = vmatprep.subr.bf16.mxu0 %v6178
    %7676 = vmatpush1.bf16.msra.mxu0 %v6177
    %7677 = vmatprep.subr.bf16.mxu0 %v6170
    %7678 = vmatpush1.bf16.msra.mxu0 %v6169
    %7679 = vmatprep.subr.bf16.mxu0 %v6162
    %7680 = vmatpush1.bf16.msra.mxu0 %v6161
    %7681 = vmatprep.subr.bf16.mxu0 %v6154
    %7682 = vmatpush1.bf16.msra.mxu0 %v6153
    %7683 = vmatprep.subr.bf16.mxu0 %v6146
    %7684 = vmatpush1.bf16.msra.mxu0 %v6145
    %7685 = vmatprep.subr.bf16.mxu0 %v6138
    %7686 = vmatpush1.bf16.msra.mxu0 %v6137
    %7687 = vmatprep.subr.bf16.mxu0 %v6258
    %7688 = vmatpush2.bf16.msra.mxu0 %v6257
    %7689 = vmatprep.subr.bf16.mxu0 %v6250
    %7690 = vmatpush2.bf16.msra.mxu0 %v6249
    %7691 = vmatprep.subr.bf16.mxu0 %v6242
    %7692 = vmatpush2.bf16.msra.mxu0 %v6241
    %7693 = vmatprep.subr.bf16.mxu0 %v6234
    %7694 = vmatpush2.bf16.msra.mxu0 %v6233
    %7695 = vmatprep.subr.bf16.mxu0 %v6226
    %7696 = vmatpush2.bf16.msra.mxu0 %v6225
    %7697 = vmatprep.subr.bf16.mxu0 %v6218
    %7698 = vmatpush2.bf16.msra.mxu0 %v6217
    %7699 = vmatprep.subr.bf16.mxu0 %v6210
    %7700 = vmatpush2.bf16.msra.mxu0 %v6209
    %7701 = vmatprep.subr.bf16.mxu0 %v6202
    %7702 = vmatpush2.bf16.msra.mxu0 %v6201
    %7703 = vmatprep.mubr.bf16.mxu0 %v4034
    %7704 = vmatmul.mubr.bf16.gmra.mxu0 %v4033
    %v7705 = vpop.f32.mrf.mxu0
    %v7706 = vadd.f32 %v4582, %v7705
    %v7707 = vpop.f32.mrf.mxu0
    %v7708 = vadd.f32 %v4586, %v7707
    %v7709 = vpop.f32.mrf.mxu0
    %v7710 = vadd.f32 %v4582, %v7709
    %v7711 = vpop.f32.mrf.mxu0
    %v7712 = vadd.f32 %v4586, %v7711
    %7713 = vdwg.mxu0
    %7714 = vmatprep.subr.bf16.mxu0 %v6322
    %7715 = vmatpush1.bf16.msra.mxu0 %v6321
    %7716 = vmatprep.subr.bf16.mxu0 %v6314
    %7717 = vmatpush1.bf16.msra.mxu0 %v6313
    %7718 = vmatprep.subr.bf16.mxu0 %v6306
    %7719 = vmatpush1.bf16.msra.mxu0 %v6305
    %7720 = vmatprep.subr.bf16.mxu0 %v6298
    %7721 = vmatpush1.bf16.msra.mxu0 %v6297
    %7722 = vmatprep.subr.bf16.mxu0 %v6290
    %7723 = vmatpush1.bf16.msra.mxu0 %v6289
    %7724 = vmatprep.subr.bf16.mxu0 %v6282
    %7725 = vmatpush1.bf16.msra.mxu0 %v6281
    %7726 = vmatprep.subr.bf16.mxu0 %v6274
    %7727 = vmatpush1.bf16.msra.mxu0 %v6273
    %7728 = vmatprep.subr.bf16.mxu0 %v6266
    %7729 = vmatpush1.bf16.msra.mxu0 %v6265
    %7730 = vmatprep.subr.bf16.mxu0 %v6386
    %7731 = vmatpush2.bf16.msra.mxu0 %v6385
    %7732 = vmatprep.subr.bf16.mxu0 %v6378
    %7733 = vmatpush2.bf16.msra.mxu0 %v6377
    %7734 = vmatprep.subr.bf16.mxu0 %v6370
    %7735 = vmatpush2.bf16.msra.mxu0 %v6369
    %7736 = vmatprep.subr.bf16.mxu0 %v6362
    %7737 = vmatpush2.bf16.msra.mxu0 %v6361
    %7738 = vmatprep.subr.bf16.mxu0 %v6354
    %7739 = vmatpush2.bf16.msra.mxu0 %v6353
    %7740 = vmatprep.subr.bf16.mxu0 %v6346
    %7741 = vmatpush2.bf16.msra.mxu0 %v6345
    %7742 = vmatprep.subr.bf16.mxu0 %v6338
    %7743 = vmatpush2.bf16.msra.mxu0 %v6337
    %7744 = vmatprep.subr.bf16.mxu0 %v6330
    %7745 = vmatpush2.bf16.msra.mxu0 %v6329
    %7746 = vmatprep.mubr.bf16.mxu0 %v4036
    %7747 = vmatmul.mubr.bf16.gmra.mxu0 %v4035
    %v7748 = vpop.f32.mrf.mxu0
    %v7749 = vadd.f32 %v7706, %v7748
    %v7750 = vpop.f32.mrf.mxu0
    %v7751 = vadd.f32 %v7708, %v7750
    %v7752 = vpop.f32.mrf.mxu0
    %v7753 = vadd.f32 %v7710, %v7752
    %v7754 = vpop.f32.mrf.mxu0
    %v7755 = vadd.f32 %v7712, %v7754
    %7756 = vdwg.mxu0
    %7757 = vmatprep.subr.bf16.mxu0 %v6450
    %7758 = vmatpush1.bf16.msra.mxu0 %v6449
    %7759 = vmatprep.subr.bf16.mxu0 %v6442
    %7760 = vmatpush1.bf16.msra.mxu0 %v6441
    %7761 = vmatprep.subr.bf16.mxu0 %v6434
    %7762 = vmatpush1.bf16.msra.mxu0 %v6433
    %7763 = vmatprep.subr.bf16.mxu0 %v6426
    %7764 = vmatpush1.bf16.msra.mxu0 %v6425
    %7765 = vmatprep.subr.bf16.mxu0 %v6418
    %7766 = vmatpush1.bf16.msra.mxu0 %v6417
    %7767 = vmatprep.subr.bf16.mxu0 %v6410
    %7768 = vmatpush1.bf16.msra.mxu0 %v6409
    %7769 = vmatprep.subr.bf16.mxu0 %v6402
    %7770 = vmatpush1.bf16.msra.mxu0 %v6401
    %7771 = vmatprep.subr.bf16.mxu0 %v6394
    %7772 = vmatpush1.bf16.msra.mxu0 %v6393
    %7773 = vmatprep.subr.bf16.mxu0 %v6514
    %7774 = vmatpush2.bf16.msra.mxu0 %v6513
    %7775 = vmatprep.subr.bf16.mxu0 %v6506
    %7776 = vmatpush2.bf16.msra.mxu0 %v6505
    %7777 = vmatprep.subr.bf16.mxu0 %v6498
    %7778 = vmatpush2.bf16.msra.mxu0 %v6497
    %7779 = vmatprep.subr.bf16.mxu0 %v6490
    %7780 = vmatpush2.bf16.msra.mxu0 %v6489
    %7781 = vmatprep.subr.bf16.mxu0 %v6482
    %7782 = vmatpush2.bf16.msra.mxu0 %v6481
    %7783 = vmatprep.subr.bf16.mxu0 %v6474
    %7784 = vmatpush2.bf16.msra.mxu0 %v6473
    %7785 = vmatprep.subr.bf16.mxu0 %v6466
    %7786 = vmatpush2.bf16.msra.mxu0 %v6465
    %7787 = vmatprep.subr.bf16.mxu0 %v6458
    %7788 = vmatpush2.bf16.msra.mxu0 %v6457
    %7789 = vmatprep.mubr.bf16.mxu0 %v4038
    %7790 = vmatmul.mubr.bf16.gmra.mxu0 %v4037
    %v7791 = vpop.f32.mrf.mxu0
    %v7792 = vadd.f32 %v7749, %v7791
    %v7793 = vpop.f32.mrf.mxu0
    %v7794 = vadd.f32 %v7751, %v7793
    %v7795 = vpop.f32.mrf.mxu0
    %v7796 = vadd.f32 %v7753, %v7795
    %v7797 = vpop.f32.mrf.mxu0
    %v7798 = vadd.f32 %v7755, %v7797
    %7799 = vdwg.mxu0
    %7800 = vmatprep.subr.bf16.mxu0 %v6578
    %7801 = vmatpush1.bf16.msra.mxu0 %v6577
    %7802 = vmatprep.subr.bf16.mxu0 %v6570
    %7803 = vmatpush1.bf16.msra.mxu0 %v6569
    %7804 = vmatprep.subr.bf16.mxu0 %v6562
    %7805 = vmatpush1.bf16.msra.mxu0 %v6561
    %7806 = vmatprep.subr.bf16.mxu0 %v6554
    %7807 = vmatpush1.bf16.msra.mxu0 %v6553
    %7808 = vmatprep.subr.bf16.mxu0 %v6546
    %7809 = vmatpush1.bf16.msra.mxu0 %v6545
    %7810 = vmatprep.subr.bf16.mxu0 %v6538
    %7811 = vmatpush1.bf16.msra.mxu0 %v6537
    %7812 = vmatprep.subr.bf16.mxu0 %v6530
    %7813 = vmatpush1.bf16.msra.mxu0 %v6529
    %7814 = vmatprep.subr.bf16.mxu0 %v6522
    %7815 = vmatpush1.bf16.msra.mxu0 %v6521
    %7816 = vmatprep.subr.bf16.mxu0 %v6642
    %7817 = vmatpush2.bf16.msra.mxu0 %v6641
    %7818 = vmatprep.subr.bf16.mxu0 %v6634
    %7819 = vmatpush2.bf16.msra.mxu0 %v6633
    %7820 = vmatprep.subr.bf16.mxu0 %v6626
    %7821 = vmatpush2.bf16.msra.mxu0 %v6625
    %7822 = vmatprep.subr.bf16.mxu0 %v6618
    %7823 = vmatpush2.bf16.msra.mxu0 %v6617
    %7824 = vmatprep.subr.bf16.mxu0 %v6610
    %7825 = vmatpush2.bf16.msra.mxu0 %v6609
    %7826 = vmatprep.subr.bf16.mxu0 %v6602
    %7827 = vmatpush2.bf16.msra.mxu0 %v6601
    %7828 = vmatprep.subr.bf16.mxu0 %v6594
    %7829 = vmatpush2.bf16.msra.mxu0 %v6593
    %7830 = vmatprep.subr.bf16.mxu0 %v6586
    %7831 = vmatpush2.bf16.msra.mxu0 %v6585
    %7832 = vmatprep.mubr.bf16.mxu0 %v4040
    %7833 = vmatmul.mubr.bf16.gmra.mxu0 %v4039
    %v7834 = vpop.f32.mrf.mxu0
    %v7835 = vadd.f32 %v7792, %v7834
    %v7836 = vpop.f32.mrf.mxu0
    %v7837 = vadd.f32 %v7794, %v7836
    %v7838 = vpop.f32.mrf.mxu0
    %v7839 = vadd.f32 %v7796, %v7838
    %v7840 = vpop.f32.mrf.mxu0
    %v7841 = vadd.f32 %v7798, %v7840
    %7842 = vdwg.mxu0
    %7843 = vst [vmem:[%s17] sm:$0xff] %v7319
    %7844 = vst [vmem:[%s17 + $0x8] sm:$0xff] %v7321
    %7845 = vst [vmem:[%s17 + $0x10] sm:$0xff] %v7491
    %7846 = vst [vmem:[%s17 + $0x18] sm:$0xff] %v7493
    %7847 = vst [vmem:[%s17 + $0x20] sm:$0xff] %v7663
    %7848 = vst [vmem:[%s17 + $0x28] sm:$0xff] %v7665
    %7849 = vst [vmem:[%s17 + $0x30] sm:$0xff] %v7835
    %7850 = vst [vmem:[%s17 + $0x38] sm:$0xff] %v7837
    %7851 = vst [vmem:[%s17 + $0x40] sm:$0xff] %v7323
    %7852 = vst [vmem:[%s17 + $0x48] sm:$0xff] %v7325
    %7853 = vst [vmem:[%s17 + $0x50] sm:$0xff] %v7495
    %7854 = vst [vmem:[%s17 + $0x58] sm:$0xff] %v7497
    %7855 = vst [vmem:[%s17 + $0x60] sm:$0xff] %v7667
    %7856 = vst [vmem:[%s17 + $0x68] sm:$0xff] %v7669
    %7857 = vst [vmem:[%s17 + $0x70] sm:$0xff] %v7839
    %7858 = vst [vmem:[%s17 + $0x78] sm:$0xff] %v7841
    // Predicated region
    $region114: #{forward.1} parent=1 // pred_check
      _
    $region115: #{forward.1} parent=1 // pred_check_branch
      %7860 = sbr.rel (0) target = $region117
    $region116: #{forward.1} parent=1 // pred_region
      _
    $region117: #{forward.1} parent=1 // pred_fallthru
      _
    // Predicated region
    $region118: #{forward.1} parent=1 // pred_check
      _
    $region119: #{forward.1} parent=1 // pred_check_branch
      %7862 = sbr.rel (0) target = $region121
    $region120: #{forward.1} parent=1 // pred_region
      _
    $region121: #{forward.1} parent=1 // pred_fallthru
      _
    %7863 = vsyncpa [#allocation5], 1
    %7864 = vsyncpa [#allocation7], 1
    %7865 = vsyncpa [#allocation10], 1
    %7866 = vsyncpa [#allocation13], 1
    %7867 = vsyncpa [#allocation16], 1
    %7868 = vsyncpa [#allocation19], 1
  %7869 = vsyncmov [#allocation3]
  %s7870 = vpop.sfrf %7869
  %p7871 = scmp.eq.s32.totalorder %s7870, 0
  %p7872 = pneg %p7871
  %7874 = shalt.err (%p7872)

</llo_original>
